<compile_context>
chip_gen: v7x
topology: tpu7x:2x2x1
jax: 0.10.0
libtpu: 0.0.40
codegen_flags: <defaults>
</compile_context>

<pallas_src>
import jax
import jax.numpy as jnp
from jax.experimental import pallas as pl
from jax.experimental.pallas import tpu as pltpu


_VMEM = pl.BlockSpec(memory_space=pltpu.MemorySpace.VMEM)


# ----------------------------- Pallas kernels ------------------------------ #

def conv_pool_relu_kernel(c00_ref, c01_ref, c10_ref, c11_ref, w_ref, b_ref,
                          o_ref):
    """Fused conv (as im2col matmul) + bias + 2x2 max-pool + ReLU.

    c??: [R, C*k*k] bf16 im2col matrices, one per 2x2 pooling phase.
    w:   [C*k*k, OC] bf16.   b: [1, OC] f32.   o: [R, OC] f32.
    max_pool(conv + b) == max_pool(conv) + b, so bias is added once after max.
    """
    w = w_ref[...]
    y00 = jnp.dot(c00_ref[...], w, preferred_element_type=jnp.float32)
    y01 = jnp.dot(c01_ref[...], w, preferred_element_type=jnp.float32)
    y10 = jnp.dot(c10_ref[...], w, preferred_element_type=jnp.float32)
    y11 = jnp.dot(c11_ref[...], w, preferred_element_type=jnp.float32)
    y = jnp.maximum(jnp.maximum(y00, y01), jnp.maximum(y10, y11)) + b_ref[...]
    o_ref[...] = jnp.maximum(y, 0.0)


def mlp_head_kernel(x_ref, w1_ref, b1_ref, w2_ref, b2_ref,
                    rw1_ref, rb1_ref, rw2_ref, rb2_ref, rw3_ref, rb3_ref,
                    cat_ref, rec_ref):
    """Entire post-flatten head in one kernel; intermediates stay in VMEM/vregs.

    x: [N, 320] f32.  Weights bf16 [in, out], biases f32 [1, out].
    cat: [N, 10] log-softmax f32.  rec: [N, 784] sigmoid f32.
    """
    xb = x_ref[...].astype(jnp.bfloat16)

    # fc1 + ReLU  -> shared trunk [N, 50]
    h = jnp.dot(xb, w1_ref[...], preferred_element_type=jnp.float32)
    h = jnp.maximum(h + b1_ref[...], 0.0)
    hb = h.astype(jnp.bfloat16)
    # TODO(synk): F.dropout after fc1 (and after rfc1/rfc2, and Dropout2d after
    # conv2) are identity in eval/inference mode; training-mode stochastic
    # dropout (pltpu.prng_*) is not implemented.

    # fc2 + log_softmax (fused epilogue), f32 throughout.
    logits = jnp.dot(hb, w2_ref[...], preferred_element_type=jnp.float32)
    logits = logits + b2_ref[...]
    s = logits - jnp.max(logits, axis=-1, keepdims=True)
    cat_ref[...] = s - jnp.log(jnp.sum(jnp.exp(s), axis=-1, keepdims=True))

    # reconstruction head: rfc1+ReLU -> rfc2+ReLU -> rfc3+sigmoid
    r = jnp.dot(hb, rw1_ref[...], preferred_element_type=jnp.float32)
    r = jnp.maximum(r + rb1_ref[...], 0.0).astype(jnp.bfloat16)
    r = jnp.dot(r, rw2_ref[...], preferred_element_type=jnp.float32)
    r = jnp.maximum(r + rb2_ref[...], 0.0).astype(jnp.bfloat16)
    r = jnp.dot(r, rw3_ref[...], preferred_element_type=jnp.float32)
    r = r + rb3_ref[...]
    # numerically-stable sigmoid via tanh (EUP slot): sig(y)=0.5*(tanh(y/2)+1)
    rec_ref[...] = 0.5 * (jnp.tanh(0.5 * r) + 1.0)


# ----------------------------- wrappers ------------------------------------ #

def _im2col_pool_phases(x_nhwc, k):
    """Build 4 bf16 im2col matrices (one per 2x2 pool phase) from NHWC input.

    Column order is (c, ki, kj), matching the PyTorch Conv2d weight reshape
    [OC, C*K*K].  Returns ([4 x (N*POH*POW, C*k*k)], (n, poh, pow)).
    """
    n, h, w, c = x_nhwc.shape
    oh, ow = h - k + 1, w - k + 1
    poh, pow_ = oh // 2, ow // 2
    cols = []
    for ci in range(c):
        for ki in range(k):
            for kj in range(k):
                cols.append(x_nhwc[:, ki:ki + oh, kj:kj + ow, ci])
    cols = jnp.stack(cols, axis=-1)                    # [N, OH, OW, C*k*k]
    mats = [
        cols[:, p::2, q::2, :].reshape(n * poh * pow_, c * k * k)
            .astype(jnp.bfloat16)
        for p in range(2) for q in range(2)
    ]
    return mats, (n, poh, pow_)


def conv_pool_relu(x_nhwc, w_mat, b_row, k):
    """x: [N,H,W,C] f32, w_mat: [C*k*k, OC] bf16, b_row: [1, OC] f32.

    Returns relu(max_pool2x2(conv(x) + b)) as NHWC [N, H', W', OC] f32.
    """
    oc = w_mat.shape[1]
    mats, (n, poh, pow_) = _im2col_pool_phases(x_nhwc, k)
    r = n * poh * pow_
    out = pl.pallas_call(
        conv_pool_relu_kernel,
        out_shape=jax.ShapeDtypeStruct((r, oc), jnp.float32),
        in_specs=[_VMEM] * 6,
        out_specs=_VMEM,
    )(*mats, w_mat, b_row)
    return out.reshape(n, poh, pow_, oc)


def mlp_head(h, p):
    """h: [N, 320] f32 -> (category [N,10], recon [N,784])."""
    n = h.shape[0]
    return pl.pallas_call(
        mlp_head_kernel,
        out_shape=(jax.ShapeDtypeStruct((n, 10), jnp.float32),
                   jax.ShapeDtypeStruct((n, 28 * 28), jnp.float32)),
        in_specs=[_VMEM] * 11,
        out_specs=(_VMEM, _VMEM),
    )(h, p["fc1_w"], p["fc1_b"], p["fc2_w"], p["fc2_b"],
      p["rfc1_w"], p["rfc1_b"], p["rfc2_w"], p["rfc2_b"],
      p["rfc3_w"], p["rfc3_b"])


# ----------------------------- parameters ---------------------------------- #

def init_params(key):
    """Weights prepared once, at init, in matmul-ready layouts:
       conv:  [C*k*k, OC] bf16,  linear: [in, out] bf16,  biases: [1, out] f32.
    """
    ks = jax.random.split(key, 14)

    def u(k, shape, fan_in):
        bound = 1.0 / (fan_in ** 0.5)
        return jax.random.uniform(k, shape, jnp.float32, -bound, bound)

    p = {}
    w = u(ks[0], (10, 1, 5, 5), 25)
    p["conv1_w"] = w.reshape(10, 25).T.astype(jnp.bfloat16)       # [25, 10]
    p["conv1_b"] = u(ks[1], (1, 10), 25)
    w = u(ks[2], (20, 10, 5, 5), 250)
    p["conv2_w"] = w.reshape(20, 250).T.astype(jnp.bfloat16)      # [250, 20]
    p["conv2_b"] = u(ks[3], (1, 20), 250)

    def lin(kw, kb, fin, fout):
        return (u(kw, (fin, fout), fin).astype(jnp.bfloat16),
                u(kb, (1, fout), fin))

    p["fc1_w"],  p["fc1_b"]  = lin(ks[4],  ks[5],  320,  50)
    p["fc2_w"],  p["fc2_b"]  = lin(ks[6],  ks[7],  50,   10)
    p["rfc1_w"], p["rfc1_b"] = lin(ks[8],  ks[9],  50,   512)
    p["rfc2_w"], p["rfc2_b"] = lin(ks[10], ks[11], 512,  1024)
    p["rfc3_w"], p["rfc3_b"] = lin(ks[12], ks[13], 1024, 28 * 28)
    return p


# ------------------------------ forward ------------------------------------ #

def net_forward(params, x):
    """x: [N, 1, 28, 28] NCHW f32 -> [category [N,10], recon [N,784]]."""
    x = x.transpose(0, 2, 3, 1)                                    # -> NHWC
    h = conv_pool_relu(x, params["conv1_w"], params["conv1_b"], 5)  # [N,12,12,10]
    h = conv_pool_relu(h, params["conv2_w"], params["conv2_b"], 5)  # [N,4,4,20]
    # Flatten in (C, H, W) order to match torch's NCHW .view(-1, 320).
    h = h.transpose(0, 3, 1, 2).reshape(-1, 320)
    category, recon = mlp_head(h, params)
    return [category, recon]


if __name__ == "__main__":
    key = jax.random.PRNGKey(0)
    k_param, k_x = jax.random.split(key)
    params = init_params(k_param)
    x = jax.random.normal(k_x, (2, 1, 28, 28), jnp.float32)  # NCHW MNIST-shaped

    category, recon = jax.jit(net_forward)(params, x)
    jax.block_until_ready(category)
    jax.block_until_ready(recon)

    assert category.shape == (2, 10) and recon.shape == (2, 28 * 28)
    # log_softmax rows must sum (in prob space) to 1; sigmoid output in [0,1].
    assert jnp.allclose(jnp.exp(category).sum(-1), 1.0, atol=1e-4)
    assert bool(jnp.all((recon >= 0.0) & (recon <= 1.0)))
    print("KERNEL_OK")
</pallas_src>

<mosaic_0001>
module attributes {stable_mosaic.version = 11 : i64} {
  func.func @conv_pool_relu_kernel(%arg0: memref<288x25xbf16, #tpu.memory_space<vmem>>, %arg1: memref<288x25xbf16, #tpu.memory_space<vmem>>, %arg2: memref<288x25xbf16, #tpu.memory_space<vmem>>, %arg3: memref<288x25xbf16, #tpu.memory_space<vmem>>, %arg4: memref<25x10xbf16, #tpu.memory_space<vmem>>, %arg5: memref<1x10xf32, #tpu.memory_space<vmem>>, %arg6: memref<288x10xf32, #tpu.memory_space<vmem>>) attributes {dimension_semantics = [], scalar_prefetch = 0 : i64, scratch_operands = 0 : i64, tpu.core_type = #tpu.core_type<tc>} {
    %c0 = arith.constant 0 : index
    %c0_0 = arith.constant 0 : index
    %0 = vector.load %arg4[%c0, %c0_0] : memref<25x10xbf16, #tpu.memory_space<vmem>>, vector<25x10xbf16>
    %c0_1 = arith.constant 0 : index
    %c0_2 = arith.constant 0 : index
    %1 = vector.load %arg0[%c0_1, %c0_2] : memref<288x25xbf16, #tpu.memory_space<vmem>>, vector<288x25xbf16>
    %cst = arith.constant dense<0.000000e+00> : vector<288x10xf32>
    %2 = tpu.matmul %1, %0, %cst {dimension_numbers = #tpu.dot_dimension_numbers<[1], [0], [0], [1], [0, 0, 1, 1], [], []>} : vector<288x25xbf16>, vector<25x10xbf16>, vector<288x10xf32> -> vector<288x10xf32>
    %c0_3 = arith.constant 0 : index
    %c0_4 = arith.constant 0 : index
    %3 = vector.load %arg1[%c0_3, %c0_4] : memref<288x25xbf16, #tpu.memory_space<vmem>>, vector<288x25xbf16>
    %cst_5 = arith.constant dense<0.000000e+00> : vector<288x10xf32>
    %4 = tpu.matmul %3, %0, %cst_5 {dimension_numbers = #tpu.dot_dimension_numbers<[1], [0], [0], [1], [0, 0, 1, 1], [], []>} : vector<288x25xbf16>, vector<25x10xbf16>, vector<288x10xf32> -> vector<288x10xf32>
    %c0_6 = arith.constant 0 : index
    %c0_7 = arith.constant 0 : index
    %5 = vector.load %arg2[%c0_6, %c0_7] : memref<288x25xbf16, #tpu.memory_space<vmem>>, vector<288x25xbf16>
    %cst_8 = arith.constant dense<0.000000e+00> : vector<288x10xf32>
    %6 = tpu.matmul %5, %0, %cst_8 {dimension_numbers = #tpu.dot_dimension_numbers<[1], [0], [0], [1], [0, 0, 1, 1], [], []>} : vector<288x25xbf16>, vector<25x10xbf16>, vector<288x10xf32> -> vector<288x10xf32>
    %c0_9 = arith.constant 0 : index
    %c0_10 = arith.constant 0 : index
    %7 = vector.load %arg3[%c0_9, %c0_10] : memref<288x25xbf16, #tpu.memory_space<vmem>>, vector<288x25xbf16>
    %cst_11 = arith.constant dense<0.000000e+00> : vector<288x10xf32>
    %8 = tpu.matmul %7, %0, %cst_11 {dimension_numbers = #tpu.dot_dimension_numbers<[1], [0], [0], [1], [0, 0, 1, 1], [], []>} : vector<288x25xbf16>, vector<25x10xbf16>, vector<288x10xf32> -> vector<288x10xf32>
    %9 = arith.maximumf %2, %4 : vector<288x10xf32>
    %10 = arith.maximumf %6, %8 : vector<288x10xf32>
    %11 = arith.maximumf %9, %10 : vector<288x10xf32>
    %c0_12 = arith.constant 0 : index
    %c0_13 = arith.constant 0 : index
    %12 = vector.load %arg5[%c0_12, %c0_13] : memref<1x10xf32, #tpu.memory_space<vmem>>, vector<1x10xf32>
    %13 = vector.broadcast %12 : vector<1x10xf32> to vector<288x10xf32>
    %14 = arith.addf %11, %13 : vector<288x10xf32>
    %cst_14 = arith.constant 0.000000e+00 : f32
    %15 = vector.broadcast %cst_14 : f32 to vector<288x10xf32>
    %16 = arith.maximumf %14, %15 : vector<288x10xf32>
    %c0_15 = arith.constant 0 : index
    %c0_16 = arith.constant 0 : index
    %17 = vector.load %arg6[%c0_15, %c0_16] : memref<288x10xf32, #tpu.memory_space<vmem>>, vector<288x10xf32>
    tpu.vector_store %arg6[%c0_15, %c0_16], %16 {strides = array<i32>} : memref<288x10xf32, #tpu.memory_space<vmem>>, vector<288x10xf32>,
    return
  }
}

module attributes {stable_mosaic.version = 11 : i64} {
  func.func @conv_pool_relu_kernel(%arg0: memref<32x250xbf16, #tpu.memory_space<vmem>>, %arg1: memref<32x250xbf16, #tpu.memory_space<vmem>>, %arg2: memref<32x250xbf16, #tpu.memory_space<vmem>>, %arg3: memref<32x250xbf16, #tpu.memory_space<vmem>>, %arg4: memref<250x20xbf16, #tpu.memory_space<vmem>>, %arg5: memref<1x20xf32, #tpu.memory_space<vmem>>, %arg6: memref<32x20xf32, #tpu.memory_space<vmem>>) attributes {dimension_semantics = [], scalar_prefetch = 0 : i64, scratch_operands = 0 : i64, tpu.core_type = #tpu.core_type<tc>} {
    %c0 = arith.constant 0 : index
    %c0_0 = arith.constant 0 : index
    %0 = vector.load %arg4[%c0, %c0_0] : memref<250x20xbf16, #tpu.memory_space<vmem>>, vector<250x20xbf16>
    %c0_1 = arith.constant 0 : index
    %c0_2 = arith.constant 0 : index
    %1 = vector.load %arg0[%c0_1, %c0_2] : memref<32x250xbf16, #tpu.memory_space<vmem>>, vector<32x250xbf16>
    %cst = arith.constant dense<0.000000e+00> : vector<32x20xf32>
    %2 = tpu.matmul %1, %0, %cst {dimension_numbers = #tpu.dot_dimension_numbers<[1], [0], [0], [1], [0, 0, 1, 1], [], []>} : vector<32x250xbf16>, vector<250x20xbf16>, vector<32x20xf32> -> vector<32x20xf32>
    %c0_3 = arith.constant 0 : index
    %c0_4 = arith.constant 0 : index
    %3 = vector.load %arg1[%c0_3, %c0_4] : memref<32x250xbf16, #tpu.memory_space<vmem>>, vector<32x250xbf16>
    %cst_5 = arith.constant dense<0.000000e+00> : vector<32x20xf32>
    %4 = tpu.matmul %3, %0, %cst_5 {dimension_numbers = #tpu.dot_dimension_numbers<[1], [0], [0], [1], [0, 0, 1, 1], [], []>} : vector<32x250xbf16>, vector<250x20xbf16>, vector<32x20xf32> -> vector<32x20xf32>
    %c0_6 = arith.constant 0 : index
    %c0_7 = arith.constant 0 : index
    %5 = vector.load %arg2[%c0_6, %c0_7] : memref<32x250xbf16, #tpu.memory_space<vmem>>, vector<32x250xbf16>
    %cst_8 = arith.constant dense<0.000000e+00> : vector<32x20xf32>
    %6 = tpu.matmul %5, %0, %cst_8 {dimension_numbers = #tpu.dot_dimension_numbers<[1], [0], [0], [1], [0, 0, 1, 1], [], []>} : vector<32x250xbf16>, vector<250x20xbf16>, vector<32x20xf32> -> vector<32x20xf32>
    %c0_9 = arith.constant 0 : index
    %c0_10 = arith.constant 0 : index
    %7 = vector.load %arg3[%c0_9, %c0_10] : memref<32x250xbf16, #tpu.memory_space<vmem>>, vector<32x250xbf16>
    %cst_11 = arith.constant dense<0.000000e+00> : vector<32x20xf32>
    %8 = tpu.matmul %7, %0, %cst_11 {dimension_numbers = #tpu.dot_dimension_numbers<[1], [0], [0], [1], [0, 0, 1, 1], [], []>} : vector<32x250xbf16>, vector<250x20xbf16>, vector<32x20xf32> -> vector<32x20xf32>
    %9 = arith.maximumf %2, %4 : vector<32x20xf32>
    %10 = arith.maximumf %6, %8 : vector<32x20xf32>
    %11 = arith.maximumf %9, %10 : vector<32x20xf32>
    %c0_12 = arith.constant 0 : index
    %c0_13 = arith.constant 0 : index
    %12 = vector.load %arg5[%c0_12, %c0_13] : memref<1x20xf32, #tpu.memory_space<vmem>>, vector<1x20xf32>
    %13 = vector.broadcast %12 : vector<1x20xf32> to vector<32x20xf32>
    %14 = arith.addf %11, %13 : vector<32x20xf32>
    %cst_14 = arith.constant 0.000000e+00 : f32
    %15 = vector.broadcast %cst_14 : f32 to vector<32x20xf32>
    %16 = arith.maximumf %14, %15 : vector<32x20xf32>
    %c0_15 = arith.constant 0 : index
    %c0_16 = arith.constant 0 : index
    %17 = vector.load %arg6[%c0_15, %c0_16] : memref<32x20xf32, #tpu.memory_space<vmem>>, vector<32x20xf32>
    tpu.vector_store %arg6[%c0_15, %c0_16], %16 {strides = array<i32>} : memref<32x20xf32, #tpu.memory_space<vmem>>, vector<32x20xf32>,
    return
  }
}

module attributes {stable_mosaic.version = 11 : i64} {
  func.func @mlp_head_kernel(%arg0: memref<2x320xf32, #tpu.memory_space<vmem>>, %arg1: memref<320x50xbf16, #tpu.memory_space<vmem>>, %arg2: memref<1x50xf32, #tpu.memory_space<vmem>>, %arg3: memref<50x10xbf16, #tpu.memory_space<vmem>>, %arg4: memref<1x10xf32, #tpu.memory_space<vmem>>, %arg5: memref<50x512xbf16, #tpu.memory_space<vmem>>, %arg6: memref<1x512xf32, #tpu.memory_space<vmem>>, %arg7: memref<512x1024xbf16, #tpu.memory_space<vmem>>, %arg8: memref<1x1024xf32, #tpu.memory_space<vmem>>, %arg9: memref<1024x784xbf16, #tpu.memory_space<vmem>>, %arg10: memref<1x784xf32, #tpu.memory_space<vmem>>, %arg11: memref<2x10xf32, #tpu.memory_space<vmem>>, %arg12: memref<2x784xf32, #tpu.memory_space<vmem>>) attributes {dimension_semantics = [], scalar_prefetch = 0 : i64, scratch_operands = 0 : i64, tpu.core_type = #tpu.core_type<tc>} {
    %c0 = arith.constant 0 : index
    %c0_0 = arith.constant 0 : index
    %0 = vector.load %arg0[%c0, %c0_0] : memref<2x320xf32, #tpu.memory_space<vmem>>, vector<2x320xf32>
    %1 = arith.truncf %0 : vector<2x320xf32> to vector<2x320xbf16>
    %c0_1 = arith.constant 0 : index
    %c0_2 = arith.constant 0 : index
    %2 = vector.load %arg1[%c0_1, %c0_2] : memref<320x50xbf16, #tpu.memory_space<vmem>>, vector<320x50xbf16>
    %cst = arith.constant dense<0.000000e+00> : vector<2x50xf32>
    %3 = tpu.matmul %1, %2, %cst {dimension_numbers = #tpu.dot_dimension_numbers<[1], [0], [0], [1], [0, 0, 1, 1], [], []>} : vector<2x320xbf16>, vector<320x50xbf16>, vector<2x50xf32> -> vector<2x50xf32>
    %c0_3 = arith.constant 0 : index
    %c0_4 = arith.constant 0 : index
    %4 = vector.load %arg2[%c0_3, %c0_4] : memref<1x50xf32, #tpu.memory_space<vmem>>, vector<1x50xf32>
    %5 = vector.broadcast %4 : vector<1x50xf32> to vector<2x50xf32>
    %6 = arith.addf %3, %5 : vector<2x50xf32>
    %cst_5 = arith.constant 0.000000e+00 : f32
    %7 = vector.broadcast %cst_5 : f32 to vector<2x50xf32>
    %8 = arith.maximumf %6, %7 : vector<2x50xf32>
    %9 = arith.truncf %8 : vector<2x50xf32> to vector<2x50xbf16>
    %c0_6 = arith.constant 0 : index
    %c0_7 = arith.constant 0 : index
    %10 = vector.load %arg3[%c0_6, %c0_7] : memref<50x10xbf16, #tpu.memory_space<vmem>>, vector<50x10xbf16>
    %cst_8 = arith.constant dense<0.000000e+00> : vector<2x10xf32>
    %11 = tpu.matmul %9, %10, %cst_8 {dimension_numbers = #tpu.dot_dimension_numbers<[1], [0], [0], [1], [0, 0, 1, 1], [], []>} : vector<2x50xbf16>, vector<50x10xbf16>, vector<2x10xf32> -> vector<2x10xf32>
    %c0_9 = arith.constant 0 : index
    %c0_10 = arith.constant 0 : index
    %12 = vector.load %arg4[%c0_9, %c0_10] : memref<1x10xf32, #tpu.memory_space<vmem>>, vector<1x10xf32>
    %13 = vector.broadcast %12 : vector<1x10xf32> to vector<2x10xf32>
    %14 = arith.addf %11, %13 : vector<2x10xf32>
    %cst_11 = arith.constant dense<0xFF800000> : vector<2xf32>
    %15 = vector.multi_reduction <maximumf>, %14, %cst_11 [1] : vector<2x10xf32> to vector<2xf32>
    %16 = vector.shape_cast %15 : vector<2xf32> to vector<2x1xf32>
    %17 = vector.broadcast %16 : vector<2x1xf32> to vector<2x10xf32>
    %18 = arith.subf %14, %17 : vector<2x10xf32>
    %19 = math.exp %18 : vector<2x10xf32>
    %cst_12 = arith.constant dense<0.000000e+00> : vector<2xf32>
    %20 = vector.multi_reduction <add>, %19, %cst_12 [1] : vector<2x10xf32> to vector<2xf32>
    %21 = vector.shape_cast %20 : vector<2xf32> to vector<2x1xf32>
    %22 = math.log %21 : vector<2x1xf32>
    %23 = vector.broadcast %22 : vector<2x1xf32> to vector<2x10xf32>
    %24 = arith.subf %18, %23 : vector<2x10xf32>
    %c0_13 = arith.constant 0 : index
    %c0_14 = arith.constant 0 : index
    %25 = vector.load %arg11[%c0_13, %c0_14] : memref<2x10xf32, #tpu.memory_space<vmem>>, vector<2x10xf32>
    tpu.vector_store %arg11[%c0_13, %c0_14], %24 {strides = array<i32>} : memref<2x10xf32, #tpu.memory_space<vmem>>, vector<2x10xf32>,
    %c0_15 = arith.constant 0 : index
    %c0_16 = arith.constant 0 : index
    %26 = vector.load %arg5[%c0_15, %c0_16] : memref<50x512xbf16, #tpu.memory_space<vmem>>, vector<50x512xbf16>
    %cst_17 = arith.constant dense<0.000000e+00> : vector<2x512xf32>
    %27 = tpu.matmul %9, %26, %cst_17 {dimension_numbers = #tpu.dot_dimension_numbers<[1], [0], [0], [1], [0, 0, 1, 1], [], []>} : vector<2x50xbf16>, vector<50x512xbf16>, vector<2x512xf32> -> vector<2x512xf32>
    %c0_18 = arith.constant 0 : index
    %c0_19 = arith.constant 0 : index
    %28 = vector.load %arg6[%c0_18, %c0_19] : memref<1x512xf32, #tpu.memory_space<vmem>>, vector<1x512xf32>
    %29 = vector.broadcast %28 : vector<1x512xf32> to vector<2x512xf32>
    %30 = arith.addf %27, %29 : vector<2x512xf32>
    %cst_20 = arith.constant 0.000000e+00 : f32
    %31 = vector.broadcast %cst_20 : f32 to vector<2x512xf32>
    %32 = arith.maximumf %30, %31 : vector<2x512xf32>
    %33 = arith.truncf %32 : vector<2x512xf32> to vector<2x512xbf16>
    %c0_21 = arith.constant 0 : index
    %c0_22 = arith.constant 0 : index
    %34 = vector.load %arg7[%c0_21, %c0_22] : memref<512x1024xbf16, #tpu.memory_space<vmem>>, vector<512x1024xbf16>
    %cst_23 = arith.constant dense<0.000000e+00> : vector<2x1024xf32>
    %35 = tpu.matmul %33, %34, %cst_23 {dimension_numbers = #tpu.dot_dimension_numbers<[1], [0], [0], [1], [0, 0, 1, 1], [], []>} : vector<2x512xbf16>, vector<512x1024xbf16>, vector<2x1024xf32> -> vector<2x1024xf32>
    %c0_24 = arith.constant 0 : index
    %c0_25 = arith.constant 0 : index
    %36 = vector.load %arg8[%c0_24, %c0_25] : memref<1x1024xf32, #tpu.memory_space<vmem>>, vector<1x1024xf32>
    %37 = vector.broadcast %36 : vector<1x1024xf32> to vector<2x1024xf32>
    %38 = arith.addf %35, %37 : vector<2x1024xf32>
    %cst_26 = arith.constant 0.000000e+00 : f32
    %39 = vector.broadcast %cst_26 : f32 to vector<2x1024xf32>
    %40 = arith.maximumf %38, %39 : vector<2x1024xf32>
    %41 = arith.truncf %40 : vector<2x1024xf32> to vector<2x1024xbf16>
    %c0_27 = arith.constant 0 : index
    %c0_28 = arith.constant 0 : index
    %42 = vector.load %arg9[%c0_27, %c0_28] : memref<1024x784xbf16, #tpu.memory_space<vmem>>, vector<1024x784xbf16>
    %cst_29 = arith.constant dense<0.000000e+00> : vector<2x784xf32>
    %43 = tpu.matmul %41, %42, %cst_29 {dimension_numbers = #tpu.dot_dimension_numbers<[1], [0], [0], [1], [0, 0, 1, 1], [], []>} : vector<2x1024xbf16>, vector<1024x784xbf16>, vector<2x784xf32> -> vector<2x784xf32>
    %c0_30 = arith.constant 0 : index
    %c0_31 = arith.constant 0 : index
    %44 = vector.load %arg10[%c0_30, %c0_31] : memref<1x784xf32, #tpu.memory_space<vmem>>, vector<1x784xf32>
    %45 = vector.broadcast %44 : vector<1x784xf32> to vector<2x784xf32>
    %46 = arith.addf %43, %45 : vector<2x784xf32>
    %cst_32 = arith.constant 5.000000e-01 : f32
    %47 = vector.broadcast %cst_32 : f32 to vector<2x784xf32>
    %48 = arith.mulf %47, %46 : vector<2x784xf32>
    %49 = math.tanh %48 : vector<2x784xf32>
    %cst_33 = arith.constant 1.000000e+00 : f32
    %50 = vector.broadcast %cst_33 : f32 to vector<2x784xf32>
    %51 = arith.addf %49, %50 : vector<2x784xf32>
    %cst_34 = arith.constant 5.000000e-01 : f32
    %52 = vector.broadcast %cst_34 : f32 to vector<2x784xf32>
    %53 = arith.mulf %52, %51 : vector<2x784xf32>
    %c0_35 = arith.constant 0 : index
    %c0_36 = arith.constant 0 : index
    %54 = vector.load %arg12[%c0_35, %c0_36] : memref<2x784xf32, #tpu.memory_space<vmem>>, vector<2x784xf32>
    tpu.vector_store %arg12[%c0_35, %c0_36], %53 {strides = array<i32>} : memref<2x784xf32, #tpu.memory_space<vmem>>, vector<2x784xf32>,
    return
  }
}

</mosaic_0001>

<llo_original>
// kernel: net_forward.3
$region0: #{net_forward.3}
  #allocation0 [shape = 'u32[]', space=smem, size = 0x4, offset = 0x4, fixed_abs, tag = 'smem constant byte address 0x4 - core index']
  #allocation1 [shape = 'u32[144,128]{1,0:T(1,128)}', space=vmem, size = 0x12000, scoped, tag = 'internal scratch']
  %s0 = inlined_call_operand.vmem [shape: bf16[288,25], index: 0, kind: input, shape index: {}]
  %s1 = inlined_call_operand.vmem [shape: bf16[288,25], index: 1, kind: input, shape index: {}]
  %s2 = inlined_call_operand.vmem [shape: bf16[288,25], index: 2, kind: input, shape index: {}]
  %s3 = inlined_call_operand.vmem [shape: bf16[288,25], index: 3, kind: input, shape index: {}]
  %s4 = inlined_call_operand.vmem [shape: bf16[25,10], index: 4, kind: input, shape index: {}]
  %s5 = inlined_call_operand.vmem [shape: f32[1,10], index: 5, kind: input, shape index: {}]
  %s6 = inlined_call_operand.vmem [shape: f32[288,10], index: 6, kind: output, shape index: {}]
  %s7 = sld [smem:[#allocation0]]
  $region34: #{net_forward.3} parent=0
    _
  %s9 = ssub.s32 1, %s7
  %s10 = scalar_select 0, %s9, %s7
  // Predicated region
  $region2: #{net_forward.3} parent=0 // pred_check
    _
  $region3: #{net_forward.3} parent=0 // pred_check_branch
    %12 = sbr.rel (0) target = $region5
  $region4: #{net_forward.3} parent=0 // pred_region
    _
  $region5: #{net_forward.3} parent=0 // pred_fallthru
    _
  // Predicated region
  $region6: #{net_forward.3} parent=0 // pred_check
    _
  $region7: #{net_forward.3} parent=0 // pred_check_branch
    %14 = sbr.rel (0) target = $region9
  $region8: #{net_forward.3} parent=0 // pred_region
    _
  $region9: #{net_forward.3} parent=0 // pred_fallthru
    _
  // Predicated region
  $region10: #{net_forward.3} parent=0 // pred_check
    _
  $region11: #{net_forward.3} parent=0 // pred_check_branch
    %16 = sbr.rel (0) target = $region13
  $region12: #{net_forward.3} parent=0 // pred_region
    _
  $region13: #{net_forward.3} parent=0 // pred_fallthru
    _
  // Predicated region
  $region14: #{net_forward.3} parent=0 // pred_check
    _
  $region15: #{net_forward.3} parent=0 // pred_check_branch
    %18 = sbr.rel (0) target = $region17
  $region16: #{net_forward.3} parent=0 // pred_region
    _
  $region17: #{net_forward.3} parent=0 // pred_fallthru
    _
  // Predicated region
  $region18: #{net_forward.3} parent=0 // pred_check
    _
  $region19: #{net_forward.3} parent=0 // pred_check_branch
    %20 = sbr.rel (0) target = $region21
  $region20: #{net_forward.3} parent=0 // pred_region
    _
  $region21: #{net_forward.3} parent=0 // pred_fallthru
    _
  // Predicated region
  $region22: #{net_forward.3} parent=0 // pred_check
    _
  $region23: #{net_forward.3} parent=0 // pred_check_branch
    %22 = sbr.rel (0) target = $region25
  $region24: #{net_forward.3} parent=0 // pred_region
    _
  $region25: #{net_forward.3} parent=0 // pred_fallthru
    _
  %v24 = vld [vmem:[%s4] sm:$0xf]
  %v25 = vld [vmem:[%s4 + $0x4] sm:$0xf]
  %v26 = vld [vmem:[%s4 + $0x8] sm:$0xf]
  %v27 = vld [vmem:[%s4 + $0xc] sm:$0x1]
  %v28 = vld [vmem:[%s0] sm:$0xf]
  %v29 = vld [vmem:[%s0 + $0x4] sm:$0xf]
  %v30 = vld [vmem:[%s0 + $0x8] sm:$0xf]
  %v31 = vld [vmem:[%s0 + $0xc] sm:$0xf]
  %v32 = vld [vmem:[%s0 + $0x10] sm:$0xf]
  %v33 = vld [vmem:[%s0 + $0x14] sm:$0xf]
  %v34 = vld [vmem:[%s0 + $0x18] sm:$0xf]
  %v35 = vld [vmem:[%s0 + $0x1c] sm:$0xf]
  %v36 = vld [vmem:[%s0 + $0x20] sm:$0xf]
  %v37 = vld [vmem:[%s0 + $0x24] sm:$0xf]
  %v38 = vld [vmem:[%s0 + $0x28] sm:$0xf]
  %v39 = vld [vmem:[%s0 + $0x2c] sm:$0xf]
  %v40 = vld [vmem:[%s0 + $0x30] sm:$0xf]
  %v41 = vld [vmem:[%s0 + $0x34] sm:$0xf]
  %v42 = vld [vmem:[%s0 + $0x38] sm:$0xf]
  %v43 = vld [vmem:[%s0 + $0x3c] sm:$0xf]
  %v44 = vld [vmem:[%s0 + $0x40] sm:$0xf]
  %v45 = vld [vmem:[%s0 + $0x44] sm:$0xf]
  %v46 = vld [vmem:[%s0 + $0x48] sm:$0xf]
  %v47 = vld [vmem:[%s0 + $0x4c] sm:$0xf]
  %v48 = vld [vmem:[%s0 + $0x50] sm:$0xf]
  %v49 = vld [vmem:[%s0 + $0x54] sm:$0xf]
  %v50 = vld [vmem:[%s0 + $0x58] sm:$0xf]
  %v51 = vld [vmem:[%s0 + $0x5c] sm:$0xf]
  %v52 = vld [vmem:[%s0 + $0x60] sm:$0xf]
  %v53 = vld [vmem:[%s0 + $0x64] sm:$0xf]
  %v54 = vld [vmem:[%s0 + $0x68] sm:$0xf]
  %v55 = vld [vmem:[%s0 + $0x6c] sm:$0xf]
  %v56 = vld [vmem:[%s0 + $0x70] sm:$0xf]
  %v57 = vld [vmem:[%s0 + $0x74] sm:$0xf]
  %v58 = vld [vmem:[%s0 + $0x78] sm:$0xf]
  %v59 = vld [vmem:[%s0 + $0x7c] sm:$0xf]
  %v60 = vld [vmem:[%s0 + $0x80] sm:$0xf]
  %v61 = vld [vmem:[%s0 + $0x84] sm:$0xf]
  %v62 = vld [vmem:[%s0 + $0x88] sm:$0xf]
  %v63 = vld [vmem:[%s0 + $0x8c] sm:$0xf]
  %v100 = vunpack.c.l.b16 %v28
  %v101 = vunpack.c.l.b16 %v29
  %v102 = vunpack.c.l.b16 %v30
  %v103 = vunpack.c.l.b16 %v31
  %v104 = vunpack.c.l.b16 %v32
  %v105 = vunpack.c.l.b16 %v33
  %v106 = vunpack.c.l.b16 %v34
  %v107 = vunpack.c.l.b16 %v35
  %v108 = vunpack.c.l.b16 %v36
  %v109 = vunpack.c.l.b16 %v37
  %v110 = vunpack.c.l.b16 %v38
  %v111 = vunpack.c.l.b16 %v39
  %v112 = vunpack.c.l.b16 %v40
  %v113 = vunpack.c.l.b16 %v41
  %v114 = vunpack.c.l.b16 %v42
  %v115 = vunpack.c.l.b16 %v43
  %v116 = vunpack.c.l.b16 %v44
  %v117 = vunpack.c.l.b16 %v45
  %v118 = vunpack.c.l.b16 %v46
  %v119 = vunpack.c.l.b16 %v47
  %v120 = vunpack.c.l.b16 %v48
  %v121 = vunpack.c.l.b16 %v49
  %v122 = vunpack.c.l.b16 %v50
  %v123 = vunpack.c.l.b16 %v51
  %v124 = vunpack.c.l.b16 %v52
  %v125 = vunpack.c.l.b16 %v53
  %v126 = vunpack.c.l.b16 %v54
  %v127 = vunpack.c.l.b16 %v55
  %v128 = vunpack.c.l.b16 %v56
  %v129 = vunpack.c.l.b16 %v57
  %v130 = vunpack.c.l.b16 %v58
  %v131 = vunpack.c.l.b16 %v59
  %v132 = vunpack.c.l.b16 %v60
  %v133 = vunpack.c.l.b16 %v61
  %v134 = vunpack.c.l.b16 %v62
  %v135 = vunpack.c.l.b16 %v63
  %v136 = vpack.c.b16 %v101, %v100
  %v137 = vpack.c.b16 %v103, %v102
  %v138 = vpack.c.b16 %v105, %v104
  %v139 = vpack.c.b16 %v107, %v106
  %v140 = vpack.c.b16 %v109, %v108
  %v141 = vpack.c.b16 %v111, %v110
  %v142 = vpack.c.b16 %v113, %v112
  %v143 = vpack.c.b16 %v115, %v114
  %v144 = vpack.c.b16 %v117, %v116
  %v145 = vpack.c.b16 %v119, %v118
  %v146 = vpack.c.b16 %v121, %v120
  %v147 = vpack.c.b16 %v123, %v122
  %v148 = vpack.c.b16 %v125, %v124
  %v149 = vpack.c.b16 %v127, %v126
  %v150 = vpack.c.b16 %v129, %v128
  %v151 = vpack.c.b16 %v131, %v130
  %v152 = vpack.c.b16 %v133, %v132
  %v153 = vpack.c.b16 %v135, %v134
  %v158 = vunpack.c.l.b16 %v24
  %v159 = vunpack.c.l.b16 %v25
  %v160 = vunpack.c.l.b16 %v26
  %v161 = vunpack.c.l.b16 %v27
  %v162 = vpack.c.b16 %v159, %v158
  %v163 = vpack.c.b16 %v161, %v160
  %vm165 = vcmask 203776
  %v167 = vsel %vm165, %v136, 0
  %v170 = vsel %vm165, %v137, 0
  %v173 = vsel %vm165, %v138, 0
  %v176 = vsel %vm165, %v139, 0
  %v179 = vsel %vm165, %v140, 0
  %v182 = vsel %vm165, %v141, 0
  %v185 = vsel %vm165, %v142, 0
  %v188 = vsel %vm165, %v143, 0
  %v191 = vsel %vm165, %v144, 0
  %v194 = vsel %vm165, %v145, 0
  %v197 = vsel %vm165, %v146, 0
  %v200 = vsel %vm165, %v147, 0
  %v203 = vsel %vm165, %v148, 0
  %v206 = vsel %vm165, %v149, 0
  %v209 = vsel %vm165, %v150, 0
  %v212 = vsel %vm165, %v151, 0
  %v215 = vsel %vm165, %v152, 0
  %v218 = vsel %vm165, %v153, 0
  %vm220 = vcmask 1043456
  %vm221 = vcmask 1044480
  %v222 = vsel %vm220, 4294967295, 65535
  %v223 = vsel %vm221, %v222, 0
  %v225 = vand.u32 %v163, %v223
  %227 = vmatprep.subr.bf16.mxu0 0
  %228 = vmatpush1.bf16.msra.mxu0 %v162
  %229 = vmatprep.subr.bf16.mxu0 0
  %230 = vmatpush1.bf16.msra.mxu0 %v225
  %231 = vmatprep.subr.bf16.mxu0 0
  %232 = vmatpush1.bf16.msra.mxu0 0
  %233 = vmatprep.subr.bf16.mxu0 0
  %234 = vmatpush1.bf16.msra.mxu0 0
  %235 = vmatprep.subr.bf16.mxu0 0
  %236 = vmatpush1.bf16.msra.mxu0 0
  %237 = vmatprep.subr.bf16.mxu0 0
  %238 = vmatpush1.bf16.msra.mxu0 0
  %239 = vmatprep.subr.bf16.mxu0 0
  %240 = vmatpush1.bf16.msra.mxu0 0
  %241 = vmatprep.subr.bf16.mxu0 0
  %242 = vmatpush1.bf16.msra.mxu0 0
  %243 = vmatprep.subr.bf16.mxu0 0
  %244 = vmatpush1.bf16.msra.mxu0 0
  %245 = vmatprep.subr.bf16.mxu0 0
  %246 = vmatpush1.bf16.msra.mxu0 0
  %247 = vmatprep.subr.bf16.mxu0 0
  %248 = vmatpush1.bf16.msra.mxu0 0
  %249 = vmatprep.subr.bf16.mxu0 0
  %250 = vmatpush1.bf16.msra.mxu0 0
  %251 = vmatprep.subr.bf16.mxu0 0
  %252 = vmatpush1.bf16.msra.mxu0 0
  %253 = vmatprep.subr.bf16.mxu0 0
  %254 = vmatpush1.bf16.msra.mxu0 0
  %255 = vmatprep.subr.bf16.mxu0 0
  %256 = vmatpush1.bf16.msra.mxu0 0
  %257 = vmatprep.subr.bf16.mxu0 0
  %258 = vmatpush1.bf16.msra.mxu0 0
  %259 = vmatprep.mubr.bf16.mxu0 0
  %260 = vmatmul.mubr.bf16.gmra.mrb[0].mxu0 %v167
  %v261 = vpop.f32.mrb[0].mxu0
  %v262 = vadd.f32 0.0, %v261
  %v263 = vpop.f32.mrb[0].mxu0
  %v264 = vpop.f32.mrb[0].mxu0
  %v265 = vadd.f32 0.0, %v264
  %v266 = vpop.f32.mrb[0].mxu0
  %267 = vmatprep.mubr.bf16.mxu0 0
  %268 = vmatmul.mubr.bf16.gmra.mrb[0].mxu0 %v170
  %v269 = vpop.f32.mrb[0].mxu0
  %v270 = vadd.f32 0.0, %v269
  %v271 = vpop.f32.mrb[0].mxu0
  %v272 = vpop.f32.mrb[0].mxu0
  %v273 = vadd.f32 0.0, %v272
  %v274 = vpop.f32.mrb[0].mxu0
  %275 = vmatprep.mubr.bf16.mxu0 0
  %276 = vmatmul.mubr.bf16.gmra.mrb[0].mxu0 %v173
  %v277 = vpop.f32.mrb[0].mxu0
  %v278 = vadd.f32 0.0, %v277
  %v279 = vpop.f32.mrb[0].mxu0
  %v280 = vpop.f32.mrb[0].mxu0
  %v281 = vadd.f32 0.0, %v280
  %v282 = vpop.f32.mrb[0].mxu0
  %283 = vmatprep.mubr.bf16.mxu0 0
  %284 = vmatmul.mubr.bf16.gmra.mrb[0].mxu0 %v176
  %v285 = vpop.f32.mrb[0].mxu0
  %v286 = vadd.f32 0.0, %v285
  %v287 = vpop.f32.mrb[0].mxu0
  %v288 = vpop.f32.mrb[0].mxu0
  %v289 = vadd.f32 0.0, %v288
  %v290 = vpop.f32.mrb[0].mxu0
  %291 = vmatprep.mubr.bf16.mxu0 0
  %292 = vmatmul.mubr.bf16.gmra.mrb[0].mxu0 %v179
  %v293 = vpop.f32.mrb[0].mxu0
  %v294 = vadd.f32 0.0, %v293
  %v295 = vpop.f32.mrb[0].mxu0
  %v296 = vpop.f32.mrb[0].mxu0
  %v297 = vadd.f32 0.0, %v296
  %v298 = vpop.f32.mrb[0].mxu0
  %299 = vmatprep.mubr.bf16.mxu0 0
  %300 = vmatmul.mubr.bf16.gmra.mrb[0].mxu0 %v182
  %v301 = vpop.f32.mrb[0].mxu0
  %v302 = vadd.f32 0.0, %v301
  %v303 = vpop.f32.mrb[0].mxu0
  %v304 = vpop.f32.mrb[0].mxu0
  %v305 = vadd.f32 0.0, %v304
  %v306 = vpop.f32.mrb[0].mxu0
  %307 = vmatprep.mubr.bf16.mxu0 0
  %308 = vmatmul.mubr.bf16.gmra.mrb[0].mxu0 %v185
  %v309 = vpop.f32.mrb[0].mxu0
  %v310 = vadd.f32 0.0, %v309
  %v311 = vpop.f32.mrb[0].mxu0
  %v312 = vpop.f32.mrb[0].mxu0
  %v313 = vadd.f32 0.0, %v312
  %v314 = vpop.f32.mrb[0].mxu0
  %315 = vmatprep.mubr.bf16.mxu0 0
  %316 = vmatmul.mubr.bf16.gmra.mrb[0].mxu0 %v188
  %v317 = vpop.f32.mrb[0].mxu0
  %v318 = vadd.f32 0.0, %v317
  %v319 = vpop.f32.mrb[0].mxu0
  %v320 = vpop.f32.mrb[0].mxu0
  %v321 = vadd.f32 0.0, %v320
  %v322 = vpop.f32.mrb[0].mxu0
  %323 = vmatprep.mubr.bf16.mxu0 0
  %324 = vmatmul.mubr.bf16.gmra.mrb[0].mxu0 %v191
  %v325 = vpop.f32.mrb[0].mxu0
  %v326 = vadd.f32 0.0, %v325
  %v327 = vpop.f32.mrb[0].mxu0
  %v328 = vpop.f32.mrb[0].mxu0
  %v329 = vadd.f32 0.0, %v328
  %v330 = vpop.f32.mrb[0].mxu0
  %331 = vmatprep.mubr.bf16.mxu0 0
  %332 = vmatmul.mubr.bf16.gmra.mrb[0].mxu0 %v194
  %v333 = vpop.f32.mrb[0].mxu0
  %v334 = vadd.f32 0.0, %v333
  %v335 = vpop.f32.mrb[0].mxu0
  %v336 = vpop.f32.mrb[0].mxu0
  %v337 = vadd.f32 0.0, %v336
  %v338 = vpop.f32.mrb[0].mxu0
  %339 = vmatprep.mubr.bf16.mxu0 0
  %340 = vmatmul.mubr.bf16.gmra.mrb[0].mxu0 %v197
  %v341 = vpop.f32.mrb[0].mxu0
  %v342 = vadd.f32 0.0, %v341
  %v343 = vpop.f32.mrb[0].mxu0
  %v344 = vpop.f32.mrb[0].mxu0
  %v345 = vadd.f32 0.0, %v344
  %v346 = vpop.f32.mrb[0].mxu0
  %347 = vmatprep.mubr.bf16.mxu0 0
  %348 = vmatmul.mubr.bf16.gmra.mrb[0].mxu0 %v200
  %v349 = vpop.f32.mrb[0].mxu0
  %v350 = vadd.f32 0.0, %v349
  %v351 = vpop.f32.mrb[0].mxu0
  %v352 = vpop.f32.mrb[0].mxu0
  %v353 = vadd.f32 0.0, %v352
  %v354 = vpop.f32.mrb[0].mxu0
  %355 = vmatprep.mubr.bf16.mxu0 0
  %356 = vmatmul.mubr.bf16.gmra.mrb[0].mxu0 %v203
  %v357 = vpop.f32.mrb[0].mxu0
  %v358 = vadd.f32 0.0, %v357
  %v359 = vpop.f32.mrb[0].mxu0
  %v360 = vpop.f32.mrb[0].mxu0
  %v361 = vadd.f32 0.0, %v360
  %v362 = vpop.f32.mrb[0].mxu0
  %363 = vmatprep.mubr.bf16.mxu0 0
  %364 = vmatmul.mubr.bf16.gmra.mrb[0].mxu0 %v206
  %v365 = vpop.f32.mrb[0].mxu0
  %v366 = vadd.f32 0.0, %v365
  %v367 = vpop.f32.mrb[0].mxu0
  %v368 = vpop.f32.mrb[0].mxu0
  %v369 = vadd.f32 0.0, %v368
  %v370 = vpop.f32.mrb[0].mxu0
  %371 = vmatprep.mubr.bf16.mxu0 0
  %372 = vmatmul.mubr.bf16.gmra.mrb[0].mxu0 %v209
  %v373 = vpop.f32.mrb[0].mxu0
  %v374 = vadd.f32 0.0, %v373
  %v375 = vpop.f32.mrb[0].mxu0
  %v376 = vpop.f32.mrb[0].mxu0
  %v377 = vadd.f32 0.0, %v376
  %v378 = vpop.f32.mrb[0].mxu0
  %379 = vmatprep.mubr.bf16.mxu0 0
  %380 = vmatmul.mubr.bf16.gmra.mrb[0].mxu0 %v212
  %v381 = vpop.f32.mrb[0].mxu0
  %v382 = vadd.f32 0.0, %v381
  %v383 = vpop.f32.mrb[0].mxu0
  %v384 = vpop.f32.mrb[0].mxu0
  %v385 = vadd.f32 0.0, %v384
  %v386 = vpop.f32.mrb[0].mxu0
  %387 = vmatprep.mubr.bf16.mxu0 0
  %388 = vmatmul.mubr.bf16.gmra.mrb[0].mxu0 %v215
  %v389 = vpop.f32.mrb[0].mxu0
  %v390 = vadd.f32 0.0, %v389
  %v391 = vpop.f32.mrb[0].mxu0
  %v392 = vpop.f32.mrb[0].mxu0
  %v393 = vadd.f32 0.0, %v392
  %v394 = vpop.f32.mrb[0].mxu0
  %395 = vmatprep.mubr.bf16.mxu0 0
  %396 = vmatmul.mubr.bf16.gmra.mrb[0].mxu0 %v218
  %v397 = vpop.f32.mrb[0].mxu0
  %v398 = vadd.f32 0.0, %v397
  %v399 = vpop.f32.mrb[0].mxu0
  %v400 = vpop.f32.mrb[0].mxu0
  %v401 = vadd.f32 0.0, %v400
  %v402 = vpop.f32.mrb[0].mxu0
  %403 = vdwg.mxu0
  %v404 = vld [vmem:[%s1] sm:$0xf]
  %v405 = vld [vmem:[%s1 + $0x4] sm:$0xf]
  %v406 = vld [vmem:[%s1 + $0x8] sm:$0xf]
  %v407 = vld [vmem:[%s1 + $0xc] sm:$0xf]
  %v408 = vld [vmem:[%s1 + $0x10] sm:$0xf]
  %v409 = vld [vmem:[%s1 + $0x14] sm:$0xf]
  %v410 = vld [vmem:[%s1 + $0x18] sm:$0xf]
  %v411 = vld [vmem:[%s1 + $0x1c] sm:$0xf]
  %v412 = vld [vmem:[%s1 + $0x20] sm:$0xf]
  %v413 = vld [vmem:[%s1 + $0x24] sm:$0xf]
  %v414 = vld [vmem:[%s1 + $0x28] sm:$0xf]
  %v415 = vld [vmem:[%s1 + $0x2c] sm:$0xf]
  %v416 = vld [vmem:[%s1 + $0x30] sm:$0xf]
  %v417 = vld [vmem:[%s1 + $0x34] sm:$0xf]
  %v418 = vld [vmem:[%s1 + $0x38] sm:$0xf]
  %v419 = vld [vmem:[%s1 + $0x3c] sm:$0xf]
  %v420 = vld [vmem:[%s1 + $0x40] sm:$0xf]
  %v421 = vld [vmem:[%s1 + $0x44] sm:$0xf]
  %v422 = vld [vmem:[%s1 + $0x48] sm:$0xf]
  %v423 = vld [vmem:[%s1 + $0x4c] sm:$0xf]
  %v424 = vld [vmem:[%s1 + $0x50] sm:$0xf]
  %v425 = vld [vmem:[%s1 + $0x54] sm:$0xf]
  %v426 = vld [vmem:[%s1 + $0x58] sm:$0xf]
  %v427 = vld [vmem:[%s1 + $0x5c] sm:$0xf]
  %v428 = vld [vmem:[%s1 + $0x60] sm:$0xf]
  %v429 = vld [vmem:[%s1 + $0x64] sm:$0xf]
  %v430 = vld [vmem:[%s1 + $0x68] sm:$0xf]
  %v431 = vld [vmem:[%s1 + $0x6c] sm:$0xf]
  %v432 = vld [vmem:[%s1 + $0x70] sm:$0xf]
  %v433 = vld [vmem:[%s1 + $0x74] sm:$0xf]
  %v434 = vld [vmem:[%s1 + $0x78] sm:$0xf]
  %v435 = vld [vmem:[%s1 + $0x7c] sm:$0xf]
  %v436 = vld [vmem:[%s1 + $0x80] sm:$0xf]
  %v437 = vld [vmem:[%s1 + $0x84] sm:$0xf]
  %v438 = vld [vmem:[%s1 + $0x88] sm:$0xf]
  %v439 = vld [vmem:[%s1 + $0x8c] sm:$0xf]
  %v476 = vunpack.c.l.b16 %v404
  %v477 = vunpack.c.l.b16 %v405
  %v478 = vunpack.c.l.b16 %v406
  %v479 = vunpack.c.l.b16 %v407
  %v480 = vunpack.c.l.b16 %v408
  %v481 = vunpack.c.l.b16 %v409
  %v482 = vunpack.c.l.b16 %v410
  %v483 = vunpack.c.l.b16 %v411
  %v484 = vunpack.c.l.b16 %v412
  %v485 = vunpack.c.l.b16 %v413
  %v486 = vunpack.c.l.b16 %v414
  %v487 = vunpack.c.l.b16 %v415
  %v488 = vunpack.c.l.b16 %v416
  %v489 = vunpack.c.l.b16 %v417
  %v490 = vunpack.c.l.b16 %v418
  %v491 = vunpack.c.l.b16 %v419
  %v492 = vunpack.c.l.b16 %v420
  %v493 = vunpack.c.l.b16 %v421
  %v494 = vunpack.c.l.b16 %v422
  %v495 = vunpack.c.l.b16 %v423
  %v496 = vunpack.c.l.b16 %v424
  %v497 = vunpack.c.l.b16 %v425
  %v498 = vunpack.c.l.b16 %v426
  %v499 = vunpack.c.l.b16 %v427
  %v500 = vunpack.c.l.b16 %v428
  %v501 = vunpack.c.l.b16 %v429
  %v502 = vunpack.c.l.b16 %v430
  %v503 = vunpack.c.l.b16 %v431
  %v504 = vunpack.c.l.b16 %v432
  %v505 = vunpack.c.l.b16 %v433
  %v506 = vunpack.c.l.b16 %v434
  %v507 = vunpack.c.l.b16 %v435
  %v508 = vunpack.c.l.b16 %v436
  %v509 = vunpack.c.l.b16 %v437
  %v510 = vunpack.c.l.b16 %v438
  %v511 = vunpack.c.l.b16 %v439
  %v512 = vpack.c.b16 %v477, %v476
  %v513 = vpack.c.b16 %v479, %v478
  %v514 = vpack.c.b16 %v481, %v480
  %v515 = vpack.c.b16 %v483, %v482
  %v516 = vpack.c.b16 %v485, %v484
  %v517 = vpack.c.b16 %v487, %v486
  %v518 = vpack.c.b16 %v489, %v488
  %v519 = vpack.c.b16 %v491, %v490
  %v520 = vpack.c.b16 %v493, %v492
  %v521 = vpack.c.b16 %v495, %v494
  %v522 = vpack.c.b16 %v497, %v496
  %v523 = vpack.c.b16 %v499, %v498
  %v524 = vpack.c.b16 %v501, %v500
  %v525 = vpack.c.b16 %v503, %v502
  %v526 = vpack.c.b16 %v505, %v504
  %v527 = vpack.c.b16 %v507, %v506
  %v528 = vpack.c.b16 %v509, %v508
  %v529 = vpack.c.b16 %v511, %v510
  %v531 = vsel %vm165, %v512, 0
  %v534 = vsel %vm165, %v513, 0
  %v537 = vsel %vm165, %v514, 0
  %v540 = vsel %vm165, %v515, 0
  %v543 = vsel %vm165, %v516, 0
  %v546 = vsel %vm165, %v517, 0
  %v549 = vsel %vm165, %v518, 0
  %v552 = vsel %vm165, %v519, 0
  %v555 = vsel %vm165, %v520, 0
  %v558 = vsel %vm165, %v521, 0
  %v561 = vsel %vm165, %v522, 0
  %v564 = vsel %vm165, %v523, 0
  %v567 = vsel %vm165, %v524, 0
  %v570 = vsel %vm165, %v525, 0
  %v573 = vsel %vm165, %v526, 0
  %v576 = vsel %vm165, %v527, 0
  %v579 = vsel %vm165, %v528, 0
  %v582 = vsel %vm165, %v529, 0
  %584 = vmatprep.subr.bf16.mxu0 0
  %585 = vmatpush1.bf16.msra.mxu0 %v162
  %586 = vmatprep.subr.bf16.mxu0 0
  %587 = vmatpush1.bf16.msra.mxu0 %v225
  %588 = vmatprep.subr.bf16.mxu0 0
  %589 = vmatpush1.bf16.msra.mxu0 0
  %590 = vmatprep.subr.bf16.mxu0 0
  %591 = vmatpush1.bf16.msra.mxu0 0
  %592 = vmatprep.subr.bf16.mxu0 0
  %593 = vmatpush1.bf16.msra.mxu0 0
  %594 = vmatprep.subr.bf16.mxu0 0
  %595 = vmatpush1.bf16.msra.mxu0 0
  %596 = vmatprep.subr.bf16.mxu0 0
  %597 = vmatpush1.bf16.msra.mxu0 0
  %598 = vmatprep.subr.bf16.mxu0 0
  %599 = vmatpush1.bf16.msra.mxu0 0
  %600 = vmatprep.subr.bf16.mxu0 0
  %601 = vmatpush1.bf16.msra.mxu0 0
  %602 = vmatprep.subr.bf16.mxu0 0
  %603 = vmatpush1.bf16.msra.mxu0 0
  %604 = vmatprep.subr.bf16.mxu0 0
  %605 = vmatpush1.bf16.msra.mxu0 0
  %606 = vmatprep.subr.bf16.mxu0 0
  %607 = vmatpush1.bf16.msra.mxu0 0
  %608 = vmatprep.subr.bf16.mxu0 0
  %609 = vmatpush1.bf16.msra.mxu0 0
  %610 = vmatprep.subr.bf16.mxu0 0
  %611 = vmatpush1.bf16.msra.mxu0 0
  %612 = vmatprep.subr.bf16.mxu0 0
  %613 = vmatpush1.bf16.msra.mxu0 0
  %614 = vmatprep.subr.bf16.mxu0 0
  %615 = vmatpush1.bf16.msra.mxu0 0
  %616 = vmatprep.mubr.bf16.mxu0 0
  %617 = vmatmul.mubr.bf16.gmra.mrb[0].mxu0 %v531
  %v618 = vpop.f32.mrb[0].mxu0
  %v619 = vadd.f32 0.0, %v618
  %v620 = vpop.f32.mrb[0].mxu0
  %v621 = vpop.f32.mrb[0].mxu0
  %v622 = vadd.f32 0.0, %v621
  %v623 = vpop.f32.mrb[0].mxu0
  %624 = vmatprep.mubr.bf16.mxu0 0
  %625 = vmatmul.mubr.bf16.gmra.mrb[0].mxu0 %v534
  %v626 = vpop.f32.mrb[0].mxu0
  %v627 = vadd.f32 0.0, %v626
  %v628 = vpop.f32.mrb[0].mxu0
  %v629 = vpop.f32.mrb[0].mxu0
  %v630 = vadd.f32 0.0, %v629
  %v631 = vpop.f32.mrb[0].mxu0
  %632 = vmatprep.mubr.bf16.mxu0 0
  %633 = vmatmul.mubr.bf16.gmra.mrb[0].mxu0 %v537
  %v634 = vpop.f32.mrb[0].mxu0
  %v635 = vadd.f32 0.0, %v634
  %v636 = vpop.f32.mrb[0].mxu0
  %v637 = vpop.f32.mrb[0].mxu0
  %v638 = vadd.f32 0.0, %v637
  %v639 = vpop.f32.mrb[0].mxu0
  %640 = vmatprep.mubr.bf16.mxu0 0
  %641 = vmatmul.mubr.bf16.gmra.mrb[0].mxu0 %v540
  %v642 = vpop.f32.mrb[0].mxu0
  %v643 = vadd.f32 0.0, %v642
  %v644 = vpop.f32.mrb[0].mxu0
  %v645 = vpop.f32.mrb[0].mxu0
  %v646 = vadd.f32 0.0, %v645
  %v647 = vpop.f32.mrb[0].mxu0
  %648 = vmatprep.mubr.bf16.mxu0 0
  %649 = vmatmul.mubr.bf16.gmra.mrb[0].mxu0 %v543
  %v650 = vpop.f32.mrb[0].mxu0
  %v651 = vadd.f32 0.0, %v650
  %v652 = vpop.f32.mrb[0].mxu0
  %v653 = vpop.f32.mrb[0].mxu0
  %v654 = vadd.f32 0.0, %v653
  %v655 = vpop.f32.mrb[0].mxu0
  %656 = vmatprep.mubr.bf16.mxu0 0
  %657 = vmatmul.mubr.bf16.gmra.mrb[0].mxu0 %v546
  %v658 = vpop.f32.mrb[0].mxu0
  %v659 = vadd.f32 0.0, %v658
  %v660 = vpop.f32.mrb[0].mxu0
  %v661 = vpop.f32.mrb[0].mxu0
  %v662 = vadd.f32 0.0, %v661
  %v663 = vpop.f32.mrb[0].mxu0
  %664 = vmatprep.mubr.bf16.mxu0 0
  %665 = vmatmul.mubr.bf16.gmra.mrb[0].mxu0 %v549
  %v666 = vpop.f32.mrb[0].mxu0
  %v667 = vadd.f32 0.0, %v666
  %v668 = vpop.f32.mrb[0].mxu0
  %v669 = vpop.f32.mrb[0].mxu0
  %v670 = vadd.f32 0.0, %v669
  %v671 = vpop.f32.mrb[0].mxu0
  %672 = vmatprep.mubr.bf16.mxu0 0
  %673 = vmatmul.mubr.bf16.gmra.mrb[0].mxu0 %v552
  %v674 = vpop.f32.mrb[0].mxu0
  %v675 = vadd.f32 0.0, %v674
  %v676 = vpop.f32.mrb[0].mxu0
  %v677 = vpop.f32.mrb[0].mxu0
  %v678 = vadd.f32 0.0, %v677
  %v679 = vpop.f32.mrb[0].mxu0
  %680 = vmatprep.mubr.bf16.mxu0 0
  %681 = vmatmul.mubr.bf16.gmra.mrb[0].mxu0 %v555
  %v682 = vpop.f32.mrb[0].mxu0
  %v683 = vadd.f32 0.0, %v682
  %v684 = vpop.f32.mrb[0].mxu0
  %v685 = vpop.f32.mrb[0].mxu0
  %v686 = vadd.f32 0.0, %v685
  %v687 = vpop.f32.mrb[0].mxu0
  %688 = vmatprep.mubr.bf16.mxu0 0
  %689 = vmatmul.mubr.bf16.gmra.mrb[0].mxu0 %v558
  %v690 = vpop.f32.mrb[0].mxu0
  %v691 = vadd.f32 0.0, %v690
  %v692 = vpop.f32.mrb[0].mxu0
  %v693 = vpop.f32.mrb[0].mxu0
  %v694 = vadd.f32 0.0, %v693
  %v695 = vpop.f32.mrb[0].mxu0
  %696 = vmatprep.mubr.bf16.mxu0 0
  %697 = vmatmul.mubr.bf16.gmra.mrb[0].mxu0 %v561
  %v698 = vpop.f32.mrb[0].mxu0
  %v699 = vadd.f32 0.0, %v698
  %v700 = vpop.f32.mrb[0].mxu0
  %v701 = vpop.f32.mrb[0].mxu0
  %v702 = vadd.f32 0.0, %v701
  %v703 = vpop.f32.mrb[0].mxu0
  %704 = vmatprep.mubr.bf16.mxu0 0
  %705 = vmatmul.mubr.bf16.gmra.mrb[0].mxu0 %v564
  %v706 = vpop.f32.mrb[0].mxu0
  %v707 = vadd.f32 0.0, %v706
  %v708 = vpop.f32.mrb[0].mxu0
  %v709 = vpop.f32.mrb[0].mxu0
  %v710 = vadd.f32 0.0, %v709
  %v711 = vpop.f32.mrb[0].mxu0
  %712 = vmatprep.mubr.bf16.mxu0 0
  %713 = vmatmul.mubr.bf16.gmra.mrb[0].mxu0 %v567
  %v714 = vpop.f32.mrb[0].mxu0
  %v715 = vadd.f32 0.0, %v714
  %v716 = vpop.f32.mrb[0].mxu0
  %v717 = vpop.f32.mrb[0].mxu0
  %v718 = vadd.f32 0.0, %v717
  %v719 = vpop.f32.mrb[0].mxu0
  %720 = vmatprep.mubr.bf16.mxu0 0
  %721 = vmatmul.mubr.bf16.gmra.mrb[0].mxu0 %v570
  %v722 = vpop.f32.mrb[0].mxu0
  %v723 = vadd.f32 0.0, %v722
  %v724 = vpop.f32.mrb[0].mxu0
  %v725 = vpop.f32.mrb[0].mxu0
  %v726 = vadd.f32 0.0, %v725
  %v727 = vpop.f32.mrb[0].mxu0
  %728 = vmatprep.mubr.bf16.mxu0 0
  %729 = vmatmul.mubr.bf16.gmra.mrb[0].mxu0 %v573
  %v730 = vpop.f32.mrb[0].mxu0
  %v731 = vadd.f32 0.0, %v730
  %v732 = vpop.f32.mrb[0].mxu0
  %v733 = vpop.f32.mrb[0].mxu0
  %v734 = vadd.f32 0.0, %v733
  %v735 = vpop.f32.mrb[0].mxu0
  %736 = vmatprep.mubr.bf16.mxu0 0
  %737 = vmatmul.mubr.bf16.gmra.mrb[0].mxu0 %v576
  %v738 = vpop.f32.mrb[0].mxu0
  %v739 = vadd.f32 0.0, %v738
  %v740 = vpop.f32.mrb[0].mxu0
  %v741 = vpop.f32.mrb[0].mxu0
  %v742 = vadd.f32 0.0, %v741
  %v743 = vpop.f32.mrb[0].mxu0
  %744 = vmatprep.mubr.bf16.mxu0 0
  %745 = vmatmul.mubr.bf16.gmra.mrb[0].mxu0 %v579
  %v746 = vpop.f32.mrb[0].mxu0
  %v747 = vadd.f32 0.0, %v746
  %v748 = vpop.f32.mrb[0].mxu0
  %v749 = vpop.f32.mrb[0].mxu0
  %v750 = vadd.f32 0.0, %v749
  %v751 = vpop.f32.mrb[0].mxu0
  %752 = vmatprep.mubr.bf16.mxu0 0
  %753 = vmatmul.mubr.bf16.gmra.mrb[0].mxu0 %v582
  %v754 = vpop.f32.mrb[0].mxu0
  %v755 = vadd.f32 0.0, %v754
  %v756 = vpop.f32.mrb[0].mxu0
  %v757 = vpop.f32.mrb[0].mxu0
  %v758 = vadd.f32 0.0, %v757
  %v759 = vpop.f32.mrb[0].mxu0
  %760 = vdwg.mxu0
  %v761 = vld [vmem:[%s2] sm:$0xf]
  %v762 = vld [vmem:[%s2 + $0x4] sm:$0xf]
  %v763 = vld [vmem:[%s2 + $0x8] sm:$0xf]
  %v764 = vld [vmem:[%s2 + $0xc] sm:$0xf]
  %v765 = vld [vmem:[%s2 + $0x10] sm:$0xf]
  %v766 = vld [vmem:[%s2 + $0x14] sm:$0xf]
  %v767 = vld [vmem:[%s2 + $0x18] sm:$0xf]
  %v768 = vld [vmem:[%s2 + $0x1c] sm:$0xf]
  %v769 = vld [vmem:[%s2 + $0x20] sm:$0xf]
  %v770 = vld [vmem:[%s2 + $0x24] sm:$0xf]
  %v771 = vld [vmem:[%s2 + $0x28] sm:$0xf]
  %v772 = vld [vmem:[%s2 + $0x2c] sm:$0xf]
  %v773 = vld [vmem:[%s2 + $0x30] sm:$0xf]
  %v774 = vld [vmem:[%s2 + $0x34] sm:$0xf]
  %v775 = vld [vmem:[%s2 + $0x38] sm:$0xf]
  %v776 = vld [vmem:[%s2 + $0x3c] sm:$0xf]
  %v777 = vld [vmem:[%s2 + $0x40] sm:$0xf]
  %v778 = vld [vmem:[%s2 + $0x44] sm:$0xf]
  %v779 = vld [vmem:[%s2 + $0x48] sm:$0xf]
  %v780 = vld [vmem:[%s2 + $0x4c] sm:$0xf]
  %v781 = vld [vmem:[%s2 + $0x50] sm:$0xf]
  %v782 = vld [vmem:[%s2 + $0x54] sm:$0xf]
  %v783 = vld [vmem:[%s2 + $0x58] sm:$0xf]
  %v784 = vld [vmem:[%s2 + $0x5c] sm:$0xf]
  %v785 = vld [vmem:[%s2 + $0x60] sm:$0xf]
  %v786 = vld [vmem:[%s2 + $0x64] sm:$0xf]
  %v787 = vld [vmem:[%s2 + $0x68] sm:$0xf]
  %v788 = vld [vmem:[%s2 + $0x6c] sm:$0xf]
  %v789 = vld [vmem:[%s2 + $0x70] sm:$0xf]
  %v790 = vld [vmem:[%s2 + $0x74] sm:$0xf]
  %v791 = vld [vmem:[%s2 + $0x78] sm:$0xf]
  %v792 = vld [vmem:[%s2 + $0x7c] sm:$0xf]
  %v793 = vld [vmem:[%s2 + $0x80] sm:$0xf]
  %v794 = vld [vmem:[%s2 + $0x84] sm:$0xf]
  %v795 = vld [vmem:[%s2 + $0x88] sm:$0xf]
  %v796 = vld [vmem:[%s2 + $0x8c] sm:$0xf]
  %v833 = vunpack.c.l.b16 %v761
  %v834 = vunpack.c.l.b16 %v762
  %v835 = vunpack.c.l.b16 %v763
  %v836 = vunpack.c.l.b16 %v764
  %v837 = vunpack.c.l.b16 %v765
  %v838 = vunpack.c.l.b16 %v766
  %v839 = vunpack.c.l.b16 %v767
  %v840 = vunpack.c.l.b16 %v768
  %v841 = vunpack.c.l.b16 %v769
  %v842 = vunpack.c.l.b16 %v770
  %v843 = vunpack.c.l.b16 %v771
  %v844 = vunpack.c.l.b16 %v772
  %v845 = vunpack.c.l.b16 %v773
  %v846 = vunpack.c.l.b16 %v774
  %v847 = vunpack.c.l.b16 %v775
  %v848 = vunpack.c.l.b16 %v776
  %v849 = vunpack.c.l.b16 %v777
  %v850 = vunpack.c.l.b16 %v778
  %v851 = vunpack.c.l.b16 %v779
  %v852 = vunpack.c.l.b16 %v780
  %v853 = vunpack.c.l.b16 %v781
  %v854 = vunpack.c.l.b16 %v782
  %v855 = vunpack.c.l.b16 %v783
  %v856 = vunpack.c.l.b16 %v784
  %v857 = vunpack.c.l.b16 %v785
  %v858 = vunpack.c.l.b16 %v786
  %v859 = vunpack.c.l.b16 %v787
  %v860 = vunpack.c.l.b16 %v788
  %v861 = vunpack.c.l.b16 %v789
  %v862 = vunpack.c.l.b16 %v790
  %v863 = vunpack.c.l.b16 %v791
  %v864 = vunpack.c.l.b16 %v792
  %v865 = vunpack.c.l.b16 %v793
  %v866 = vunpack.c.l.b16 %v794
  %v867 = vunpack.c.l.b16 %v795
  %v868 = vunpack.c.l.b16 %v796
  %v869 = vpack.c.b16 %v834, %v833
  %v870 = vpack.c.b16 %v836, %v835
  %v871 = vpack.c.b16 %v838, %v837
  %v872 = vpack.c.b16 %v840, %v839
  %v873 = vpack.c.b16 %v842, %v841
  %v874 = vpack.c.b16 %v844, %v843
  %v875 = vpack.c.b16 %v846, %v845
  %v876 = vpack.c.b16 %v848, %v847
  %v877 = vpack.c.b16 %v850, %v849
  %v878 = vpack.c.b16 %v852, %v851
  %v879 = vpack.c.b16 %v854, %v853
  %v880 = vpack.c.b16 %v856, %v855
  %v881 = vpack.c.b16 %v858, %v857
  %v882 = vpack.c.b16 %v860, %v859
  %v883 = vpack.c.b16 %v862, %v861
  %v884 = vpack.c.b16 %v864, %v863
  %v885 = vpack.c.b16 %v866, %v865
  %v886 = vpack.c.b16 %v868, %v867
  %v888 = vsel %vm165, %v869, 0
  %v891 = vsel %vm165, %v870, 0
  %v894 = vsel %vm165, %v871, 0
  %v897 = vsel %vm165, %v872, 0
  %v900 = vsel %vm165, %v873, 0
  %v903 = vsel %vm165, %v874, 0
  %v906 = vsel %vm165, %v875, 0
  %v909 = vsel %vm165, %v876, 0
  %v912 = vsel %vm165, %v877, 0
  %v915 = vsel %vm165, %v878, 0
  %v918 = vsel %vm165, %v879, 0
  %v921 = vsel %vm165, %v880, 0
  %v924 = vsel %vm165, %v881, 0
  %v927 = vsel %vm165, %v882, 0
  %v930 = vsel %vm165, %v883, 0
  %v933 = vsel %vm165, %v884, 0
  %v936 = vsel %vm165, %v885, 0
  %v939 = vsel %vm165, %v886, 0
  %941 = vmatprep.subr.bf16.mxu0 0
  %942 = vmatpush1.bf16.msra.mxu0 %v162
  %943 = vmatprep.subr.bf16.mxu0 0
  %944 = vmatpush1.bf16.msra.mxu0 %v225
  %945 = vmatprep.subr.bf16.mxu0 0
  %946 = vmatpush1.bf16.msra.mxu0 0
  %947 = vmatprep.subr.bf16.mxu0 0
  %948 = vmatpush1.bf16.msra.mxu0 0
  %949 = vmatprep.subr.bf16.mxu0 0
  %950 = vmatpush1.bf16.msra.mxu0 0
  %951 = vmatprep.subr.bf16.mxu0 0
  %952 = vmatpush1.bf16.msra.mxu0 0
  %953 = vmatprep.subr.bf16.mxu0 0
  %954 = vmatpush1.bf16.msra.mxu0 0
  %955 = vmatprep.subr.bf16.mxu0 0
  %956 = vmatpush1.bf16.msra.mxu0 0
  %957 = vmatprep.subr.bf16.mxu0 0
  %958 = vmatpush1.bf16.msra.mxu0 0
  %959 = vmatprep.subr.bf16.mxu0 0
  %960 = vmatpush1.bf16.msra.mxu0 0
  %961 = vmatprep.subr.bf16.mxu0 0
  %962 = vmatpush1.bf16.msra.mxu0 0
  %963 = vmatprep.subr.bf16.mxu0 0
  %964 = vmatpush1.bf16.msra.mxu0 0
  %965 = vmatprep.subr.bf16.mxu0 0
  %966 = vmatpush1.bf16.msra.mxu0 0
  %967 = vmatprep.subr.bf16.mxu0 0
  %968 = vmatpush1.bf16.msra.mxu0 0
  %969 = vmatprep.subr.bf16.mxu0 0
  %970 = vmatpush1.bf16.msra.mxu0 0
  %971 = vmatprep.subr.bf16.mxu0 0
  %972 = vmatpush1.bf16.msra.mxu0 0
  %973 = vmatprep.mubr.bf16.mxu0 0
  %974 = vmatmul.mubr.bf16.gmra.mrb[0].mxu0 %v888
  %v975 = vpop.f32.mrb[0].mxu0
  %v976 = vadd.f32 0.0, %v975
  %v977 = vpop.f32.mrb[0].mxu0
  %v978 = vpop.f32.mrb[0].mxu0
  %v979 = vadd.f32 0.0, %v978
  %v980 = vpop.f32.mrb[0].mxu0
  %981 = vmatprep.mubr.bf16.mxu0 0
  %982 = vmatmul.mubr.bf16.gmra.mrb[0].mxu0 %v891
  %v983 = vpop.f32.mrb[0].mxu0
  %v984 = vadd.f32 0.0, %v983
  %v985 = vpop.f32.mrb[0].mxu0
  %v986 = vpop.f32.mrb[0].mxu0
  %v987 = vadd.f32 0.0, %v986
  %v988 = vpop.f32.mrb[0].mxu0
  %989 = vmatprep.mubr.bf16.mxu0 0
  %990 = vmatmul.mubr.bf16.gmra.mrb[0].mxu0 %v894
  %v991 = vpop.f32.mrb[0].mxu0
  %v992 = vadd.f32 0.0, %v991
  %v993 = vpop.f32.mrb[0].mxu0
  %v994 = vpop.f32.mrb[0].mxu0
  %v995 = vadd.f32 0.0, %v994
  %v996 = vpop.f32.mrb[0].mxu0
  %997 = vmatprep.mubr.bf16.mxu0 0
  %998 = vmatmul.mubr.bf16.gmra.mrb[0].mxu0 %v897
  %v999 = vpop.f32.mrb[0].mxu0
  %v1000 = vadd.f32 0.0, %v999
  %v1001 = vpop.f32.mrb[0].mxu0
  %v1002 = vpop.f32.mrb[0].mxu0
  %v1003 = vadd.f32 0.0, %v1002
  %v1004 = vpop.f32.mrb[0].mxu0
  %1005 = vmatprep.mubr.bf16.mxu0 0
  %1006 = vmatmul.mubr.bf16.gmra.mrb[0].mxu0 %v900
  %v1007 = vpop.f32.mrb[0].mxu0
  %v1008 = vadd.f32 0.0, %v1007
  %v1009 = vpop.f32.mrb[0].mxu0
  %v1010 = vpop.f32.mrb[0].mxu0
  %v1011 = vadd.f32 0.0, %v1010
  %v1012 = vpop.f32.mrb[0].mxu0
  %1013 = vmatprep.mubr.bf16.mxu0 0
  %1014 = vmatmul.mubr.bf16.gmra.mrb[0].mxu0 %v903
  %v1015 = vpop.f32.mrb[0].mxu0
  %v1016 = vadd.f32 0.0, %v1015
  %v1017 = vpop.f32.mrb[0].mxu0
  %v1018 = vpop.f32.mrb[0].mxu0
  %v1019 = vadd.f32 0.0, %v1018
  %v1020 = vpop.f32.mrb[0].mxu0
  %1021 = vmatprep.mubr.bf16.mxu0 0
  %1022 = vmatmul.mubr.bf16.gmra.mrb[0].mxu0 %v906
  %v1023 = vpop.f32.mrb[0].mxu0
  %v1024 = vadd.f32 0.0, %v1023
  %v1025 = vpop.f32.mrb[0].mxu0
  %v1026 = vpop.f32.mrb[0].mxu0
  %v1027 = vadd.f32 0.0, %v1026
  %v1028 = vpop.f32.mrb[0].mxu0
  %1029 = vmatprep.mubr.bf16.mxu0 0
  %1030 = vmatmul.mubr.bf16.gmra.mrb[0].mxu0 %v909
  %v1031 = vpop.f32.mrb[0].mxu0
  %v1032 = vadd.f32 0.0, %v1031
  %v1033 = vpop.f32.mrb[0].mxu0
  %v1034 = vpop.f32.mrb[0].mxu0
  %v1035 = vadd.f32 0.0, %v1034
  %v1036 = vpop.f32.mrb[0].mxu0
  %1037 = vmatprep.mubr.bf16.mxu0 0
  %1038 = vmatmul.mubr.bf16.gmra.mrb[0].mxu0 %v912
  %v1039 = vpop.f32.mrb[0].mxu0
  %v1040 = vadd.f32 0.0, %v1039
  %v1041 = vpop.f32.mrb[0].mxu0
  %v1042 = vpop.f32.mrb[0].mxu0
  %v1043 = vadd.f32 0.0, %v1042
  %v1044 = vpop.f32.mrb[0].mxu0
  %1045 = vmatprep.mubr.bf16.mxu0 0
  %1046 = vmatmul.mubr.bf16.gmra.mrb[0].mxu0 %v915
  %v1047 = vpop.f32.mrb[0].mxu0
  %v1048 = vadd.f32 0.0, %v1047
  %v1049 = vpop.f32.mrb[0].mxu0
  %v1050 = vpop.f32.mrb[0].mxu0
  %v1051 = vadd.f32 0.0, %v1050
  %v1052 = vpop.f32.mrb[0].mxu0
  %1053 = vmatprep.mubr.bf16.mxu0 0
  %1054 = vmatmul.mubr.bf16.gmra.mrb[0].mxu0 %v918
  %v1055 = vpop.f32.mrb[0].mxu0
  %v1056 = vadd.f32 0.0, %v1055
  %v1057 = vpop.f32.mrb[0].mxu0
  %v1058 = vpop.f32.mrb[0].mxu0
  %v1059 = vadd.f32 0.0, %v1058
  %v1060 = vpop.f32.mrb[0].mxu0
  %1061 = vmatprep.mubr.bf16.mxu0 0
  %1062 = vmatmul.mubr.bf16.gmra.mrb[0].mxu0 %v921
  %v1063 = vpop.f32.mrb[0].mxu0
  %v1064 = vadd.f32 0.0, %v1063
  %v1065 = vpop.f32.mrb[0].mxu0
  %v1066 = vpop.f32.mrb[0].mxu0
  %v1067 = vadd.f32 0.0, %v1066
  %v1068 = vpop.f32.mrb[0].mxu0
  %1069 = vmatprep.mubr.bf16.mxu0 0
  %1070 = vmatmul.mubr.bf16.gmra.mrb[0].mxu0 %v924
  %v1071 = vpop.f32.mrb[0].mxu0
  %v1072 = vadd.f32 0.0, %v1071
  %v1073 = vpop.f32.mrb[0].mxu0
  %v1074 = vpop.f32.mrb[0].mxu0
  %v1075 = vadd.f32 0.0, %v1074
  %v1076 = vpop.f32.mrb[0].mxu0
  %1077 = vmatprep.mubr.bf16.mxu0 0
  %1078 = vmatmul.mubr.bf16.gmra.mrb[0].mxu0 %v927
  %v1079 = vpop.f32.mrb[0].mxu0
  %v1080 = vadd.f32 0.0, %v1079
  %v1081 = vpop.f32.mrb[0].mxu0
  %v1082 = vpop.f32.mrb[0].mxu0
  %v1083 = vadd.f32 0.0, %v1082
  %v1084 = vpop.f32.mrb[0].mxu0
  %1085 = vmatprep.mubr.bf16.mxu0 0
  %1086 = vmatmul.mubr.bf16.gmra.mrb[0].mxu0 %v930
  %v1087 = vpop.f32.mrb[0].mxu0
  %v1088 = vadd.f32 0.0, %v1087
  %v1089 = vpop.f32.mrb[0].mxu0
  %v1090 = vpop.f32.mrb[0].mxu0
  %v1091 = vadd.f32 0.0, %v1090
  %v1092 = vpop.f32.mrb[0].mxu0
  %1093 = vmatprep.mubr.bf16.mxu0 0
  %1094 = vmatmul.mubr.bf16.gmra.mrb[0].mxu0 %v933
  %v1095 = vpop.f32.mrb[0].mxu0
  %v1096 = vadd.f32 0.0, %v1095
  %v1097 = vpop.f32.mrb[0].mxu0
  %v1098 = vpop.f32.mrb[0].mxu0
  %v1099 = vadd.f32 0.0, %v1098
  %v1100 = vpop.f32.mrb[0].mxu0
  %1101 = vmatprep.mubr.bf16.mxu0 0
  %1102 = vmatmul.mubr.bf16.gmra.mrb[0].mxu0 %v936
  %v1103 = vpop.f32.mrb[0].mxu0
  %v1104 = vadd.f32 0.0, %v1103
  %v1105 = vpop.f32.mrb[0].mxu0
  %v1106 = vpop.f32.mrb[0].mxu0
  %v1107 = vadd.f32 0.0, %v1106
  %v1108 = vpop.f32.mrb[0].mxu0
  %1109 = vmatprep.mubr.bf16.mxu0 0
  %1110 = vmatmul.mubr.bf16.gmra.mrb[0].mxu0 %v939
  %v1111 = vpop.f32.mrb[0].mxu0
  %v1112 = vadd.f32 0.0, %v1111
  %v1113 = vpop.f32.mrb[0].mxu0
  %v1114 = vpop.f32.mrb[0].mxu0
  %v1115 = vadd.f32 0.0, %v1114
  %v1116 = vpop.f32.mrb[0].mxu0
  %1117 = vdwg.mxu0
  %v1118 = vld [vmem:[%s3] sm:$0xf]
  %v1119 = vld [vmem:[%s3 + $0x4] sm:$0xf]
  %v1120 = vld [vmem:[%s3 + $0x8] sm:$0xf]
  %v1121 = vld [vmem:[%s3 + $0xc] sm:$0xf]
  %v1122 = vld [vmem:[%s3 + $0x10] sm:$0xf]
  %v1123 = vld [vmem:[%s3 + $0x14] sm:$0xf]
  %v1124 = vld [vmem:[%s3 + $0x18] sm:$0xf]
  %v1125 = vld [vmem:[%s3 + $0x1c] sm:$0xf]
  %v1126 = vld [vmem:[%s3 + $0x20] sm:$0xf]
  %v1127 = vld [vmem:[%s3 + $0x24] sm:$0xf]
  %v1128 = vld [vmem:[%s3 + $0x28] sm:$0xf]
  %v1129 = vld [vmem:[%s3 + $0x2c] sm:$0xf]
  %v1130 = vld [vmem:[%s3 + $0x30] sm:$0xf]
  %v1131 = vld [vmem:[%s3 + $0x34] sm:$0xf]
  %v1132 = vld [vmem:[%s3 + $0x38] sm:$0xf]
  %v1133 = vld [vmem:[%s3 + $0x3c] sm:$0xf]
  %v1134 = vld [vmem:[%s3 + $0x40] sm:$0xf]
  %v1135 = vld [vmem:[%s3 + $0x44] sm:$0xf]
  %v1136 = vld [vmem:[%s3 + $0x48] sm:$0xf]
  %v1137 = vld [vmem:[%s3 + $0x4c] sm:$0xf]
  %v1138 = vld [vmem:[%s3 + $0x50] sm:$0xf]
  %v1139 = vld [vmem:[%s3 + $0x54] sm:$0xf]
  %v1140 = vld [vmem:[%s3 + $0x58] sm:$0xf]
  %v1141 = vld [vmem:[%s3 + $0x5c] sm:$0xf]
  %v1142 = vld [vmem:[%s3 + $0x60] sm:$0xf]
  %v1143 = vld [vmem:[%s3 + $0x64] sm:$0xf]
  %v1144 = vld [vmem:[%s3 + $0x68] sm:$0xf]
  %v1145 = vld [vmem:[%s3 + $0x6c] sm:$0xf]
  %v1146 = vld [vmem:[%s3 + $0x70] sm:$0xf]
  %v1147 = vld [vmem:[%s3 + $0x74] sm:$0xf]
  %v1148 = vld [vmem:[%s3 + $0x78] sm:$0xf]
  %v1149 = vld [vmem:[%s3 + $0x7c] sm:$0xf]
  %v1150 = vld [vmem:[%s3 + $0x80] sm:$0xf]
  %v1151 = vld [vmem:[%s3 + $0x84] sm:$0xf]
  %v1152 = vld [vmem:[%s3 + $0x88] sm:$0xf]
  %v1153 = vld [vmem:[%s3 + $0x8c] sm:$0xf]
  %v1190 = vunpack.c.l.b16 %v1118
  %v1191 = vunpack.c.l.b16 %v1119
  %v1192 = vunpack.c.l.b16 %v1120
  %v1193 = vunpack.c.l.b16 %v1121
  %v1194 = vunpack.c.l.b16 %v1122
  %v1195 = vunpack.c.l.b16 %v1123
  %v1196 = vunpack.c.l.b16 %v1124
  %v1197 = vunpack.c.l.b16 %v1125
  %v1198 = vunpack.c.l.b16 %v1126
  %v1199 = vunpack.c.l.b16 %v1127
  %v1200 = vunpack.c.l.b16 %v1128
  %v1201 = vunpack.c.l.b16 %v1129
  %v1202 = vunpack.c.l.b16 %v1130
  %v1203 = vunpack.c.l.b16 %v1131
  %v1204 = vunpack.c.l.b16 %v1132
  %v1205 = vunpack.c.l.b16 %v1133
  %v1206 = vunpack.c.l.b16 %v1134
  %v1207 = vunpack.c.l.b16 %v1135
  %v1208 = vunpack.c.l.b16 %v1136
  %v1209 = vunpack.c.l.b16 %v1137
  %v1210 = vunpack.c.l.b16 %v1138
  %v1211 = vunpack.c.l.b16 %v1139
  %v1212 = vunpack.c.l.b16 %v1140
  %v1213 = vunpack.c.l.b16 %v1141
  %v1214 = vunpack.c.l.b16 %v1142
  %v1215 = vunpack.c.l.b16 %v1143
  %v1216 = vunpack.c.l.b16 %v1144
  %v1217 = vunpack.c.l.b16 %v1145
  %v1218 = vunpack.c.l.b16 %v1146
  %v1219 = vunpack.c.l.b16 %v1147
  %v1220 = vunpack.c.l.b16 %v1148
  %v1221 = vunpack.c.l.b16 %v1149
  %v1222 = vunpack.c.l.b16 %v1150
  %v1223 = vunpack.c.l.b16 %v1151
  %v1224 = vunpack.c.l.b16 %v1152
  %v1225 = vunpack.c.l.b16 %v1153
  %v1226 = vpack.c.b16 %v1191, %v1190
  %v1227 = vpack.c.b16 %v1193, %v1192
  %v1228 = vpack.c.b16 %v1195, %v1194
  %v1229 = vpack.c.b16 %v1197, %v1196
  %v1230 = vpack.c.b16 %v1199, %v1198
  %v1231 = vpack.c.b16 %v1201, %v1200
  %v1232 = vpack.c.b16 %v1203, %v1202
  %v1233 = vpack.c.b16 %v1205, %v1204
  %v1234 = vpack.c.b16 %v1207, %v1206
  %v1235 = vpack.c.b16 %v1209, %v1208
  %v1236 = vpack.c.b16 %v1211, %v1210
  %v1237 = vpack.c.b16 %v1213, %v1212
  %v1238 = vpack.c.b16 %v1215, %v1214
  %v1239 = vpack.c.b16 %v1217, %v1216
  %v1240 = vpack.c.b16 %v1219, %v1218
  %v1241 = vpack.c.b16 %v1221, %v1220
  %v1242 = vpack.c.b16 %v1223, %v1222
  %v1243 = vpack.c.b16 %v1225, %v1224
  %v1245 = vsel %vm165, %v1226, 0
  %v1248 = vsel %vm165, %v1227, 0
  %v1251 = vsel %vm165, %v1228, 0
  %v1254 = vsel %vm165, %v1229, 0
  %v1257 = vsel %vm165, %v1230, 0
  %v1260 = vsel %vm165, %v1231, 0
  %v1263 = vsel %vm165, %v1232, 0
  %v1266 = vsel %vm165, %v1233, 0
  %v1269 = vsel %vm165, %v1234, 0
  %v1272 = vsel %vm165, %v1235, 0
  %v1275 = vsel %vm165, %v1236, 0
  %v1278 = vsel %vm165, %v1237, 0
  %v1281 = vsel %vm165, %v1238, 0
  %v1284 = vsel %vm165, %v1239, 0
  %v1287 = vsel %vm165, %v1240, 0
  %v1290 = vsel %vm165, %v1241, 0
  %v1293 = vsel %vm165, %v1242, 0
  %v1296 = vsel %vm165, %v1243, 0
  %1298 = vmatprep.subr.bf16.mxu0 0
  %1299 = vmatpush1.bf16.msra.mxu0 %v162
  %1300 = vmatprep.subr.bf16.mxu0 0
  %1301 = vmatpush1.bf16.msra.mxu0 %v225
  %1302 = vmatprep.subr.bf16.mxu0 0
  %1303 = vmatpush1.bf16.msra.mxu0 0
  %1304 = vmatprep.subr.bf16.mxu0 0
  %1305 = vmatpush1.bf16.msra.mxu0 0
  %1306 = vmatprep.subr.bf16.mxu0 0
  %1307 = vmatpush1.bf16.msra.mxu0 0
  %1308 = vmatprep.subr.bf16.mxu0 0
  %1309 = vmatpush1.bf16.msra.mxu0 0
  %1310 = vmatprep.subr.bf16.mxu0 0
  %1311 = vmatpush1.bf16.msra.mxu0 0
  %1312 = vmatprep.subr.bf16.mxu0 0
  %1313 = vmatpush1.bf16.msra.mxu0 0
  %1314 = vmatprep.subr.bf16.mxu0 0
  %1315 = vmatpush1.bf16.msra.mxu0 0
  %1316 = vmatprep.subr.bf16.mxu0 0
  %1317 = vmatpush1.bf16.msra.mxu0 0
  %1318 = vmatprep.subr.bf16.mxu0 0
  %1319 = vmatpush1.bf16.msra.mxu0 0
  %1320 = vmatprep.subr.bf16.mxu0 0
  %1321 = vmatpush1.bf16.msra.mxu0 0
  %1322 = vmatprep.subr.bf16.mxu0 0
  %1323 = vmatpush1.bf16.msra.mxu0 0
  %1324 = vmatprep.subr.bf16.mxu0 0
  %1325 = vmatpush1.bf16.msra.mxu0 0
  %1326 = vmatprep.subr.bf16.mxu0 0
  %1327 = vmatpush1.bf16.msra.mxu0 0
  %1328 = vmatprep.subr.bf16.mxu0 0
  %1329 = vmatpush1.bf16.msra.mxu0 0
  %1330 = vmatprep.mubr.bf16.mxu0 0
  %1331 = vmatmul.mubr.bf16.gmra.mrb[0].mxu0 %v1245
  %v1332 = vpop.f32.mrb[0].mxu0
  %v1333 = vadd.f32 0.0, %v1332
  %v1334 = vpop.f32.mrb[0].mxu0
  %v1335 = vpop.f32.mrb[0].mxu0
  %v1336 = vadd.f32 0.0, %v1335
  %v1337 = vpop.f32.mrb[0].mxu0
  %1338 = vmatprep.mubr.bf16.mxu0 0
  %1339 = vmatmul.mubr.bf16.gmra.mrb[0].mxu0 %v1248
  %v1340 = vpop.f32.mrb[0].mxu0
  %v1341 = vadd.f32 0.0, %v1340
  %v1342 = vpop.f32.mrb[0].mxu0
  %v1343 = vpop.f32.mrb[0].mxu0
  %v1344 = vadd.f32 0.0, %v1343
  %v1345 = vpop.f32.mrb[0].mxu0
  %1346 = vmatprep.mubr.bf16.mxu0 0
  %1347 = vmatmul.mubr.bf16.gmra.mrb[0].mxu0 %v1251
  %v1348 = vpop.f32.mrb[0].mxu0
  %v1349 = vadd.f32 0.0, %v1348
  %v1350 = vpop.f32.mrb[0].mxu0
  %v1351 = vpop.f32.mrb[0].mxu0
  %v1352 = vadd.f32 0.0, %v1351
  %v1353 = vpop.f32.mrb[0].mxu0
  %1354 = vmatprep.mubr.bf16.mxu0 0
  %1355 = vmatmul.mubr.bf16.gmra.mrb[0].mxu0 %v1254
  %v1356 = vpop.f32.mrb[0].mxu0
  %v1357 = vadd.f32 0.0, %v1356
  %v1358 = vpop.f32.mrb[0].mxu0
  %v1359 = vpop.f32.mrb[0].mxu0
  %v1360 = vadd.f32 0.0, %v1359
  %v1361 = vpop.f32.mrb[0].mxu0
  %1362 = vmatprep.mubr.bf16.mxu0 0
  %1363 = vmatmul.mubr.bf16.gmra.mrb[0].mxu0 %v1257
  %v1364 = vpop.f32.mrb[0].mxu0
  %v1365 = vadd.f32 0.0, %v1364
  %v1366 = vpop.f32.mrb[0].mxu0
  %v1367 = vpop.f32.mrb[0].mxu0
  %v1368 = vadd.f32 0.0, %v1367
  %v1369 = vpop.f32.mrb[0].mxu0
  %1370 = vmatprep.mubr.bf16.mxu0 0
  %1371 = vmatmul.mubr.bf16.gmra.mrb[0].mxu0 %v1260
  %v1372 = vpop.f32.mrb[0].mxu0
  %v1373 = vadd.f32 0.0, %v1372
  %v1374 = vpop.f32.mrb[0].mxu0
  %v1375 = vpop.f32.mrb[0].mxu0
  %v1376 = vadd.f32 0.0, %v1375
  %v1377 = vpop.f32.mrb[0].mxu0
  %1378 = vmatprep.mubr.bf16.mxu0 0
  %1379 = vmatmul.mubr.bf16.gmra.mrb[0].mxu0 %v1263
  %v1380 = vpop.f32.mrb[0].mxu0
  %v1381 = vadd.f32 0.0, %v1380
  %v1382 = vpop.f32.mrb[0].mxu0
  %v1383 = vpop.f32.mrb[0].mxu0
  %v1384 = vadd.f32 0.0, %v1383
  %v1385 = vpop.f32.mrb[0].mxu0
  %1386 = vmatprep.mubr.bf16.mxu0 0
  %1387 = vmatmul.mubr.bf16.gmra.mrb[0].mxu0 %v1266
  %v1388 = vpop.f32.mrb[0].mxu0
  %v1389 = vadd.f32 0.0, %v1388
  %v1390 = vpop.f32.mrb[0].mxu0
  %v1391 = vpop.f32.mrb[0].mxu0
  %v1392 = vadd.f32 0.0, %v1391
  %v1393 = vpop.f32.mrb[0].mxu0
  %1394 = vmatprep.mubr.bf16.mxu0 0
  %1395 = vmatmul.mubr.bf16.gmra.mrb[0].mxu0 %v1269
  %v1396 = vpop.f32.mrb[0].mxu0
  %v1397 = vadd.f32 0.0, %v1396
  %v1398 = vpop.f32.mrb[0].mxu0
  %v1399 = vpop.f32.mrb[0].mxu0
  %v1400 = vadd.f32 0.0, %v1399
  %v1401 = vpop.f32.mrb[0].mxu0
  %1402 = vmatprep.mubr.bf16.mxu0 0
  %1403 = vmatmul.mubr.bf16.gmra.mrb[0].mxu0 %v1272
  %v1404 = vpop.f32.mrb[0].mxu0
  %v1405 = vadd.f32 0.0, %v1404
  %v1406 = vpop.f32.mrb[0].mxu0
  %v1407 = vpop.f32.mrb[0].mxu0
  %v1408 = vadd.f32 0.0, %v1407
  %v1409 = vpop.f32.mrb[0].mxu0
  %1410 = vmatprep.mubr.bf16.mxu0 0
  %1411 = vmatmul.mubr.bf16.gmra.mrb[0].mxu0 %v1275
  %v1412 = vpop.f32.mrb[0].mxu0
  %v1413 = vadd.f32 0.0, %v1412
  %v1414 = vpop.f32.mrb[0].mxu0
  %v1415 = vpop.f32.mrb[0].mxu0
  %v1416 = vadd.f32 0.0, %v1415
  %v1417 = vpop.f32.mrb[0].mxu0
  %1418 = vmatprep.mubr.bf16.mxu0 0
  %1419 = vmatmul.mubr.bf16.gmra.mrb[0].mxu0 %v1278
  %v1420 = vpop.f32.mrb[0].mxu0
  %v1421 = vadd.f32 0.0, %v1420
  %v1422 = vpop.f32.mrb[0].mxu0
  %v1423 = vpop.f32.mrb[0].mxu0
  %v1424 = vadd.f32 0.0, %v1423
  %v1425 = vpop.f32.mrb[0].mxu0
  %1426 = vmatprep.mubr.bf16.mxu0 0
  %1427 = vmatmul.mubr.bf16.gmra.mrb[0].mxu0 %v1281
  %v1428 = vpop.f32.mrb[0].mxu0
  %v1429 = vadd.f32 0.0, %v1428
  %v1430 = vpop.f32.mrb[0].mxu0
  %v1431 = vpop.f32.mrb[0].mxu0
  %v1432 = vadd.f32 0.0, %v1431
  %v1433 = vpop.f32.mrb[0].mxu0
  %1434 = vmatprep.mubr.bf16.mxu0 0
  %1435 = vmatmul.mubr.bf16.gmra.mrb[0].mxu0 %v1284
  %v1436 = vpop.f32.mrb[0].mxu0
  %v1437 = vadd.f32 0.0, %v1436
  %v1438 = vpop.f32.mrb[0].mxu0
  %v1439 = vpop.f32.mrb[0].mxu0
  %v1440 = vadd.f32 0.0, %v1439
  %v1441 = vpop.f32.mrb[0].mxu0
  %1442 = vmatprep.mubr.bf16.mxu0 0
  %1443 = vmatmul.mubr.bf16.gmra.mrb[0].mxu0 %v1287
  %v1444 = vpop.f32.mrb[0].mxu0
  %v1445 = vadd.f32 0.0, %v1444
  %v1446 = vpop.f32.mrb[0].mxu0
  %v1447 = vpop.f32.mrb[0].mxu0
  %v1448 = vadd.f32 0.0, %v1447
  %v1449 = vpop.f32.mrb[0].mxu0
  %1450 = vmatprep.mubr.bf16.mxu0 0
  %1451 = vmatmul.mubr.bf16.gmra.mrb[0].mxu0 %v1290
  %v1452 = vpop.f32.mrb[0].mxu0
  %v1453 = vadd.f32 0.0, %v1452
  %v1454 = vpop.f32.mrb[0].mxu0
  %v1455 = vpop.f32.mrb[0].mxu0
  %v1456 = vadd.f32 0.0, %v1455
  %v1457 = vpop.f32.mrb[0].mxu0
  %1458 = vmatprep.mubr.bf16.mxu0 0
  %1459 = vmatmul.mubr.bf16.gmra.mrb[0].mxu0 %v1293
  %v1460 = vpop.f32.mrb[0].mxu0
  %v1461 = vadd.f32 0.0, %v1460
  %v1462 = vpop.f32.mrb[0].mxu0
  %v1463 = vpop.f32.mrb[0].mxu0
  %v1464 = vadd.f32 0.0, %v1463
  %v1465 = vpop.f32.mrb[0].mxu0
  %1466 = vmatprep.mubr.bf16.mxu0 0
  %1467 = vmatmul.mubr.bf16.gmra.mrb[0].mxu0 %v1296
  %v1468 = vpop.f32.mrb[0].mxu0
  %v1469 = vadd.f32 0.0, %v1468
  %v1470 = vpop.f32.mrb[0].mxu0
  %v1471 = vpop.f32.mrb[0].mxu0
  %v1472 = vadd.f32 0.0, %v1471
  %v1473 = vpop.f32.mrb[0].mxu0
  %1474 = vdwg.mxu0
  %v1475 = vmax.f32 %v262, %v619
  %v1476 = vmax.f32 %v265, %v622
  %v1477 = vmax.f32 %v270, %v627
  %v1478 = vmax.f32 %v273, %v630
  %v1479 = vmax.f32 %v278, %v635
  %v1480 = vmax.f32 %v281, %v638
  %v1481 = vmax.f32 %v286, %v643
  %v1482 = vmax.f32 %v289, %v646
  %v1483 = vmax.f32 %v294, %v651
  %v1484 = vmax.f32 %v297, %v654
  %v1485 = vmax.f32 %v302, %v659
  %v1486 = vmax.f32 %v305, %v662
  %v1487 = vmax.f32 %v310, %v667
  %v1488 = vmax.f32 %v313, %v670
  %v1489 = vmax.f32 %v318, %v675
  %v1490 = vmax.f32 %v321, %v678
  %v1491 = vmax.f32 %v326, %v683
  %v1492 = vmax.f32 %v329, %v686
  %v1493 = vmax.f32 %v334, %v691
  %v1494 = vmax.f32 %v337, %v694
  %v1495 = vmax.f32 %v342, %v699
  %v1496 = vmax.f32 %v345, %v702
  %v1497 = vmax.f32 %v350, %v707
  %v1498 = vmax.f32 %v353, %v710
  %v1499 = vmax.f32 %v358, %v715
  %v1500 = vmax.f32 %v361, %v718
  %v1501 = vmax.f32 %v366, %v723
  %v1502 = vmax.f32 %v369, %v726
  %v1503 = vmax.f32 %v374, %v731
  %v1504 = vmax.f32 %v377, %v734
  %v1505 = vmax.f32 %v382, %v739
  %v1506 = vmax.f32 %v385, %v742
  %v1507 = vmax.f32 %v390, %v747
  %v1508 = vmax.f32 %v393, %v750
  %v1509 = vmax.f32 %v398, %v755
  %v1510 = vmax.f32 %v401, %v758
  %v1511 = vmax.f32 %v976, %v1333
  %v1512 = vmax.f32 %v979, %v1336
  %v1513 = vmax.f32 %v984, %v1341
  %v1514 = vmax.f32 %v987, %v1344
  %v1515 = vmax.f32 %v992, %v1349
  %v1516 = vmax.f32 %v995, %v1352
  %v1517 = vmax.f32 %v1000, %v1357
  %v1518 = vmax.f32 %v1003, %v1360
  %v1519 = vmax.f32 %v1008, %v1365
  %v1520 = vmax.f32 %v1011, %v1368
  %v1521 = vmax.f32 %v1016, %v1373
  %v1522 = vmax.f32 %v1019, %v1376
  %v1523 = vmax.f32 %v1024, %v1381
  %v1524 = vmax.f32 %v1027, %v1384
  %v1525 = vmax.f32 %v1032, %v1389
  %v1526 = vmax.f32 %v1035, %v1392
  %v1527 = vmax.f32 %v1040, %v1397
  %v1528 = vmax.f32 %v1043, %v1400
  %v1529 = vmax.f32 %v1048, %v1405
  %v1530 = vmax.f32 %v1051, %v1408
  %v1531 = vmax.f32 %v1056, %v1413
  %v1532 = vmax.f32 %v1059, %v1416
  %v1533 = vmax.f32 %v1064, %v1421
  %v1534 = vmax.f32 %v1067, %v1424
  %v1535 = vmax.f32 %v1072, %v1429
  %v1536 = vmax.f32 %v1075, %v1432
  %v1537 = vmax.f32 %v1080, %v1437
  %v1538 = vmax.f32 %v1083, %v1440
  %v1539 = vmax.f32 %v1088, %v1445
  %v1540 = vmax.f32 %v1091, %v1448
  %v1541 = vmax.f32 %v1096, %v1453
  %v1542 = vmax.f32 %v1099, %v1456
  %v1543 = vmax.f32 %v1104, %v1461
  %v1544 = vmax.f32 %v1107, %v1464
  %v1545 = vmax.f32 %v1112, %v1469
  %v1546 = vmax.f32 %v1115, %v1472
  %v1547 = vmax.f32 %v1475, %v1511
  %v1548 = vmax.f32 %v1476, %v1512
  %v1549 = vmax.f32 %v1477, %v1513
  %v1550 = vmax.f32 %v1478, %v1514
  %v1551 = vmax.f32 %v1479, %v1515
  %v1552 = vmax.f32 %v1480, %v1516
  %v1553 = vmax.f32 %v1481, %v1517
  %v1554 = vmax.f32 %v1482, %v1518
  %v1555 = vmax.f32 %v1483, %v1519
  %v1556 = vmax.f32 %v1484, %v1520
  %v1557 = vmax.f32 %v1485, %v1521
  %v1558 = vmax.f32 %v1486, %v1522
  %v1559 = vmax.f32 %v1487, %v1523
  %v1560 = vmax.f32 %v1488, %v1524
  %v1561 = vmax.f32 %v1489, %v1525
  %v1562 = vmax.f32 %v1490, %v1526
  %v1563 = vmax.f32 %v1491, %v1527
  %v1564 = vmax.f32 %v1492, %v1528
  %v1565 = vmax.f32 %v1493, %v1529
  %v1566 = vmax.f32 %v1494, %v1530
  %v1567 = vmax.f32 %v1495, %v1531
  %v1568 = vmax.f32 %v1496, %v1532
  %v1569 = vmax.f32 %v1497, %v1533
  %v1570 = vmax.f32 %v1498, %v1534
  %v1571 = vmax.f32 %v1499, %v1535
  %v1572 = vmax.f32 %v1500, %v1536
  %v1573 = vmax.f32 %v1501, %v1537
  %v1574 = vmax.f32 %v1502, %v1538
  %v1575 = vmax.f32 %v1503, %v1539
  %v1576 = vmax.f32 %v1504, %v1540
  %v1577 = vmax.f32 %v1505, %v1541
  %v1578 = vmax.f32 %v1506, %v1542
  %v1579 = vmax.f32 %v1507, %v1543
  %v1580 = vmax.f32 %v1508, %v1544
  %v1581 = vmax.f32 %v1509, %v1545
  %v1582 = vmax.f32 %v1510, %v1546
  %v1583 = vld [vmem:[%s5] sm:$0x1]
  %v1585 = vlaneseq
  %v1586 = vshrl.u32 %v1585, 7
  %v1587 = vsub.s32 0, %v1586
  %v1588 = vrot.slane %v1583, %v1587
  %v1590 = vadd.f32 %v1547, %v1588
  %v1591 = vadd.f32 %v1548, %v1588
  %v1592 = vadd.f32 %v1549, %v1588
  %v1593 = vadd.f32 %v1550, %v1588
  %v1594 = vadd.f32 %v1551, %v1588
  %v1595 = vadd.f32 %v1552, %v1588
  %v1596 = vadd.f32 %v1553, %v1588
  %v1597 = vadd.f32 %v1554, %v1588
  %v1598 = vadd.f32 %v1555, %v1588
  %v1599 = vadd.f32 %v1556, %v1588
  %v1600 = vadd.f32 %v1557, %v1588
  %v1601 = vadd.f32 %v1558, %v1588
  %v1602 = vadd.f32 %v1559, %v1588
  %v1603 = vadd.f32 %v1560, %v1588
  %v1604 = vadd.f32 %v1561, %v1588
  %v1605 = vadd.f32 %v1562, %v1588
  %v1606 = vadd.f32 %v1563, %v1588
  %v1607 = vadd.f32 %v1564, %v1588
  %v1608 = vadd.f32 %v1565, %v1588
  %v1609 = vadd.f32 %v1566, %v1588
  %v1610 = vadd.f32 %v1567, %v1588
  %v1611 = vadd.f32 %v1568, %v1588
  %v1612 = vadd.f32 %v1569, %v1588
  %v1613 = vadd.f32 %v1570, %v1588
  %v1614 = vadd.f32 %v1571, %v1588
  %v1615 = vadd.f32 %v1572, %v1588
  %v1616 = vadd.f32 %v1573, %v1588
  %v1617 = vadd.f32 %v1574, %v1588
  %v1618 = vadd.f32 %v1575, %v1588
  %v1619 = vadd.f32 %v1576, %v1588
  %v1620 = vadd.f32 %v1577, %v1588
  %v1621 = vadd.f32 %v1578, %v1588
  %v1622 = vadd.f32 %v1579, %v1588
  %v1623 = vadd.f32 %v1580, %v1588
  %v1624 = vadd.f32 %v1581, %v1588
  %v1625 = vadd.f32 %v1582, %v1588
  %v1626 = vmax.f32 %v1590, 0.0
  %v1627 = vmax.f32 %v1591, 0.0
  %v1628 = vmax.f32 %v1592, 0.0
  %v1629 = vmax.f32 %v1593, 0.0
  %v1630 = vmax.f32 %v1594, 0.0
  %v1631 = vmax.f32 %v1595, 0.0
  %v1632 = vmax.f32 %v1596, 0.0
  %v1633 = vmax.f32 %v1597, 0.0
  %v1634 = vmax.f32 %v1598, 0.0
  %v1635 = vmax.f32 %v1599, 0.0
  %v1636 = vmax.f32 %v1600, 0.0
  %v1637 = vmax.f32 %v1601, 0.0
  %v1638 = vmax.f32 %v1602, 0.0
  %v1639 = vmax.f32 %v1603, 0.0
  %v1640 = vmax.f32 %v1604, 0.0
  %v1641 = vmax.f32 %v1605, 0.0
  %v1642 = vmax.f32 %v1606, 0.0
  %v1643 = vmax.f32 %v1607, 0.0
  %v1644 = vmax.f32 %v1608, 0.0
  %v1645 = vmax.f32 %v1609, 0.0
  %v1646 = vmax.f32 %v1610, 0.0
  %v1647 = vmax.f32 %v1611, 0.0
  %v1648 = vmax.f32 %v1612, 0.0
  %v1649 = vmax.f32 %v1613, 0.0
  %v1650 = vmax.f32 %v1614, 0.0
  %v1651 = vmax.f32 %v1615, 0.0
  %v1652 = vmax.f32 %v1616, 0.0
  %v1653 = vmax.f32 %v1617, 0.0
  %v1654 = vmax.f32 %v1618, 0.0
  %v1655 = vmax.f32 %v1619, 0.0
  %v1656 = vmax.f32 %v1620, 0.0
  %v1657 = vmax.f32 %v1621, 0.0
  %v1658 = vmax.f32 %v1622, 0.0
  %v1659 = vmax.f32 %v1623, 0.0
  %v1660 = vmax.f32 %v1624, 0.0
  %v1661 = vmax.f32 %v1625, 0.0
  %vm1662 = vcmask 80896
  %1663 = vst.msk [vmem:[%s6] sm:$0xff] %vm1662, %v1626
  %1664 = vst.msk [vmem:[%s6 + $0x8] sm:$0xff] %vm1662, %v1627
  %1665 = vst.msk [vmem:[%s6 + $0x10] sm:$0xff] %vm1662, %v1628
  %1666 = vst.msk [vmem:[%s6 + $0x18] sm:$0xff] %vm1662, %v1629
  %1667 = vst.msk [vmem:[%s6 + $0x20] sm:$0xff] %vm1662, %v1630
  %1668 = vst.msk [vmem:[%s6 + $0x28] sm:$0xff] %vm1662, %v1631
  %1669 = vst.msk [vmem:[%s6 + $0x30] sm:$0xff] %vm1662, %v1632
  %1670 = vst.msk [vmem:[%s6 + $0x38] sm:$0xff] %vm1662, %v1633
  %1671 = vst.msk [vmem:[%s6 + $0x40] sm:$0xff] %vm1662, %v1634
  %1672 = vst.msk [vmem:[%s6 + $0x48] sm:$0xff] %vm1662, %v1635
  %1673 = vst.msk [vmem:[%s6 + $0x50] sm:$0xff] %vm1662, %v1636
  %1674 = vst.msk [vmem:[%s6 + $0x58] sm:$0xff] %vm1662, %v1637
  %1675 = vst.msk [vmem:[%s6 + $0x60] sm:$0xff] %vm1662, %v1638
  %1676 = vst.msk [vmem:[%s6 + $0x68] sm:$0xff] %vm1662, %v1639
  %1677 = vst.msk [vmem:[%s6 + $0x70] sm:$0xff] %vm1662, %v1640
  %1678 = vst.msk [vmem:[%s6 + $0x78] sm:$0xff] %vm1662, %v1641
  %1679 = vst.msk [vmem:[%s6 + $0x80] sm:$0xff] %vm1662, %v1642
  %1680 = vst.msk [vmem:[%s6 + $0x88] sm:$0xff] %vm1662, %v1643
  %1681 = vst.msk [vmem:[%s6 + $0x90] sm:$0xff] %vm1662, %v1644
  %1682 = vst.msk [vmem:[%s6 + $0x98] sm:$0xff] %vm1662, %v1645
  %1683 = vst.msk [vmem:[%s6 + $0xa0] sm:$0xff] %vm1662, %v1646
  %1684 = vst.msk [vmem:[%s6 + $0xa8] sm:$0xff] %vm1662, %v1647
  %1685 = vst.msk [vmem:[%s6 + $0xb0] sm:$0xff] %vm1662, %v1648
  %1686 = vst.msk [vmem:[%s6 + $0xb8] sm:$0xff] %vm1662, %v1649
  %1687 = vst.msk [vmem:[%s6 + $0xc0] sm:$0xff] %vm1662, %v1650
  %1688 = vst.msk [vmem:[%s6 + $0xc8] sm:$0xff] %vm1662, %v1651
  %1689 = vst.msk [vmem:[%s6 + $0xd0] sm:$0xff] %vm1662, %v1652
  %1690 = vst.msk [vmem:[%s6 + $0xd8] sm:$0xff] %vm1662, %v1653
  %1691 = vst.msk [vmem:[%s6 + $0xe0] sm:$0xff] %vm1662, %v1654
  %1692 = vst.msk [vmem:[%s6 + $0xe8] sm:$0xff] %vm1662, %v1655
  %1693 = vst.msk [vmem:[%s6 + $0xf0] sm:$0xff] %vm1662, %v1656
  %1694 = vst.msk [vmem:[%s6 + $0xf8] sm:$0xff] %vm1662, %v1657
  %1695 = vst.msk [vmem:[%s6 + $0x100] sm:$0xff] %vm1662, %v1658
  %1696 = vst.msk [vmem:[%s6 + $0x108] sm:$0xff] %vm1662, %v1659
  %1697 = vst.msk [vmem:[%s6 + $0x110] sm:$0xff] %vm1662, %v1660
  %1698 = vst.msk [vmem:[%s6 + $0x118] sm:$0xff] %vm1662, %v1661
  // Predicated region
  $region26: #{net_forward.3} parent=0 // pred_check
    _
  $region27: #{net_forward.3} parent=0 // pred_check_branch
    %1700 = sbr.rel (0) target = $region29
  $region28: #{net_forward.3} parent=0 // pred_region
    _
  $region29: #{net_forward.3} parent=0 // pred_fallthru
    _
  // Predicated region
  $region30: #{net_forward.3} parent=0 // pred_check
    _
  $region31: #{net_forward.3} parent=0 // pred_check_branch
    %1702 = sbr.rel (0) target = $region33
  $region32: #{net_forward.3} parent=0 // pred_region
    _
  $region33: #{net_forward.3} parent=0 // pred_fallthru
    _

// kernel: net_forward.4
$region0: #{net_forward.4}
  #allocation0 [shape = 'u32[]', space=smem, size = 0x4, offset = 0x4, fixed_abs, tag = 'smem constant byte address 0x4 - core index']
  #allocation1 [shape = 'u32[144,128]{1,0:T(1,128)}', space=vmem, size = 0x12000, scoped, tag = 'internal scratch']
  %s0 = inlined_call_operand.vmem [shape: bf16[32,250], index: 0, kind: input, shape index: {}]
  %s1 = inlined_call_operand.vmem [shape: bf16[32,250], index: 1, kind: input, shape index: {}]
  %s2 = inlined_call_operand.vmem [shape: bf16[32,250], index: 2, kind: input, shape index: {}]
  %s3 = inlined_call_operand.vmem [shape: bf16[32,250], index: 3, kind: input, shape index: {}]
  %s4 = inlined_call_operand.vmem [shape: bf16[250,20], index: 4, kind: input, shape index: {}]
  %s5 = inlined_call_operand.vmem [shape: f32[1,20], index: 5, kind: input, shape index: {}]
  %s6 = inlined_call_operand.vmem [shape: f32[32,20], index: 6, kind: output, shape index: {}]
  %s7 = sld [smem:[#allocation0]]
  $region34: #{net_forward.4} parent=0
    _
  %s9 = ssub.s32 1, %s7
  %s10 = scalar_select 0, %s9, %s7
  // Predicated region
  $region2: #{net_forward.4} parent=0 // pred_check
    _
  $region3: #{net_forward.4} parent=0 // pred_check_branch
    %12 = sbr.rel (0) target = $region5
  $region4: #{net_forward.4} parent=0 // pred_region
    _
  $region5: #{net_forward.4} parent=0 // pred_fallthru
    _
  // Predicated region
  $region6: #{net_forward.4} parent=0 // pred_check
    _
  $region7: #{net_forward.4} parent=0 // pred_check_branch
    %14 = sbr.rel (0) target = $region9
  $region8: #{net_forward.4} parent=0 // pred_region
    _
  $region9: #{net_forward.4} parent=0 // pred_fallthru
    _
  // Predicated region
  $region10: #{net_forward.4} parent=0 // pred_check
    _
  $region11: #{net_forward.4} parent=0 // pred_check_branch
    %16 = sbr.rel (0) target = $region13
  $region12: #{net_forward.4} parent=0 // pred_region
    _
  $region13: #{net_forward.4} parent=0 // pred_fallthru
    _
  // Predicated region
  $region14: #{net_forward.4} parent=0 // pred_check
    _
  $region15: #{net_forward.4} parent=0 // pred_check_branch
    %18 = sbr.rel (0) target = $region17
  $region16: #{net_forward.4} parent=0 // pred_region
    _
  $region17: #{net_forward.4} parent=0 // pred_fallthru
    _
  // Predicated region
  $region18: #{net_forward.4} parent=0 // pred_check
    _
  $region19: #{net_forward.4} parent=0 // pred_check_branch
    %20 = sbr.rel (0) target = $region21
  $region20: #{net_forward.4} parent=0 // pred_region
    _
  $region21: #{net_forward.4} parent=0 // pred_fallthru
    _
  // Predicated region
  $region22: #{net_forward.4} parent=0 // pred_check
    _
  $region23: #{net_forward.4} parent=0 // pred_check_branch
    %22 = sbr.rel (0) target = $region25
  $region24: #{net_forward.4} parent=0 // pred_region
    _
  $region25: #{net_forward.4} parent=0 // pred_fallthru
    _
  %v24 = vld [vmem:[%s4] sm:$0xf]
  %v25 = vld [vmem:[%s4 + $0x4] sm:$0xf]
  %v26 = vld [vmem:[%s4 + $0x8] sm:$0xf]
  %v27 = vld [vmem:[%s4 + $0xc] sm:$0xf]
  %v28 = vld [vmem:[%s4 + $0x10] sm:$0xf]
  %v29 = vld [vmem:[%s4 + $0x14] sm:$0xf]
  %v30 = vld [vmem:[%s4 + $0x18] sm:$0xf]
  %v31 = vld [vmem:[%s4 + $0x1c] sm:$0xf]
  %v32 = vld [vmem:[%s4 + $0x20] sm:$0xf]
  %v33 = vld [vmem:[%s4 + $0x24] sm:$0xf]
  %v34 = vld [vmem:[%s4 + $0x28] sm:$0xf]
  %v35 = vld [vmem:[%s4 + $0x2c] sm:$0xf]
  %v36 = vld [vmem:[%s4 + $0x30] sm:$0xf]
  %v37 = vld [vmem:[%s4 + $0x34] sm:$0xf]
  %v38 = vld [vmem:[%s4 + $0x38] sm:$0xf]
  %v39 = vld [vmem:[%s4 + $0x3c] sm:$0xf]
  %v40 = vld [vmem:[%s4 + $0x40] sm:$0xf]
  %v41 = vld [vmem:[%s4 + $0x44] sm:$0xf]
  %v42 = vld [vmem:[%s4 + $0x48] sm:$0xf]
  %v43 = vld [vmem:[%s4 + $0x4c] sm:$0xf]
  %v44 = vld [vmem:[%s4 + $0x50] sm:$0xf]
  %v45 = vld [vmem:[%s4 + $0x54] sm:$0xf]
  %v46 = vld [vmem:[%s4 + $0x58] sm:$0xf]
  %v47 = vld [vmem:[%s4 + $0x5c] sm:$0xf]
  %v48 = vld [vmem:[%s4 + $0x60] sm:$0xf]
  %v49 = vld [vmem:[%s4 + $0x64] sm:$0xf]
  %v50 = vld [vmem:[%s4 + $0x68] sm:$0xf]
  %v51 = vld [vmem:[%s4 + $0x6c] sm:$0xf]
  %v52 = vld [vmem:[%s4 + $0x70] sm:$0xf]
  %v53 = vld [vmem:[%s4 + $0x74] sm:$0xf]
  %v54 = vld [vmem:[%s4 + $0x78] sm:$0xf]
  %v55 = vld [vmem:[%s4 + $0x7c] sm:$0x1]
  %v56 = vld [vmem:[%s0] sm:$0xff]
  %v57 = vld [vmem:[%s0 + $0x8] sm:$0xff]
  %v58 = vld [vmem:[%s0 + $0x10] sm:$0xff]
  %v59 = vld [vmem:[%s0 + $0x18] sm:$0xff]
  %v64 = vunpack.c.l.b16 %v56
  %v65 = vunpack.c.h.b16 %v56
  %v66 = vunpack.c.l.b16 %v57
  %v67 = vunpack.c.h.b16 %v57
  %v68 = vunpack.c.l.b16 %v58
  %v69 = vunpack.c.h.b16 %v58
  %v70 = vunpack.c.l.b16 %v59
  %v71 = vunpack.c.h.b16 %v59
  %v72 = vpack.c.b16 %v66, %v64
  %v73 = vpack.c.b16 %v67, %v65
  %v74 = vpack.c.b16 %v70, %v68
  %v75 = vpack.c.b16 %v71, %v69
  %v110 = vunpack.c.l.b16 %v24
  %v111 = vunpack.c.l.b16 %v25
  %v112 = vunpack.c.l.b16 %v26
  %v113 = vunpack.c.l.b16 %v27
  %v114 = vunpack.c.l.b16 %v28
  %v115 = vunpack.c.l.b16 %v29
  %v116 = vunpack.c.l.b16 %v30
  %v117 = vunpack.c.l.b16 %v31
  %v118 = vunpack.c.l.b16 %v32
  %v119 = vunpack.c.l.b16 %v33
  %v120 = vunpack.c.l.b16 %v34
  %v121 = vunpack.c.l.b16 %v35
  %v122 = vunpack.c.l.b16 %v36
  %v123 = vunpack.c.l.b16 %v37
  %v124 = vunpack.c.l.b16 %v38
  %v125 = vunpack.c.l.b16 %v39
  %v126 = vunpack.c.l.b16 %v40
  %v127 = vunpack.c.l.b16 %v41
  %v128 = vunpack.c.l.b16 %v42
  %v129 = vunpack.c.l.b16 %v43
  %v130 = vunpack.c.l.b16 %v44
  %v131 = vunpack.c.l.b16 %v45
  %v132 = vunpack.c.l.b16 %v46
  %v133 = vunpack.c.l.b16 %v47
  %v134 = vunpack.c.l.b16 %v48
  %v135 = vunpack.c.l.b16 %v49
  %v136 = vunpack.c.l.b16 %v50
  %v137 = vunpack.c.l.b16 %v51
  %v138 = vunpack.c.l.b16 %v52
  %v139 = vunpack.c.l.b16 %v53
  %v140 = vunpack.c.l.b16 %v54
  %v141 = vunpack.c.l.b16 %v55
  %v142 = vpack.c.b16 %v111, %v110
  %v143 = vpack.c.b16 %v113, %v112
  %v144 = vpack.c.b16 %v115, %v114
  %v145 = vpack.c.b16 %v117, %v116
  %v146 = vpack.c.b16 %v119, %v118
  %v147 = vpack.c.b16 %v121, %v120
  %v148 = vpack.c.b16 %v123, %v122
  %v149 = vpack.c.b16 %v125, %v124
  %v150 = vpack.c.b16 %v127, %v126
  %v151 = vpack.c.b16 %v129, %v128
  %v152 = vpack.c.b16 %v131, %v130
  %v153 = vpack.c.b16 %v133, %v132
  %v154 = vpack.c.b16 %v135, %v134
  %v155 = vpack.c.b16 %v137, %v136
  %v156 = vpack.c.b16 %v139, %v138
  %v157 = vpack.c.b16 %v141, %v140
  %vm173 = vcmask 998400
  %v175 = vsel %vm173, %v73, 0
  %v178 = vsel %vm173, %v75, 0
  %vm180 = vcmask 1044480
  %v182 = vsel %vm180, %v157, 0
  %184 = vmatprep.subr.bf16.mxu0 0
  %185 = vmatpush1.bf16.msra.mxu0 %v142
  %186 = vmatprep.subr.bf16.mxu0 0
  %187 = vmatpush1.bf16.msra.mxu0 %v143
  %188 = vmatprep.subr.bf16.mxu0 0
  %189 = vmatpush1.bf16.msra.mxu0 %v144
  %190 = vmatprep.subr.bf16.mxu0 0
  %191 = vmatpush1.bf16.msra.mxu0 %v145
  %192 = vmatprep.subr.bf16.mxu0 0
  %193 = vmatpush1.bf16.msra.mxu0 %v146
  %194 = vmatprep.subr.bf16.mxu0 0
  %195 = vmatpush1.bf16.msra.mxu0 %v147
  %196 = vmatprep.subr.bf16.mxu0 0
  %197 = vmatpush1.bf16.msra.mxu0 %v148
  %198 = vmatprep.subr.bf16.mxu0 0
  %199 = vmatpush1.bf16.msra.mxu0 %v149
  %200 = vmatprep.subr.bf16.mxu0 0
  %201 = vmatpush1.bf16.msra.mxu0 %v150
  %202 = vmatprep.subr.bf16.mxu0 0
  %203 = vmatpush1.bf16.msra.mxu0 %v151
  %204 = vmatprep.subr.bf16.mxu0 0
  %205 = vmatpush1.bf16.msra.mxu0 %v152
  %206 = vmatprep.subr.bf16.mxu0 0
  %207 = vmatpush1.bf16.msra.mxu0 %v153
  %208 = vmatprep.subr.bf16.mxu0 0
  %209 = vmatpush1.bf16.msra.mxu0 %v154
  %210 = vmatprep.subr.bf16.mxu0 0
  %211 = vmatpush1.bf16.msra.mxu0 %v155
  %212 = vmatprep.subr.bf16.mxu0 0
  %213 = vmatpush1.bf16.msra.mxu0 %v156
  %214 = vmatprep.subr.bf16.mxu0 0
  %215 = vmatpush1.bf16.msra.mxu0 %v182
  %216 = vmatprep.mubr.bf16.mxu0 %v175
  %217 = vmatmul.mubr.bf16.gmra.mrb[0].mxu0 %v72
  %v218 = vpop.f32.mrb[0].mxu0
  %v219 = vadd.f32 0.0, %v218
  %v220 = vpop.f32.mrb[0].mxu0
  %v221 = vpop.f32.mrb[0].mxu0
  %v222 = vadd.f32 0.0, %v221
  %v223 = vpop.f32.mrb[0].mxu0
  %224 = vmatprep.mubr.bf16.mxu0 %v178
  %225 = vmatmul.mubr.bf16.gmra.mrb[0].mxu0 %v74
  %v226 = vpop.f32.mrb[0].mxu0
  %v227 = vadd.f32 0.0, %v226
  %v228 = vpop.f32.mrb[0].mxu0
  %v229 = vpop.f32.mrb[0].mxu0
  %v230 = vadd.f32 0.0, %v229
  %v231 = vpop.f32.mrb[0].mxu0
  %232 = vdwg.mxu0
  %v233 = vld [vmem:[%s1] sm:$0xff]
  %v234 = vld [vmem:[%s1 + $0x8] sm:$0xff]
  %v235 = vld [vmem:[%s1 + $0x10] sm:$0xff]
  %v236 = vld [vmem:[%s1 + $0x18] sm:$0xff]
  %v241 = vunpack.c.l.b16 %v233
  %v242 = vunpack.c.h.b16 %v233
  %v243 = vunpack.c.l.b16 %v234
  %v244 = vunpack.c.h.b16 %v234
  %v245 = vunpack.c.l.b16 %v235
  %v246 = vunpack.c.h.b16 %v235
  %v247 = vunpack.c.l.b16 %v236
  %v248 = vunpack.c.h.b16 %v236
  %v249 = vpack.c.b16 %v243, %v241
  %v250 = vpack.c.b16 %v244, %v242
  %v251 = vpack.c.b16 %v247, %v245
  %v252 = vpack.c.b16 %v248, %v246
  %v256 = vsel %vm173, %v250, 0
  %v259 = vsel %vm173, %v252, 0
  %261 = vmatprep.subr.bf16.mxu0 0
  %262 = vmatpush1.bf16.msra.mxu0 %v142
  %263 = vmatprep.subr.bf16.mxu0 0
  %264 = vmatpush1.bf16.msra.mxu0 %v143
  %265 = vmatprep.subr.bf16.mxu0 0
  %266 = vmatpush1.bf16.msra.mxu0 %v144
  %267 = vmatprep.subr.bf16.mxu0 0
  %268 = vmatpush1.bf16.msra.mxu0 %v145
  %269 = vmatprep.subr.bf16.mxu0 0
  %270 = vmatpush1.bf16.msra.mxu0 %v146
  %271 = vmatprep.subr.bf16.mxu0 0
  %272 = vmatpush1.bf16.msra.mxu0 %v147
  %273 = vmatprep.subr.bf16.mxu0 0
  %274 = vmatpush1.bf16.msra.mxu0 %v148
  %275 = vmatprep.subr.bf16.mxu0 0
  %276 = vmatpush1.bf16.msra.mxu0 %v149
  %277 = vmatprep.subr.bf16.mxu0 0
  %278 = vmatpush1.bf16.msra.mxu0 %v150
  %279 = vmatprep.subr.bf16.mxu0 0
  %280 = vmatpush1.bf16.msra.mxu0 %v151
  %281 = vmatprep.subr.bf16.mxu0 0
  %282 = vmatpush1.bf16.msra.mxu0 %v152
  %283 = vmatprep.subr.bf16.mxu0 0
  %284 = vmatpush1.bf16.msra.mxu0 %v153
  %285 = vmatprep.subr.bf16.mxu0 0
  %286 = vmatpush1.bf16.msra.mxu0 %v154
  %287 = vmatprep.subr.bf16.mxu0 0
  %288 = vmatpush1.bf16.msra.mxu0 %v155
  %289 = vmatprep.subr.bf16.mxu0 0
  %290 = vmatpush1.bf16.msra.mxu0 %v156
  %291 = vmatprep.subr.bf16.mxu0 0
  %292 = vmatpush1.bf16.msra.mxu0 %v182
  %293 = vmatprep.mubr.bf16.mxu0 %v256
  %294 = vmatmul.mubr.bf16.gmra.mrb[0].mxu0 %v249
  %v295 = vpop.f32.mrb[0].mxu0
  %v296 = vadd.f32 0.0, %v295
  %v297 = vpop.f32.mrb[0].mxu0
  %v298 = vpop.f32.mrb[0].mxu0
  %v299 = vadd.f32 0.0, %v298
  %v300 = vpop.f32.mrb[0].mxu0
  %301 = vmatprep.mubr.bf16.mxu0 %v259
  %302 = vmatmul.mubr.bf16.gmra.mrb[0].mxu0 %v251
  %v303 = vpop.f32.mrb[0].mxu0
  %v304 = vadd.f32 0.0, %v303
  %v305 = vpop.f32.mrb[0].mxu0
  %v306 = vpop.f32.mrb[0].mxu0
  %v307 = vadd.f32 0.0, %v306
  %v308 = vpop.f32.mrb[0].mxu0
  %309 = vdwg.mxu0
  %v310 = vld [vmem:[%s2] sm:$0xff]
  %v311 = vld [vmem:[%s2 + $0x8] sm:$0xff]
  %v312 = vld [vmem:[%s2 + $0x10] sm:$0xff]
  %v313 = vld [vmem:[%s2 + $0x18] sm:$0xff]
  %v318 = vunpack.c.l.b16 %v310
  %v319 = vunpack.c.h.b16 %v310
  %v320 = vunpack.c.l.b16 %v311
  %v321 = vunpack.c.h.b16 %v311
  %v322 = vunpack.c.l.b16 %v312
  %v323 = vunpack.c.h.b16 %v312
  %v324 = vunpack.c.l.b16 %v313
  %v325 = vunpack.c.h.b16 %v313
  %v326 = vpack.c.b16 %v320, %v318
  %v327 = vpack.c.b16 %v321, %v319
  %v328 = vpack.c.b16 %v324, %v322
  %v329 = vpack.c.b16 %v325, %v323
  %v333 = vsel %vm173, %v327, 0
  %v336 = vsel %vm173, %v329, 0
  %338 = vmatprep.subr.bf16.mxu0 0
  %339 = vmatpush1.bf16.msra.mxu0 %v142
  %340 = vmatprep.subr.bf16.mxu0 0
  %341 = vmatpush1.bf16.msra.mxu0 %v143
  %342 = vmatprep.subr.bf16.mxu0 0
  %343 = vmatpush1.bf16.msra.mxu0 %v144
  %344 = vmatprep.subr.bf16.mxu0 0
  %345 = vmatpush1.bf16.msra.mxu0 %v145
  %346 = vmatprep.subr.bf16.mxu0 0
  %347 = vmatpush1.bf16.msra.mxu0 %v146
  %348 = vmatprep.subr.bf16.mxu0 0
  %349 = vmatpush1.bf16.msra.mxu0 %v147
  %350 = vmatprep.subr.bf16.mxu0 0
  %351 = vmatpush1.bf16.msra.mxu0 %v148
  %352 = vmatprep.subr.bf16.mxu0 0
  %353 = vmatpush1.bf16.msra.mxu0 %v149
  %354 = vmatprep.subr.bf16.mxu0 0
  %355 = vmatpush1.bf16.msra.mxu0 %v150
  %356 = vmatprep.subr.bf16.mxu0 0
  %357 = vmatpush1.bf16.msra.mxu0 %v151
  %358 = vmatprep.subr.bf16.mxu0 0
  %359 = vmatpush1.bf16.msra.mxu0 %v152
  %360 = vmatprep.subr.bf16.mxu0 0
  %361 = vmatpush1.bf16.msra.mxu0 %v153
  %362 = vmatprep.subr.bf16.mxu0 0
  %363 = vmatpush1.bf16.msra.mxu0 %v154
  %364 = vmatprep.subr.bf16.mxu0 0
  %365 = vmatpush1.bf16.msra.mxu0 %v155
  %366 = vmatprep.subr.bf16.mxu0 0
  %367 = vmatpush1.bf16.msra.mxu0 %v156
  %368 = vmatprep.subr.bf16.mxu0 0
  %369 = vmatpush1.bf16.msra.mxu0 %v182
  %370 = vmatprep.mubr.bf16.mxu0 %v333
  %371 = vmatmul.mubr.bf16.gmra.mrb[0].mxu0 %v326
  %v372 = vpop.f32.mrb[0].mxu0
  %v373 = vadd.f32 0.0, %v372
  %v374 = vpop.f32.mrb[0].mxu0
  %v375 = vpop.f32.mrb[0].mxu0
  %v376 = vadd.f32 0.0, %v375
  %v377 = vpop.f32.mrb[0].mxu0
  %378 = vmatprep.mubr.bf16.mxu0 %v336
  %379 = vmatmul.mubr.bf16.gmra.mrb[0].mxu0 %v328
  %v380 = vpop.f32.mrb[0].mxu0
  %v381 = vadd.f32 0.0, %v380
  %v382 = vpop.f32.mrb[0].mxu0
  %v383 = vpop.f32.mrb[0].mxu0
  %v384 = vadd.f32 0.0, %v383
  %v385 = vpop.f32.mrb[0].mxu0
  %386 = vdwg.mxu0
  %v387 = vld [vmem:[%s3] sm:$0xff]
  %v388 = vld [vmem:[%s3 + $0x8] sm:$0xff]
  %v389 = vld [vmem:[%s3 + $0x10] sm:$0xff]
  %v390 = vld [vmem:[%s3 + $0x18] sm:$0xff]
  %v395 = vunpack.c.l.b16 %v387
  %v396 = vunpack.c.h.b16 %v387
  %v397 = vunpack.c.l.b16 %v388
  %v398 = vunpack.c.h.b16 %v388
  %v399 = vunpack.c.l.b16 %v389
  %v400 = vunpack.c.h.b16 %v389
  %v401 = vunpack.c.l.b16 %v390
  %v402 = vunpack.c.h.b16 %v390
  %v403 = vpack.c.b16 %v397, %v395
  %v404 = vpack.c.b16 %v398, %v396
  %v405 = vpack.c.b16 %v401, %v399
  %v406 = vpack.c.b16 %v402, %v400
  %v410 = vsel %vm173, %v404, 0
  %v413 = vsel %vm173, %v406, 0
  %415 = vmatprep.subr.bf16.mxu0 0
  %416 = vmatpush1.bf16.msra.mxu0 %v142
  %417 = vmatprep.subr.bf16.mxu0 0
  %418 = vmatpush1.bf16.msra.mxu0 %v143
  %419 = vmatprep.subr.bf16.mxu0 0
  %420 = vmatpush1.bf16.msra.mxu0 %v144
  %421 = vmatprep.subr.bf16.mxu0 0
  %422 = vmatpush1.bf16.msra.mxu0 %v145
  %423 = vmatprep.subr.bf16.mxu0 0
  %424 = vmatpush1.bf16.msra.mxu0 %v146
  %425 = vmatprep.subr.bf16.mxu0 0
  %426 = vmatpush1.bf16.msra.mxu0 %v147
  %427 = vmatprep.subr.bf16.mxu0 0
  %428 = vmatpush1.bf16.msra.mxu0 %v148
  %429 = vmatprep.subr.bf16.mxu0 0
  %430 = vmatpush1.bf16.msra.mxu0 %v149
  %431 = vmatprep.subr.bf16.mxu0 0
  %432 = vmatpush1.bf16.msra.mxu0 %v150
  %433 = vmatprep.subr.bf16.mxu0 0
  %434 = vmatpush1.bf16.msra.mxu0 %v151
  %435 = vmatprep.subr.bf16.mxu0 0
  %436 = vmatpush1.bf16.msra.mxu0 %v152
  %437 = vmatprep.subr.bf16.mxu0 0
  %438 = vmatpush1.bf16.msra.mxu0 %v153
  %439 = vmatprep.subr.bf16.mxu0 0
  %440 = vmatpush1.bf16.msra.mxu0 %v154
  %441 = vmatprep.subr.bf16.mxu0 0
  %442 = vmatpush1.bf16.msra.mxu0 %v155
  %443 = vmatprep.subr.bf16.mxu0 0
  %444 = vmatpush1.bf16.msra.mxu0 %v156
  %445 = vmatprep.subr.bf16.mxu0 0
  %446 = vmatpush1.bf16.msra.mxu0 %v182
  %447 = vmatprep.mubr.bf16.mxu0 %v410
  %448 = vmatmul.mubr.bf16.gmra.mrb[0].mxu0 %v403
  %v449 = vpop.f32.mrb[0].mxu0
  %v450 = vadd.f32 0.0, %v449
  %v451 = vpop.f32.mrb[0].mxu0
  %v452 = vpop.f32.mrb[0].mxu0
  %v453 = vadd.f32 0.0, %v452
  %v454 = vpop.f32.mrb[0].mxu0
  %455 = vmatprep.mubr.bf16.mxu0 %v413
  %456 = vmatmul.mubr.bf16.gmra.mrb[0].mxu0 %v405
  %v457 = vpop.f32.mrb[0].mxu0
  %v458 = vadd.f32 0.0, %v457
  %v459 = vpop.f32.mrb[0].mxu0
  %v460 = vpop.f32.mrb[0].mxu0
  %v461 = vadd.f32 0.0, %v460
  %v462 = vpop.f32.mrb[0].mxu0
  %463 = vdwg.mxu0
  %v464 = vmax.f32 %v219, %v296
  %v465 = vmax.f32 %v222, %v299
  %v466 = vmax.f32 %v227, %v304
  %v467 = vmax.f32 %v230, %v307
  %v468 = vmax.f32 %v373, %v450
  %v469 = vmax.f32 %v376, %v453
  %v470 = vmax.f32 %v381, %v458
  %v471 = vmax.f32 %v384, %v461
  %v472 = vmax.f32 %v464, %v468
  %v473 = vmax.f32 %v465, %v469
  %v474 = vmax.f32 %v466, %v470
  %v475 = vmax.f32 %v467, %v471
  %v476 = vld [vmem:[%s5] sm:$0x1]
  %v478 = vlaneseq
  %v479 = vshrl.u32 %v478, 7
  %v480 = vsub.s32 0, %v479
  %v481 = vrot.slane %v476, %v480
  %v483 = vadd.f32 %v472, %v481
  %v484 = vadd.f32 %v473, %v481
  %v485 = vadd.f32 %v474, %v481
  %v486 = vadd.f32 %v475, %v481
  %v487 = vmax.f32 %v483, 0.0
  %v488 = vmax.f32 %v484, 0.0
  %v489 = vmax.f32 %v485, 0.0
  %v490 = vmax.f32 %v486, 0.0
  %vm491 = vcmask 162816
  %492 = vst.msk [vmem:[%s6] sm:$0xff] %vm491, %v487
  %493 = vst.msk [vmem:[%s6 + $0x8] sm:$0xff] %vm491, %v488
  %494 = vst.msk [vmem:[%s6 + $0x10] sm:$0xff] %vm491, %v489
  %495 = vst.msk [vmem:[%s6 + $0x18] sm:$0xff] %vm491, %v490
  // Predicated region
  $region26: #{net_forward.4} parent=0 // pred_check
    _
  $region27: #{net_forward.4} parent=0 // pred_check_branch
    %497 = sbr.rel (0) target = $region29
  $region28: #{net_forward.4} parent=0 // pred_region
    _
  $region29: #{net_forward.4} parent=0 // pred_fallthru
    _
  // Predicated region
  $region30: #{net_forward.4} parent=0 // pred_check
    _
  $region31: #{net_forward.4} parent=0 // pred_check_branch
    %499 = sbr.rel (0) target = $region33
  $region32: #{net_forward.4} parent=0 // pred_region
    _
  $region33: #{net_forward.4} parent=0 // pred_fallthru
    _

// kernel: net_forward.5
$region0: #{net_forward.5}
  #allocation0 [shape = 'u32[]', space=smem, size = 0x4, offset = 0x4, fixed_abs, tag = 'smem constant byte address 0x4 - core index']
  #allocation1 [shape = 'u32[144,128]{1,0:T(1,128)}', space=vmem, size = 0x12000, scoped, tag = 'internal scratch']
  %s0 = inlined_call_operand.vmem [shape: f32[2,320], index: 0, kind: input, shape index: {}]
  %s1 = inlined_call_operand.vmem [shape: bf16[320,50], index: 1, kind: input, shape index: {}]
  %s2 = inlined_call_operand.vmem [shape: f32[1,50], index: 2, kind: input, shape index: {}]
  %s3 = inlined_call_operand.vmem [shape: bf16[50,10], index: 3, kind: input, shape index: {}]
  %s4 = inlined_call_operand.vmem [shape: f32[1,10], index: 4, kind: input, shape index: {}]
  %s5 = inlined_call_operand.vmem [shape: bf16[50,512], index: 5, kind: input, shape index: {}]
  %s6 = inlined_call_operand.vmem [shape: f32[1,512], index: 6, kind: input, shape index: {}]
  %s7 = inlined_call_operand.vmem [shape: bf16[512,1024], index: 7, kind: input, shape index: {}]
  %s8 = inlined_call_operand.vmem [shape: f32[1,1024], index: 8, kind: input, shape index: {}]
  %s9 = inlined_call_operand.vmem [shape: bf16[1024,784], index: 9, kind: input, shape index: {}]
  %s10 = inlined_call_operand.vmem [shape: f32[1,784], index: 10, kind: input, shape index: {}]
  %s11 = inlined_call_operand.hbm [shape: f32[2,10], index: 11, kind: output, shape index: {0}]
  %s12 = inlined_call_operand.hbm [shape: f32[2,784], index: 12, kind: output, shape index: {1}]
  %13 = xla_tuple %s11, %s12
  %s14 = sld [smem:[#allocation0]]
  $region62: #{net_forward.5} parent=0
    _
  %s16 = ssub.s32 1, %s14
  %s17 = scalar_select 0, %s16, %s14
  $region1: #{net_forward.5} parent=0
    #allocation2 [shape = 'u8[1024]{0}', space=vmem, size = 0x400, scoped, tag = 'output window, operand 0, single buffered']
    #allocation3 [shape = 's32[1]{0}', space=sflag, size = 0x4, scoped, tag = 'scoped memory for net_forward.5']
    #allocation4 [shape = 'u8[7168]{0}', space=vmem, size = 0x1c00, scoped, tag = 'output window, operand 1, single buffered']
    #allocation5 [shape = 's32[1]{0}', space=sflag, size = 0x4, scoped, tag = 'scoped memory for net_forward.5']
    %18 = vsyncpa [#allocation3], 0
    %19 = vsyncpa [#allocation5], 0
    // Predicated region
    $region2: #{net_forward.5} parent=1 // pred_check
      _
    $region3: #{net_forward.5} parent=1 // pred_check_branch
      %21 = sbr.rel (0) target = $region5
    $region4: #{net_forward.5} parent=1 // pred_region
      _
    $region5: #{net_forward.5} parent=1 // pred_fallthru
      _
    // Predicated region
    $region6: #{net_forward.5} parent=1 // pred_check
      _
    $region7: #{net_forward.5} parent=1 // pred_check_branch
      %23 = sbr.rel (0) target = $region9
    $region8: #{net_forward.5} parent=1 // pred_region
      _
    $region9: #{net_forward.5} parent=1 // pred_fallthru
      _
    // Predicated region
    $region10: #{net_forward.5} parent=1 // pred_check
      _
    $region11: #{net_forward.5} parent=1 // pred_check_branch
      %25 = sbr.rel (0) target = $region13
    $region12: #{net_forward.5} parent=1 // pred_region
      _
    $region13: #{net_forward.5} parent=1 // pred_fallthru
      _
    // Predicated region
    $region14: #{net_forward.5} parent=1 // pred_check
      _
    $region15: #{net_forward.5} parent=1 // pred_check_branch
      %27 = sbr.rel (0) target = $region17
    $region16: #{net_forward.5} parent=1 // pred_region
      _
    $region17: #{net_forward.5} parent=1 // pred_fallthru
      _
    // Predicated region
    $region18: #{net_forward.5} parent=1 // pred_check
      _
    $region19: #{net_forward.5} parent=1 // pred_check_branch
      %29 = sbr.rel (0) target = $region21
    $region20: #{net_forward.5} parent=1 // pred_region
      _
    $region21: #{net_forward.5} parent=1 // pred_fallthru
      _
    // Predicated region
    $region22: #{net_forward.5} parent=1 // pred_check
      _
    $region23: #{net_forward.5} parent=1 // pred_check_branch
      %31 = sbr.rel (0) target = $region25
    $region24: #{net_forward.5} parent=1 // pred_region
      _
    $region25: #{net_forward.5} parent=1 // pred_fallthru
      _
    // Predicated region
    $region26: #{net_forward.5} parent=1 // pred_check
      _
    $region27: #{net_forward.5} parent=1 // pred_check_branch
      %33 = sbr.rel (0) target = $region29
    $region28: #{net_forward.5} parent=1 // pred_region
      _
    $region29: #{net_forward.5} parent=1 // pred_fallthru
      _
    // Predicated region
    $region30: #{net_forward.5} parent=1 // pred_check
      _
    $region31: #{net_forward.5} parent=1 // pred_check_branch
      %35 = sbr.rel (0) target = $region33
    $region32: #{net_forward.5} parent=1 // pred_region
      _
    $region33: #{net_forward.5} parent=1 // pred_fallthru
      _
    // Predicated region
    $region34: #{net_forward.5} parent=1 // pred_check
      _
    $region35: #{net_forward.5} parent=1 // pred_check_branch
      %37 = sbr.rel (0) target = $region37
    $region36: #{net_forward.5} parent=1 // pred_region
      _
    $region37: #{net_forward.5} parent=1 // pred_fallthru
      _
    // Predicated region
    $region38: #{net_forward.5} parent=1 // pred_check
      _
    $region39: #{net_forward.5} parent=1 // pred_check_branch
      %39 = sbr.rel (0) target = $region41
    $region40: #{net_forward.5} parent=1 // pred_region
      _
    $region41: #{net_forward.5} parent=1 // pred_fallthru
      _
    // Predicated region
    $region42: #{net_forward.5} parent=1 // pred_check
      _
    $region43: #{net_forward.5} parent=1 // pred_check_branch
      %41 = sbr.rel (0) target = $region45
    $region44: #{net_forward.5} parent=1 // pred_region
      _
    $region45: #{net_forward.5} parent=1 // pred_fallthru
      _
    %v43 = vld [vmem:[%s0] sm:$0x3f]
    %v45 = vcombine.high %v43, %v43
    %v47 = vunpack.c.l.s4 1983009808
    %v48 = vunpack.c.0.s8 %v47
    %v49 = vlaneseq
    %v50 = vshrl.u32 %v49, 7
    %v51 = vsub.s32 %v48, %v50
    %v52 = vrot.slane %v43, %v51
    %v54 = vunpack.c.l.s4 1983009808
    %v55 = vunpack.c.0.s8 %v54
    %v56 = vlaneseq
    %v57 = vshrl.u32 %v56, 7
    %v58 = vsub.s32 %v55, %v57
    %v59 = vrot.slane %v45, %v58
    %v60 = vcombine.high %v52, %v52
    %v64 = vpack.c.bf16 %v52, %v52
    %v65 = vpack.c.bf16 %v60, %v60
    %v66 = vpack.c.bf16 %v59, %v59
    %v67 = vld [vmem:[%s1] sm:$0xf]
    %v68 = vld [vmem:[%s1 + $0x4] sm:$0xf]
    %v69 = vld [vmem:[%s1 + $0x8] sm:$0xf]
    %v70 = vld [vmem:[%s1 + $0xc] sm:$0xf]
    %v71 = vld [vmem:[%s1 + $0x10] sm:$0xf]
    %v72 = vld [vmem:[%s1 + $0x14] sm:$0xf]
    %v73 = vld [vmem:[%s1 + $0x18] sm:$0xf]
    %v74 = vld [vmem:[%s1 + $0x1c] sm:$0xf]
    %v75 = vld [vmem:[%s1 + $0x20] sm:$0xf]
    %v76 = vld [vmem:[%s1 + $0x24] sm:$0xf]
    %v77 = vld [vmem:[%s1 + $0x28] sm:$0xf]
    %v78 = vld [vmem:[%s1 + $0x2c] sm:$0xf]
    %v79 = vld [vmem:[%s1 + $0x30] sm:$0xf]
    %v80 = vld [vmem:[%s1 + $0x34] sm:$0xf]
    %v81 = vld [vmem:[%s1 + $0x38] sm:$0xf]
    %v82 = vld [vmem:[%s1 + $0x3c] sm:$0xf]
    %v83 = vld [vmem:[%s1 + $0x40] sm:$0xf]
    %v84 = vld [vmem:[%s1 + $0x44] sm:$0xf]
    %v85 = vld [vmem:[%s1 + $0x48] sm:$0xf]
    %v86 = vld [vmem:[%s1 + $0x4c] sm:$0xf]
    %v87 = vld [vmem:[%s1 + $0x50] sm:$0xf]
    %v88 = vld [vmem:[%s1 + $0x54] sm:$0xf]
    %v89 = vld [vmem:[%s1 + $0x58] sm:$0xf]
    %v90 = vld [vmem:[%s1 + $0x5c] sm:$0xf]
    %v91 = vld [vmem:[%s1 + $0x60] sm:$0xf]
    %v92 = vld [vmem:[%s1 + $0x64] sm:$0xf]
    %v93 = vld [vmem:[%s1 + $0x68] sm:$0xf]
    %v94 = vld [vmem:[%s1 + $0x6c] sm:$0xf]
    %v95 = vld [vmem:[%s1 + $0x70] sm:$0xf]
    %v96 = vld [vmem:[%s1 + $0x74] sm:$0xf]
    %v97 = vld [vmem:[%s1 + $0x78] sm:$0xf]
    %v98 = vld [vmem:[%s1 + $0x7c] sm:$0xf]
    %v99 = vld [vmem:[%s1 + $0x80] sm:$0xf]
    %v100 = vld [vmem:[%s1 + $0x84] sm:$0xf]
    %v101 = vld [vmem:[%s1 + $0x88] sm:$0xf]
    %v102 = vld [vmem:[%s1 + $0x8c] sm:$0xf]
    %v103 = vld [vmem:[%s1 + $0x90] sm:$0xf]
    %v104 = vld [vmem:[%s1 + $0x94] sm:$0xf]
    %v105 = vld [vmem:[%s1 + $0x98] sm:$0xf]
    %v106 = vld [vmem:[%s1 + $0x9c] sm:$0xf]
    %v107 = vld [vmem:[%s2] sm:$0x1]
    %v109 = vlaneseq
    %v110 = vshrl.u32 %v109, 7
    %v111 = vsub.s32 0, %v110
    %v112 = vrot.slane %v107, %v111
    %v154 = vunpack.c.l.b16 %v67
    %v155 = vunpack.c.l.b16 %v68
    %v156 = vunpack.c.l.b16 %v69
    %v157 = vunpack.c.l.b16 %v70
    %v158 = vunpack.c.l.b16 %v71
    %v159 = vunpack.c.l.b16 %v72
    %v160 = vunpack.c.l.b16 %v73
    %v161 = vunpack.c.l.b16 %v74
    %v162 = vunpack.c.l.b16 %v75
    %v163 = vunpack.c.l.b16 %v76
    %v164 = vunpack.c.l.b16 %v77
    %v165 = vunpack.c.l.b16 %v78
    %v166 = vunpack.c.l.b16 %v79
    %v167 = vunpack.c.l.b16 %v80
    %v168 = vunpack.c.l.b16 %v81
    %v169 = vunpack.c.l.b16 %v82
    %v170 = vunpack.c.l.b16 %v83
    %v171 = vunpack.c.l.b16 %v84
    %v172 = vunpack.c.l.b16 %v85
    %v173 = vunpack.c.l.b16 %v86
    %v174 = vunpack.c.l.b16 %v87
    %v175 = vunpack.c.l.b16 %v88
    %v176 = vunpack.c.l.b16 %v89
    %v177 = vunpack.c.l.b16 %v90
    %v178 = vunpack.c.l.b16 %v91
    %v179 = vunpack.c.l.b16 %v92
    %v180 = vunpack.c.l.b16 %v93
    %v181 = vunpack.c.l.b16 %v94
    %v182 = vunpack.c.l.b16 %v95
    %v183 = vunpack.c.l.b16 %v96
    %v184 = vunpack.c.l.b16 %v97
    %v185 = vunpack.c.l.b16 %v98
    %v186 = vunpack.c.l.b16 %v99
    %v187 = vunpack.c.l.b16 %v100
    %v188 = vunpack.c.l.b16 %v101
    %v189 = vunpack.c.l.b16 %v102
    %v190 = vunpack.c.l.b16 %v103
    %v191 = vunpack.c.l.b16 %v104
    %v192 = vunpack.c.l.b16 %v105
    %v193 = vunpack.c.l.b16 %v106
    %v194 = vpack.c.b16 %v155, %v154
    %v195 = vpack.c.b16 %v157, %v156
    %v196 = vpack.c.b16 %v159, %v158
    %v197 = vpack.c.b16 %v161, %v160
    %v198 = vpack.c.b16 %v163, %v162
    %v199 = vpack.c.b16 %v165, %v164
    %v200 = vpack.c.b16 %v167, %v166
    %v201 = vpack.c.b16 %v169, %v168
    %v202 = vpack.c.b16 %v171, %v170
    %v203 = vpack.c.b16 %v173, %v172
    %v204 = vpack.c.b16 %v175, %v174
    %v205 = vpack.c.b16 %v177, %v176
    %v206 = vpack.c.b16 %v179, %v178
    %v207 = vpack.c.b16 %v181, %v180
    %v208 = vpack.c.b16 %v183, %v182
    %v209 = vpack.c.b16 %v185, %v184
    %v210 = vpack.c.b16 %v187, %v186
    %v211 = vpack.c.b16 %v189, %v188
    %v212 = vpack.c.b16 %v191, %v190
    %v213 = vpack.c.b16 %v193, %v192
    %vm234 = vcmask 523264
    %v236 = vsel %vm234, %v66, 0
    %238 = vmatprep.subr.bf16.mxu0 0
    %239 = vmatpush1.bf16.msra.mxu0 %v194
    %240 = vmatprep.subr.bf16.mxu0 0
    %241 = vmatpush1.bf16.msra.mxu0 %v195
    %242 = vmatprep.subr.bf16.mxu0 0
    %243 = vmatpush1.bf16.msra.mxu0 %v196
    %244 = vmatprep.subr.bf16.mxu0 0
    %245 = vmatpush1.bf16.msra.mxu0 %v197
    %246 = vmatprep.subr.bf16.mxu0 0
    %247 = vmatpush1.bf16.msra.mxu0 %v198
    %248 = vmatprep.subr.bf16.mxu0 0
    %249 = vmatpush1.bf16.msra.mxu0 %v199
    %250 = vmatprep.subr.bf16.mxu0 0
    %251 = vmatpush1.bf16.msra.mxu0 %v200
    %252 = vmatprep.subr.bf16.mxu0 0
    %253 = vmatpush1.bf16.msra.mxu0 %v201
    %254 = vmatprep.subr.bf16.mxu0 0
    %255 = vmatpush1.bf16.msra.mxu0 %v202
    %256 = vmatprep.subr.bf16.mxu0 0
    %257 = vmatpush1.bf16.msra.mxu0 %v203
    %258 = vmatprep.subr.bf16.mxu0 0
    %259 = vmatpush1.bf16.msra.mxu0 %v204
    %260 = vmatprep.subr.bf16.mxu0 0
    %261 = vmatpush1.bf16.msra.mxu0 %v205
    %262 = vmatprep.subr.bf16.mxu0 0
    %263 = vmatpush1.bf16.msra.mxu0 %v206
    %264 = vmatprep.subr.bf16.mxu0 0
    %265 = vmatpush1.bf16.msra.mxu0 %v207
    %266 = vmatprep.subr.bf16.mxu0 0
    %267 = vmatpush1.bf16.msra.mxu0 %v208
    %268 = vmatprep.subr.bf16.mxu0 0
    %269 = vmatpush1.bf16.msra.mxu0 %v209
    %270 = vmatprep.mubr.bf16.mxu0 %v65
    %271 = vmatmul.mubr.bf16.gmra.mrb[0].mxu0 %v64
    %v272 = vpop.f32.mrb[0].mxu0
    %v273 = vadd.f32 %v112, %v272
    %v274 = vpop.f32.mrb[0].mxu0
    %v275 = vpop.f32.mrb[0].mxu0
    %v276 = vpop.f32.mrb[0].mxu0
    %277 = vdwg.mxu0
    %278 = vmatprep.subr.bf16.mxu0 0
    %279 = vmatpush1.bf16.msra.mxu0 %v210
    %280 = vmatprep.subr.bf16.mxu0 0
    %281 = vmatpush1.bf16.msra.mxu0 %v211
    %282 = vmatprep.subr.bf16.mxu0 0
    %283 = vmatpush1.bf16.msra.mxu0 %v212
    %284 = vmatprep.subr.bf16.mxu0 0
    %285 = vmatpush1.bf16.msra.mxu0 %v213
    %286 = vmatprep.subr.bf16.mxu0 0
    %287 = vmatpush1.bf16.msra.mxu0 0
    %288 = vmatprep.subr.bf16.mxu0 0
    %289 = vmatpush1.bf16.msra.mxu0 0
    %290 = vmatprep.subr.bf16.mxu0 0
    %291 = vmatpush1.bf16.msra.mxu0 0
    %292 = vmatprep.subr.bf16.mxu0 0
    %293 = vmatpush1.bf16.msra.mxu0 0
    %294 = vmatprep.subr.bf16.mxu0 0
    %295 = vmatpush1.bf16.msra.mxu0 0
    %296 = vmatprep.subr.bf16.mxu0 0
    %297 = vmatpush1.bf16.msra.mxu0 0
    %298 = vmatprep.subr.bf16.mxu0 0
    %299 = vmatpush1.bf16.msra.mxu0 0
    %300 = vmatprep.subr.bf16.mxu0 0
    %301 = vmatpush1.bf16.msra.mxu0 0
    %302 = vmatprep.subr.bf16.mxu0 0
    %303 = vmatpush1.bf16.msra.mxu0 0
    %304 = vmatprep.subr.bf16.mxu0 0
    %305 = vmatpush1.bf16.msra.mxu0 0
    %306 = vmatprep.subr.bf16.mxu0 0
    %307 = vmatpush1.bf16.msra.mxu0 0
    %308 = vmatprep.subr.bf16.mxu0 0
    %309 = vmatpush1.bf16.msra.mxu0 0
    %310 = vmatprep.mubr.bf16.mxu0 0
    %311 = vmatmul.mubr.bf16.gmra.mrb[0].mxu0 %v236
    %v312 = vpop.f32.mrb[0].mxu0
    %v313 = vadd.f32 %v273, %v312
    %v314 = vpop.f32.mrb[0].mxu0
    %v315 = vpop.f32.mrb[0].mxu0
    %v316 = vpop.f32.mrb[0].mxu0
    %317 = vdwg.mxu0
    %v318 = vmax.f32 %v313, 0.0
    %v319 = vpack.c.bf16 %v318, %v318
    %v320 = vld [vmem:[%s3] sm:$0xf]
    %v321 = vld [vmem:[%s3 + $0x4] sm:$0xf]
    %v322 = vld [vmem:[%s3 + $0x8] sm:$0xf]
    %v323 = vld [vmem:[%s3 + $0xc] sm:$0xf]
    %v324 = vld [vmem:[%s3 + $0x10] sm:$0xf]
    %v325 = vld [vmem:[%s3 + $0x14] sm:$0xf]
    %v326 = vld [vmem:[%s3 + $0x18] sm:$0x1]
    %v327 = vld [vmem:[%s4] sm:$0x1]
    %v329 = vlaneseq
    %v330 = vshrl.u32 %v329, 7
    %v331 = vsub.s32 0, %v330
    %v332 = vrot.slane %v327, %v331
    %v341 = vunpack.c.l.b16 %v320
    %v342 = vunpack.c.l.b16 %v321
    %v343 = vunpack.c.l.b16 %v322
    %v344 = vunpack.c.l.b16 %v323
    %v345 = vunpack.c.l.b16 %v324
    %v346 = vunpack.c.l.b16 %v325
    %v347 = vunpack.c.l.b16 %v326
    %v348 = vpack.c.b16 %v342, %v341
    %v349 = vpack.c.b16 %v344, %v343
    %v350 = vpack.c.b16 %v346, %v345
    %v351 = vpack.c.b16 %v347, %v347
    %vm355 = vcmask 408576
    %v357 = vsel %vm355, %v319, 0
    %vm359 = vcmask 1040384
    %v361 = vsel %vm359, %v351, 0
    %363 = vmatprep.subr.bf16.mxu0 0
    %364 = vmatpush1.bf16.msra.mxu0 %v348
    %365 = vmatprep.subr.bf16.mxu0 0
    %366 = vmatpush1.bf16.msra.mxu0 %v349
    %367 = vmatprep.subr.bf16.mxu0 0
    %368 = vmatpush1.bf16.msra.mxu0 %v350
    %369 = vmatprep.subr.bf16.mxu0 0
    %370 = vmatpush1.bf16.msra.mxu0 %v361
    %371 = vmatprep.subr.bf16.mxu0 0
    %372 = vmatpush1.bf16.msra.mxu0 0
    %373 = vmatprep.subr.bf16.mxu0 0
    %374 = vmatpush1.bf16.msra.mxu0 0
    %375 = vmatprep.subr.bf16.mxu0 0
    %376 = vmatpush1.bf16.msra.mxu0 0
    %377 = vmatprep.subr.bf16.mxu0 0
    %378 = vmatpush1.bf16.msra.mxu0 0
    %379 = vmatprep.subr.bf16.mxu0 0
    %380 = vmatpush1.bf16.msra.mxu0 0
    %381 = vmatprep.subr.bf16.mxu0 0
    %382 = vmatpush1.bf16.msra.mxu0 0
    %383 = vmatprep.subr.bf16.mxu0 0
    %384 = vmatpush1.bf16.msra.mxu0 0
    %385 = vmatprep.subr.bf16.mxu0 0
    %386 = vmatpush1.bf16.msra.mxu0 0
    %387 = vmatprep.subr.bf16.mxu0 0
    %388 = vmatpush1.bf16.msra.mxu0 0
    %389 = vmatprep.subr.bf16.mxu0 0
    %390 = vmatpush1.bf16.msra.mxu0 0
    %391 = vmatprep.subr.bf16.mxu0 0
    %392 = vmatpush1.bf16.msra.mxu0 0
    %393 = vmatprep.subr.bf16.mxu0 0
    %394 = vmatpush1.bf16.msra.mxu0 0
    %395 = vmatprep.mubr.bf16.mxu0 0
    %396 = vmatmul.mubr.bf16.gmra.mrb[0].mxu0 %v357
    %v397 = vpop.f32.mrb[0].mxu0
    %v398 = vadd.f32 %v332, %v397
    %v399 = vpop.f32.mrb[0].mxu0
    %v400 = vpop.f32.mrb[0].mxu0
    %v401 = vpop.f32.mrb[0].mxu0
    %402 = vdwg.mxu0
    %vm403 = vcmask 74752
    %v404 = vsel %vm403, %v398, -inf
    %405 = vmax.xlane.f32.xlu0 %v404
    %v406 = vpop.xlane.xlu0 %405
    %v407 = vsub.f32 %v398, %v406
    %v408 = vmul.f32 %v407, 1.442695
    %v409 = vpow.pop %v408
    %v410 = vsel %vm403, %v409, 0.0
    %411 = vadd.xlane.f32.xlu0 %v410
    %v412 = vpop.xlane.xlu0 %411
    %v413 = vlog2.pop %v412
    %v414 = vmul.f32 %v413, 0.6931472
    %v415 = vsub.f32 %v407, %v414
    %416 = vst.msk [vmem:[#allocation2] sm:$0x3] %vm403, %v415
    %v417 = vld [vmem:[%s5] sm:$0xff]
    %v418 = vld [vmem:[%s5 + $0x8] sm:$0xff]
    %v419 = vld [vmem:[%s5 + $0x10] sm:$0xff]
    %v420 = vld [vmem:[%s5 + $0x18] sm:$0xff]
    %v421 = vld [vmem:[%s5 + $0x20] sm:$0xff]
    %v422 = vld [vmem:[%s5 + $0x28] sm:$0xff]
    %v423 = vld [vmem:[%s5 + $0x30] sm:$0xff]
    %v424 = vld [vmem:[%s5 + $0x38] sm:$0xff]
    %v425 = vld [vmem:[%s5 + $0x40] sm:$0xff]
    %v426 = vld [vmem:[%s5 + $0x48] sm:$0xff]
    %v427 = vld [vmem:[%s5 + $0x50] sm:$0xff]
    %v428 = vld [vmem:[%s5 + $0x58] sm:$0xff]
    %v429 = vld [vmem:[%s5 + $0x60] sm:$0x11]
    %v430 = vld [vmem:[%s5 + $0x68] sm:$0x11]
    %v431 = vld [vmem:[%s6] sm:$0xf]
    %v433 = vlaneseq
    %v434 = vshrl.u32 %v433, 7
    %v435 = vsub.s32 0, %v434
    %v436 = vrot.slane %v431, %v435
    %v437 = vlaneseq
    %v438 = vshrl.u32 %v437, 7
    %v439 = vsub.s32 1, %v438
    %v440 = vrot.slane %v431, %v439
    %v441 = vlaneseq
    %v442 = vshrl.u32 %v441, 7
    %v443 = vsub.s32 2, %v442
    %v444 = vrot.slane %v431, %v443
    %v445 = vlaneseq
    %v446 = vshrl.u32 %v445, 7
    %v447 = vsub.s32 3, %v446
    %v448 = vrot.slane %v431, %v447
    %v467 = vunpack.c.l.b16 %v417
    %v468 = vunpack.c.h.b16 %v417
    %v469 = vunpack.c.l.b16 %v418
    %v470 = vunpack.c.h.b16 %v418
    %v471 = vunpack.c.l.b16 %v419
    %v472 = vunpack.c.h.b16 %v419
    %v473 = vunpack.c.l.b16 %v420
    %v474 = vunpack.c.h.b16 %v420
    %v475 = vunpack.c.l.b16 %v421
    %v476 = vunpack.c.h.b16 %v421
    %v477 = vunpack.c.l.b16 %v422
    %v478 = vunpack.c.h.b16 %v422
    %v479 = vunpack.c.l.b16 %v423
    %v480 = vunpack.c.h.b16 %v423
    %v481 = vunpack.c.l.b16 %v424
    %v482 = vunpack.c.h.b16 %v424
    %v483 = vunpack.c.l.b16 %v425
    %v484 = vunpack.c.h.b16 %v425
    %v485 = vunpack.c.l.b16 %v426
    %v486 = vunpack.c.h.b16 %v426
    %v487 = vunpack.c.l.b16 %v427
    %v488 = vunpack.c.h.b16 %v427
    %v489 = vunpack.c.l.b16 %v428
    %v490 = vunpack.c.h.b16 %v428
    %v491 = vunpack.c.l.b16 %v429
    %v492 = vunpack.c.h.b16 %v429
    %v493 = vunpack.c.l.b16 %v430
    %v494 = vunpack.c.h.b16 %v430
    %v495 = vpack.c.b16 %v471, %v467
    %v496 = vpack.c.b16 %v472, %v468
    %v497 = vpack.c.b16 %v473, %v469
    %v498 = vpack.c.b16 %v474, %v470
    %v499 = vpack.c.b16 %v479, %v475
    %v500 = vpack.c.b16 %v480, %v476
    %v501 = vpack.c.b16 %v481, %v477
    %v502 = vpack.c.b16 %v482, %v478
    %v503 = vpack.c.b16 %v487, %v483
    %v504 = vpack.c.b16 %v488, %v484
    %v505 = vpack.c.b16 %v489, %v485
    %v506 = vpack.c.b16 %v490, %v486
    %v507 = vpack.c.b16 %v491, %v491
    %v508 = vpack.c.b16 %v492, %v492
    %v509 = vpack.c.b16 %v493, %v493
    %v510 = vpack.c.b16 %v494, %v494
    %v524 = vsel %vm359, %v507, 0
    %v527 = vsel %vm359, %v508, 0
    %v530 = vsel %vm359, %v509, 0
    %v533 = vsel %vm359, %v510, 0
    %535 = vmatprep.subr.bf16.mxu0 %v496
    %536 = vmatpush1.bf16.msra.mxu0 %v495
    %537 = vmatprep.subr.bf16.mxu0 %v500
    %538 = vmatpush1.bf16.msra.mxu0 %v499
    %539 = vmatprep.subr.bf16.mxu0 %v504
    %540 = vmatpush1.bf16.msra.mxu0 %v503
    %541 = vmatprep.subr.bf16.mxu0 %v527
    %542 = vmatpush1.bf16.msra.mxu0 %v524
    %543 = vmatprep.subr.bf16.mxu0 0
    %544 = vmatpush1.bf16.msra.mxu0 0
    %545 = vmatprep.subr.bf16.mxu0 0
    %546 = vmatpush1.bf16.msra.mxu0 0
    %547 = vmatprep.subr.bf16.mxu0 0
    %548 = vmatpush1.bf16.msra.mxu0 0
    %549 = vmatprep.subr.bf16.mxu0 0
    %550 = vmatpush1.bf16.msra.mxu0 0
    %551 = vmatprep.subr.bf16.mxu0 0
    %552 = vmatpush1.bf16.msra.mxu0 0
    %553 = vmatprep.subr.bf16.mxu0 0
    %554 = vmatpush1.bf16.msra.mxu0 0
    %555 = vmatprep.subr.bf16.mxu0 0
    %556 = vmatpush1.bf16.msra.mxu0 0
    %557 = vmatprep.subr.bf16.mxu0 0
    %558 = vmatpush1.bf16.msra.mxu0 0
    %559 = vmatprep.subr.bf16.mxu0 0
    %560 = vmatpush1.bf16.msra.mxu0 0
    %561 = vmatprep.subr.bf16.mxu0 0
    %562 = vmatpush1.bf16.msra.mxu0 0
    %563 = vmatprep.subr.bf16.mxu0 0
    %564 = vmatpush1.bf16.msra.mxu0 0
    %565 = vmatprep.subr.bf16.mxu0 0
    %566 = vmatpush1.bf16.msra.mxu0 0
    %567 = vmatprep.mubr.bf16.mxu0 0
    %568 = vmatmul.mubr.bf16.gmra.mrb[0].mxu0 %v357
    %v569 = vpop.f32.mrb[0].mxu0
    %v570 = vadd.f32 %v436, %v569
    %v571 = vpop.f32.mrb[0].mxu0
    %v572 = vadd.f32 %v440, %v571
    %v573 = vpop.f32.mrb[0].mxu0
    %v574 = vpop.f32.mrb[0].mxu0
    %575 = vdwg.mxu0
    %576 = vmatprep.subr.bf16.mxu0 %v498
    %577 = vmatpush1.bf16.msra.mxu0 %v497
    %578 = vmatprep.subr.bf16.mxu0 %v502
    %579 = vmatpush1.bf16.msra.mxu0 %v501
    %580 = vmatprep.subr.bf16.mxu0 %v506
    %581 = vmatpush1.bf16.msra.mxu0 %v505
    %582 = vmatprep.subr.bf16.mxu0 %v533
    %583 = vmatpush1.bf16.msra.mxu0 %v530
    %584 = vmatprep.subr.bf16.mxu0 0
    %585 = vmatpush1.bf16.msra.mxu0 0
    %586 = vmatprep.subr.bf16.mxu0 0
    %587 = vmatpush1.bf16.msra.mxu0 0
    %588 = vmatprep.subr.bf16.mxu0 0
    %589 = vmatpush1.bf16.msra.mxu0 0
    %590 = vmatprep.subr.bf16.mxu0 0
    %591 = vmatpush1.bf16.msra.mxu0 0
    %592 = vmatprep.subr.bf16.mxu0 0
    %593 = vmatpush1.bf16.msra.mxu0 0
    %594 = vmatprep.subr.bf16.mxu0 0
    %595 = vmatpush1.bf16.msra.mxu0 0
    %596 = vmatprep.subr.bf16.mxu0 0
    %597 = vmatpush1.bf16.msra.mxu0 0
    %598 = vmatprep.subr.bf16.mxu0 0
    %599 = vmatpush1.bf16.msra.mxu0 0
    %600 = vmatprep.subr.bf16.mxu0 0
    %601 = vmatpush1.bf16.msra.mxu0 0
    %602 = vmatprep.subr.bf16.mxu0 0
    %603 = vmatpush1.bf16.msra.mxu0 0
    %604 = vmatprep.subr.bf16.mxu0 0
    %605 = vmatpush1.bf16.msra.mxu0 0
    %606 = vmatprep.subr.bf16.mxu0 0
    %607 = vmatpush1.bf16.msra.mxu0 0
    %608 = vmatprep.mubr.bf16.mxu0 0
    %609 = vmatmul.mubr.bf16.gmra.mrb[0].mxu0 %v357
    %v610 = vpop.f32.mrb[0].mxu0
    %v611 = vadd.f32 %v444, %v610
    %v612 = vpop.f32.mrb[0].mxu0
    %v613 = vadd.f32 %v448, %v612
    %v614 = vpop.f32.mrb[0].mxu0
    %v615 = vpop.f32.mrb[0].mxu0
    %616 = vdwg.mxu0
    %v617 = vmax.f32 %v570, 0.0
    %v618 = vmax.f32 %v572, 0.0
    %v619 = vmax.f32 %v611, 0.0
    %v620 = vmax.f32 %v613, 0.0
    %v621 = vpack.c.bf16 %v617, %v617
    %v622 = vpack.c.bf16 %v618, %v618
    %v623 = vpack.c.bf16 %v619, %v619
    %v624 = vpack.c.bf16 %v620, %v620
    %v625 = vld [vmem:[%s7] sm:$0xff]
    %v626 = vld [vmem:[%s7 + $0x8] sm:$0xff]
    %v627 = vld [vmem:[%s7 + $0x10] sm:$0xff]
    %v628 = vld [vmem:[%s7 + $0x18] sm:$0xff]
    %v629 = vld [vmem:[%s7 + $0x20] sm:$0xff]
    %v630 = vld [vmem:[%s7 + $0x28] sm:$0xff]
    %v631 = vld [vmem:[%s7 + $0x30] sm:$0xff]
    %v632 = vld [vmem:[%s7 + $0x38] sm:$0xff]
    %v633 = vld [vmem:[%s7 + $0x40] sm:$0xff]
    %v634 = vld [vmem:[%s7 + $0x48] sm:$0xff]
    %v635 = vld [vmem:[%s7 + $0x50] sm:$0xff]
    %v636 = vld [vmem:[%s7 + $0x58] sm:$0xff]
    %v637 = vld [vmem:[%s7 + $0x60] sm:$0xff]
    %v638 = vld [vmem:[%s7 + $0x68] sm:$0xff]
    %v639 = vld [vmem:[%s7 + $0x70] sm:$0xff]
    %v640 = vld [vmem:[%s7 + $0x78] sm:$0xff]
    %v641 = vld [vmem:[%s7 + $0x80] sm:$0xff]
    %v642 = vld [vmem:[%s7 + $0x88] sm:$0xff]
    %v643 = vld [vmem:[%s7 + $0x90] sm:$0xff]
    %v644 = vld [vmem:[%s7 + $0x98] sm:$0xff]
    %v645 = vld [vmem:[%s7 + $0xa0] sm:$0xff]
    %v646 = vld [vmem:[%s7 + $0xa8] sm:$0xff]
    %v647 = vld [vmem:[%s7 + $0xb0] sm:$0xff]
    %v648 = vld [vmem:[%s7 + $0xb8] sm:$0xff]
    %v649 = vld [vmem:[%s7 + $0xc0] sm:$0xff]
    %v650 = vld [vmem:[%s7 + $0xc8] sm:$0xff]
    %v651 = vld [vmem:[%s7 + $0xd0] sm:$0xff]
    %v652 = vld [vmem:[%s7 + $0xd8] sm:$0xff]
    %v653 = vld [vmem:[%s7 + $0xe0] sm:$0xff]
    %v654 = vld [vmem:[%s7 + $0xe8] sm:$0xff]
    %v655 = vld [vmem:[%s7 + $0xf0] sm:$0xff]
    %v656 = vld [vmem:[%s7 + $0xf8] sm:$0xff]
    %v657 = vld [vmem:[%s7 + $0x100] sm:$0xff]
    %v658 = vld [vmem:[%s7 + $0x108] sm:$0xff]
    %v659 = vld [vmem:[%s7 + $0x110] sm:$0xff]
    %v660 = vld [vmem:[%s7 + $0x118] sm:$0xff]
    %v661 = vld [vmem:[%s7 + $0x120] sm:$0xff]
    %v662 = vld [vmem:[%s7 + $0x128] sm:$0xff]
    %v663 = vld [vmem:[%s7 + $0x130] sm:$0xff]
    %v664 = vld [vmem:[%s7 + $0x138] sm:$0xff]
    %v665 = vld [vmem:[%s7 + $0x140] sm:$0xff]
    %v666 = vld [vmem:[%s7 + $0x148] sm:$0xff]
    %v667 = vld [vmem:[%s7 + $0x150] sm:$0xff]
    %v668 = vld [vmem:[%s7 + $0x158] sm:$0xff]
    %v669 = vld [vmem:[%s7 + $0x160] sm:$0xff]
    %v670 = vld [vmem:[%s7 + $0x168] sm:$0xff]
    %v671 = vld [vmem:[%s7 + $0x170] sm:$0xff]
    %v672 = vld [vmem:[%s7 + $0x178] sm:$0xff]
    %v673 = vld [vmem:[%s7 + $0x180] sm:$0xff]
    %v674 = vld [vmem:[%s7 + $0x188] sm:$0xff]
    %v675 = vld [vmem:[%s7 + $0x190] sm:$0xff]
    %v676 = vld [vmem:[%s7 + $0x198] sm:$0xff]
    %v677 = vld [vmem:[%s7 + $0x1a0] sm:$0xff]
    %v678 = vld [vmem:[%s7 + $0x1a8] sm:$0xff]
    %v679 = vld [vmem:[%s7 + $0x1b0] sm:$0xff]
    %v680 = vld [vmem:[%s7 + $0x1b8] sm:$0xff]
    %v681 = vld [vmem:[%s7 + $0x1c0] sm:$0xff]
    %v682 = vld [vmem:[%s7 + $0x1c8] sm:$0xff]
    %v683 = vld [vmem:[%s7 + $0x1d0] sm:$0xff]
    %v684 = vld [vmem:[%s7 + $0x1d8] sm:$0xff]
    %v685 = vld [vmem:[%s7 + $0x1e0] sm:$0xff]
    %v686 = vld [vmem:[%s7 + $0x1e8] sm:$0xff]
    %v687 = vld [vmem:[%s7 + $0x1f0] sm:$0xff]
    %v688 = vld [vmem:[%s7 + $0x1f8] sm:$0xff]
    %v689 = vld [vmem:[%s7 + $0x200] sm:$0xff]
    %v690 = vld [vmem:[%s7 + $0x208] sm:$0xff]
    %v691 = vld [vmem:[%s7 + $0x210] sm:$0xff]
    %v692 = vld [vmem:[%s7 + $0x218] sm:$0xff]
    %v693 = vld [vmem:[%s7 + $0x220] sm:$0xff]
    %v694 = vld [vmem:[%s7 + $0x228] sm:$0xff]
    %v695 = vld [vmem:[%s7 + $0x230] sm:$0xff]
    %v696 = vld [vmem:[%s7 + $0x238] sm:$0xff]
    %v697 = vld [vmem:[%s7 + $0x240] sm:$0xff]
    %v698 = vld [vmem:[%s7 + $0x248] sm:$0xff]
    %v699 = vld [vmem:[%s7 + $0x250] sm:$0xff]
    %v700 = vld [vmem:[%s7 + $0x258] sm:$0xff]
    %v701 = vld [vmem:[%s7 + $0x260] sm:$0xff]
    %v702 = vld [vmem:[%s7 + $0x268] sm:$0xff]
    %v703 = vld [vmem:[%s7 + $0x270] sm:$0xff]
    %v704 = vld [vmem:[%s7 + $0x278] sm:$0xff]
    %v705 = vld [vmem:[%s7 + $0x280] sm:$0xff]
    %v706 = vld [vmem:[%s7 + $0x288] sm:$0xff]
    %v707 = vld [vmem:[%s7 + $0x290] sm:$0xff]
    %v708 = vld [vmem:[%s7 + $0x298] sm:$0xff]
    %v709 = vld [vmem:[%s7 + $0x2a0] sm:$0xff]
    %v710 = vld [vmem:[%s7 + $0x2a8] sm:$0xff]
    %v711 = vld [vmem:[%s7 + $0x2b0] sm:$0xff]
    %v712 = vld [vmem:[%s7 + $0x2b8] sm:$0xff]
    %v713 = vld [vmem:[%s7 + $0x2c0] sm:$0xff]
    %v714 = vld [vmem:[%s7 + $0x2c8] sm:$0xff]
    %v715 = vld [vmem:[%s7 + $0x2d0] sm:$0xff]
    %v716 = vld [vmem:[%s7 + $0x2d8] sm:$0xff]
    %v717 = vld [vmem:[%s7 + $0x2e0] sm:$0xff]
    %v718 = vld [vmem:[%s7 + $0x2e8] sm:$0xff]
    %v719 = vld [vmem:[%s7 + $0x2f0] sm:$0xff]
    %v720 = vld [vmem:[%s7 + $0x2f8] sm:$0xff]
    %v721 = vld [vmem:[%s7 + $0x300] sm:$0xff]
    %v722 = vld [vmem:[%s7 + $0x308] sm:$0xff]
    %v723 = vld [vmem:[%s7 + $0x310] sm:$0xff]
    %v724 = vld [vmem:[%s7 + $0x318] sm:$0xff]
    %v725 = vld [vmem:[%s7 + $0x320] sm:$0xff]
    %v726 = vld [vmem:[%s7 + $0x328] sm:$0xff]
    %v727 = vld [vmem:[%s7 + $0x330] sm:$0xff]
    %v728 = vld [vmem:[%s7 + $0x338] sm:$0xff]
    %v729 = vld [vmem:[%s7 + $0x340] sm:$0xff]
    %v730 = vld [vmem:[%s7 + $0x348] sm:$0xff]
    %v731 = vld [vmem:[%s7 + $0x350] sm:$0xff]
    %v732 = vld [vmem:[%s7 + $0x358] sm:$0xff]
    %v733 = vld [vmem:[%s7 + $0x360] sm:$0xff]
    %v734 = vld [vmem:[%s7 + $0x368] sm:$0xff]
    %v735 = vld [vmem:[%s7 + $0x370] sm:$0xff]
    %v736 = vld [vmem:[%s7 + $0x378] sm:$0xff]
    %v737 = vld [vmem:[%s7 + $0x380] sm:$0xff]
    %v738 = vld [vmem:[%s7 + $0x388] sm:$0xff]
    %v739 = vld [vmem:[%s7 + $0x390] sm:$0xff]
    %v740 = vld [vmem:[%s7 + $0x398] sm:$0xff]
    %v741 = vld [vmem:[%s7 + $0x3a0] sm:$0xff]
    %v742 = vld [vmem:[%s7 + $0x3a8] sm:$0xff]
    %v743 = vld [vmem:[%s7 + $0x3b0] sm:$0xff]
    %v744 = vld [vmem:[%s7 + $0x3b8] sm:$0xff]
    %v745 = vld [vmem:[%s7 + $0x3c0] sm:$0xff]
    %v746 = vld [vmem:[%s7 + $0x3c8] sm:$0xff]
    %v747 = vld [vmem:[%s7 + $0x3d0] sm:$0xff]
    %v748 = vld [vmem:[%s7 + $0x3d8] sm:$0xff]
    %v749 = vld [vmem:[%s7 + $0x3e0] sm:$0xff]
    %v750 = vld [vmem:[%s7 + $0x3e8] sm:$0xff]
    %v751 = vld [vmem:[%s7 + $0x3f0] sm:$0xff]
    %v752 = vld [vmem:[%s7 + $0x3f8] sm:$0xff]
    %v753 = vld [vmem:[%s7 + $0x400] sm:$0xff]
    %v754 = vld [vmem:[%s7 + $0x408] sm:$0xff]
    %v755 = vld [vmem:[%s7 + $0x410] sm:$0xff]
    %v756 = vld [vmem:[%s7 + $0x418] sm:$0xff]
    %v757 = vld [vmem:[%s7 + $0x420] sm:$0xff]
    %v758 = vld [vmem:[%s7 + $0x428] sm:$0xff]
    %v759 = vld [vmem:[%s7 + $0x430] sm:$0xff]
    %v760 = vld [vmem:[%s7 + $0x438] sm:$0xff]
    %v761 = vld [vmem:[%s7 + $0x440] sm:$0xff]
    %v762 = vld [vmem:[%s7 + $0x448] sm:$0xff]
    %v763 = vld [vmem:[%s7 + $0x450] sm:$0xff]
    %v764 = vld [vmem:[%s7 + $0x458] sm:$0xff]
    %v765 = vld [vmem:[%s7 + $0x460] sm:$0xff]
    %v766 = vld [vmem:[%s7 + $0x468] sm:$0xff]
    %v767 = vld [vmem:[%s7 + $0x470] sm:$0xff]
    %v768 = vld [vmem:[%s7 + $0x478] sm:$0xff]
    %v769 = vld [vmem:[%s7 + $0x480] sm:$0xff]
    %v770 = vld [vmem:[%s7 + $0x488] sm:$0xff]
    %v771 = vld [vmem:[%s7 + $0x490] sm:$0xff]
    %v772 = vld [vmem:[%s7 + $0x498] sm:$0xff]
    %v773 = vld [vmem:[%s7 + $0x4a0] sm:$0xff]
    %v774 = vld [vmem:[%s7 + $0x4a8] sm:$0xff]
    %v775 = vld [vmem:[%s7 + $0x4b0] sm:$0xff]
    %v776 = vld [vmem:[%s7 + $0x4b8] sm:$0xff]
    %v777 = vld [vmem:[%s7 + $0x4c0] sm:$0xff]
    %v778 = vld [vmem:[%s7 + $0x4c8] sm:$0xff]
    %v779 = vld [vmem:[%s7 + $0x4d0] sm:$0xff]
    %v780 = vld [vmem:[%s7 + $0x4d8] sm:$0xff]
    %v781 = vld [vmem:[%s7 + $0x4e0] sm:$0xff]
    %v782 = vld [vmem:[%s7 + $0x4e8] sm:$0xff]
    %v783 = vld [vmem:[%s7 + $0x4f0] sm:$0xff]
    %v784 = vld [vmem:[%s7 + $0x4f8] sm:$0xff]
    %v785 = vld [vmem:[%s7 + $0x500] sm:$0xff]
    %v786 = vld [vmem:[%s7 + $0x508] sm:$0xff]
    %v787 = vld [vmem:[%s7 + $0x510] sm:$0xff]
    %v788 = vld [vmem:[%s7 + $0x518] sm:$0xff]
    %v789 = vld [vmem:[%s7 + $0x520] sm:$0xff]
    %v790 = vld [vmem:[%s7 + $0x528] sm:$0xff]
    %v791 = vld [vmem:[%s7 + $0x530] sm:$0xff]
    %v792 = vld [vmem:[%s7 + $0x538] sm:$0xff]
    %v793 = vld [vmem:[%s7 + $0x540] sm:$0xff]
    %v794 = vld [vmem:[%s7 + $0x548] sm:$0xff]
    %v795 = vld [vmem:[%s7 + $0x550] sm:$0xff]
    %v796 = vld [vmem:[%s7 + $0x558] sm:$0xff]
    %v797 = vld [vmem:[%s7 + $0x560] sm:$0xff]
    %v798 = vld [vmem:[%s7 + $0x568] sm:$0xff]
    %v799 = vld [vmem:[%s7 + $0x570] sm:$0xff]
    %v800 = vld [vmem:[%s7 + $0x578] sm:$0xff]
    %v801 = vld [vmem:[%s7 + $0x580] sm:$0xff]
    %v802 = vld [vmem:[%s7 + $0x588] sm:$0xff]
    %v803 = vld [vmem:[%s7 + $0x590] sm:$0xff]
    %v804 = vld [vmem:[%s7 + $0x598] sm:$0xff]
    %v805 = vld [vmem:[%s7 + $0x5a0] sm:$0xff]
    %v806 = vld [vmem:[%s7 + $0x5a8] sm:$0xff]
    %v807 = vld [vmem:[%s7 + $0x5b0] sm:$0xff]
    %v808 = vld [vmem:[%s7 + $0x5b8] sm:$0xff]
    %v809 = vld [vmem:[%s7 + $0x5c0] sm:$0xff]
    %v810 = vld [vmem:[%s7 + $0x5c8] sm:$0xff]
    %v811 = vld [vmem:[%s7 + $0x5d0] sm:$0xff]
    %v812 = vld [vmem:[%s7 + $0x5d8] sm:$0xff]
    %v813 = vld [vmem:[%s7 + $0x5e0] sm:$0xff]
    %v814 = vld [vmem:[%s7 + $0x5e8] sm:$0xff]
    %v815 = vld [vmem:[%s7 + $0x5f0] sm:$0xff]
    %v816 = vld [vmem:[%s7 + $0x5f8] sm:$0xff]
    %v817 = vld [vmem:[%s7 + $0x600] sm:$0xff]
    %v818 = vld [vmem:[%s7 + $0x608] sm:$0xff]
    %v819 = vld [vmem:[%s7 + $0x610] sm:$0xff]
    %v820 = vld [vmem:[%s7 + $0x618] sm:$0xff]
    %v821 = vld [vmem:[%s7 + $0x620] sm:$0xff]
    %v822 = vld [vmem:[%s7 + $0x628] sm:$0xff]
    %v823 = vld [vmem:[%s7 + $0x630] sm:$0xff]
    %v824 = vld [vmem:[%s7 + $0x638] sm:$0xff]
    %v825 = vld [vmem:[%s7 + $0x640] sm:$0xff]
    %v826 = vld [vmem:[%s7 + $0x648] sm:$0xff]
    %v827 = vld [vmem:[%s7 + $0x650] sm:$0xff]
    %v828 = vld [vmem:[%s7 + $0x658] sm:$0xff]
    %v829 = vld [vmem:[%s7 + $0x660] sm:$0xff]
    %v830 = vld [vmem:[%s7 + $0x668] sm:$0xff]
    %v831 = vld [vmem:[%s7 + $0x670] sm:$0xff]
    %v832 = vld [vmem:[%s7 + $0x678] sm:$0xff]
    %v833 = vld [vmem:[%s7 + $0x680] sm:$0xff]
    %v834 = vld [vmem:[%s7 + $0x688] sm:$0xff]
    %v835 = vld [vmem:[%s7 + $0x690] sm:$0xff]
    %v836 = vld [vmem:[%s7 + $0x698] sm:$0xff]
    %v837 = vld [vmem:[%s7 + $0x6a0] sm:$0xff]
    %v838 = vld [vmem:[%s7 + $0x6a8] sm:$0xff]
    %v839 = vld [vmem:[%s7 + $0x6b0] sm:$0xff]
    %v840 = vld [vmem:[%s7 + $0x6b8] sm:$0xff]
    %v841 = vld [vmem:[%s7 + $0x6c0] sm:$0xff]
    %v842 = vld [vmem:[%s7 + $0x6c8] sm:$0xff]
    %v843 = vld [vmem:[%s7 + $0x6d0] sm:$0xff]
    %v844 = vld [vmem:[%s7 + $0x6d8] sm:$0xff]
    %v845 = vld [vmem:[%s7 + $0x6e0] sm:$0xff]
    %v846 = vld [vmem:[%s7 + $0x6e8] sm:$0xff]
    %v847 = vld [vmem:[%s7 + $0x6f0] sm:$0xff]
    %v848 = vld [vmem:[%s7 + $0x6f8] sm:$0xff]
    %v849 = vld [vmem:[%s7 + $0x700] sm:$0xff]
    %v850 = vld [vmem:[%s7 + $0x708] sm:$0xff]
    %v851 = vld [vmem:[%s7 + $0x710] sm:$0xff]
    %v852 = vld [vmem:[%s7 + $0x718] sm:$0xff]
    %v853 = vld [vmem:[%s7 + $0x720] sm:$0xff]
    %v854 = vld [vmem:[%s7 + $0x728] sm:$0xff]
    %v855 = vld [vmem:[%s7 + $0x730] sm:$0xff]
    %v856 = vld [vmem:[%s7 + $0x738] sm:$0xff]
    %v857 = vld [vmem:[%s7 + $0x740] sm:$0xff]
    %v858 = vld [vmem:[%s7 + $0x748] sm:$0xff]
    %v859 = vld [vmem:[%s7 + $0x750] sm:$0xff]
    %v860 = vld [vmem:[%s7 + $0x758] sm:$0xff]
    %v861 = vld [vmem:[%s7 + $0x760] sm:$0xff]
    %v862 = vld [vmem:[%s7 + $0x768] sm:$0xff]
    %v863 = vld [vmem:[%s7 + $0x770] sm:$0xff]
    %v864 = vld [vmem:[%s7 + $0x778] sm:$0xff]
    %v865 = vld [vmem:[%s7 + $0x780] sm:$0xff]
    %v866 = vld [vmem:[%s7 + $0x788] sm:$0xff]
    %v867 = vld [vmem:[%s7 + $0x790] sm:$0xff]
    %v868 = vld [vmem:[%s7 + $0x798] sm:$0xff]
    %v869 = vld [vmem:[%s7 + $0x7a0] sm:$0xff]
    %v870 = vld [vmem:[%s7 + $0x7a8] sm:$0xff]
    %v871 = vld [vmem:[%s7 + $0x7b0] sm:$0xff]
    %v872 = vld [vmem:[%s7 + $0x7b8] sm:$0xff]
    %v873 = vld [vmem:[%s7 + $0x7c0] sm:$0xff]
    %v874 = vld [vmem:[%s7 + $0x7c8] sm:$0xff]
    %v875 = vld [vmem:[%s7 + $0x7d0] sm:$0xff]
    %v876 = vld [vmem:[%s7 + $0x7d8] sm:$0xff]
    %v877 = vld [vmem:[%s7 + $0x7e0] sm:$0xff]
    %v878 = vld [vmem:[%s7 + $0x7e8] sm:$0xff]
    %v879 = vld [vmem:[%s7 + $0x7f0] sm:$0xff]
    %v880 = vld [vmem:[%s7 + $0x7f8] sm:$0xff]
    %v881 = vld [vmem:[%s8] sm:$0xff]
    %v883 = vlaneseq
    %v884 = vshrl.u32 %v883, 7
    %v885 = vsub.s32 0, %v884
    %v886 = vrot.slane %v881, %v885
    %v887 = vlaneseq
    %v888 = vshrl.u32 %v887, 7
    %v889 = vsub.s32 1, %v888
    %v890 = vrot.slane %v881, %v889
    %v891 = vlaneseq
    %v892 = vshrl.u32 %v891, 7
    %v893 = vsub.s32 2, %v892
    %v894 = vrot.slane %v881, %v893
    %v895 = vlaneseq
    %v896 = vshrl.u32 %v895, 7
    %v897 = vsub.s32 3, %v896
    %v898 = vrot.slane %v881, %v897
    %v899 = vlaneseq
    %v900 = vshrl.u32 %v899, 7
    %v901 = vsub.s32 4, %v900
    %v902 = vrot.slane %v881, %v901
    %v903 = vlaneseq
    %v904 = vshrl.u32 %v903, 7
    %v905 = vsub.s32 5, %v904
    %v906 = vrot.slane %v881, %v905
    %v907 = vlaneseq
    %v908 = vshrl.u32 %v907, 7
    %v909 = vsub.s32 6, %v908
    %v910 = vrot.slane %v881, %v909
    %v911 = vlaneseq
    %v912 = vshrl.u32 %v911, 7
    %v913 = vsub.s32 7, %v912
    %v914 = vrot.slane %v881, %v913
    %v1179 = vunpack.c.l.b16 %v625
    %v1180 = vunpack.c.h.b16 %v625
    %v1181 = vunpack.c.l.b16 %v626
    %v1182 = vunpack.c.h.b16 %v626
    %v1183 = vunpack.c.l.b16 %v627
    %v1184 = vunpack.c.h.b16 %v627
    %v1185 = vunpack.c.l.b16 %v628
    %v1186 = vunpack.c.h.b16 %v628
    %v1187 = vunpack.c.l.b16 %v629
    %v1188 = vunpack.c.h.b16 %v629
    %v1189 = vunpack.c.l.b16 %v630
    %v1190 = vunpack.c.h.b16 %v630
    %v1191 = vunpack.c.l.b16 %v631
    %v1192 = vunpack.c.h.b16 %v631
    %v1193 = vunpack.c.l.b16 %v632
    %v1194 = vunpack.c.h.b16 %v632
    %v1195 = vunpack.c.l.b16 %v633
    %v1196 = vunpack.c.h.b16 %v633
    %v1197 = vunpack.c.l.b16 %v634
    %v1198 = vunpack.c.h.b16 %v634
    %v1199 = vunpack.c.l.b16 %v635
    %v1200 = vunpack.c.h.b16 %v635
    %v1201 = vunpack.c.l.b16 %v636
    %v1202 = vunpack.c.h.b16 %v636
    %v1203 = vunpack.c.l.b16 %v637
    %v1204 = vunpack.c.h.b16 %v637
    %v1205 = vunpack.c.l.b16 %v638
    %v1206 = vunpack.c.h.b16 %v638
    %v1207 = vunpack.c.l.b16 %v639
    %v1208 = vunpack.c.h.b16 %v639
    %v1209 = vunpack.c.l.b16 %v640
    %v1210 = vunpack.c.h.b16 %v640
    %v1211 = vunpack.c.l.b16 %v641
    %v1212 = vunpack.c.h.b16 %v641
    %v1213 = vunpack.c.l.b16 %v642
    %v1214 = vunpack.c.h.b16 %v642
    %v1215 = vunpack.c.l.b16 %v643
    %v1216 = vunpack.c.h.b16 %v643
    %v1217 = vunpack.c.l.b16 %v644
    %v1218 = vunpack.c.h.b16 %v644
    %v1219 = vunpack.c.l.b16 %v645
    %v1220 = vunpack.c.h.b16 %v645
    %v1221 = vunpack.c.l.b16 %v646
    %v1222 = vunpack.c.h.b16 %v646
    %v1223 = vunpack.c.l.b16 %v647
    %v1224 = vunpack.c.h.b16 %v647
    %v1225 = vunpack.c.l.b16 %v648
    %v1226 = vunpack.c.h.b16 %v648
    %v1227 = vunpack.c.l.b16 %v649
    %v1228 = vunpack.c.h.b16 %v649
    %v1229 = vunpack.c.l.b16 %v650
    %v1230 = vunpack.c.h.b16 %v650
    %v1231 = vunpack.c.l.b16 %v651
    %v1232 = vunpack.c.h.b16 %v651
    %v1233 = vunpack.c.l.b16 %v652
    %v1234 = vunpack.c.h.b16 %v652
    %v1235 = vunpack.c.l.b16 %v653
    %v1236 = vunpack.c.h.b16 %v653
    %v1237 = vunpack.c.l.b16 %v654
    %v1238 = vunpack.c.h.b16 %v654
    %v1239 = vunpack.c.l.b16 %v655
    %v1240 = vunpack.c.h.b16 %v655
    %v1241 = vunpack.c.l.b16 %v656
    %v1242 = vunpack.c.h.b16 %v656
    %v1243 = vunpack.c.l.b16 %v657
    %v1244 = vunpack.c.h.b16 %v657
    %v1245 = vunpack.c.l.b16 %v658
    %v1246 = vunpack.c.h.b16 %v658
    %v1247 = vunpack.c.l.b16 %v659
    %v1248 = vunpack.c.h.b16 %v659
    %v1249 = vunpack.c.l.b16 %v660
    %v1250 = vunpack.c.h.b16 %v660
    %v1251 = vunpack.c.l.b16 %v661
    %v1252 = vunpack.c.h.b16 %v661
    %v1253 = vunpack.c.l.b16 %v662
    %v1254 = vunpack.c.h.b16 %v662
    %v1255 = vunpack.c.l.b16 %v663
    %v1256 = vunpack.c.h.b16 %v663
    %v1257 = vunpack.c.l.b16 %v664
    %v1258 = vunpack.c.h.b16 %v664
    %v1259 = vunpack.c.l.b16 %v665
    %v1260 = vunpack.c.h.b16 %v665
    %v1261 = vunpack.c.l.b16 %v666
    %v1262 = vunpack.c.h.b16 %v666
    %v1263 = vunpack.c.l.b16 %v667
    %v1264 = vunpack.c.h.b16 %v667
    %v1265 = vunpack.c.l.b16 %v668
    %v1266 = vunpack.c.h.b16 %v668
    %v1267 = vunpack.c.l.b16 %v669
    %v1268 = vunpack.c.h.b16 %v669
    %v1269 = vunpack.c.l.b16 %v670
    %v1270 = vunpack.c.h.b16 %v670
    %v1271 = vunpack.c.l.b16 %v671
    %v1272 = vunpack.c.h.b16 %v671
    %v1273 = vunpack.c.l.b16 %v672
    %v1274 = vunpack.c.h.b16 %v672
    %v1275 = vunpack.c.l.b16 %v673
    %v1276 = vunpack.c.h.b16 %v673
    %v1277 = vunpack.c.l.b16 %v674
    %v1278 = vunpack.c.h.b16 %v674
    %v1279 = vunpack.c.l.b16 %v675
    %v1280 = vunpack.c.h.b16 %v675
    %v1281 = vunpack.c.l.b16 %v676
    %v1282 = vunpack.c.h.b16 %v676
    %v1283 = vunpack.c.l.b16 %v677
    %v1284 = vunpack.c.h.b16 %v677
    %v1285 = vunpack.c.l.b16 %v678
    %v1286 = vunpack.c.h.b16 %v678
    %v1287 = vunpack.c.l.b16 %v679
    %v1288 = vunpack.c.h.b16 %v679
    %v1289 = vunpack.c.l.b16 %v680
    %v1290 = vunpack.c.h.b16 %v680
    %v1291 = vunpack.c.l.b16 %v681
    %v1292 = vunpack.c.h.b16 %v681
    %v1293 = vunpack.c.l.b16 %v682
    %v1294 = vunpack.c.h.b16 %v682
    %v1295 = vunpack.c.l.b16 %v683
    %v1296 = vunpack.c.h.b16 %v683
    %v1297 = vunpack.c.l.b16 %v684
    %v1298 = vunpack.c.h.b16 %v684
    %v1299 = vunpack.c.l.b16 %v685
    %v1300 = vunpack.c.h.b16 %v685
    %v1301 = vunpack.c.l.b16 %v686
    %v1302 = vunpack.c.h.b16 %v686
    %v1303 = vunpack.c.l.b16 %v687
    %v1304 = vunpack.c.h.b16 %v687
    %v1305 = vunpack.c.l.b16 %v688
    %v1306 = vunpack.c.h.b16 %v688
    %v1307 = vunpack.c.l.b16 %v689
    %v1308 = vunpack.c.h.b16 %v689
    %v1309 = vunpack.c.l.b16 %v690
    %v1310 = vunpack.c.h.b16 %v690
    %v1311 = vunpack.c.l.b16 %v691
    %v1312 = vunpack.c.h.b16 %v691
    %v1313 = vunpack.c.l.b16 %v692
    %v1314 = vunpack.c.h.b16 %v692
    %v1315 = vunpack.c.l.b16 %v693
    %v1316 = vunpack.c.h.b16 %v693
    %v1317 = vunpack.c.l.b16 %v694
    %v1318 = vunpack.c.h.b16 %v694
    %v1319 = vunpack.c.l.b16 %v695
    %v1320 = vunpack.c.h.b16 %v695
    %v1321 = vunpack.c.l.b16 %v696
    %v1322 = vunpack.c.h.b16 %v696
    %v1323 = vunpack.c.l.b16 %v697
    %v1324 = vunpack.c.h.b16 %v697
    %v1325 = vunpack.c.l.b16 %v698
    %v1326 = vunpack.c.h.b16 %v698
    %v1327 = vunpack.c.l.b16 %v699
    %v1328 = vunpack.c.h.b16 %v699
    %v1329 = vunpack.c.l.b16 %v700
    %v1330 = vunpack.c.h.b16 %v700
    %v1331 = vunpack.c.l.b16 %v701
    %v1332 = vunpack.c.h.b16 %v701
    %v1333 = vunpack.c.l.b16 %v702
    %v1334 = vunpack.c.h.b16 %v702
    %v1335 = vunpack.c.l.b16 %v703
    %v1336 = vunpack.c.h.b16 %v703
    %v1337 = vunpack.c.l.b16 %v704
    %v1338 = vunpack.c.h.b16 %v704
    %v1339 = vunpack.c.l.b16 %v705
    %v1340 = vunpack.c.h.b16 %v705
    %v1341 = vunpack.c.l.b16 %v706
    %v1342 = vunpack.c.h.b16 %v706
    %v1343 = vunpack.c.l.b16 %v707
    %v1344 = vunpack.c.h.b16 %v707
    %v1345 = vunpack.c.l.b16 %v708
    %v1346 = vunpack.c.h.b16 %v708
    %v1347 = vunpack.c.l.b16 %v709
    %v1348 = vunpack.c.h.b16 %v709
    %v1349 = vunpack.c.l.b16 %v710
    %v1350 = vunpack.c.h.b16 %v710
    %v1351 = vunpack.c.l.b16 %v711
    %v1352 = vunpack.c.h.b16 %v711
    %v1353 = vunpack.c.l.b16 %v712
    %v1354 = vunpack.c.h.b16 %v712
    %v1355 = vunpack.c.l.b16 %v713
    %v1356 = vunpack.c.h.b16 %v713
    %v1357 = vunpack.c.l.b16 %v714
    %v1358 = vunpack.c.h.b16 %v714
    %v1359 = vunpack.c.l.b16 %v715
    %v1360 = vunpack.c.h.b16 %v715
    %v1361 = vunpack.c.l.b16 %v716
    %v1362 = vunpack.c.h.b16 %v716
    %v1363 = vunpack.c.l.b16 %v717
    %v1364 = vunpack.c.h.b16 %v717
    %v1365 = vunpack.c.l.b16 %v718
    %v1366 = vunpack.c.h.b16 %v718
    %v1367 = vunpack.c.l.b16 %v719
    %v1368 = vunpack.c.h.b16 %v719
    %v1369 = vunpack.c.l.b16 %v720
    %v1370 = vunpack.c.h.b16 %v720
    %v1371 = vunpack.c.l.b16 %v721
    %v1372 = vunpack.c.h.b16 %v721
    %v1373 = vunpack.c.l.b16 %v722
    %v1374 = vunpack.c.h.b16 %v722
    %v1375 = vunpack.c.l.b16 %v723
    %v1376 = vunpack.c.h.b16 %v723
    %v1377 = vunpack.c.l.b16 %v724
    %v1378 = vunpack.c.h.b16 %v724
    %v1379 = vunpack.c.l.b16 %v725
    %v1380 = vunpack.c.h.b16 %v725
    %v1381 = vunpack.c.l.b16 %v726
    %v1382 = vunpack.c.h.b16 %v726
    %v1383 = vunpack.c.l.b16 %v727
    %v1384 = vunpack.c.h.b16 %v727
    %v1385 = vunpack.c.l.b16 %v728
    %v1386 = vunpack.c.h.b16 %v728
    %v1387 = vunpack.c.l.b16 %v729
    %v1388 = vunpack.c.h.b16 %v729
    %v1389 = vunpack.c.l.b16 %v730
    %v1390 = vunpack.c.h.b16 %v730
    %v1391 = vunpack.c.l.b16 %v731
    %v1392 = vunpack.c.h.b16 %v731
    %v1393 = vunpack.c.l.b16 %v732
    %v1394 = vunpack.c.h.b16 %v732
    %v1395 = vunpack.c.l.b16 %v733
    %v1396 = vunpack.c.h.b16 %v733
    %v1397 = vunpack.c.l.b16 %v734
    %v1398 = vunpack.c.h.b16 %v734
    %v1399 = vunpack.c.l.b16 %v735
    %v1400 = vunpack.c.h.b16 %v735
    %v1401 = vunpack.c.l.b16 %v736
    %v1402 = vunpack.c.h.b16 %v736
    %v1403 = vunpack.c.l.b16 %v737
    %v1404 = vunpack.c.h.b16 %v737
    %v1405 = vunpack.c.l.b16 %v738
    %v1406 = vunpack.c.h.b16 %v738
    %v1407 = vunpack.c.l.b16 %v739
    %v1408 = vunpack.c.h.b16 %v739
    %v1409 = vunpack.c.l.b16 %v740
    %v1410 = vunpack.c.h.b16 %v740
    %v1411 = vunpack.c.l.b16 %v741
    %v1412 = vunpack.c.h.b16 %v741
    %v1413 = vunpack.c.l.b16 %v742
    %v1414 = vunpack.c.h.b16 %v742
    %v1415 = vunpack.c.l.b16 %v743
    %v1416 = vunpack.c.h.b16 %v743
    %v1417 = vunpack.c.l.b16 %v744
    %v1418 = vunpack.c.h.b16 %v744
    %v1419 = vunpack.c.l.b16 %v745
    %v1420 = vunpack.c.h.b16 %v745
    %v1421 = vunpack.c.l.b16 %v746
    %v1422 = vunpack.c.h.b16 %v746
    %v1423 = vunpack.c.l.b16 %v747
    %v1424 = vunpack.c.h.b16 %v747
    %v1425 = vunpack.c.l.b16 %v748
    %v1426 = vunpack.c.h.b16 %v748
    %v1427 = vunpack.c.l.b16 %v749
    %v1428 = vunpack.c.h.b16 %v749
    %v1429 = vunpack.c.l.b16 %v750
    %v1430 = vunpack.c.h.b16 %v750
    %v1431 = vunpack.c.l.b16 %v751
    %v1432 = vunpack.c.h.b16 %v751
    %v1433 = vunpack.c.l.b16 %v752
    %v1434 = vunpack.c.h.b16 %v752
    %v1435 = vunpack.c.l.b16 %v753
    %v1436 = vunpack.c.h.b16 %v753
    %v1437 = vunpack.c.l.b16 %v754
    %v1438 = vunpack.c.h.b16 %v754
    %v1439 = vunpack.c.l.b16 %v755
    %v1440 = vunpack.c.h.b16 %v755
    %v1441 = vunpack.c.l.b16 %v756
    %v1442 = vunpack.c.h.b16 %v756
    %v1443 = vunpack.c.l.b16 %v757
    %v1444 = vunpack.c.h.b16 %v757
    %v1445 = vunpack.c.l.b16 %v758
    %v1446 = vunpack.c.h.b16 %v758
    %v1447 = vunpack.c.l.b16 %v759
    %v1448 = vunpack.c.h.b16 %v759
    %v1449 = vunpack.c.l.b16 %v760
    %v1450 = vunpack.c.h.b16 %v760
    %v1451 = vunpack.c.l.b16 %v761
    %v1452 = vunpack.c.h.b16 %v761
    %v1453 = vunpack.c.l.b16 %v762
    %v1454 = vunpack.c.h.b16 %v762
    %v1455 = vunpack.c.l.b16 %v763
    %v1456 = vunpack.c.h.b16 %v763
    %v1457 = vunpack.c.l.b16 %v764
    %v1458 = vunpack.c.h.b16 %v764
    %v1459 = vunpack.c.l.b16 %v765
    %v1460 = vunpack.c.h.b16 %v765
    %v1461 = vunpack.c.l.b16 %v766
    %v1462 = vunpack.c.h.b16 %v766
    %v1463 = vunpack.c.l.b16 %v767
    %v1464 = vunpack.c.h.b16 %v767
    %v1465 = vunpack.c.l.b16 %v768
    %v1466 = vunpack.c.h.b16 %v768
    %v1467 = vunpack.c.l.b16 %v769
    %v1468 = vunpack.c.h.b16 %v769
    %v1469 = vunpack.c.l.b16 %v770
    %v1470 = vunpack.c.h.b16 %v770
    %v1471 = vunpack.c.l.b16 %v771
    %v1472 = vunpack.c.h.b16 %v771
    %v1473 = vunpack.c.l.b16 %v772
    %v1474 = vunpack.c.h.b16 %v772
    %v1475 = vunpack.c.l.b16 %v773
    %v1476 = vunpack.c.h.b16 %v773
    %v1477 = vunpack.c.l.b16 %v774
    %v1478 = vunpack.c.h.b16 %v774
    %v1479 = vunpack.c.l.b16 %v775
    %v1480 = vunpack.c.h.b16 %v775
    %v1481 = vunpack.c.l.b16 %v776
    %v1482 = vunpack.c.h.b16 %v776
    %v1483 = vunpack.c.l.b16 %v777
    %v1484 = vunpack.c.h.b16 %v777
    %v1485 = vunpack.c.l.b16 %v778
    %v1486 = vunpack.c.h.b16 %v778
    %v1487 = vunpack.c.l.b16 %v779
    %v1488 = vunpack.c.h.b16 %v779
    %v1489 = vunpack.c.l.b16 %v780
    %v1490 = vunpack.c.h.b16 %v780
    %v1491 = vunpack.c.l.b16 %v781
    %v1492 = vunpack.c.h.b16 %v781
    %v1493 = vunpack.c.l.b16 %v782
    %v1494 = vunpack.c.h.b16 %v782
    %v1495 = vunpack.c.l.b16 %v783
    %v1496 = vunpack.c.h.b16 %v783
    %v1497 = vunpack.c.l.b16 %v784
    %v1498 = vunpack.c.h.b16 %v784
    %v1499 = vunpack.c.l.b16 %v785
    %v1500 = vunpack.c.h.b16 %v785
    %v1501 = vunpack.c.l.b16 %v786
    %v1502 = vunpack.c.h.b16 %v786
    %v1503 = vunpack.c.l.b16 %v787
    %v1504 = vunpack.c.h.b16 %v787
    %v1505 = vunpack.c.l.b16 %v788
    %v1506 = vunpack.c.h.b16 %v788
    %v1507 = vunpack.c.l.b16 %v789
    %v1508 = vunpack.c.h.b16 %v789
    %v1509 = vunpack.c.l.b16 %v790
    %v1510 = vunpack.c.h.b16 %v790
    %v1511 = vunpack.c.l.b16 %v791
    %v1512 = vunpack.c.h.b16 %v791
    %v1513 = vunpack.c.l.b16 %v792
    %v1514 = vunpack.c.h.b16 %v792
    %v1515 = vunpack.c.l.b16 %v793
    %v1516 = vunpack.c.h.b16 %v793
    %v1517 = vunpack.c.l.b16 %v794
    %v1518 = vunpack.c.h.b16 %v794
    %v1519 = vunpack.c.l.b16 %v795
    %v1520 = vunpack.c.h.b16 %v795
    %v1521 = vunpack.c.l.b16 %v796
    %v1522 = vunpack.c.h.b16 %v796
    %v1523 = vunpack.c.l.b16 %v797
    %v1524 = vunpack.c.h.b16 %v797
    %v1525 = vunpack.c.l.b16 %v798
    %v1526 = vunpack.c.h.b16 %v798
    %v1527 = vunpack.c.l.b16 %v799
    %v1528 = vunpack.c.h.b16 %v799
    %v1529 = vunpack.c.l.b16 %v800
    %v1530 = vunpack.c.h.b16 %v800
    %v1531 = vunpack.c.l.b16 %v801
    %v1532 = vunpack.c.h.b16 %v801
    %v1533 = vunpack.c.l.b16 %v802
    %v1534 = vunpack.c.h.b16 %v802
    %v1535 = vunpack.c.l.b16 %v803
    %v1536 = vunpack.c.h.b16 %v803
    %v1537 = vunpack.c.l.b16 %v804
    %v1538 = vunpack.c.h.b16 %v804
    %v1539 = vunpack.c.l.b16 %v805
    %v1540 = vunpack.c.h.b16 %v805
    %v1541 = vunpack.c.l.b16 %v806
    %v1542 = vunpack.c.h.b16 %v806
    %v1543 = vunpack.c.l.b16 %v807
    %v1544 = vunpack.c.h.b16 %v807
    %v1545 = vunpack.c.l.b16 %v808
    %v1546 = vunpack.c.h.b16 %v808
    %v1547 = vunpack.c.l.b16 %v809
    %v1548 = vunpack.c.h.b16 %v809
    %v1549 = vunpack.c.l.b16 %v810
    %v1550 = vunpack.c.h.b16 %v810
    %v1551 = vunpack.c.l.b16 %v811
    %v1552 = vunpack.c.h.b16 %v811
    %v1553 = vunpack.c.l.b16 %v812
    %v1554 = vunpack.c.h.b16 %v812
    %v1555 = vunpack.c.l.b16 %v813
    %v1556 = vunpack.c.h.b16 %v813
    %v1557 = vunpack.c.l.b16 %v814
    %v1558 = vunpack.c.h.b16 %v814
    %v1559 = vunpack.c.l.b16 %v815
    %v1560 = vunpack.c.h.b16 %v815
    %v1561 = vunpack.c.l.b16 %v816
    %v1562 = vunpack.c.h.b16 %v816
    %v1563 = vunpack.c.l.b16 %v817
    %v1564 = vunpack.c.h.b16 %v817
    %v1565 = vunpack.c.l.b16 %v818
    %v1566 = vunpack.c.h.b16 %v818
    %v1567 = vunpack.c.l.b16 %v819
    %v1568 = vunpack.c.h.b16 %v819
    %v1569 = vunpack.c.l.b16 %v820
    %v1570 = vunpack.c.h.b16 %v820
    %v1571 = vunpack.c.l.b16 %v821
    %v1572 = vunpack.c.h.b16 %v821
    %v1573 = vunpack.c.l.b16 %v822
    %v1574 = vunpack.c.h.b16 %v822
    %v1575 = vunpack.c.l.b16 %v823
    %v1576 = vunpack.c.h.b16 %v823
    %v1577 = vunpack.c.l.b16 %v824
    %v1578 = vunpack.c.h.b16 %v824
    %v1579 = vunpack.c.l.b16 %v825
    %v1580 = vunpack.c.h.b16 %v825
    %v1581 = vunpack.c.l.b16 %v826
    %v1582 = vunpack.c.h.b16 %v826
    %v1583 = vunpack.c.l.b16 %v827
    %v1584 = vunpack.c.h.b16 %v827
    %v1585 = vunpack.c.l.b16 %v828
    %v1586 = vunpack.c.h.b16 %v828
    %v1587 = vunpack.c.l.b16 %v829
    %v1588 = vunpack.c.h.b16 %v829
    %v1589 = vunpack.c.l.b16 %v830
    %v1590 = vunpack.c.h.b16 %v830
    %v1591 = vunpack.c.l.b16 %v831
    %v1592 = vunpack.c.h.b16 %v831
    %v1593 = vunpack.c.l.b16 %v832
    %v1594 = vunpack.c.h.b16 %v832
    %v1595 = vunpack.c.l.b16 %v833
    %v1596 = vunpack.c.h.b16 %v833
    %v1597 = vunpack.c.l.b16 %v834
    %v1598 = vunpack.c.h.b16 %v834
    %v1599 = vunpack.c.l.b16 %v835
    %v1600 = vunpack.c.h.b16 %v835
    %v1601 = vunpack.c.l.b16 %v836
    %v1602 = vunpack.c.h.b16 %v836
    %v1603 = vunpack.c.l.b16 %v837
    %v1604 = vunpack.c.h.b16 %v837
    %v1605 = vunpack.c.l.b16 %v838
    %v1606 = vunpack.c.h.b16 %v838
    %v1607 = vunpack.c.l.b16 %v839
    %v1608 = vunpack.c.h.b16 %v839
    %v1609 = vunpack.c.l.b16 %v840
    %v1610 = vunpack.c.h.b16 %v840
    %v1611 = vunpack.c.l.b16 %v841
    %v1612 = vunpack.c.h.b16 %v841
    %v1613 = vunpack.c.l.b16 %v842
    %v1614 = vunpack.c.h.b16 %v842
    %v1615 = vunpack.c.l.b16 %v843
    %v1616 = vunpack.c.h.b16 %v843
    %v1617 = vunpack.c.l.b16 %v844
    %v1618 = vunpack.c.h.b16 %v844
    %v1619 = vunpack.c.l.b16 %v845
    %v1620 = vunpack.c.h.b16 %v845
    %v1621 = vunpack.c.l.b16 %v846
    %v1622 = vunpack.c.h.b16 %v846
    %v1623 = vunpack.c.l.b16 %v847
    %v1624 = vunpack.c.h.b16 %v847
    %v1625 = vunpack.c.l.b16 %v848
    %v1626 = vunpack.c.h.b16 %v848
    %v1627 = vunpack.c.l.b16 %v849
    %v1628 = vunpack.c.h.b16 %v849
    %v1629 = vunpack.c.l.b16 %v850
    %v1630 = vunpack.c.h.b16 %v850
    %v1631 = vunpack.c.l.b16 %v851
    %v1632 = vunpack.c.h.b16 %v851
    %v1633 = vunpack.c.l.b16 %v852
    %v1634 = vunpack.c.h.b16 %v852
    %v1635 = vunpack.c.l.b16 %v853
    %v1636 = vunpack.c.h.b16 %v853
    %v1637 = vunpack.c.l.b16 %v854
    %v1638 = vunpack.c.h.b16 %v854
    %v1639 = vunpack.c.l.b16 %v855
    %v1640 = vunpack.c.h.b16 %v855
    %v1641 = vunpack.c.l.b16 %v856
    %v1642 = vunpack.c.h.b16 %v856
    %v1643 = vunpack.c.l.b16 %v857
    %v1644 = vunpack.c.h.b16 %v857
    %v1645 = vunpack.c.l.b16 %v858
    %v1646 = vunpack.c.h.b16 %v858
    %v1647 = vunpack.c.l.b16 %v859
    %v1648 = vunpack.c.h.b16 %v859
    %v1649 = vunpack.c.l.b16 %v860
    %v1650 = vunpack.c.h.b16 %v860
    %v1651 = vunpack.c.l.b16 %v861
    %v1652 = vunpack.c.h.b16 %v861
    %v1653 = vunpack.c.l.b16 %v862
    %v1654 = vunpack.c.h.b16 %v862
    %v1655 = vunpack.c.l.b16 %v863
    %v1656 = vunpack.c.h.b16 %v863
    %v1657 = vunpack.c.l.b16 %v864
    %v1658 = vunpack.c.h.b16 %v864
    %v1659 = vunpack.c.l.b16 %v865
    %v1660 = vunpack.c.h.b16 %v865
    %v1661 = vunpack.c.l.b16 %v866
    %v1662 = vunpack.c.h.b16 %v866
    %v1663 = vunpack.c.l.b16 %v867
    %v1664 = vunpack.c.h.b16 %v867
    %v1665 = vunpack.c.l.b16 %v868
    %v1666 = vunpack.c.h.b16 %v868
    %v1667 = vunpack.c.l.b16 %v869
    %v1668 = vunpack.c.h.b16 %v869
    %v1669 = vunpack.c.l.b16 %v870
    %v1670 = vunpack.c.h.b16 %v870
    %v1671 = vunpack.c.l.b16 %v871
    %v1672 = vunpack.c.h.b16 %v871
    %v1673 = vunpack.c.l.b16 %v872
    %v1674 = vunpack.c.h.b16 %v872
    %v1675 = vunpack.c.l.b16 %v873
    %v1676 = vunpack.c.h.b16 %v873
    %v1677 = vunpack.c.l.b16 %v874
    %v1678 = vunpack.c.h.b16 %v874
    %v1679 = vunpack.c.l.b16 %v875
    %v1680 = vunpack.c.h.b16 %v875
    %v1681 = vunpack.c.l.b16 %v876
    %v1682 = vunpack.c.h.b16 %v876
    %v1683 = vunpack.c.l.b16 %v877
    %v1684 = vunpack.c.h.b16 %v877
    %v1685 = vunpack.c.l.b16 %v878
    %v1686 = vunpack.c.h.b16 %v878
    %v1687 = vunpack.c.l.b16 %v879
    %v1688 = vunpack.c.h.b16 %v879
    %v1689 = vunpack.c.l.b16 %v880
    %v1690 = vunpack.c.h.b16 %v880
    %v1691 = vpack.c.b16 %v1187, %v1179
    %v1692 = vpack.c.b16 %v1188, %v1180
    %v1693 = vpack.c.b16 %v1189, %v1181
    %v1694 = vpack.c.b16 %v1190, %v1182
    %v1695 = vpack.c.b16 %v1191, %v1183
    %v1696 = vpack.c.b16 %v1192, %v1184
    %v1697 = vpack.c.b16 %v1193, %v1185
    %v1698 = vpack.c.b16 %v1194, %v1186
    %v1699 = vpack.c.b16 %v1203, %v1195
    %v1700 = vpack.c.b16 %v1204, %v1196
    %v1701 = vpack.c.b16 %v1205, %v1197
    %v1702 = vpack.c.b16 %v1206, %v1198
    %v1703 = vpack.c.b16 %v1207, %v1199
    %v1704 = vpack.c.b16 %v1208, %v1200
    %v1705 = vpack.c.b16 %v1209, %v1201
    %v1706 = vpack.c.b16 %v1210, %v1202
    %v1707 = vpack.c.b16 %v1219, %v1211
    %v1708 = vpack.c.b16 %v1220, %v1212
    %v1709 = vpack.c.b16 %v1221, %v1213
    %v1710 = vpack.c.b16 %v1222, %v1214
    %v1711 = vpack.c.b16 %v1223, %v1215
    %v1712 = vpack.c.b16 %v1224, %v1216
    %v1713 = vpack.c.b16 %v1225, %v1217
    %v1714 = vpack.c.b16 %v1226, %v1218
    %v1715 = vpack.c.b16 %v1235, %v1227
    %v1716 = vpack.c.b16 %v1236, %v1228
    %v1717 = vpack.c.b16 %v1237, %v1229
    %v1718 = vpack.c.b16 %v1238, %v1230
    %v1719 = vpack.c.b16 %v1239, %v1231
    %v1720 = vpack.c.b16 %v1240, %v1232
    %v1721 = vpack.c.b16 %v1241, %v1233
    %v1722 = vpack.c.b16 %v1242, %v1234
    %v1723 = vpack.c.b16 %v1251, %v1243
    %v1724 = vpack.c.b16 %v1252, %v1244
    %v1725 = vpack.c.b16 %v1253, %v1245
    %v1726 = vpack.c.b16 %v1254, %v1246
    %v1727 = vpack.c.b16 %v1255, %v1247
    %v1728 = vpack.c.b16 %v1256, %v1248
    %v1729 = vpack.c.b16 %v1257, %v1249
    %v1730 = vpack.c.b16 %v1258, %v1250
    %v1731 = vpack.c.b16 %v1267, %v1259
    %v1732 = vpack.c.b16 %v1268, %v1260
    %v1733 = vpack.c.b16 %v1269, %v1261
    %v1734 = vpack.c.b16 %v1270, %v1262
    %v1735 = vpack.c.b16 %v1271, %v1263
    %v1736 = vpack.c.b16 %v1272, %v1264
    %v1737 = vpack.c.b16 %v1273, %v1265
    %v1738 = vpack.c.b16 %v1274, %v1266
    %v1739 = vpack.c.b16 %v1283, %v1275
    %v1740 = vpack.c.b16 %v1284, %v1276
    %v1741 = vpack.c.b16 %v1285, %v1277
    %v1742 = vpack.c.b16 %v1286, %v1278
    %v1743 = vpack.c.b16 %v1287, %v1279
    %v1744 = vpack.c.b16 %v1288, %v1280
    %v1745 = vpack.c.b16 %v1289, %v1281
    %v1746 = vpack.c.b16 %v1290, %v1282
    %v1747 = vpack.c.b16 %v1299, %v1291
    %v1748 = vpack.c.b16 %v1300, %v1292
    %v1749 = vpack.c.b16 %v1301, %v1293
    %v1750 = vpack.c.b16 %v1302, %v1294
    %v1751 = vpack.c.b16 %v1303, %v1295
    %v1752 = vpack.c.b16 %v1304, %v1296
    %v1753 = vpack.c.b16 %v1305, %v1297
    %v1754 = vpack.c.b16 %v1306, %v1298
    %v1755 = vpack.c.b16 %v1315, %v1307
    %v1756 = vpack.c.b16 %v1316, %v1308
    %v1757 = vpack.c.b16 %v1317, %v1309
    %v1758 = vpack.c.b16 %v1318, %v1310
    %v1759 = vpack.c.b16 %v1319, %v1311
    %v1760 = vpack.c.b16 %v1320, %v1312
    %v1761 = vpack.c.b16 %v1321, %v1313
    %v1762 = vpack.c.b16 %v1322, %v1314
    %v1763 = vpack.c.b16 %v1331, %v1323
    %v1764 = vpack.c.b16 %v1332, %v1324
    %v1765 = vpack.c.b16 %v1333, %v1325
    %v1766 = vpack.c.b16 %v1334, %v1326
    %v1767 = vpack.c.b16 %v1335, %v1327
    %v1768 = vpack.c.b16 %v1336, %v1328
    %v1769 = vpack.c.b16 %v1337, %v1329
    %v1770 = vpack.c.b16 %v1338, %v1330
    %v1771 = vpack.c.b16 %v1347, %v1339
    %v1772 = vpack.c.b16 %v1348, %v1340
    %v1773 = vpack.c.b16 %v1349, %v1341
    %v1774 = vpack.c.b16 %v1350, %v1342
    %v1775 = vpack.c.b16 %v1351, %v1343
    %v1776 = vpack.c.b16 %v1352, %v1344
    %v1777 = vpack.c.b16 %v1353, %v1345
    %v1778 = vpack.c.b16 %v1354, %v1346
    %v1779 = vpack.c.b16 %v1363, %v1355
    %v1780 = vpack.c.b16 %v1364, %v1356
    %v1781 = vpack.c.b16 %v1365, %v1357
    %v1782 = vpack.c.b16 %v1366, %v1358
    %v1783 = vpack.c.b16 %v1367, %v1359
    %v1784 = vpack.c.b16 %v1368, %v1360
    %v1785 = vpack.c.b16 %v1369, %v1361
    %v1786 = vpack.c.b16 %v1370, %v1362
    %v1787 = vpack.c.b16 %v1379, %v1371
    %v1788 = vpack.c.b16 %v1380, %v1372
    %v1789 = vpack.c.b16 %v1381, %v1373
    %v1790 = vpack.c.b16 %v1382, %v1374
    %v1791 = vpack.c.b16 %v1383, %v1375
    %v1792 = vpack.c.b16 %v1384, %v1376
    %v1793 = vpack.c.b16 %v1385, %v1377
    %v1794 = vpack.c.b16 %v1386, %v1378
    %v1795 = vpack.c.b16 %v1395, %v1387
    %v1796 = vpack.c.b16 %v1396, %v1388
    %v1797 = vpack.c.b16 %v1397, %v1389
    %v1798 = vpack.c.b16 %v1398, %v1390
    %v1799 = vpack.c.b16 %v1399, %v1391
    %v1800 = vpack.c.b16 %v1400, %v1392
    %v1801 = vpack.c.b16 %v1401, %v1393
    %v1802 = vpack.c.b16 %v1402, %v1394
    %v1803 = vpack.c.b16 %v1411, %v1403
    %v1804 = vpack.c.b16 %v1412, %v1404
    %v1805 = vpack.c.b16 %v1413, %v1405
    %v1806 = vpack.c.b16 %v1414, %v1406
    %v1807 = vpack.c.b16 %v1415, %v1407
    %v1808 = vpack.c.b16 %v1416, %v1408
    %v1809 = vpack.c.b16 %v1417, %v1409
    %v1810 = vpack.c.b16 %v1418, %v1410
    %v1811 = vpack.c.b16 %v1427, %v1419
    %v1812 = vpack.c.b16 %v1428, %v1420
    %v1813 = vpack.c.b16 %v1429, %v1421
    %v1814 = vpack.c.b16 %v1430, %v1422
    %v1815 = vpack.c.b16 %v1431, %v1423
    %v1816 = vpack.c.b16 %v1432, %v1424
    %v1817 = vpack.c.b16 %v1433, %v1425
    %v1818 = vpack.c.b16 %v1434, %v1426
    %v1819 = vpack.c.b16 %v1443, %v1435
    %v1820 = vpack.c.b16 %v1444, %v1436
    %v1821 = vpack.c.b16 %v1445, %v1437
    %v1822 = vpack.c.b16 %v1446, %v1438
    %v1823 = vpack.c.b16 %v1447, %v1439
    %v1824 = vpack.c.b16 %v1448, %v1440
    %v1825 = vpack.c.b16 %v1449, %v1441
    %v1826 = vpack.c.b16 %v1450, %v1442
    %v1827 = vpack.c.b16 %v1459, %v1451
    %v1828 = vpack.c.b16 %v1460, %v1452
    %v1829 = vpack.c.b16 %v1461, %v1453
    %v1830 = vpack.c.b16 %v1462, %v1454
    %v1831 = vpack.c.b16 %v1463, %v1455
    %v1832 = vpack.c.b16 %v1464, %v1456
    %v1833 = vpack.c.b16 %v1465, %v1457
    %v1834 = vpack.c.b16 %v1466, %v1458
    %v1835 = vpack.c.b16 %v1475, %v1467
    %v1836 = vpack.c.b16 %v1476, %v1468
    %v1837 = vpack.c.b16 %v1477, %v1469
    %v1838 = vpack.c.b16 %v1478, %v1470
    %v1839 = vpack.c.b16 %v1479, %v1471
    %v1840 = vpack.c.b16 %v1480, %v1472
    %v1841 = vpack.c.b16 %v1481, %v1473
    %v1842 = vpack.c.b16 %v1482, %v1474
    %v1843 = vpack.c.b16 %v1491, %v1483
    %v1844 = vpack.c.b16 %v1492, %v1484
    %v1845 = vpack.c.b16 %v1493, %v1485
    %v1846 = vpack.c.b16 %v1494, %v1486
    %v1847 = vpack.c.b16 %v1495, %v1487
    %v1848 = vpack.c.b16 %v1496, %v1488
    %v1849 = vpack.c.b16 %v1497, %v1489
    %v1850 = vpack.c.b16 %v1498, %v1490
    %v1851 = vpack.c.b16 %v1507, %v1499
    %v1852 = vpack.c.b16 %v1508, %v1500
    %v1853 = vpack.c.b16 %v1509, %v1501
    %v1854 = vpack.c.b16 %v1510, %v1502
    %v1855 = vpack.c.b16 %v1511, %v1503
    %v1856 = vpack.c.b16 %v1512, %v1504
    %v1857 = vpack.c.b16 %v1513, %v1505
    %v1858 = vpack.c.b16 %v1514, %v1506
    %v1859 = vpack.c.b16 %v1523, %v1515
    %v1860 = vpack.c.b16 %v1524, %v1516
    %v1861 = vpack.c.b16 %v1525, %v1517
    %v1862 = vpack.c.b16 %v1526, %v1518
    %v1863 = vpack.c.b16 %v1527, %v1519
    %v1864 = vpack.c.b16 %v1528, %v1520
    %v1865 = vpack.c.b16 %v1529, %v1521
    %v1866 = vpack.c.b16 %v1530, %v1522
    %v1867 = vpack.c.b16 %v1539, %v1531
    %v1868 = vpack.c.b16 %v1540, %v1532
    %v1869 = vpack.c.b16 %v1541, %v1533
    %v1870 = vpack.c.b16 %v1542, %v1534
    %v1871 = vpack.c.b16 %v1543, %v1535
    %v1872 = vpack.c.b16 %v1544, %v1536
    %v1873 = vpack.c.b16 %v1545, %v1537
    %v1874 = vpack.c.b16 %v1546, %v1538
    %v1875 = vpack.c.b16 %v1555, %v1547
    %v1876 = vpack.c.b16 %v1556, %v1548
    %v1877 = vpack.c.b16 %v1557, %v1549
    %v1878 = vpack.c.b16 %v1558, %v1550
    %v1879 = vpack.c.b16 %v1559, %v1551
    %v1880 = vpack.c.b16 %v1560, %v1552
    %v1881 = vpack.c.b16 %v1561, %v1553
    %v1882 = vpack.c.b16 %v1562, %v1554
    %v1883 = vpack.c.b16 %v1571, %v1563
    %v1884 = vpack.c.b16 %v1572, %v1564
    %v1885 = vpack.c.b16 %v1573, %v1565
    %v1886 = vpack.c.b16 %v1574, %v1566
    %v1887 = vpack.c.b16 %v1575, %v1567
    %v1888 = vpack.c.b16 %v1576, %v1568
    %v1889 = vpack.c.b16 %v1577, %v1569
    %v1890 = vpack.c.b16 %v1578, %v1570
    %v1891 = vpack.c.b16 %v1587, %v1579
    %v1892 = vpack.c.b16 %v1588, %v1580
    %v1893 = vpack.c.b16 %v1589, %v1581
    %v1894 = vpack.c.b16 %v1590, %v1582
    %v1895 = vpack.c.b16 %v1591, %v1583
    %v1896 = vpack.c.b16 %v1592, %v1584
    %v1897 = vpack.c.b16 %v1593, %v1585
    %v1898 = vpack.c.b16 %v1594, %v1586
    %v1899 = vpack.c.b16 %v1603, %v1595
    %v1900 = vpack.c.b16 %v1604, %v1596
    %v1901 = vpack.c.b16 %v1605, %v1597
    %v1902 = vpack.c.b16 %v1606, %v1598
    %v1903 = vpack.c.b16 %v1607, %v1599
    %v1904 = vpack.c.b16 %v1608, %v1600
    %v1905 = vpack.c.b16 %v1609, %v1601
    %v1906 = vpack.c.b16 %v1610, %v1602
    %v1907 = vpack.c.b16 %v1619, %v1611
    %v1908 = vpack.c.b16 %v1620, %v1612
    %v1909 = vpack.c.b16 %v1621, %v1613
    %v1910 = vpack.c.b16 %v1622, %v1614
    %v1911 = vpack.c.b16 %v1623, %v1615
    %v1912 = vpack.c.b16 %v1624, %v1616
    %v1913 = vpack.c.b16 %v1625, %v1617
    %v1914 = vpack.c.b16 %v1626, %v1618
    %v1915 = vpack.c.b16 %v1635, %v1627
    %v1916 = vpack.c.b16 %v1636, %v1628
    %v1917 = vpack.c.b16 %v1637, %v1629
    %v1918 = vpack.c.b16 %v1638, %v1630
    %v1919 = vpack.c.b16 %v1639, %v1631
    %v1920 = vpack.c.b16 %v1640, %v1632
    %v1921 = vpack.c.b16 %v1641, %v1633
    %v1922 = vpack.c.b16 %v1642, %v1634
    %v1923 = vpack.c.b16 %v1651, %v1643
    %v1924 = vpack.c.b16 %v1652, %v1644
    %v1925 = vpack.c.b16 %v1653, %v1645
    %v1926 = vpack.c.b16 %v1654, %v1646
    %v1927 = vpack.c.b16 %v1655, %v1647
    %v1928 = vpack.c.b16 %v1656, %v1648
    %v1929 = vpack.c.b16 %v1657, %v1649
    %v1930 = vpack.c.b16 %v1658, %v1650
    %v1931 = vpack.c.b16 %v1667, %v1659
    %v1932 = vpack.c.b16 %v1668, %v1660
    %v1933 = vpack.c.b16 %v1669, %v1661
    %v1934 = vpack.c.b16 %v1670, %v1662
    %v1935 = vpack.c.b16 %v1671, %v1663
    %v1936 = vpack.c.b16 %v1672, %v1664
    %v1937 = vpack.c.b16 %v1673, %v1665
    %v1938 = vpack.c.b16 %v1674, %v1666
    %v1939 = vpack.c.b16 %v1683, %v1675
    %v1940 = vpack.c.b16 %v1684, %v1676
    %v1941 = vpack.c.b16 %v1685, %v1677
    %v1942 = vpack.c.b16 %v1686, %v1678
    %v1943 = vpack.c.b16 %v1687, %v1679
    %v1944 = vpack.c.b16 %v1688, %v1680
    %v1945 = vpack.c.b16 %v1689, %v1681
    %v1946 = vpack.c.b16 %v1690, %v1682
    %2203 = vmatprep.subr.bf16.mxu0 %v1692
    %2204 = vmatpush1.bf16.msra.mxu0 %v1691
    %2205 = vmatprep.subr.bf16.mxu0 %v1700
    %2206 = vmatpush1.bf16.msra.mxu0 %v1699
    %2207 = vmatprep.subr.bf16.mxu0 %v1708
    %2208 = vmatpush1.bf16.msra.mxu0 %v1707
    %2209 = vmatprep.subr.bf16.mxu0 %v1716
    %2210 = vmatpush1.bf16.msra.mxu0 %v1715
    %2211 = vmatprep.subr.bf16.mxu0 %v1724
    %2212 = vmatpush1.bf16.msra.mxu0 %v1723
    %2213 = vmatprep.subr.bf16.mxu0 %v1732
    %2214 = vmatpush1.bf16.msra.mxu0 %v1731
    %2215 = vmatprep.subr.bf16.mxu0 %v1740
    %2216 = vmatpush1.bf16.msra.mxu0 %v1739
    %2217 = vmatprep.subr.bf16.mxu0 %v1748
    %2218 = vmatpush1.bf16.msra.mxu0 %v1747
    %2219 = vmatprep.subr.bf16.mxu0 %v1756
    %2220 = vmatpush1.bf16.msra.mxu0 %v1755
    %2221 = vmatprep.subr.bf16.mxu0 %v1764
    %2222 = vmatpush1.bf16.msra.mxu0 %v1763
    %2223 = vmatprep.subr.bf16.mxu0 %v1772
    %2224 = vmatpush1.bf16.msra.mxu0 %v1771
    %2225 = vmatprep.subr.bf16.mxu0 %v1780
    %2226 = vmatpush1.bf16.msra.mxu0 %v1779
    %2227 = vmatprep.subr.bf16.mxu0 %v1788
    %2228 = vmatpush1.bf16.msra.mxu0 %v1787
    %2229 = vmatprep.subr.bf16.mxu0 %v1796
    %2230 = vmatpush1.bf16.msra.mxu0 %v1795
    %2231 = vmatprep.subr.bf16.mxu0 %v1804
    %2232 = vmatpush1.bf16.msra.mxu0 %v1803
    %2233 = vmatprep.subr.bf16.mxu0 %v1812
    %2234 = vmatpush1.bf16.msra.mxu0 %v1811
    %2235 = vmatprep.mubr.bf16.mxu0 %v622
    %2236 = vmatmul.mubr.bf16.gmra.mrb[0].mxu0 %v621
    %v2237 = vpop.f32.mrb[0].mxu0
    %v2238 = vadd.f32 %v886, %v2237
    %v2239 = vpop.f32.mrb[0].mxu0
    %v2240 = vadd.f32 %v890, %v2239
    %v2241 = vpop.f32.mrb[0].mxu0
    %v2242 = vpop.f32.mrb[0].mxu0
    %2243 = vdwg.mxu0
    %2244 = vmatprep.subr.bf16.mxu0 %v1820
    %2245 = vmatpush1.bf16.msra.mxu0 %v1819
    %2246 = vmatprep.subr.bf16.mxu0 %v1828
    %2247 = vmatpush1.bf16.msra.mxu0 %v1827
    %2248 = vmatprep.subr.bf16.mxu0 %v1836
    %2249 = vmatpush1.bf16.msra.mxu0 %v1835
    %2250 = vmatprep.subr.bf16.mxu0 %v1844
    %2251 = vmatpush1.bf16.msra.mxu0 %v1843
    %2252 = vmatprep.subr.bf16.mxu0 %v1852
    %2253 = vmatpush1.bf16.msra.mxu0 %v1851
    %2254 = vmatprep.subr.bf16.mxu0 %v1860
    %2255 = vmatpush1.bf16.msra.mxu0 %v1859
    %2256 = vmatprep.subr.bf16.mxu0 %v1868
    %2257 = vmatpush1.bf16.msra.mxu0 %v1867
    %2258 = vmatprep.subr.bf16.mxu0 %v1876
    %2259 = vmatpush1.bf16.msra.mxu0 %v1875
    %2260 = vmatprep.subr.bf16.mxu0 %v1884
    %2261 = vmatpush1.bf16.msra.mxu0 %v1883
    %2262 = vmatprep.subr.bf16.mxu0 %v1892
    %2263 = vmatpush1.bf16.msra.mxu0 %v1891
    %2264 = vmatprep.subr.bf16.mxu0 %v1900
    %2265 = vmatpush1.bf16.msra.mxu0 %v1899
    %2266 = vmatprep.subr.bf16.mxu0 %v1908
    %2267 = vmatpush1.bf16.msra.mxu0 %v1907
    %2268 = vmatprep.subr.bf16.mxu0 %v1916
    %2269 = vmatpush1.bf16.msra.mxu0 %v1915
    %2270 = vmatprep.subr.bf16.mxu0 %v1924
    %2271 = vmatpush1.bf16.msra.mxu0 %v1923
    %2272 = vmatprep.subr.bf16.mxu0 %v1932
    %2273 = vmatpush1.bf16.msra.mxu0 %v1931
    %2274 = vmatprep.subr.bf16.mxu0 %v1940
    %2275 = vmatpush1.bf16.msra.mxu0 %v1939
    %2276 = vmatprep.mubr.bf16.mxu0 %v624
    %2277 = vmatmul.mubr.bf16.gmra.mrb[0].mxu0 %v623
    %v2278 = vpop.f32.mrb[0].mxu0
    %v2279 = vadd.f32 %v2238, %v2278
    %v2280 = vpop.f32.mrb[0].mxu0
    %v2281 = vadd.f32 %v2240, %v2280
    %v2282 = vpop.f32.mrb[0].mxu0
    %v2283 = vpop.f32.mrb[0].mxu0
    %2284 = vdwg.mxu0
    %2285 = vmatprep.subr.bf16.mxu0 %v1694
    %2286 = vmatpush1.bf16.msra.mxu0 %v1693
    %2287 = vmatprep.subr.bf16.mxu0 %v1702
    %2288 = vmatpush1.bf16.msra.mxu0 %v1701
    %2289 = vmatprep.subr.bf16.mxu0 %v1710
    %2290 = vmatpush1.bf16.msra.mxu0 %v1709
    %2291 = vmatprep.subr.bf16.mxu0 %v1718
    %2292 = vmatpush1.bf16.msra.mxu0 %v1717
    %2293 = vmatprep.subr.bf16.mxu0 %v1726
    %2294 = vmatpush1.bf16.msra.mxu0 %v1725
    %2295 = vmatprep.subr.bf16.mxu0 %v1734
    %2296 = vmatpush1.bf16.msra.mxu0 %v1733
    %2297 = vmatprep.subr.bf16.mxu0 %v1742
    %2298 = vmatpush1.bf16.msra.mxu0 %v1741
    %2299 = vmatprep.subr.bf16.mxu0 %v1750
    %2300 = vmatpush1.bf16.msra.mxu0 %v1749
    %2301 = vmatprep.subr.bf16.mxu0 %v1758
    %2302 = vmatpush1.bf16.msra.mxu0 %v1757
    %2303 = vmatprep.subr.bf16.mxu0 %v1766
    %2304 = vmatpush1.bf16.msra.mxu0 %v1765
    %2305 = vmatprep.subr.bf16.mxu0 %v1774
    %2306 = vmatpush1.bf16.msra.mxu0 %v1773
    %2307 = vmatprep.subr.bf16.mxu0 %v1782
    %2308 = vmatpush1.bf16.msra.mxu0 %v1781
    %2309 = vmatprep.subr.bf16.mxu0 %v1790
    %2310 = vmatpush1.bf16.msra.mxu0 %v1789
    %2311 = vmatprep.subr.bf16.mxu0 %v1798
    %2312 = vmatpush1.bf16.msra.mxu0 %v1797
    %2313 = vmatprep.subr.bf16.mxu0 %v1806
    %2314 = vmatpush1.bf16.msra.mxu0 %v1805
    %2315 = vmatprep.subr.bf16.mxu0 %v1814
    %2316 = vmatpush1.bf16.msra.mxu0 %v1813
    %2317 = vmatprep.mubr.bf16.mxu0 %v622
    %2318 = vmatmul.mubr.bf16.gmra.mrb[0].mxu0 %v621
    %v2319 = vpop.f32.mrb[0].mxu0
    %v2320 = vadd.f32 %v894, %v2319
    %v2321 = vpop.f32.mrb[0].mxu0
    %v2322 = vadd.f32 %v898, %v2321
    %v2323 = vpop.f32.mrb[0].mxu0
    %v2324 = vpop.f32.mrb[0].mxu0
    %2325 = vdwg.mxu0
    %2326 = vmatprep.subr.bf16.mxu0 %v1822
    %2327 = vmatpush1.bf16.msra.mxu0 %v1821
    %2328 = vmatprep.subr.bf16.mxu0 %v1830
    %2329 = vmatpush1.bf16.msra.mxu0 %v1829
    %2330 = vmatprep.subr.bf16.mxu0 %v1838
    %2331 = vmatpush1.bf16.msra.mxu0 %v1837
    %2332 = vmatprep.subr.bf16.mxu0 %v1846
    %2333 = vmatpush1.bf16.msra.mxu0 %v1845
    %2334 = vmatprep.subr.bf16.mxu0 %v1854
    %2335 = vmatpush1.bf16.msra.mxu0 %v1853
    %2336 = vmatprep.subr.bf16.mxu0 %v1862
    %2337 = vmatpush1.bf16.msra.mxu0 %v1861
    %2338 = vmatprep.subr.bf16.mxu0 %v1870
    %2339 = vmatpush1.bf16.msra.mxu0 %v1869
    %2340 = vmatprep.subr.bf16.mxu0 %v1878
    %2341 = vmatpush1.bf16.msra.mxu0 %v1877
    %2342 = vmatprep.subr.bf16.mxu0 %v1886
    %2343 = vmatpush1.bf16.msra.mxu0 %v1885
    %2344 = vmatprep.subr.bf16.mxu0 %v1894
    %2345 = vmatpush1.bf16.msra.mxu0 %v1893
    %2346 = vmatprep.subr.bf16.mxu0 %v1902
    %2347 = vmatpush1.bf16.msra.mxu0 %v1901
    %2348 = vmatprep.subr.bf16.mxu0 %v1910
    %2349 = vmatpush1.bf16.msra.mxu0 %v1909
    %2350 = vmatprep.subr.bf16.mxu0 %v1918
    %2351 = vmatpush1.bf16.msra.mxu0 %v1917
    %2352 = vmatprep.subr.bf16.mxu0 %v1926
    %2353 = vmatpush1.bf16.msra.mxu0 %v1925
    %2354 = vmatprep.subr.bf16.mxu0 %v1934
    %2355 = vmatpush1.bf16.msra.mxu0 %v1933
    %2356 = vmatprep.subr.bf16.mxu0 %v1942
    %2357 = vmatpush1.bf16.msra.mxu0 %v1941
    %2358 = vmatprep.mubr.bf16.mxu0 %v624
    %2359 = vmatmul.mubr.bf16.gmra.mrb[0].mxu0 %v623
    %v2360 = vpop.f32.mrb[0].mxu0
    %v2361 = vadd.f32 %v2320, %v2360
    %v2362 = vpop.f32.mrb[0].mxu0
    %v2363 = vadd.f32 %v2322, %v2362
    %v2364 = vpop.f32.mrb[0].mxu0
    %v2365 = vpop.f32.mrb[0].mxu0
    %2366 = vdwg.mxu0
    %2367 = vmatprep.subr.bf16.mxu0 %v1696
    %2368 = vmatpush1.bf16.msra.mxu0 %v1695
    %2369 = vmatprep.subr.bf16.mxu0 %v1704
    %2370 = vmatpush1.bf16.msra.mxu0 %v1703
    %2371 = vmatprep.subr.bf16.mxu0 %v1712
    %2372 = vmatpush1.bf16.msra.mxu0 %v1711
    %2373 = vmatprep.subr.bf16.mxu0 %v1720
    %2374 = vmatpush1.bf16.msra.mxu0 %v1719
    %2375 = vmatprep.subr.bf16.mxu0 %v1728
    %2376 = vmatpush1.bf16.msra.mxu0 %v1727
    %2377 = vmatprep.subr.bf16.mxu0 %v1736
    %2378 = vmatpush1.bf16.msra.mxu0 %v1735
    %2379 = vmatprep.subr.bf16.mxu0 %v1744
    %2380 = vmatpush1.bf16.msra.mxu0 %v1743
    %2381 = vmatprep.subr.bf16.mxu0 %v1752
    %2382 = vmatpush1.bf16.msra.mxu0 %v1751
    %2383 = vmatprep.subr.bf16.mxu0 %v1760
    %2384 = vmatpush1.bf16.msra.mxu0 %v1759
    %2385 = vmatprep.subr.bf16.mxu0 %v1768
    %2386 = vmatpush1.bf16.msra.mxu0 %v1767
    %2387 = vmatprep.subr.bf16.mxu0 %v1776
    %2388 = vmatpush1.bf16.msra.mxu0 %v1775
    %2389 = vmatprep.subr.bf16.mxu0 %v1784
    %2390 = vmatpush1.bf16.msra.mxu0 %v1783
    %2391 = vmatprep.subr.bf16.mxu0 %v1792
    %2392 = vmatpush1.bf16.msra.mxu0 %v1791
    %2393 = vmatprep.subr.bf16.mxu0 %v1800
    %2394 = vmatpush1.bf16.msra.mxu0 %v1799
    %2395 = vmatprep.subr.bf16.mxu0 %v1808
    %2396 = vmatpush1.bf16.msra.mxu0 %v1807
    %2397 = vmatprep.subr.bf16.mxu0 %v1816
    %2398 = vmatpush1.bf16.msra.mxu0 %v1815
    %2399 = vmatprep.mubr.bf16.mxu0 %v622
    %2400 = vmatmul.mubr.bf16.gmra.mrb[0].mxu0 %v621
    %v2401 = vpop.f32.mrb[0].mxu0
    %v2402 = vadd.f32 %v902, %v2401
    %v2403 = vpop.f32.mrb[0].mxu0
    %v2404 = vadd.f32 %v906, %v2403
    %v2405 = vpop.f32.mrb[0].mxu0
    %v2406 = vpop.f32.mrb[0].mxu0
    %2407 = vdwg.mxu0
    %2408 = vmatprep.subr.bf16.mxu0 %v1824
    %2409 = vmatpush1.bf16.msra.mxu0 %v1823
    %2410 = vmatprep.subr.bf16.mxu0 %v1832
    %2411 = vmatpush1.bf16.msra.mxu0 %v1831
    %2412 = vmatprep.subr.bf16.mxu0 %v1840
    %2413 = vmatpush1.bf16.msra.mxu0 %v1839
    %2414 = vmatprep.subr.bf16.mxu0 %v1848
    %2415 = vmatpush1.bf16.msra.mxu0 %v1847
    %2416 = vmatprep.subr.bf16.mxu0 %v1856
    %2417 = vmatpush1.bf16.msra.mxu0 %v1855
    %2418 = vmatprep.subr.bf16.mxu0 %v1864
    %2419 = vmatpush1.bf16.msra.mxu0 %v1863
    %2420 = vmatprep.subr.bf16.mxu0 %v1872
    %2421 = vmatpush1.bf16.msra.mxu0 %v1871
    %2422 = vmatprep.subr.bf16.mxu0 %v1880
    %2423 = vmatpush1.bf16.msra.mxu0 %v1879
    %2424 = vmatprep.subr.bf16.mxu0 %v1888
    %2425 = vmatpush1.bf16.msra.mxu0 %v1887
    %2426 = vmatprep.subr.bf16.mxu0 %v1896
    %2427 = vmatpush1.bf16.msra.mxu0 %v1895
    %2428 = vmatprep.subr.bf16.mxu0 %v1904
    %2429 = vmatpush1.bf16.msra.mxu0 %v1903
    %2430 = vmatprep.subr.bf16.mxu0 %v1912
    %2431 = vmatpush1.bf16.msra.mxu0 %v1911
    %2432 = vmatprep.subr.bf16.mxu0 %v1920
    %2433 = vmatpush1.bf16.msra.mxu0 %v1919
    %2434 = vmatprep.subr.bf16.mxu0 %v1928
    %2435 = vmatpush1.bf16.msra.mxu0 %v1927
    %2436 = vmatprep.subr.bf16.mxu0 %v1936
    %2437 = vmatpush1.bf16.msra.mxu0 %v1935
    %2438 = vmatprep.subr.bf16.mxu0 %v1944
    %2439 = vmatpush1.bf16.msra.mxu0 %v1943
    %2440 = vmatprep.mubr.bf16.mxu0 %v624
    %2441 = vmatmul.mubr.bf16.gmra.mrb[0].mxu0 %v623
    %v2442 = vpop.f32.mrb[0].mxu0
    %v2443 = vadd.f32 %v2402, %v2442
    %v2444 = vpop.f32.mrb[0].mxu0
    %v2445 = vadd.f32 %v2404, %v2444
    %v2446 = vpop.f32.mrb[0].mxu0
    %v2447 = vpop.f32.mrb[0].mxu0
    %2448 = vdwg.mxu0
    %2449 = vmatprep.subr.bf16.mxu0 %v1698
    %2450 = vmatpush1.bf16.msra.mxu0 %v1697
    %2451 = vmatprep.subr.bf16.mxu0 %v1706
    %2452 = vmatpush1.bf16.msra.mxu0 %v1705
    %2453 = vmatprep.subr.bf16.mxu0 %v1714
    %2454 = vmatpush1.bf16.msra.mxu0 %v1713
    %2455 = vmatprep.subr.bf16.mxu0 %v1722
    %2456 = vmatpush1.bf16.msra.mxu0 %v1721
    %2457 = vmatprep.subr.bf16.mxu0 %v1730
    %2458 = vmatpush1.bf16.msra.mxu0 %v1729
    %2459 = vmatprep.subr.bf16.mxu0 %v1738
    %2460 = vmatpush1.bf16.msra.mxu0 %v1737
    %2461 = vmatprep.subr.bf16.mxu0 %v1746
    %2462 = vmatpush1.bf16.msra.mxu0 %v1745
    %2463 = vmatprep.subr.bf16.mxu0 %v1754
    %2464 = vmatpush1.bf16.msra.mxu0 %v1753
    %2465 = vmatprep.subr.bf16.mxu0 %v1762
    %2466 = vmatpush1.bf16.msra.mxu0 %v1761
    %2467 = vmatprep.subr.bf16.mxu0 %v1770
    %2468 = vmatpush1.bf16.msra.mxu0 %v1769
    %2469 = vmatprep.subr.bf16.mxu0 %v1778
    %2470 = vmatpush1.bf16.msra.mxu0 %v1777
    %2471 = vmatprep.subr.bf16.mxu0 %v1786
    %2472 = vmatpush1.bf16.msra.mxu0 %v1785
    %2473 = vmatprep.subr.bf16.mxu0 %v1794
    %2474 = vmatpush1.bf16.msra.mxu0 %v1793
    %2475 = vmatprep.subr.bf16.mxu0 %v1802
    %2476 = vmatpush1.bf16.msra.mxu0 %v1801
    %2477 = vmatprep.subr.bf16.mxu0 %v1810
    %2478 = vmatpush1.bf16.msra.mxu0 %v1809
    %2479 = vmatprep.subr.bf16.mxu0 %v1818
    %2480 = vmatpush1.bf16.msra.mxu0 %v1817
    %2481 = vmatprep.mubr.bf16.mxu0 %v622
    %2482 = vmatmul.mubr.bf16.gmra.mrb[0].mxu0 %v621
    %v2483 = vpop.f32.mrb[0].mxu0
    %v2484 = vadd.f32 %v910, %v2483
    %v2485 = vpop.f32.mrb[0].mxu0
    %v2486 = vadd.f32 %v914, %v2485
    %v2487 = vpop.f32.mrb[0].mxu0
    %v2488 = vpop.f32.mrb[0].mxu0
    %2489 = vdwg.mxu0
    %2490 = vmatprep.subr.bf16.mxu0 %v1826
    %2491 = vmatpush1.bf16.msra.mxu0 %v1825
    %2492 = vmatprep.subr.bf16.mxu0 %v1834
    %2493 = vmatpush1.bf16.msra.mxu0 %v1833
    %2494 = vmatprep.subr.bf16.mxu0 %v1842
    %2495 = vmatpush1.bf16.msra.mxu0 %v1841
    %2496 = vmatprep.subr.bf16.mxu0 %v1850
    %2497 = vmatpush1.bf16.msra.mxu0 %v1849
    %2498 = vmatprep.subr.bf16.mxu0 %v1858
    %2499 = vmatpush1.bf16.msra.mxu0 %v1857
    %2500 = vmatprep.subr.bf16.mxu0 %v1866
    %2501 = vmatpush1.bf16.msra.mxu0 %v1865
    %2502 = vmatprep.subr.bf16.mxu0 %v1874
    %2503 = vmatpush1.bf16.msra.mxu0 %v1873
    %2504 = vmatprep.subr.bf16.mxu0 %v1882
    %2505 = vmatpush1.bf16.msra.mxu0 %v1881
    %2506 = vmatprep.subr.bf16.mxu0 %v1890
    %2507 = vmatpush1.bf16.msra.mxu0 %v1889
    %2508 = vmatprep.subr.bf16.mxu0 %v1898
    %2509 = vmatpush1.bf16.msra.mxu0 %v1897
    %2510 = vmatprep.subr.bf16.mxu0 %v1906
    %2511 = vmatpush1.bf16.msra.mxu0 %v1905
    %2512 = vmatprep.subr.bf16.mxu0 %v1914
    %2513 = vmatpush1.bf16.msra.mxu0 %v1913
    %2514 = vmatprep.subr.bf16.mxu0 %v1922
    %2515 = vmatpush1.bf16.msra.mxu0 %v1921
    %2516 = vmatprep.subr.bf16.mxu0 %v1930
    %2517 = vmatpush1.bf16.msra.mxu0 %v1929
    %2518 = vmatprep.subr.bf16.mxu0 %v1938
    %2519 = vmatpush1.bf16.msra.mxu0 %v1937
    %2520 = vmatprep.subr.bf16.mxu0 %v1946
    %2521 = vmatpush1.bf16.msra.mxu0 %v1945
    %2522 = vmatprep.mubr.bf16.mxu0 %v624
    %2523 = vmatmul.mubr.bf16.gmra.mrb[0].mxu0 %v623
    %v2524 = vpop.f32.mrb[0].mxu0
    %v2525 = vadd.f32 %v2484, %v2524
    %v2526 = vpop.f32.mrb[0].mxu0
    %v2527 = vadd.f32 %v2486, %v2526
    %v2528 = vpop.f32.mrb[0].mxu0
    %v2529 = vpop.f32.mrb[0].mxu0
    %2530 = vdwg.mxu0
    %v2531 = vmax.f32 %v2279, 0.0
    %v2532 = vmax.f32 %v2281, 0.0
    %v2533 = vmax.f32 %v2361, 0.0
    %v2534 = vmax.f32 %v2363, 0.0
    %v2535 = vmax.f32 %v2443, 0.0
    %v2536 = vmax.f32 %v2445, 0.0
    %v2537 = vmax.f32 %v2525, 0.0
    %v2538 = vmax.f32 %v2527, 0.0
    %v2539 = vpack.c.bf16 %v2531, %v2531
    %v2540 = vpack.c.bf16 %v2532, %v2532
    %v2541 = vpack.c.bf16 %v2533, %v2533
    %v2542 = vpack.c.bf16 %v2534, %v2534
    %v2543 = vpack.c.bf16 %v2535, %v2535
    %v2544 = vpack.c.bf16 %v2536, %v2536
    %v2545 = vpack.c.bf16 %v2537, %v2537
    %v2546 = vpack.c.bf16 %v2538, %v2538
    %v2547 = vld [vmem:[%s9] sm:$0xff]
    %v2548 = vld [vmem:[%s9 + $0x8] sm:$0xff]
    %v2549 = vld [vmem:[%s9 + $0x10] sm:$0xff]
    %v2550 = vld [vmem:[%s9 + $0x18] sm:$0xf]
    %v2551 = vld [vmem:[%s9 + $0x1c] sm:$0xff]
    %v2552 = vld [vmem:[%s9 + $0x24] sm:$0xff]
    %v2553 = vld [vmem:[%s9 + $0x2c] sm:$0xff]
    %v2554 = vld [vmem:[%s9 + $0x34] sm:$0xf]
    %v2555 = vld [vmem:[%s9 + $0x38] sm:$0xff]
    %v2556 = vld [vmem:[%s9 + $0x40] sm:$0xff]
    %v2557 = vld [vmem:[%s9 + $0x48] sm:$0xff]
    %v2558 = vld [vmem:[%s9 + $0x50] sm:$0xf]
    %v2559 = vld [vmem:[%s9 + $0x54] sm:$0xff]
    %v2560 = vld [vmem:[%s9 + $0x5c] sm:$0xff]
    %v2561 = vld [vmem:[%s9 + $0x64] sm:$0xff]
    %v2562 = vld [vmem:[%s9 + $0x6c] sm:$0xf]
    %v2563 = vld [vmem:[%s9 + $0x70] sm:$0xff]
    %v2564 = vld [vmem:[%s9 + $0x78] sm:$0xff]
    %v2565 = vld [vmem:[%s9 + $0x80] sm:$0xff]
    %v2566 = vld [vmem:[%s9 + $0x88] sm:$0xf]
    %v2567 = vld [vmem:[%s9 + $0x8c] sm:$0xff]
    %v2568 = vld [vmem:[%s9 + $0x94] sm:$0xff]
    %v2569 = vld [vmem:[%s9 + $0x9c] sm:$0xff]
    %v2570 = vld [vmem:[%s9 + $0xa4] sm:$0xf]
    %v2571 = vld [vmem:[%s9 + $0xa8] sm:$0xff]
    %v2572 = vld [vmem:[%s9 + $0xb0] sm:$0xff]
    %v2573 = vld [vmem:[%s9 + $0xb8] sm:$0xff]
    %v2574 = vld [vmem:[%s9 + $0xc0] sm:$0xf]
    %v2575 = vld [vmem:[%s9 + $0xc4] sm:$0xff]
    %v2576 = vld [vmem:[%s9 + $0xcc] sm:$0xff]
    %v2577 = vld [vmem:[%s9 + $0xd4] sm:$0xff]
    %v2578 = vld [vmem:[%s9 + $0xdc] sm:$0xf]
    %v2579 = vld [vmem:[%s9 + $0xe0] sm:$0xff]
    %v2580 = vld [vmem:[%s9 + $0xe8] sm:$0xff]
    %v2581 = vld [vmem:[%s9 + $0xf0] sm:$0xff]
    %v2582 = vld [vmem:[%s9 + $0xf8] sm:$0xf]
    %v2583 = vld [vmem:[%s9 + $0xfc] sm:$0xff]
    %v2584 = vld [vmem:[%s9 + $0x104] sm:$0xff]
    %v2585 = vld [vmem:[%s9 + $0x10c] sm:$0xff]
    %v2586 = vld [vmem:[%s9 + $0x114] sm:$0xf]
    %v2587 = vld [vmem:[%s9 + $0x118] sm:$0xff]
    %v2588 = vld [vmem:[%s9 + $0x120] sm:$0xff]
    %v2589 = vld [vmem:[%s9 + $0x128] sm:$0xff]
    %v2590 = vld [vmem:[%s9 + $0x130] sm:$0xf]
    %v2591 = vld [vmem:[%s9 + $0x134] sm:$0xff]
    %v2592 = vld [vmem:[%s9 + $0x13c] sm:$0xff]
    %v2593 = vld [vmem:[%s9 + $0x144] sm:$0xff]
    %v2594 = vld [vmem:[%s9 + $0x14c] sm:$0xf]
    %v2595 = vld [vmem:[%s9 + $0x150] sm:$0xff]
    %v2596 = vld [vmem:[%s9 + $0x158] sm:$0xff]
    %v2597 = vld [vmem:[%s9 + $0x160] sm:$0xff]
    %v2598 = vld [vmem:[%s9 + $0x168] sm:$0xf]
    %v2599 = vld [vmem:[%s9 + $0x16c] sm:$0xff]
    %v2600 = vld [vmem:[%s9 + $0x174] sm:$0xff]
    %v2601 = vld [vmem:[%s9 + $0x17c] sm:$0xff]
    %v2602 = vld [vmem:[%s9 + $0x184] sm:$0xf]
    %v2603 = vld [vmem:[%s9 + $0x188] sm:$0xff]
    %v2604 = vld [vmem:[%s9 + $0x190] sm:$0xff]
    %v2605 = vld [vmem:[%s9 + $0x198] sm:$0xff]
    %v2606 = vld [vmem:[%s9 + $0x1a0] sm:$0xf]
    %v2607 = vld [vmem:[%s9 + $0x1a4] sm:$0xff]
    %v2608 = vld [vmem:[%s9 + $0x1ac] sm:$0xff]
    %v2609 = vld [vmem:[%s9 + $0x1b4] sm:$0xff]
    %v2610 = vld [vmem:[%s9 + $0x1bc] sm:$0xf]
    %v2611 = vld [vmem:[%s9 + $0x1c0] sm:$0xff]
    %v2612 = vld [vmem:[%s9 + $0x1c8] sm:$0xff]
    %v2613 = vld [vmem:[%s9 + $0x1d0] sm:$0xff]
    %v2614 = vld [vmem:[%s9 + $0x1d8] sm:$0xf]
    %v2615 = vld [vmem:[%s9 + $0x1dc] sm:$0xff]
    %v2616 = vld [vmem:[%s9 + $0x1e4] sm:$0xff]
    %v2617 = vld [vmem:[%s9 + $0x1ec] sm:$0xff]
    %v2618 = vld [vmem:[%s9 + $0x1f4] sm:$0xf]
    %v2619 = vld [vmem:[%s9 + $0x1f8] sm:$0xff]
    %v2620 = vld [vmem:[%s9 + $0x200] sm:$0xff]
    %v2621 = vld [vmem:[%s9 + $0x208] sm:$0xff]
    %v2622 = vld [vmem:[%s9 + $0x210] sm:$0xf]
    %v2623 = vld [vmem:[%s9 + $0x214] sm:$0xff]
    %v2624 = vld [vmem:[%s9 + $0x21c] sm:$0xff]
    %v2625 = vld [vmem:[%s9 + $0x224] sm:$0xff]
    %v2626 = vld [vmem:[%s9 + $0x22c] sm:$0xf]
    %v2627 = vld [vmem:[%s9 + $0x230] sm:$0xff]
    %v2628 = vld [vmem:[%s9 + $0x238] sm:$0xff]
    %v2629 = vld [vmem:[%s9 + $0x240] sm:$0xff]
    %v2630 = vld [vmem:[%s9 + $0x248] sm:$0xf]
    %v2631 = vld [vmem:[%s9 + $0x24c] sm:$0xff]
    %v2632 = vld [vmem:[%s9 + $0x254] sm:$0xff]
    %v2633 = vld [vmem:[%s9 + $0x25c] sm:$0xff]
    %v2634 = vld [vmem:[%s9 + $0x264] sm:$0xf]
    %v2635 = vld [vmem:[%s9 + $0x268] sm:$0xff]
    %v2636 = vld [vmem:[%s9 + $0x270] sm:$0xff]
    %v2637 = vld [vmem:[%s9 + $0x278] sm:$0xff]
    %v2638 = vld [vmem:[%s9 + $0x280] sm:$0xf]
    %v2639 = vld [vmem:[%s9 + $0x284] sm:$0xff]
    %v2640 = vld [vmem:[%s9 + $0x28c] sm:$0xff]
    %v2641 = vld [vmem:[%s9 + $0x294] sm:$0xff]
    %v2642 = vld [vmem:[%s9 + $0x29c] sm:$0xf]
    %v2643 = vld [vmem:[%s9 + $0x2a0] sm:$0xff]
    %v2644 = vld [vmem:[%s9 + $0x2a8] sm:$0xff]
    %v2645 = vld [vmem:[%s9 + $0x2b0] sm:$0xff]
    %v2646 = vld [vmem:[%s9 + $0x2b8] sm:$0xf]
    %v2647 = vld [vmem:[%s9 + $0x2bc] sm:$0xff]
    %v2648 = vld [vmem:[%s9 + $0x2c4] sm:$0xff]
    %v2649 = vld [vmem:[%s9 + $0x2cc] sm:$0xff]
    %v2650 = vld [vmem:[%s9 + $0x2d4] sm:$0xf]
    %v2651 = vld [vmem:[%s9 + $0x2d8] sm:$0xff]
    %v2652 = vld [vmem:[%s9 + $0x2e0] sm:$0xff]
    %v2653 = vld [vmem:[%s9 + $0x2e8] sm:$0xff]
    %v2654 = vld [vmem:[%s9 + $0x2f0] sm:$0xf]
    %v2655 = vld [vmem:[%s9 + $0x2f4] sm:$0xff]
    %v2656 = vld [vmem:[%s9 + $0x2fc] sm:$0xff]
    %v2657 = vld [vmem:[%s9 + $0x304] sm:$0xff]
    %v2658 = vld [vmem:[%s9 + $0x30c] sm:$0xf]
    %v2659 = vld [vmem:[%s9 + $0x310] sm:$0xff]
    %v2660 = vld [vmem:[%s9 + $0x318] sm:$0xff]
    %v2661 = vld [vmem:[%s9 + $0x320] sm:$0xff]
    %v2662 = vld [vmem:[%s9 + $0x328] sm:$0xf]
    %v2663 = vld [vmem:[%s9 + $0x32c] sm:$0xff]
    %v2664 = vld [vmem:[%s9 + $0x334] sm:$0xff]
    %v2665 = vld [vmem:[%s9 + $0x33c] sm:$0xff]
    %v2666 = vld [vmem:[%s9 + $0x344] sm:$0xf]
    %v2667 = vld [vmem:[%s9 + $0x348] sm:$0xff]
    %v2668 = vld [vmem:[%s9 + $0x350] sm:$0xff]
    %v2669 = vld [vmem:[%s9 + $0x358] sm:$0xff]
    %v2670 = vld [vmem:[%s9 + $0x360] sm:$0xf]
    %v2671 = vld [vmem:[%s9 + $0x364] sm:$0xff]
    %v2672 = vld [vmem:[%s9 + $0x36c] sm:$0xff]
    %v2673 = vld [vmem:[%s9 + $0x374] sm:$0xff]
    %v2674 = vld [vmem:[%s9 + $0x37c] sm:$0xf]
    %v2675 = vld [vmem:[%s9 + $0x380] sm:$0xff]
    %v2676 = vld [vmem:[%s9 + $0x388] sm:$0xff]
    %v2677 = vld [vmem:[%s9 + $0x390] sm:$0xff]
    %v2678 = vld [vmem:[%s9 + $0x398] sm:$0xf]
    %v2679 = vld [vmem:[%s9 + $0x39c] sm:$0xff]
    %v2680 = vld [vmem:[%s9 + $0x3a4] sm:$0xff]
    %v2681 = vld [vmem:[%s9 + $0x3ac] sm:$0xff]
    %v2682 = vld [vmem:[%s9 + $0x3b4] sm:$0xf]
    %v2683 = vld [vmem:[%s9 + $0x3b8] sm:$0xff]
    %v2684 = vld [vmem:[%s9 + $0x3c0] sm:$0xff]
    %v2685 = vld [vmem:[%s9 + $0x3c8] sm:$0xff]
    %v2686 = vld [vmem:[%s9 + $0x3d0] sm:$0xf]
    %v2687 = vld [vmem:[%s9 + $0x3d4] sm:$0xff]
    %v2688 = vld [vmem:[%s9 + $0x3dc] sm:$0xff]
    %v2689 = vld [vmem:[%s9 + $0x3e4] sm:$0xff]
    %v2690 = vld [vmem:[%s9 + $0x3ec] sm:$0xf]
    %v2691 = vld [vmem:[%s9 + $0x3f0] sm:$0xff]
    %v2692 = vld [vmem:[%s9 + $0x3f8] sm:$0xff]
    %v2693 = vld [vmem:[%s9 + $0x400] sm:$0xff]
    %v2694 = vld [vmem:[%s9 + $0x408] sm:$0xf]
    %v2695 = vld [vmem:[%s9 + $0x40c] sm:$0xff]
    %v2696 = vld [vmem:[%s9 + $0x414] sm:$0xff]
    %v2697 = vld [vmem:[%s9 + $0x41c] sm:$0xff]
    %v2698 = vld [vmem:[%s9 + $0x424] sm:$0xf]
    %v2699 = vld [vmem:[%s9 + $0x428] sm:$0xff]
    %v2700 = vld [vmem:[%s9 + $0x430] sm:$0xff]
    %v2701 = vld [vmem:[%s9 + $0x438] sm:$0xff]
    %v2702 = vld [vmem:[%s9 + $0x440] sm:$0xf]
    %v2703 = vld [vmem:[%s9 + $0x444] sm:$0xff]
    %v2704 = vld [vmem:[%s9 + $0x44c] sm:$0xff]
    %v2705 = vld [vmem:[%s9 + $0x454] sm:$0xff]
    %v2706 = vld [vmem:[%s9 + $0x45c] sm:$0xf]
    %v2707 = vld [vmem:[%s9 + $0x460] sm:$0xff]
    %v2708 = vld [vmem:[%s9 + $0x468] sm:$0xff]
    %v2709 = vld [vmem:[%s9 + $0x470] sm:$0xff]
    %v2710 = vld [vmem:[%s9 + $0x478] sm:$0xf]
    %v2711 = vld [vmem:[%s9 + $0x47c] sm:$0xff]
    %v2712 = vld [vmem:[%s9 + $0x484] sm:$0xff]
    %v2713 = vld [vmem:[%s9 + $0x48c] sm:$0xff]
    %v2714 = vld [vmem:[%s9 + $0x494] sm:$0xf]
    %v2715 = vld [vmem:[%s9 + $0x498] sm:$0xff]
    %v2716 = vld [vmem:[%s9 + $0x4a0] sm:$0xff]
    %v2717 = vld [vmem:[%s9 + $0x4a8] sm:$0xff]
    %v2718 = vld [vmem:[%s9 + $0x4b0] sm:$0xf]
    %v2719 = vld [vmem:[%s9 + $0x4b4] sm:$0xff]
    %v2720 = vld [vmem:[%s9 + $0x4bc] sm:$0xff]
    %v2721 = vld [vmem:[%s9 + $0x4c4] sm:$0xff]
    %v2722 = vld [vmem:[%s9 + $0x4cc] sm:$0xf]
    %v2723 = vld [vmem:[%s9 + $0x4d0] sm:$0xff]
    %v2724 = vld [vmem:[%s9 + $0x4d8] sm:$0xff]
    %v2725 = vld [vmem:[%s9 + $0x4e0] sm:$0xff]
    %v2726 = vld [vmem:[%s9 + $0x4e8] sm:$0xf]
    %v2727 = vld [vmem:[%s9 + $0x4ec] sm:$0xff]
    %v2728 = vld [vmem:[%s9 + $0x4f4] sm:$0xff]
    %v2729 = vld [vmem:[%s9 + $0x4fc] sm:$0xff]
    %v2730 = vld [vmem:[%s9 + $0x504] sm:$0xf]
    %v2731 = vld [vmem:[%s9 + $0x508] sm:$0xff]
    %v2732 = vld [vmem:[%s9 + $0x510] sm:$0xff]
    %v2733 = vld [vmem:[%s9 + $0x518] sm:$0xff]
    %v2734 = vld [vmem:[%s9 + $0x520] sm:$0xf]
    %v2735 = vld [vmem:[%s9 + $0x524] sm:$0xff]
    %v2736 = vld [vmem:[%s9 + $0x52c] sm:$0xff]
    %v2737 = vld [vmem:[%s9 + $0x534] sm:$0xff]
    %v2738 = vld [vmem:[%s9 + $0x53c] sm:$0xf]
    %v2739 = vld [vmem:[%s9 + $0x540] sm:$0xff]
    %v2740 = vld [vmem:[%s9 + $0x548] sm:$0xff]
    %v2741 = vld [vmem:[%s9 + $0x550] sm:$0xff]
    %v2742 = vld [vmem:[%s9 + $0x558] sm:$0xf]
    %v2743 = vld [vmem:[%s9 + $0x55c] sm:$0xff]
    %v2744 = vld [vmem:[%s9 + $0x564] sm:$0xff]
    %v2745 = vld [vmem:[%s9 + $0x56c] sm:$0xff]
    %v2746 = vld [vmem:[%s9 + $0x574] sm:$0xf]
    %v2747 = vld [vmem:[%s9 + $0x578] sm:$0xff]
    %v2748 = vld [vmem:[%s9 + $0x580] sm:$0xff]
    %v2749 = vld [vmem:[%s9 + $0x588] sm:$0xff]
    %v2750 = vld [vmem:[%s9 + $0x590] sm:$0xf]
    %v2751 = vld [vmem:[%s9 + $0x594] sm:$0xff]
    %v2752 = vld [vmem:[%s9 + $0x59c] sm:$0xff]
    %v2753 = vld [vmem:[%s9 + $0x5a4] sm:$0xff]
    %v2754 = vld [vmem:[%s9 + $0x5ac] sm:$0xf]
    %v2755 = vld [vmem:[%s9 + $0x5b0] sm:$0xff]
    %v2756 = vld [vmem:[%s9 + $0x5b8] sm:$0xff]
    %v2757 = vld [vmem:[%s9 + $0x5c0] sm:$0xff]
    %v2758 = vld [vmem:[%s9 + $0x5c8] sm:$0xf]
    %v2759 = vld [vmem:[%s9 + $0x5cc] sm:$0xff]
    %v2760 = vld [vmem:[%s9 + $0x5d4] sm:$0xff]
    %v2761 = vld [vmem:[%s9 + $0x5dc] sm:$0xff]
    %v2762 = vld [vmem:[%s9 + $0x5e4] sm:$0xf]
    %v2763 = vld [vmem:[%s9 + $0x5e8] sm:$0xff]
    %v2764 = vld [vmem:[%s9 + $0x5f0] sm:$0xff]
    %v2765 = vld [vmem:[%s9 + $0x5f8] sm:$0xff]
    %v2766 = vld [vmem:[%s9 + $0x600] sm:$0xf]
    %v2767 = vld [vmem:[%s9 + $0x604] sm:$0xff]
    %v2768 = vld [vmem:[%s9 + $0x60c] sm:$0xff]
    %v2769 = vld [vmem:[%s9 + $0x614] sm:$0xff]
    %v2770 = vld [vmem:[%s9 + $0x61c] sm:$0xf]
    %v2771 = vld [vmem:[%s9 + $0x620] sm:$0xff]
    %v2772 = vld [vmem:[%s9 + $0x628] sm:$0xff]
    %v2773 = vld [vmem:[%s9 + $0x630] sm:$0xff]
    %v2774 = vld [vmem:[%s9 + $0x638] sm:$0xf]
    %v2775 = vld [vmem:[%s9 + $0x63c] sm:$0xff]
    %v2776 = vld [vmem:[%s9 + $0x644] sm:$0xff]
    %v2777 = vld [vmem:[%s9 + $0x64c] sm:$0xff]
    %v2778 = vld [vmem:[%s9 + $0x654] sm:$0xf]
    %v2779 = vld [vmem:[%s9 + $0x658] sm:$0xff]
    %v2780 = vld [vmem:[%s9 + $0x660] sm:$0xff]
    %v2781 = vld [vmem:[%s9 + $0x668] sm:$0xff]
    %v2782 = vld [vmem:[%s9 + $0x670] sm:$0xf]
    %v2783 = vld [vmem:[%s9 + $0x674] sm:$0xff]
    %v2784 = vld [vmem:[%s9 + $0x67c] sm:$0xff]
    %v2785 = vld [vmem:[%s9 + $0x684] sm:$0xff]
    %v2786 = vld [vmem:[%s9 + $0x68c] sm:$0xf]
    %v2787 = vld [vmem:[%s9 + $0x690] sm:$0xff]
    %v2788 = vld [vmem:[%s9 + $0x698] sm:$0xff]
    %v2789 = vld [vmem:[%s9 + $0x6a0] sm:$0xff]
    %v2790 = vld [vmem:[%s9 + $0x6a8] sm:$0xf]
    %v2791 = vld [vmem:[%s9 + $0x6ac] sm:$0xff]
    %v2792 = vld [vmem:[%s9 + $0x6b4] sm:$0xff]
    %v2793 = vld [vmem:[%s9 + $0x6bc] sm:$0xff]
    %v2794 = vld [vmem:[%s9 + $0x6c4] sm:$0xf]
    %v2795 = vld [vmem:[%s9 + $0x6c8] sm:$0xff]
    %v2796 = vld [vmem:[%s9 + $0x6d0] sm:$0xff]
    %v2797 = vld [vmem:[%s9 + $0x6d8] sm:$0xff]
    %v2798 = vld [vmem:[%s9 + $0x6e0] sm:$0xf]
    %v2799 = vld [vmem:[%s9 + $0x6e4] sm:$0xff]
    %v2800 = vld [vmem:[%s9 + $0x6ec] sm:$0xff]
    %v2801 = vld [vmem:[%s9 + $0x6f4] sm:$0xff]
    %v2802 = vld [vmem:[%s9 + $0x6fc] sm:$0xf]
    %v2803 = vld [vmem:[%s9 + $0x700] sm:$0xff]
    %v2804 = vld [vmem:[%s9 + $0x708] sm:$0xff]
    %v2805 = vld [vmem:[%s9 + $0x710] sm:$0xff]
    %v2806 = vld [vmem:[%s9 + $0x718] sm:$0xf]
    %v2807 = vld [vmem:[%s9 + $0x71c] sm:$0xff]
    %v2808 = vld [vmem:[%s9 + $0x724] sm:$0xff]
    %v2809 = vld [vmem:[%s9 + $0x72c] sm:$0xff]
    %v2810 = vld [vmem:[%s9 + $0x734] sm:$0xf]
    %v2811 = vld [vmem:[%s9 + $0x738] sm:$0xff]
    %v2812 = vld [vmem:[%s9 + $0x740] sm:$0xff]
    %v2813 = vld [vmem:[%s9 + $0x748] sm:$0xff]
    %v2814 = vld [vmem:[%s9 + $0x750] sm:$0xf]
    %v2815 = vld [vmem:[%s9 + $0x754] sm:$0xff]
    %v2816 = vld [vmem:[%s9 + $0x75c] sm:$0xff]
    %v2817 = vld [vmem:[%s9 + $0x764] sm:$0xff]
    %v2818 = vld [vmem:[%s9 + $0x76c] sm:$0xf]
    %v2819 = vld [vmem:[%s9 + $0x770] sm:$0xff]
    %v2820 = vld [vmem:[%s9 + $0x778] sm:$0xff]
    %v2821 = vld [vmem:[%s9 + $0x780] sm:$0xff]
    %v2822 = vld [vmem:[%s9 + $0x788] sm:$0xf]
    %v2823 = vld [vmem:[%s9 + $0x78c] sm:$0xff]
    %v2824 = vld [vmem:[%s9 + $0x794] sm:$0xff]
    %v2825 = vld [vmem:[%s9 + $0x79c] sm:$0xff]
    %v2826 = vld [vmem:[%s9 + $0x7a4] sm:$0xf]
    %v2827 = vld [vmem:[%s9 + $0x7a8] sm:$0xff]
    %v2828 = vld [vmem:[%s9 + $0x7b0] sm:$0xff]
    %v2829 = vld [vmem:[%s9 + $0x7b8] sm:$0xff]
    %v2830 = vld [vmem:[%s9 + $0x7c0] sm:$0xf]
    %v2831 = vld [vmem:[%s9 + $0x7c4] sm:$0xff]
    %v2832 = vld [vmem:[%s9 + $0x7cc] sm:$0xff]
    %v2833 = vld [vmem:[%s9 + $0x7d4] sm:$0xff]
    %v2834 = vld [vmem:[%s9 + $0x7dc] sm:$0xf]
    %v2835 = vld [vmem:[%s9 + $0x7e0] sm:$0xff]
    %v2836 = vld [vmem:[%s9 + $0x7e8] sm:$0xff]
    %v2837 = vld [vmem:[%s9 + $0x7f0] sm:$0xff]
    %v2838 = vld [vmem:[%s9 + $0x7f8] sm:$0xf]
    %v2839 = vld [vmem:[%s9 + $0x7fc] sm:$0xff]
    %v2840 = vld [vmem:[%s9 + $0x804] sm:$0xff]
    %v2841 = vld [vmem:[%s9 + $0x80c] sm:$0xff]
    %v2842 = vld [vmem:[%s9 + $0x814] sm:$0xf]
    %v2843 = vld [vmem:[%s9 + $0x818] sm:$0xff]
    %v2844 = vld [vmem:[%s9 + $0x820] sm:$0xff]
    %v2845 = vld [vmem:[%s9 + $0x828] sm:$0xff]
    %v2846 = vld [vmem:[%s9 + $0x830] sm:$0xf]
    %v2847 = vld [vmem:[%s9 + $0x834] sm:$0xff]
    %v2848 = vld [vmem:[%s9 + $0x83c] sm:$0xff]
    %v2849 = vld [vmem:[%s9 + $0x844] sm:$0xff]
    %v2850 = vld [vmem:[%s9 + $0x84c] sm:$0xf]
    %v2851 = vld [vmem:[%s9 + $0x850] sm:$0xff]
    %v2852 = vld [vmem:[%s9 + $0x858] sm:$0xff]
    %v2853 = vld [vmem:[%s9 + $0x860] sm:$0xff]
    %v2854 = vld [vmem:[%s9 + $0x868] sm:$0xf]
    %v2855 = vld [vmem:[%s9 + $0x86c] sm:$0xff]
    %v2856 = vld [vmem:[%s9 + $0x874] sm:$0xff]
    %v2857 = vld [vmem:[%s9 + $0x87c] sm:$0xff]
    %v2858 = vld [vmem:[%s9 + $0x884] sm:$0xf]
    %v2859 = vld [vmem:[%s9 + $0x888] sm:$0xff]
    %v2860 = vld [vmem:[%s9 + $0x890] sm:$0xff]
    %v2861 = vld [vmem:[%s9 + $0x898] sm:$0xff]
    %v2862 = vld [vmem:[%s9 + $0x8a0] sm:$0xf]
    %v2863 = vld [vmem:[%s9 + $0x8a4] sm:$0xff]
    %v2864 = vld [vmem:[%s9 + $0x8ac] sm:$0xff]
    %v2865 = vld [vmem:[%s9 + $0x8b4] sm:$0xff]
    %v2866 = vld [vmem:[%s9 + $0x8bc] sm:$0xf]
    %v2867 = vld [vmem:[%s9 + $0x8c0] sm:$0xff]
    %v2868 = vld [vmem:[%s9 + $0x8c8] sm:$0xff]
    %v2869 = vld [vmem:[%s9 + $0x8d0] sm:$0xff]
    %v2870 = vld [vmem:[%s9 + $0x8d8] sm:$0xf]
    %v2871 = vld [vmem:[%s9 + $0x8dc] sm:$0xff]
    %v2872 = vld [vmem:[%s9 + $0x8e4] sm:$0xff]
    %v2873 = vld [vmem:[%s9 + $0x8ec] sm:$0xff]
    %v2874 = vld [vmem:[%s9 + $0x8f4] sm:$0xf]
    %v2875 = vld [vmem:[%s9 + $0x8f8] sm:$0xff]
    %v2876 = vld [vmem:[%s9 + $0x900] sm:$0xff]
    %v2877 = vld [vmem:[%s9 + $0x908] sm:$0xff]
    %v2878 = vld [vmem:[%s9 + $0x910] sm:$0xf]
    %v2879 = vld [vmem:[%s9 + $0x914] sm:$0xff]
    %v2880 = vld [vmem:[%s9 + $0x91c] sm:$0xff]
    %v2881 = vld [vmem:[%s9 + $0x924] sm:$0xff]
    %v2882 = vld [vmem:[%s9 + $0x92c] sm:$0xf]
    %v2883 = vld [vmem:[%s9 + $0x930] sm:$0xff]
    %v2884 = vld [vmem:[%s9 + $0x938] sm:$0xff]
    %v2885 = vld [vmem:[%s9 + $0x940] sm:$0xff]
    %v2886 = vld [vmem:[%s9 + $0x948] sm:$0xf]
    %v2887 = vld [vmem:[%s9 + $0x94c] sm:$0xff]
    %v2888 = vld [vmem:[%s9 + $0x954] sm:$0xff]
    %v2889 = vld [vmem:[%s9 + $0x95c] sm:$0xff]
    %v2890 = vld [vmem:[%s9 + $0x964] sm:$0xf]
    %v2891 = vld [vmem:[%s9 + $0x968] sm:$0xff]
    %v2892 = vld [vmem:[%s9 + $0x970] sm:$0xff]
    %v2893 = vld [vmem:[%s9 + $0x978] sm:$0xff]
    %v2894 = vld [vmem:[%s9 + $0x980] sm:$0xf]
    %v2895 = vld [vmem:[%s9 + $0x984] sm:$0xff]
    %v2896 = vld [vmem:[%s9 + $0x98c] sm:$0xff]
    %v2897 = vld [vmem:[%s9 + $0x994] sm:$0xff]
    %v2898 = vld [vmem:[%s9 + $0x99c] sm:$0xf]
    %v2899 = vld [vmem:[%s9 + $0x9a0] sm:$0xff]
    %v2900 = vld [vmem:[%s9 + $0x9a8] sm:$0xff]
    %v2901 = vld [vmem:[%s9 + $0x9b0] sm:$0xff]
    %v2902 = vld [vmem:[%s9 + $0x9b8] sm:$0xf]
    %v2903 = vld [vmem:[%s9 + $0x9bc] sm:$0xff]
    %v2904 = vld [vmem:[%s9 + $0x9c4] sm:$0xff]
    %v2905 = vld [vmem:[%s9 + $0x9cc] sm:$0xff]
    %v2906 = vld [vmem:[%s9 + $0x9d4] sm:$0xf]
    %v2907 = vld [vmem:[%s9 + $0x9d8] sm:$0xff]
    %v2908 = vld [vmem:[%s9 + $0x9e0] sm:$0xff]
    %v2909 = vld [vmem:[%s9 + $0x9e8] sm:$0xff]
    %v2910 = vld [vmem:[%s9 + $0x9f0] sm:$0xf]
    %v2911 = vld [vmem:[%s9 + $0x9f4] sm:$0xff]
    %v2912 = vld [vmem:[%s9 + $0x9fc] sm:$0xff]
    %v2913 = vld [vmem:[%s9 + $0xa04] sm:$0xff]
    %v2914 = vld [vmem:[%s9 + $0xa0c] sm:$0xf]
    %v2915 = vld [vmem:[%s9 + $0xa10] sm:$0xff]
    %v2916 = vld [vmem:[%s9 + $0xa18] sm:$0xff]
    %v2917 = vld [vmem:[%s9 + $0xa20] sm:$0xff]
    %v2918 = vld [vmem:[%s9 + $0xa28] sm:$0xf]
    %v2919 = vld [vmem:[%s9 + $0xa2c] sm:$0xff]
    %v2920 = vld [vmem:[%s9 + $0xa34] sm:$0xff]
    %v2921 = vld [vmem:[%s9 + $0xa3c] sm:$0xff]
    %v2922 = vld [vmem:[%s9 + $0xa44] sm:$0xf]
    %v2923 = vld [vmem:[%s9 + $0xa48] sm:$0xff]
    %v2924 = vld [vmem:[%s9 + $0xa50] sm:$0xff]
    %v2925 = vld [vmem:[%s9 + $0xa58] sm:$0xff]
    %v2926 = vld [vmem:[%s9 + $0xa60] sm:$0xf]
    %v2927 = vld [vmem:[%s9 + $0xa64] sm:$0xff]
    %v2928 = vld [vmem:[%s9 + $0xa6c] sm:$0xff]
    %v2929 = vld [vmem:[%s9 + $0xa74] sm:$0xff]
    %v2930 = vld [vmem:[%s9 + $0xa7c] sm:$0xf]
    %v2931 = vld [vmem:[%s9 + $0xa80] sm:$0xff]
    %v2932 = vld [vmem:[%s9 + $0xa88] sm:$0xff]
    %v2933 = vld [vmem:[%s9 + $0xa90] sm:$0xff]
    %v2934 = vld [vmem:[%s9 + $0xa98] sm:$0xf]
    %v2935 = vld [vmem:[%s9 + $0xa9c] sm:$0xff]
    %v2936 = vld [vmem:[%s9 + $0xaa4] sm:$0xff]
    %v2937 = vld [vmem:[%s9 + $0xaac] sm:$0xff]
    %v2938 = vld [vmem:[%s9 + $0xab4] sm:$0xf]
    %v2939 = vld [vmem:[%s9 + $0xab8] sm:$0xff]
    %v2940 = vld [vmem:[%s9 + $0xac0] sm:$0xff]
    %v2941 = vld [vmem:[%s9 + $0xac8] sm:$0xff]
    %v2942 = vld [vmem:[%s9 + $0xad0] sm:$0xf]
    %v2943 = vld [vmem:[%s9 + $0xad4] sm:$0xff]
    %v2944 = vld [vmem:[%s9 + $0xadc] sm:$0xff]
    %v2945 = vld [vmem:[%s9 + $0xae4] sm:$0xff]
    %v2946 = vld [vmem:[%s9 + $0xaec] sm:$0xf]
    %v2947 = vld [vmem:[%s9 + $0xaf0] sm:$0xff]
    %v2948 = vld [vmem:[%s9 + $0xaf8] sm:$0xff]
    %v2949 = vld [vmem:[%s9 + $0xb00] sm:$0xff]
    %v2950 = vld [vmem:[%s9 + $0xb08] sm:$0xf]
    %v2951 = vld [vmem:[%s9 + $0xb0c] sm:$0xff]
    %v2952 = vld [vmem:[%s9 + $0xb14] sm:$0xff]
    %v2953 = vld [vmem:[%s9 + $0xb1c] sm:$0xff]
    %v2954 = vld [vmem:[%s9 + $0xb24] sm:$0xf]
    %v2955 = vld [vmem:[%s9 + $0xb28] sm:$0xff]
    %v2956 = vld [vmem:[%s9 + $0xb30] sm:$0xff]
    %v2957 = vld [vmem:[%s9 + $0xb38] sm:$0xff]
    %v2958 = vld [vmem:[%s9 + $0xb40] sm:$0xf]
    %v2959 = vld [vmem:[%s9 + $0xb44] sm:$0xff]
    %v2960 = vld [vmem:[%s9 + $0xb4c] sm:$0xff]
    %v2961 = vld [vmem:[%s9 + $0xb54] sm:$0xff]
    %v2962 = vld [vmem:[%s9 + $0xb5c] sm:$0xf]
    %v2963 = vld [vmem:[%s9 + $0xb60] sm:$0xff]
    %v2964 = vld [vmem:[%s9 + $0xb68] sm:$0xff]
    %v2965 = vld [vmem:[%s9 + $0xb70] sm:$0xff]
    %v2966 = vld [vmem:[%s9 + $0xb78] sm:$0xf]
    %v2967 = vld [vmem:[%s9 + $0xb7c] sm:$0xff]
    %v2968 = vld [vmem:[%s9 + $0xb84] sm:$0xff]
    %v2969 = vld [vmem:[%s9 + $0xb8c] sm:$0xff]
    %v2970 = vld [vmem:[%s9 + $0xb94] sm:$0xf]
    %v2971 = vld [vmem:[%s9 + $0xb98] sm:$0xff]
    %v2972 = vld [vmem:[%s9 + $0xba0] sm:$0xff]
    %v2973 = vld [vmem:[%s9 + $0xba8] sm:$0xff]
    %v2974 = vld [vmem:[%s9 + $0xbb0] sm:$0xf]
    %v2975 = vld [vmem:[%s9 + $0xbb4] sm:$0xff]
    %v2976 = vld [vmem:[%s9 + $0xbbc] sm:$0xff]
    %v2977 = vld [vmem:[%s9 + $0xbc4] sm:$0xff]
    %v2978 = vld [vmem:[%s9 + $0xbcc] sm:$0xf]
    %v2979 = vld [vmem:[%s9 + $0xbd0] sm:$0xff]
    %v2980 = vld [vmem:[%s9 + $0xbd8] sm:$0xff]
    %v2981 = vld [vmem:[%s9 + $0xbe0] sm:$0xff]
    %v2982 = vld [vmem:[%s9 + $0xbe8] sm:$0xf]
    %v2983 = vld [vmem:[%s9 + $0xbec] sm:$0xff]
    %v2984 = vld [vmem:[%s9 + $0xbf4] sm:$0xff]
    %v2985 = vld [vmem:[%s9 + $0xbfc] sm:$0xff]
    %v2986 = vld [vmem:[%s9 + $0xc04] sm:$0xf]
    %v2987 = vld [vmem:[%s9 + $0xc08] sm:$0xff]
    %v2988 = vld [vmem:[%s9 + $0xc10] sm:$0xff]
    %v2989 = vld [vmem:[%s9 + $0xc18] sm:$0xff]
    %v2990 = vld [vmem:[%s9 + $0xc20] sm:$0xf]
    %v2991 = vld [vmem:[%s9 + $0xc24] sm:$0xff]
    %v2992 = vld [vmem:[%s9 + $0xc2c] sm:$0xff]
    %v2993 = vld [vmem:[%s9 + $0xc34] sm:$0xff]
    %v2994 = vld [vmem:[%s9 + $0xc3c] sm:$0xf]
    %v2995 = vld [vmem:[%s9 + $0xc40] sm:$0xff]
    %v2996 = vld [vmem:[%s9 + $0xc48] sm:$0xff]
    %v2997 = vld [vmem:[%s9 + $0xc50] sm:$0xff]
    %v2998 = vld [vmem:[%s9 + $0xc58] sm:$0xf]
    %v2999 = vld [vmem:[%s9 + $0xc5c] sm:$0xff]
    %v3000 = vld [vmem:[%s9 + $0xc64] sm:$0xff]
    %v3001 = vld [vmem:[%s9 + $0xc6c] sm:$0xff]
    %v3002 = vld [vmem:[%s9 + $0xc74] sm:$0xf]
    %v3003 = vld [vmem:[%s9 + $0xc78] sm:$0xff]
    %v3004 = vld [vmem:[%s9 + $0xc80] sm:$0xff]
    %v3005 = vld [vmem:[%s9 + $0xc88] sm:$0xff]
    %v3006 = vld [vmem:[%s9 + $0xc90] sm:$0xf]
    %v3007 = vld [vmem:[%s9 + $0xc94] sm:$0xff]
    %v3008 = vld [vmem:[%s9 + $0xc9c] sm:$0xff]
    %v3009 = vld [vmem:[%s9 + $0xca4] sm:$0xff]
    %v3010 = vld [vmem:[%s9 + $0xcac] sm:$0xf]
    %v3011 = vld [vmem:[%s9 + $0xcb0] sm:$0xff]
    %v3012 = vld [vmem:[%s9 + $0xcb8] sm:$0xff]
    %v3013 = vld [vmem:[%s9 + $0xcc0] sm:$0xff]
    %v3014 = vld [vmem:[%s9 + $0xcc8] sm:$0xf]
    %v3015 = vld [vmem:[%s9 + $0xccc] sm:$0xff]
    %v3016 = vld [vmem:[%s9 + $0xcd4] sm:$0xff]
    %v3017 = vld [vmem:[%s9 + $0xcdc] sm:$0xff]
    %v3018 = vld [vmem:[%s9 + $0xce4] sm:$0xf]
    %v3019 = vld [vmem:[%s9 + $0xce8] sm:$0xff]
    %v3020 = vld [vmem:[%s9 + $0xcf0] sm:$0xff]
    %v3021 = vld [vmem:[%s9 + $0xcf8] sm:$0xff]
    %v3022 = vld [vmem:[%s9 + $0xd00] sm:$0xf]
    %v3023 = vld [vmem:[%s9 + $0xd04] sm:$0xff]
    %v3024 = vld [vmem:[%s9 + $0xd0c] sm:$0xff]
    %v3025 = vld [vmem:[%s9 + $0xd14] sm:$0xff]
    %v3026 = vld [vmem:[%s9 + $0xd1c] sm:$0xf]
    %v3027 = vld [vmem:[%s9 + $0xd20] sm:$0xff]
    %v3028 = vld [vmem:[%s9 + $0xd28] sm:$0xff]
    %v3029 = vld [vmem:[%s9 + $0xd30] sm:$0xff]
    %v3030 = vld [vmem:[%s9 + $0xd38] sm:$0xf]
    %v3031 = vld [vmem:[%s9 + $0xd3c] sm:$0xff]
    %v3032 = vld [vmem:[%s9 + $0xd44] sm:$0xff]
    %v3033 = vld [vmem:[%s9 + $0xd4c] sm:$0xff]
    %v3034 = vld [vmem:[%s9 + $0xd54] sm:$0xf]
    %v3035 = vld [vmem:[%s9 + $0xd58] sm:$0xff]
    %v3036 = vld [vmem:[%s9 + $0xd60] sm:$0xff]
    %v3037 = vld [vmem:[%s9 + $0xd68] sm:$0xff]
    %v3038 = vld [vmem:[%s9 + $0xd70] sm:$0xf]
    %v3039 = vld [vmem:[%s9 + $0xd74] sm:$0xff]
    %v3040 = vld [vmem:[%s9 + $0xd7c] sm:$0xff]
    %v3041 = vld [vmem:[%s9 + $0xd84] sm:$0xff]
    %v3042 = vld [vmem:[%s9 + $0xd8c] sm:$0xf]
    %v3043 = vld [vmem:[%s9 + $0xd90] sm:$0xff]
    %v3044 = vld [vmem:[%s9 + $0xd98] sm:$0xff]
    %v3045 = vld [vmem:[%s9 + $0xda0] sm:$0xff]
    %v3046 = vld [vmem:[%s9 + $0xda8] sm:$0xf]
    %v3047 = vld [vmem:[%s9 + $0xdac] sm:$0xff]
    %v3048 = vld [vmem:[%s9 + $0xdb4] sm:$0xff]
    %v3049 = vld [vmem:[%s9 + $0xdbc] sm:$0xff]
    %v3050 = vld [vmem:[%s9 + $0xdc4] sm:$0xf]
    %v3051 = vld [vmem:[%s9 + $0xdc8] sm:$0xff]
    %v3052 = vld [vmem:[%s9 + $0xdd0] sm:$0xff]
    %v3053 = vld [vmem:[%s9 + $0xdd8] sm:$0xff]
    %v3054 = vld [vmem:[%s9 + $0xde0] sm:$0xf]
    %v3055 = vld [vmem:[%s9 + $0xde4] sm:$0xff]
    %v3056 = vld [vmem:[%s9 + $0xdec] sm:$0xff]
    %v3057 = vld [vmem:[%s9 + $0xdf4] sm:$0xff]
    %v3058 = vld [vmem:[%s9 + $0xdfc] sm:$0xf]
    %v3059 = vld [vmem:[%s10] sm:$0x7f]
    %v3061 = vlaneseq
    %v3062 = vshrl.u32 %v3061, 7
    %v3063 = vsub.s32 0, %v3062
    %v3064 = vrot.slane %v3059, %v3063
    %v3065 = vlaneseq
    %v3066 = vshrl.u32 %v3065, 7
    %v3067 = vsub.s32 1, %v3066
    %v3068 = vrot.slane %v3059, %v3067
    %v3069 = vlaneseq
    %v3070 = vshrl.u32 %v3069, 7
    %v3071 = vsub.s32 2, %v3070
    %v3072 = vrot.slane %v3059, %v3071
    %v3073 = vlaneseq
    %v3074 = vshrl.u32 %v3073, 7
    %v3075 = vsub.s32 3, %v3074
    %v3076 = vrot.slane %v3059, %v3075
    %v3077 = vlaneseq
    %v3078 = vshrl.u32 %v3077, 7
    %v3079 = vsub.s32 4, %v3078
    %v3080 = vrot.slane %v3059, %v3079
    %v3081 = vlaneseq
    %v3082 = vshrl.u32 %v3081, 7
    %v3083 = vsub.s32 5, %v3082
    %v3084 = vrot.slane %v3059, %v3083
    %v3085 = vlaneseq
    %v3086 = vshrl.u32 %v3085, 7
    %v3087 = vsub.s32 6, %v3086
    %v3088 = vrot.slane %v3059, %v3087
    %v3608 = vunpack.c.l.b16 %v2547
    %v3609 = vunpack.c.h.b16 %v2547
    %v3610 = vunpack.c.l.b16 %v2548
    %v3611 = vunpack.c.h.b16 %v2548
    %v3612 = vunpack.c.l.b16 %v2549
    %v3613 = vunpack.c.h.b16 %v2549
    %v3614 = vunpack.c.l.b16 %v2550
    %v3615 = vunpack.c.l.b16 %v2551
    %v3616 = vunpack.c.h.b16 %v2551
    %v3617 = vunpack.c.l.b16 %v2552
    %v3618 = vunpack.c.h.b16 %v2552
    %v3619 = vunpack.c.l.b16 %v2553
    %v3620 = vunpack.c.h.b16 %v2553
    %v3621 = vunpack.c.l.b16 %v2554
    %v3622 = vunpack.c.l.b16 %v2555
    %v3623 = vunpack.c.h.b16 %v2555
    %v3624 = vunpack.c.l.b16 %v2556
    %v3625 = vunpack.c.h.b16 %v2556
    %v3626 = vunpack.c.l.b16 %v2557
    %v3627 = vunpack.c.h.b16 %v2557
    %v3628 = vunpack.c.l.b16 %v2558
    %v3629 = vunpack.c.l.b16 %v2559
    %v3630 = vunpack.c.h.b16 %v2559
    %v3631 = vunpack.c.l.b16 %v2560
    %v3632 = vunpack.c.h.b16 %v2560
    %v3633 = vunpack.c.l.b16 %v2561
    %v3634 = vunpack.c.h.b16 %v2561
    %v3635 = vunpack.c.l.b16 %v2562
    %v3636 = vunpack.c.l.b16 %v2563
    %v3637 = vunpack.c.h.b16 %v2563
    %v3638 = vunpack.c.l.b16 %v2564
    %v3639 = vunpack.c.h.b16 %v2564
    %v3640 = vunpack.c.l.b16 %v2565
    %v3641 = vunpack.c.h.b16 %v2565
    %v3642 = vunpack.c.l.b16 %v2566
    %v3643 = vunpack.c.l.b16 %v2567
    %v3644 = vunpack.c.h.b16 %v2567
    %v3645 = vunpack.c.l.b16 %v2568
    %v3646 = vunpack.c.h.b16 %v2568
    %v3647 = vunpack.c.l.b16 %v2569
    %v3648 = vunpack.c.h.b16 %v2569
    %v3649 = vunpack.c.l.b16 %v2570
    %v3650 = vunpack.c.l.b16 %v2571
    %v3651 = vunpack.c.h.b16 %v2571
    %v3652 = vunpack.c.l.b16 %v2572
    %v3653 = vunpack.c.h.b16 %v2572
    %v3654 = vunpack.c.l.b16 %v2573
    %v3655 = vunpack.c.h.b16 %v2573
    %v3656 = vunpack.c.l.b16 %v2574
    %v3657 = vunpack.c.l.b16 %v2575
    %v3658 = vunpack.c.h.b16 %v2575
    %v3659 = vunpack.c.l.b16 %v2576
    %v3660 = vunpack.c.h.b16 %v2576
    %v3661 = vunpack.c.l.b16 %v2577
    %v3662 = vunpack.c.h.b16 %v2577
    %v3663 = vunpack.c.l.b16 %v2578
    %v3664 = vunpack.c.l.b16 %v2579
    %v3665 = vunpack.c.h.b16 %v2579
    %v3666 = vunpack.c.l.b16 %v2580
    %v3667 = vunpack.c.h.b16 %v2580
    %v3668 = vunpack.c.l.b16 %v2581
    %v3669 = vunpack.c.h.b16 %v2581
    %v3670 = vunpack.c.l.b16 %v2582
    %v3671 = vunpack.c.l.b16 %v2583
    %v3672 = vunpack.c.h.b16 %v2583
    %v3673 = vunpack.c.l.b16 %v2584
    %v3674 = vunpack.c.h.b16 %v2584
    %v3675 = vunpack.c.l.b16 %v2585
    %v3676 = vunpack.c.h.b16 %v2585
    %v3677 = vunpack.c.l.b16 %v2586
    %v3678 = vunpack.c.l.b16 %v2587
    %v3679 = vunpack.c.h.b16 %v2587
    %v3680 = vunpack.c.l.b16 %v2588
    %v3681 = vunpack.c.h.b16 %v2588
    %v3682 = vunpack.c.l.b16 %v2589
    %v3683 = vunpack.c.h.b16 %v2589
    %v3684 = vunpack.c.l.b16 %v2590
    %v3685 = vunpack.c.l.b16 %v2591
    %v3686 = vunpack.c.h.b16 %v2591
    %v3687 = vunpack.c.l.b16 %v2592
    %v3688 = vunpack.c.h.b16 %v2592
    %v3689 = vunpack.c.l.b16 %v2593
    %v3690 = vunpack.c.h.b16 %v2593
    %v3691 = vunpack.c.l.b16 %v2594
    %v3692 = vunpack.c.l.b16 %v2595
    %v3693 = vunpack.c.h.b16 %v2595
    %v3694 = vunpack.c.l.b16 %v2596
    %v3695 = vunpack.c.h.b16 %v2596
    %v3696 = vunpack.c.l.b16 %v2597
    %v3697 = vunpack.c.h.b16 %v2597
    %v3698 = vunpack.c.l.b16 %v2598
    %v3699 = vunpack.c.l.b16 %v2599
    %v3700 = vunpack.c.h.b16 %v2599
    %v3701 = vunpack.c.l.b16 %v2600
    %v3702 = vunpack.c.h.b16 %v2600
    %v3703 = vunpack.c.l.b16 %v2601
    %v3704 = vunpack.c.h.b16 %v2601
    %v3705 = vunpack.c.l.b16 %v2602
    %v3706 = vunpack.c.l.b16 %v2603
    %v3707 = vunpack.c.h.b16 %v2603
    %v3708 = vunpack.c.l.b16 %v2604
    %v3709 = vunpack.c.h.b16 %v2604
    %v3710 = vunpack.c.l.b16 %v2605
    %v3711 = vunpack.c.h.b16 %v2605
    %v3712 = vunpack.c.l.b16 %v2606
    %v3713 = vunpack.c.l.b16 %v2607
    %v3714 = vunpack.c.h.b16 %v2607
    %v3715 = vunpack.c.l.b16 %v2608
    %v3716 = vunpack.c.h.b16 %v2608
    %v3717 = vunpack.c.l.b16 %v2609
    %v3718 = vunpack.c.h.b16 %v2609
    %v3719 = vunpack.c.l.b16 %v2610
    %v3720 = vunpack.c.l.b16 %v2611
    %v3721 = vunpack.c.h.b16 %v2611
    %v3722 = vunpack.c.l.b16 %v2612
    %v3723 = vunpack.c.h.b16 %v2612
    %v3724 = vunpack.c.l.b16 %v2613
    %v3725 = vunpack.c.h.b16 %v2613
    %v3726 = vunpack.c.l.b16 %v2614
    %v3727 = vunpack.c.l.b16 %v2615
    %v3728 = vunpack.c.h.b16 %v2615
    %v3729 = vunpack.c.l.b16 %v2616
    %v3730 = vunpack.c.h.b16 %v2616
    %v3731 = vunpack.c.l.b16 %v2617
    %v3732 = vunpack.c.h.b16 %v2617
    %v3733 = vunpack.c.l.b16 %v2618
    %v3734 = vunpack.c.l.b16 %v2619
    %v3735 = vunpack.c.h.b16 %v2619
    %v3736 = vunpack.c.l.b16 %v2620
    %v3737 = vunpack.c.h.b16 %v2620
    %v3738 = vunpack.c.l.b16 %v2621
    %v3739 = vunpack.c.h.b16 %v2621
    %v3740 = vunpack.c.l.b16 %v2622
    %v3741 = vunpack.c.l.b16 %v2623
    %v3742 = vunpack.c.h.b16 %v2623
    %v3743 = vunpack.c.l.b16 %v2624
    %v3744 = vunpack.c.h.b16 %v2624
    %v3745 = vunpack.c.l.b16 %v2625
    %v3746 = vunpack.c.h.b16 %v2625
    %v3747 = vunpack.c.l.b16 %v2626
    %v3748 = vunpack.c.l.b16 %v2627
    %v3749 = vunpack.c.h.b16 %v2627
    %v3750 = vunpack.c.l.b16 %v2628
    %v3751 = vunpack.c.h.b16 %v2628
    %v3752 = vunpack.c.l.b16 %v2629
    %v3753 = vunpack.c.h.b16 %v2629
    %v3754 = vunpack.c.l.b16 %v2630
    %v3755 = vunpack.c.l.b16 %v2631
    %v3756 = vunpack.c.h.b16 %v2631
    %v3757 = vunpack.c.l.b16 %v2632
    %v3758 = vunpack.c.h.b16 %v2632
    %v3759 = vunpack.c.l.b16 %v2633
    %v3760 = vunpack.c.h.b16 %v2633
    %v3761 = vunpack.c.l.b16 %v2634
    %v3762 = vunpack.c.l.b16 %v2635
    %v3763 = vunpack.c.h.b16 %v2635
    %v3764 = vunpack.c.l.b16 %v2636
    %v3765 = vunpack.c.h.b16 %v2636
    %v3766 = vunpack.c.l.b16 %v2637
    %v3767 = vunpack.c.h.b16 %v2637
    %v3768 = vunpack.c.l.b16 %v2638
    %v3769 = vunpack.c.l.b16 %v2639
    %v3770 = vunpack.c.h.b16 %v2639
    %v3771 = vunpack.c.l.b16 %v2640
    %v3772 = vunpack.c.h.b16 %v2640
    %v3773 = vunpack.c.l.b16 %v2641
    %v3774 = vunpack.c.h.b16 %v2641
    %v3775 = vunpack.c.l.b16 %v2642
    %v3776 = vunpack.c.l.b16 %v2643
    %v3777 = vunpack.c.h.b16 %v2643
    %v3778 = vunpack.c.l.b16 %v2644
    %v3779 = vunpack.c.h.b16 %v2644
    %v3780 = vunpack.c.l.b16 %v2645
    %v3781 = vunpack.c.h.b16 %v2645
    %v3782 = vunpack.c.l.b16 %v2646
    %v3783 = vunpack.c.l.b16 %v2647
    %v3784 = vunpack.c.h.b16 %v2647
    %v3785 = vunpack.c.l.b16 %v2648
    %v3786 = vunpack.c.h.b16 %v2648
    %v3787 = vunpack.c.l.b16 %v2649
    %v3788 = vunpack.c.h.b16 %v2649
    %v3789 = vunpack.c.l.b16 %v2650
    %v3790 = vunpack.c.l.b16 %v2651
    %v3791 = vunpack.c.h.b16 %v2651
    %v3792 = vunpack.c.l.b16 %v2652
    %v3793 = vunpack.c.h.b16 %v2652
    %v3794 = vunpack.c.l.b16 %v2653
    %v3795 = vunpack.c.h.b16 %v2653
    %v3796 = vunpack.c.l.b16 %v2654
    %v3797 = vunpack.c.l.b16 %v2655
    %v3798 = vunpack.c.h.b16 %v2655
    %v3799 = vunpack.c.l.b16 %v2656
    %v3800 = vunpack.c.h.b16 %v2656
    %v3801 = vunpack.c.l.b16 %v2657
    %v3802 = vunpack.c.h.b16 %v2657
    %v3803 = vunpack.c.l.b16 %v2658
    %v3804 = vunpack.c.l.b16 %v2659
    %v3805 = vunpack.c.h.b16 %v2659
    %v3806 = vunpack.c.l.b16 %v2660
    %v3807 = vunpack.c.h.b16 %v2660
    %v3808 = vunpack.c.l.b16 %v2661
    %v3809 = vunpack.c.h.b16 %v2661
    %v3810 = vunpack.c.l.b16 %v2662
    %v3811 = vunpack.c.l.b16 %v2663
    %v3812 = vunpack.c.h.b16 %v2663
    %v3813 = vunpack.c.l.b16 %v2664
    %v3814 = vunpack.c.h.b16 %v2664
    %v3815 = vunpack.c.l.b16 %v2665
    %v3816 = vunpack.c.h.b16 %v2665
    %v3817 = vunpack.c.l.b16 %v2666
    %v3818 = vunpack.c.l.b16 %v2667
    %v3819 = vunpack.c.h.b16 %v2667
    %v3820 = vunpack.c.l.b16 %v2668
    %v3821 = vunpack.c.h.b16 %v2668
    %v3822 = vunpack.c.l.b16 %v2669
    %v3823 = vunpack.c.h.b16 %v2669
    %v3824 = vunpack.c.l.b16 %v2670
    %v3825 = vunpack.c.l.b16 %v2671
    %v3826 = vunpack.c.h.b16 %v2671
    %v3827 = vunpack.c.l.b16 %v2672
    %v3828 = vunpack.c.h.b16 %v2672
    %v3829 = vunpack.c.l.b16 %v2673
    %v3830 = vunpack.c.h.b16 %v2673
    %v3831 = vunpack.c.l.b16 %v2674
    %v3832 = vunpack.c.l.b16 %v2675
    %v3833 = vunpack.c.h.b16 %v2675
    %v3834 = vunpack.c.l.b16 %v2676
    %v3835 = vunpack.c.h.b16 %v2676
    %v3836 = vunpack.c.l.b16 %v2677
    %v3837 = vunpack.c.h.b16 %v2677
    %v3838 = vunpack.c.l.b16 %v2678
    %v3839 = vunpack.c.l.b16 %v2679
    %v3840 = vunpack.c.h.b16 %v2679
    %v3841 = vunpack.c.l.b16 %v2680
    %v3842 = vunpack.c.h.b16 %v2680
    %v3843 = vunpack.c.l.b16 %v2681
    %v3844 = vunpack.c.h.b16 %v2681
    %v3845 = vunpack.c.l.b16 %v2682
    %v3846 = vunpack.c.l.b16 %v2683
    %v3847 = vunpack.c.h.b16 %v2683
    %v3848 = vunpack.c.l.b16 %v2684
    %v3849 = vunpack.c.h.b16 %v2684
    %v3850 = vunpack.c.l.b16 %v2685
    %v3851 = vunpack.c.h.b16 %v2685
    %v3852 = vunpack.c.l.b16 %v2686
    %v3853 = vunpack.c.l.b16 %v2687
    %v3854 = vunpack.c.h.b16 %v2687
    %v3855 = vunpack.c.l.b16 %v2688
    %v3856 = vunpack.c.h.b16 %v2688
    %v3857 = vunpack.c.l.b16 %v2689
    %v3858 = vunpack.c.h.b16 %v2689
    %v3859 = vunpack.c.l.b16 %v2690
    %v3860 = vunpack.c.l.b16 %v2691
    %v3861 = vunpack.c.h.b16 %v2691
    %v3862 = vunpack.c.l.b16 %v2692
    %v3863 = vunpack.c.h.b16 %v2692
    %v3864 = vunpack.c.l.b16 %v2693
    %v3865 = vunpack.c.h.b16 %v2693
    %v3866 = vunpack.c.l.b16 %v2694
    %v3867 = vunpack.c.l.b16 %v2695
    %v3868 = vunpack.c.h.b16 %v2695
    %v3869 = vunpack.c.l.b16 %v2696
    %v3870 = vunpack.c.h.b16 %v2696
    %v3871 = vunpack.c.l.b16 %v2697
    %v3872 = vunpack.c.h.b16 %v2697
    %v3873 = vunpack.c.l.b16 %v2698
    %v3874 = vunpack.c.l.b16 %v2699
    %v3875 = vunpack.c.h.b16 %v2699
    %v3876 = vunpack.c.l.b16 %v2700
    %v3877 = vunpack.c.h.b16 %v2700
    %v3878 = vunpack.c.l.b16 %v2701
    %v3879 = vunpack.c.h.b16 %v2701
    %v3880 = vunpack.c.l.b16 %v2702
    %v3881 = vunpack.c.l.b16 %v2703
    %v3882 = vunpack.c.h.b16 %v2703
    %v3883 = vunpack.c.l.b16 %v2704
    %v3884 = vunpack.c.h.b16 %v2704
    %v3885 = vunpack.c.l.b16 %v2705
    %v3886 = vunpack.c.h.b16 %v2705
    %v3887 = vunpack.c.l.b16 %v2706
    %v3888 = vunpack.c.l.b16 %v2707
    %v3889 = vunpack.c.h.b16 %v2707
    %v3890 = vunpack.c.l.b16 %v2708
    %v3891 = vunpack.c.h.b16 %v2708
    %v3892 = vunpack.c.l.b16 %v2709
    %v3893 = vunpack.c.h.b16 %v2709
    %v3894 = vunpack.c.l.b16 %v2710
    %v3895 = vunpack.c.l.b16 %v2711
    %v3896 = vunpack.c.h.b16 %v2711
    %v3897 = vunpack.c.l.b16 %v2712
    %v3898 = vunpack.c.h.b16 %v2712
    %v3899 = vunpack.c.l.b16 %v2713
    %v3900 = vunpack.c.h.b16 %v2713
    %v3901 = vunpack.c.l.b16 %v2714
    %v3902 = vunpack.c.l.b16 %v2715
    %v3903 = vunpack.c.h.b16 %v2715
    %v3904 = vunpack.c.l.b16 %v2716
    %v3905 = vunpack.c.h.b16 %v2716
    %v3906 = vunpack.c.l.b16 %v2717
    %v3907 = vunpack.c.h.b16 %v2717
    %v3908 = vunpack.c.l.b16 %v2718
    %v3909 = vunpack.c.l.b16 %v2719
    %v3910 = vunpack.c.h.b16 %v2719
    %v3911 = vunpack.c.l.b16 %v2720
    %v3912 = vunpack.c.h.b16 %v2720
    %v3913 = vunpack.c.l.b16 %v2721
    %v3914 = vunpack.c.h.b16 %v2721
    %v3915 = vunpack.c.l.b16 %v2722
    %v3916 = vunpack.c.l.b16 %v2723
    %v3917 = vunpack.c.h.b16 %v2723
    %v3918 = vunpack.c.l.b16 %v2724
    %v3919 = vunpack.c.h.b16 %v2724
    %v3920 = vunpack.c.l.b16 %v2725
    %v3921 = vunpack.c.h.b16 %v2725
    %v3922 = vunpack.c.l.b16 %v2726
    %v3923 = vunpack.c.l.b16 %v2727
    %v3924 = vunpack.c.h.b16 %v2727
    %v3925 = vunpack.c.l.b16 %v2728
    %v3926 = vunpack.c.h.b16 %v2728
    %v3927 = vunpack.c.l.b16 %v2729
    %v3928 = vunpack.c.h.b16 %v2729
    %v3929 = vunpack.c.l.b16 %v2730
    %v3930 = vunpack.c.l.b16 %v2731
    %v3931 = vunpack.c.h.b16 %v2731
    %v3932 = vunpack.c.l.b16 %v2732
    %v3933 = vunpack.c.h.b16 %v2732
    %v3934 = vunpack.c.l.b16 %v2733
    %v3935 = vunpack.c.h.b16 %v2733
    %v3936 = vunpack.c.l.b16 %v2734
    %v3937 = vunpack.c.l.b16 %v2735
    %v3938 = vunpack.c.h.b16 %v2735
    %v3939 = vunpack.c.l.b16 %v2736
    %v3940 = vunpack.c.h.b16 %v2736
    %v3941 = vunpack.c.l.b16 %v2737
    %v3942 = vunpack.c.h.b16 %v2737
    %v3943 = vunpack.c.l.b16 %v2738
    %v3944 = vunpack.c.l.b16 %v2739
    %v3945 = vunpack.c.h.b16 %v2739
    %v3946 = vunpack.c.l.b16 %v2740
    %v3947 = vunpack.c.h.b16 %v2740
    %v3948 = vunpack.c.l.b16 %v2741
    %v3949 = vunpack.c.h.b16 %v2741
    %v3950 = vunpack.c.l.b16 %v2742
    %v3951 = vunpack.c.l.b16 %v2743
    %v3952 = vunpack.c.h.b16 %v2743
    %v3953 = vunpack.c.l.b16 %v2744
    %v3954 = vunpack.c.h.b16 %v2744
    %v3955 = vunpack.c.l.b16 %v2745
    %v3956 = vunpack.c.h.b16 %v2745
    %v3957 = vunpack.c.l.b16 %v2746
    %v3958 = vunpack.c.l.b16 %v2747
    %v3959 = vunpack.c.h.b16 %v2747
    %v3960 = vunpack.c.l.b16 %v2748
    %v3961 = vunpack.c.h.b16 %v2748
    %v3962 = vunpack.c.l.b16 %v2749
    %v3963 = vunpack.c.h.b16 %v2749
    %v3964 = vunpack.c.l.b16 %v2750
    %v3965 = vunpack.c.l.b16 %v2751
    %v3966 = vunpack.c.h.b16 %v2751
    %v3967 = vunpack.c.l.b16 %v2752
    %v3968 = vunpack.c.h.b16 %v2752
    %v3969 = vunpack.c.l.b16 %v2753
    %v3970 = vunpack.c.h.b16 %v2753
    %v3971 = vunpack.c.l.b16 %v2754
    %v3972 = vunpack.c.l.b16 %v2755
    %v3973 = vunpack.c.h.b16 %v2755
    %v3974 = vunpack.c.l.b16 %v2756
    %v3975 = vunpack.c.h.b16 %v2756
    %v3976 = vunpack.c.l.b16 %v2757
    %v3977 = vunpack.c.h.b16 %v2757
    %v3978 = vunpack.c.l.b16 %v2758
    %v3979 = vunpack.c.l.b16 %v2759
    %v3980 = vunpack.c.h.b16 %v2759
    %v3981 = vunpack.c.l.b16 %v2760
    %v3982 = vunpack.c.h.b16 %v2760
    %v3983 = vunpack.c.l.b16 %v2761
    %v3984 = vunpack.c.h.b16 %v2761
    %v3985 = vunpack.c.l.b16 %v2762
    %v3986 = vunpack.c.l.b16 %v2763
    %v3987 = vunpack.c.h.b16 %v2763
    %v3988 = vunpack.c.l.b16 %v2764
    %v3989 = vunpack.c.h.b16 %v2764
    %v3990 = vunpack.c.l.b16 %v2765
    %v3991 = vunpack.c.h.b16 %v2765
    %v3992 = vunpack.c.l.b16 %v2766
    %v3993 = vunpack.c.l.b16 %v2767
    %v3994 = vunpack.c.h.b16 %v2767
    %v3995 = vunpack.c.l.b16 %v2768
    %v3996 = vunpack.c.h.b16 %v2768
    %v3997 = vunpack.c.l.b16 %v2769
    %v3998 = vunpack.c.h.b16 %v2769
    %v3999 = vunpack.c.l.b16 %v2770
    %v4000 = vunpack.c.l.b16 %v2771
    %v4001 = vunpack.c.h.b16 %v2771
    %v4002 = vunpack.c.l.b16 %v2772
    %v4003 = vunpack.c.h.b16 %v2772
    %v4004 = vunpack.c.l.b16 %v2773
    %v4005 = vunpack.c.h.b16 %v2773
    %v4006 = vunpack.c.l.b16 %v2774
    %v4007 = vunpack.c.l.b16 %v2775
    %v4008 = vunpack.c.h.b16 %v2775
    %v4009 = vunpack.c.l.b16 %v2776
    %v4010 = vunpack.c.h.b16 %v2776
    %v4011 = vunpack.c.l.b16 %v2777
    %v4012 = vunpack.c.h.b16 %v2777
    %v4013 = vunpack.c.l.b16 %v2778
    %v4014 = vunpack.c.l.b16 %v2779
    %v4015 = vunpack.c.h.b16 %v2779
    %v4016 = vunpack.c.l.b16 %v2780
    %v4017 = vunpack.c.h.b16 %v2780
    %v4018 = vunpack.c.l.b16 %v2781
    %v4019 = vunpack.c.h.b16 %v2781
    %v4020 = vunpack.c.l.b16 %v2782
    %v4021 = vunpack.c.l.b16 %v2783
    %v4022 = vunpack.c.h.b16 %v2783
    %v4023 = vunpack.c.l.b16 %v2784
    %v4024 = vunpack.c.h.b16 %v2784
    %v4025 = vunpack.c.l.b16 %v2785
    %v4026 = vunpack.c.h.b16 %v2785
    %v4027 = vunpack.c.l.b16 %v2786
    %v4028 = vunpack.c.l.b16 %v2787
    %v4029 = vunpack.c.h.b16 %v2787
    %v4030 = vunpack.c.l.b16 %v2788
    %v4031 = vunpack.c.h.b16 %v2788
    %v4032 = vunpack.c.l.b16 %v2789
    %v4033 = vunpack.c.h.b16 %v2789
    %v4034 = vunpack.c.l.b16 %v2790
    %v4035 = vunpack.c.l.b16 %v2791
    %v4036 = vunpack.c.h.b16 %v2791
    %v4037 = vunpack.c.l.b16 %v2792
    %v4038 = vunpack.c.h.b16 %v2792
    %v4039 = vunpack.c.l.b16 %v2793
    %v4040 = vunpack.c.h.b16 %v2793
    %v4041 = vunpack.c.l.b16 %v2794
    %v4042 = vunpack.c.l.b16 %v2795
    %v4043 = vunpack.c.h.b16 %v2795
    %v4044 = vunpack.c.l.b16 %v2796
    %v4045 = vunpack.c.h.b16 %v2796
    %v4046 = vunpack.c.l.b16 %v2797
    %v4047 = vunpack.c.h.b16 %v2797
    %v4048 = vunpack.c.l.b16 %v2798
    %v4049 = vunpack.c.l.b16 %v2799
    %v4050 = vunpack.c.h.b16 %v2799
    %v4051 = vunpack.c.l.b16 %v2800
    %v4052 = vunpack.c.h.b16 %v2800
    %v4053 = vunpack.c.l.b16 %v2801
    %v4054 = vunpack.c.h.b16 %v2801
    %v4055 = vunpack.c.l.b16 %v2802
    %v4056 = vunpack.c.l.b16 %v2803
    %v4057 = vunpack.c.h.b16 %v2803
    %v4058 = vunpack.c.l.b16 %v2804
    %v4059 = vunpack.c.h.b16 %v2804
    %v4060 = vunpack.c.l.b16 %v2805
    %v4061 = vunpack.c.h.b16 %v2805
    %v4062 = vunpack.c.l.b16 %v2806
    %v4063 = vunpack.c.l.b16 %v2807
    %v4064 = vunpack.c.h.b16 %v2807
    %v4065 = vunpack.c.l.b16 %v2808
    %v4066 = vunpack.c.h.b16 %v2808
    %v4067 = vunpack.c.l.b16 %v2809
    %v4068 = vunpack.c.h.b16 %v2809
    %v4069 = vunpack.c.l.b16 %v2810
    %v4070 = vunpack.c.l.b16 %v2811
    %v4071 = vunpack.c.h.b16 %v2811
    %v4072 = vunpack.c.l.b16 %v2812
    %v4073 = vunpack.c.h.b16 %v2812
    %v4074 = vunpack.c.l.b16 %v2813
    %v4075 = vunpack.c.h.b16 %v2813
    %v4076 = vunpack.c.l.b16 %v2814
    %v4077 = vunpack.c.l.b16 %v2815
    %v4078 = vunpack.c.h.b16 %v2815
    %v4079 = vunpack.c.l.b16 %v2816
    %v4080 = vunpack.c.h.b16 %v2816
    %v4081 = vunpack.c.l.b16 %v2817
    %v4082 = vunpack.c.h.b16 %v2817
    %v4083 = vunpack.c.l.b16 %v2818
    %v4084 = vunpack.c.l.b16 %v2819
    %v4085 = vunpack.c.h.b16 %v2819
    %v4086 = vunpack.c.l.b16 %v2820
    %v4087 = vunpack.c.h.b16 %v2820
    %v4088 = vunpack.c.l.b16 %v2821
    %v4089 = vunpack.c.h.b16 %v2821
    %v4090 = vunpack.c.l.b16 %v2822
    %v4091 = vunpack.c.l.b16 %v2823
    %v4092 = vunpack.c.h.b16 %v2823
    %v4093 = vunpack.c.l.b16 %v2824
    %v4094 = vunpack.c.h.b16 %v2824
    %v4095 = vunpack.c.l.b16 %v2825
    %v4096 = vunpack.c.h.b16 %v2825
    %v4097 = vunpack.c.l.b16 %v2826
    %v4098 = vunpack.c.l.b16 %v2827
    %v4099 = vunpack.c.h.b16 %v2827
    %v4100 = vunpack.c.l.b16 %v2828
    %v4101 = vunpack.c.h.b16 %v2828
    %v4102 = vunpack.c.l.b16 %v2829
    %v4103 = vunpack.c.h.b16 %v2829
    %v4104 = vunpack.c.l.b16 %v2830
    %v4105 = vunpack.c.l.b16 %v2831
    %v4106 = vunpack.c.h.b16 %v2831
    %v4107 = vunpack.c.l.b16 %v2832
    %v4108 = vunpack.c.h.b16 %v2832
    %v4109 = vunpack.c.l.b16 %v2833
    %v4110 = vunpack.c.h.b16 %v2833
    %v4111 = vunpack.c.l.b16 %v2834
    %v4112 = vunpack.c.l.b16 %v2835
    %v4113 = vunpack.c.h.b16 %v2835
    %v4114 = vunpack.c.l.b16 %v2836
    %v4115 = vunpack.c.h.b16 %v2836
    %v4116 = vunpack.c.l.b16 %v2837
    %v4117 = vunpack.c.h.b16 %v2837
    %v4118 = vunpack.c.l.b16 %v2838
    %v4119 = vunpack.c.l.b16 %v2839
    %v4120 = vunpack.c.h.b16 %v2839
    %v4121 = vunpack.c.l.b16 %v2840
    %v4122 = vunpack.c.h.b16 %v2840
    %v4123 = vunpack.c.l.b16 %v2841
    %v4124 = vunpack.c.h.b16 %v2841
    %v4125 = vunpack.c.l.b16 %v2842
    %v4126 = vunpack.c.l.b16 %v2843
    %v4127 = vunpack.c.h.b16 %v2843
    %v4128 = vunpack.c.l.b16 %v2844
    %v4129 = vunpack.c.h.b16 %v2844
    %v4130 = vunpack.c.l.b16 %v2845
    %v4131 = vunpack.c.h.b16 %v2845
    %v4132 = vunpack.c.l.b16 %v2846
    %v4133 = vunpack.c.l.b16 %v2847
    %v4134 = vunpack.c.h.b16 %v2847
    %v4135 = vunpack.c.l.b16 %v2848
    %v4136 = vunpack.c.h.b16 %v2848
    %v4137 = vunpack.c.l.b16 %v2849
    %v4138 = vunpack.c.h.b16 %v2849
    %v4139 = vunpack.c.l.b16 %v2850
    %v4140 = vunpack.c.l.b16 %v2851
    %v4141 = vunpack.c.h.b16 %v2851
    %v4142 = vunpack.c.l.b16 %v2852
    %v4143 = vunpack.c.h.b16 %v2852
    %v4144 = vunpack.c.l.b16 %v2853
    %v4145 = vunpack.c.h.b16 %v2853
    %v4146 = vunpack.c.l.b16 %v2854
    %v4147 = vunpack.c.l.b16 %v2855
    %v4148 = vunpack.c.h.b16 %v2855
    %v4149 = vunpack.c.l.b16 %v2856
    %v4150 = vunpack.c.h.b16 %v2856
    %v4151 = vunpack.c.l.b16 %v2857
    %v4152 = vunpack.c.h.b16 %v2857
    %v4153 = vunpack.c.l.b16 %v2858
    %v4154 = vunpack.c.l.b16 %v2859
    %v4155 = vunpack.c.h.b16 %v2859
    %v4156 = vunpack.c.l.b16 %v2860
    %v4157 = vunpack.c.h.b16 %v2860
    %v4158 = vunpack.c.l.b16 %v2861
    %v4159 = vunpack.c.h.b16 %v2861
    %v4160 = vunpack.c.l.b16 %v2862
    %v4161 = vunpack.c.l.b16 %v2863
    %v4162 = vunpack.c.h.b16 %v2863
    %v4163 = vunpack.c.l.b16 %v2864
    %v4164 = vunpack.c.h.b16 %v2864
    %v4165 = vunpack.c.l.b16 %v2865
    %v4166 = vunpack.c.h.b16 %v2865
    %v4167 = vunpack.c.l.b16 %v2866
    %v4168 = vunpack.c.l.b16 %v2867
    %v4169 = vunpack.c.h.b16 %v2867
    %v4170 = vunpack.c.l.b16 %v2868
    %v4171 = vunpack.c.h.b16 %v2868
    %v4172 = vunpack.c.l.b16 %v2869
    %v4173 = vunpack.c.h.b16 %v2869
    %v4174 = vunpack.c.l.b16 %v2870
    %v4175 = vunpack.c.l.b16 %v2871
    %v4176 = vunpack.c.h.b16 %v2871
    %v4177 = vunpack.c.l.b16 %v2872
    %v4178 = vunpack.c.h.b16 %v2872
    %v4179 = vunpack.c.l.b16 %v2873
    %v4180 = vunpack.c.h.b16 %v2873
    %v4181 = vunpack.c.l.b16 %v2874
    %v4182 = vunpack.c.l.b16 %v2875
    %v4183 = vunpack.c.h.b16 %v2875
    %v4184 = vunpack.c.l.b16 %v2876
    %v4185 = vunpack.c.h.b16 %v2876
    %v4186 = vunpack.c.l.b16 %v2877
    %v4187 = vunpack.c.h.b16 %v2877
    %v4188 = vunpack.c.l.b16 %v2878
    %v4189 = vunpack.c.l.b16 %v2879
    %v4190 = vunpack.c.h.b16 %v2879
    %v4191 = vunpack.c.l.b16 %v2880
    %v4192 = vunpack.c.h.b16 %v2880
    %v4193 = vunpack.c.l.b16 %v2881
    %v4194 = vunpack.c.h.b16 %v2881
    %v4195 = vunpack.c.l.b16 %v2882
    %v4196 = vunpack.c.l.b16 %v2883
    %v4197 = vunpack.c.h.b16 %v2883
    %v4198 = vunpack.c.l.b16 %v2884
    %v4199 = vunpack.c.h.b16 %v2884
    %v4200 = vunpack.c.l.b16 %v2885
    %v4201 = vunpack.c.h.b16 %v2885
    %v4202 = vunpack.c.l.b16 %v2886
    %v4203 = vunpack.c.l.b16 %v2887
    %v4204 = vunpack.c.h.b16 %v2887
    %v4205 = vunpack.c.l.b16 %v2888
    %v4206 = vunpack.c.h.b16 %v2888
    %v4207 = vunpack.c.l.b16 %v2889
    %v4208 = vunpack.c.h.b16 %v2889
    %v4209 = vunpack.c.l.b16 %v2890
    %v4210 = vunpack.c.l.b16 %v2891
    %v4211 = vunpack.c.h.b16 %v2891
    %v4212 = vunpack.c.l.b16 %v2892
    %v4213 = vunpack.c.h.b16 %v2892
    %v4214 = vunpack.c.l.b16 %v2893
    %v4215 = vunpack.c.h.b16 %v2893
    %v4216 = vunpack.c.l.b16 %v2894
    %v4217 = vunpack.c.l.b16 %v2895
    %v4218 = vunpack.c.h.b16 %v2895
    %v4219 = vunpack.c.l.b16 %v2896
    %v4220 = vunpack.c.h.b16 %v2896
    %v4221 = vunpack.c.l.b16 %v2897
    %v4222 = vunpack.c.h.b16 %v2897
    %v4223 = vunpack.c.l.b16 %v2898
    %v4224 = vunpack.c.l.b16 %v2899
    %v4225 = vunpack.c.h.b16 %v2899
    %v4226 = vunpack.c.l.b16 %v2900
    %v4227 = vunpack.c.h.b16 %v2900
    %v4228 = vunpack.c.l.b16 %v2901
    %v4229 = vunpack.c.h.b16 %v2901
    %v4230 = vunpack.c.l.b16 %v2902
    %v4231 = vunpack.c.l.b16 %v2903
    %v4232 = vunpack.c.h.b16 %v2903
    %v4233 = vunpack.c.l.b16 %v2904
    %v4234 = vunpack.c.h.b16 %v2904
    %v4235 = vunpack.c.l.b16 %v2905
    %v4236 = vunpack.c.h.b16 %v2905
    %v4237 = vunpack.c.l.b16 %v2906
    %v4238 = vunpack.c.l.b16 %v2907
    %v4239 = vunpack.c.h.b16 %v2907
    %v4240 = vunpack.c.l.b16 %v2908
    %v4241 = vunpack.c.h.b16 %v2908
    %v4242 = vunpack.c.l.b16 %v2909
    %v4243 = vunpack.c.h.b16 %v2909
    %v4244 = vunpack.c.l.b16 %v2910
    %v4245 = vunpack.c.l.b16 %v2911
    %v4246 = vunpack.c.h.b16 %v2911
    %v4247 = vunpack.c.l.b16 %v2912
    %v4248 = vunpack.c.h.b16 %v2912
    %v4249 = vunpack.c.l.b16 %v2913
    %v4250 = vunpack.c.h.b16 %v2913
    %v4251 = vunpack.c.l.b16 %v2914
    %v4252 = vunpack.c.l.b16 %v2915
    %v4253 = vunpack.c.h.b16 %v2915
    %v4254 = vunpack.c.l.b16 %v2916
    %v4255 = vunpack.c.h.b16 %v2916
    %v4256 = vunpack.c.l.b16 %v2917
    %v4257 = vunpack.c.h.b16 %v2917
    %v4258 = vunpack.c.l.b16 %v2918
    %v4259 = vunpack.c.l.b16 %v2919
    %v4260 = vunpack.c.h.b16 %v2919
    %v4261 = vunpack.c.l.b16 %v2920
    %v4262 = vunpack.c.h.b16 %v2920
    %v4263 = vunpack.c.l.b16 %v2921
    %v4264 = vunpack.c.h.b16 %v2921
    %v4265 = vunpack.c.l.b16 %v2922
    %v4266 = vunpack.c.l.b16 %v2923
    %v4267 = vunpack.c.h.b16 %v2923
    %v4268 = vunpack.c.l.b16 %v2924
    %v4269 = vunpack.c.h.b16 %v2924
    %v4270 = vunpack.c.l.b16 %v2925
    %v4271 = vunpack.c.h.b16 %v2925
    %v4272 = vunpack.c.l.b16 %v2926
    %v4273 = vunpack.c.l.b16 %v2927
    %v4274 = vunpack.c.h.b16 %v2927
    %v4275 = vunpack.c.l.b16 %v2928
    %v4276 = vunpack.c.h.b16 %v2928
    %v4277 = vunpack.c.l.b16 %v2929
    %v4278 = vunpack.c.h.b16 %v2929
    %v4279 = vunpack.c.l.b16 %v2930
    %v4280 = vunpack.c.l.b16 %v2931
    %v4281 = vunpack.c.h.b16 %v2931
    %v4282 = vunpack.c.l.b16 %v2932
    %v4283 = vunpack.c.h.b16 %v2932
    %v4284 = vunpack.c.l.b16 %v2933
    %v4285 = vunpack.c.h.b16 %v2933
    %v4286 = vunpack.c.l.b16 %v2934
    %v4287 = vunpack.c.l.b16 %v2935
    %v4288 = vunpack.c.h.b16 %v2935
    %v4289 = vunpack.c.l.b16 %v2936
    %v4290 = vunpack.c.h.b16 %v2936
    %v4291 = vunpack.c.l.b16 %v2937
    %v4292 = vunpack.c.h.b16 %v2937
    %v4293 = vunpack.c.l.b16 %v2938
    %v4294 = vunpack.c.l.b16 %v2939
    %v4295 = vunpack.c.h.b16 %v2939
    %v4296 = vunpack.c.l.b16 %v2940
    %v4297 = vunpack.c.h.b16 %v2940
    %v4298 = vunpack.c.l.b16 %v2941
    %v4299 = vunpack.c.h.b16 %v2941
    %v4300 = vunpack.c.l.b16 %v2942
    %v4301 = vunpack.c.l.b16 %v2943
    %v4302 = vunpack.c.h.b16 %v2943
    %v4303 = vunpack.c.l.b16 %v2944
    %v4304 = vunpack.c.h.b16 %v2944
    %v4305 = vunpack.c.l.b16 %v2945
    %v4306 = vunpack.c.h.b16 %v2945
    %v4307 = vunpack.c.l.b16 %v2946
    %v4308 = vunpack.c.l.b16 %v2947
    %v4309 = vunpack.c.h.b16 %v2947
    %v4310 = vunpack.c.l.b16 %v2948
    %v4311 = vunpack.c.h.b16 %v2948
    %v4312 = vunpack.c.l.b16 %v2949
    %v4313 = vunpack.c.h.b16 %v2949
    %v4314 = vunpack.c.l.b16 %v2950
    %v4315 = vunpack.c.l.b16 %v2951
    %v4316 = vunpack.c.h.b16 %v2951
    %v4317 = vunpack.c.l.b16 %v2952
    %v4318 = vunpack.c.h.b16 %v2952
    %v4319 = vunpack.c.l.b16 %v2953
    %v4320 = vunpack.c.h.b16 %v2953
    %v4321 = vunpack.c.l.b16 %v2954
    %v4322 = vunpack.c.l.b16 %v2955
    %v4323 = vunpack.c.h.b16 %v2955
    %v4324 = vunpack.c.l.b16 %v2956
    %v4325 = vunpack.c.h.b16 %v2956
    %v4326 = vunpack.c.l.b16 %v2957
    %v4327 = vunpack.c.h.b16 %v2957
    %v4328 = vunpack.c.l.b16 %v2958
    %v4329 = vunpack.c.l.b16 %v2959
    %v4330 = vunpack.c.h.b16 %v2959
    %v4331 = vunpack.c.l.b16 %v2960
    %v4332 = vunpack.c.h.b16 %v2960
    %v4333 = vunpack.c.l.b16 %v2961
    %v4334 = vunpack.c.h.b16 %v2961
    %v4335 = vunpack.c.l.b16 %v2962
    %v4336 = vunpack.c.l.b16 %v2963
    %v4337 = vunpack.c.h.b16 %v2963
    %v4338 = vunpack.c.l.b16 %v2964
    %v4339 = vunpack.c.h.b16 %v2964
    %v4340 = vunpack.c.l.b16 %v2965
    %v4341 = vunpack.c.h.b16 %v2965
    %v4342 = vunpack.c.l.b16 %v2966
    %v4343 = vunpack.c.l.b16 %v2967
    %v4344 = vunpack.c.h.b16 %v2967
    %v4345 = vunpack.c.l.b16 %v2968
    %v4346 = vunpack.c.h.b16 %v2968
    %v4347 = vunpack.c.l.b16 %v2969
    %v4348 = vunpack.c.h.b16 %v2969
    %v4349 = vunpack.c.l.b16 %v2970
    %v4350 = vunpack.c.l.b16 %v2971
    %v4351 = vunpack.c.h.b16 %v2971
    %v4352 = vunpack.c.l.b16 %v2972
    %v4353 = vunpack.c.h.b16 %v2972
    %v4354 = vunpack.c.l.b16 %v2973
    %v4355 = vunpack.c.h.b16 %v2973
    %v4356 = vunpack.c.l.b16 %v2974
    %v4357 = vunpack.c.l.b16 %v2975
    %v4358 = vunpack.c.h.b16 %v2975
    %v4359 = vunpack.c.l.b16 %v2976
    %v4360 = vunpack.c.h.b16 %v2976
    %v4361 = vunpack.c.l.b16 %v2977
    %v4362 = vunpack.c.h.b16 %v2977
    %v4363 = vunpack.c.l.b16 %v2978
    %v4364 = vunpack.c.l.b16 %v2979
    %v4365 = vunpack.c.h.b16 %v2979
    %v4366 = vunpack.c.l.b16 %v2980
    %v4367 = vunpack.c.h.b16 %v2980
    %v4368 = vunpack.c.l.b16 %v2981
    %v4369 = vunpack.c.h.b16 %v2981
    %v4370 = vunpack.c.l.b16 %v2982
    %v4371 = vunpack.c.l.b16 %v2983
    %v4372 = vunpack.c.h.b16 %v2983
    %v4373 = vunpack.c.l.b16 %v2984
    %v4374 = vunpack.c.h.b16 %v2984
    %v4375 = vunpack.c.l.b16 %v2985
    %v4376 = vunpack.c.h.b16 %v2985
    %v4377 = vunpack.c.l.b16 %v2986
    %v4378 = vunpack.c.l.b16 %v2987
    %v4379 = vunpack.c.h.b16 %v2987
    %v4380 = vunpack.c.l.b16 %v2988
    %v4381 = vunpack.c.h.b16 %v2988
    %v4382 = vunpack.c.l.b16 %v2989
    %v4383 = vunpack.c.h.b16 %v2989
    %v4384 = vunpack.c.l.b16 %v2990
    %v4385 = vunpack.c.l.b16 %v2991
    %v4386 = vunpack.c.h.b16 %v2991
    %v4387 = vunpack.c.l.b16 %v2992
    %v4388 = vunpack.c.h.b16 %v2992
    %v4389 = vunpack.c.l.b16 %v2993
    %v4390 = vunpack.c.h.b16 %v2993
    %v4391 = vunpack.c.l.b16 %v2994
    %v4392 = vunpack.c.l.b16 %v2995
    %v4393 = vunpack.c.h.b16 %v2995
    %v4394 = vunpack.c.l.b16 %v2996
    %v4395 = vunpack.c.h.b16 %v2996
    %v4396 = vunpack.c.l.b16 %v2997
    %v4397 = vunpack.c.h.b16 %v2997
    %v4398 = vunpack.c.l.b16 %v2998
    %v4399 = vunpack.c.l.b16 %v2999
    %v4400 = vunpack.c.h.b16 %v2999
    %v4401 = vunpack.c.l.b16 %v3000
    %v4402 = vunpack.c.h.b16 %v3000
    %v4403 = vunpack.c.l.b16 %v3001
    %v4404 = vunpack.c.h.b16 %v3001
    %v4405 = vunpack.c.l.b16 %v3002
    %v4406 = vunpack.c.l.b16 %v3003
    %v4407 = vunpack.c.h.b16 %v3003
    %v4408 = vunpack.c.l.b16 %v3004
    %v4409 = vunpack.c.h.b16 %v3004
    %v4410 = vunpack.c.l.b16 %v3005
    %v4411 = vunpack.c.h.b16 %v3005
    %v4412 = vunpack.c.l.b16 %v3006
    %v4413 = vunpack.c.l.b16 %v3007
    %v4414 = vunpack.c.h.b16 %v3007
    %v4415 = vunpack.c.l.b16 %v3008
    %v4416 = vunpack.c.h.b16 %v3008
    %v4417 = vunpack.c.l.b16 %v3009
    %v4418 = vunpack.c.h.b16 %v3009
    %v4419 = vunpack.c.l.b16 %v3010
    %v4420 = vunpack.c.l.b16 %v3011
    %v4421 = vunpack.c.h.b16 %v3011
    %v4422 = vunpack.c.l.b16 %v3012
    %v4423 = vunpack.c.h.b16 %v3012
    %v4424 = vunpack.c.l.b16 %v3013
    %v4425 = vunpack.c.h.b16 %v3013
    %v4426 = vunpack.c.l.b16 %v3014
    %v4427 = vunpack.c.l.b16 %v3015
    %v4428 = vunpack.c.h.b16 %v3015
    %v4429 = vunpack.c.l.b16 %v3016
    %v4430 = vunpack.c.h.b16 %v3016
    %v4431 = vunpack.c.l.b16 %v3017
    %v4432 = vunpack.c.h.b16 %v3017
    %v4433 = vunpack.c.l.b16 %v3018
    %v4434 = vunpack.c.l.b16 %v3019
    %v4435 = vunpack.c.h.b16 %v3019
    %v4436 = vunpack.c.l.b16 %v3020
    %v4437 = vunpack.c.h.b16 %v3020
    %v4438 = vunpack.c.l.b16 %v3021
    %v4439 = vunpack.c.h.b16 %v3021
    %v4440 = vunpack.c.l.b16 %v3022
    %v4441 = vunpack.c.l.b16 %v3023
    %v4442 = vunpack.c.h.b16 %v3023
    %v4443 = vunpack.c.l.b16 %v3024
    %v4444 = vunpack.c.h.b16 %v3024
    %v4445 = vunpack.c.l.b16 %v3025
    %v4446 = vunpack.c.h.b16 %v3025
    %v4447 = vunpack.c.l.b16 %v3026
    %v4448 = vunpack.c.l.b16 %v3027
    %v4449 = vunpack.c.h.b16 %v3027
    %v4450 = vunpack.c.l.b16 %v3028
    %v4451 = vunpack.c.h.b16 %v3028
    %v4452 = vunpack.c.l.b16 %v3029
    %v4453 = vunpack.c.h.b16 %v3029
    %v4454 = vunpack.c.l.b16 %v3030
    %v4455 = vunpack.c.l.b16 %v3031
    %v4456 = vunpack.c.h.b16 %v3031
    %v4457 = vunpack.c.l.b16 %v3032
    %v4458 = vunpack.c.h.b16 %v3032
    %v4459 = vunpack.c.l.b16 %v3033
    %v4460 = vunpack.c.h.b16 %v3033
    %v4461 = vunpack.c.l.b16 %v3034
    %v4462 = vunpack.c.l.b16 %v3035
    %v4463 = vunpack.c.h.b16 %v3035
    %v4464 = vunpack.c.l.b16 %v3036
    %v4465 = vunpack.c.h.b16 %v3036
    %v4466 = vunpack.c.l.b16 %v3037
    %v4467 = vunpack.c.h.b16 %v3037
    %v4468 = vunpack.c.l.b16 %v3038
    %v4469 = vunpack.c.l.b16 %v3039
    %v4470 = vunpack.c.h.b16 %v3039
    %v4471 = vunpack.c.l.b16 %v3040
    %v4472 = vunpack.c.h.b16 %v3040
    %v4473 = vunpack.c.l.b16 %v3041
    %v4474 = vunpack.c.h.b16 %v3041
    %v4475 = vunpack.c.l.b16 %v3042
    %v4476 = vunpack.c.l.b16 %v3043
    %v4477 = vunpack.c.h.b16 %v3043
    %v4478 = vunpack.c.l.b16 %v3044
    %v4479 = vunpack.c.h.b16 %v3044
    %v4480 = vunpack.c.l.b16 %v3045
    %v4481 = vunpack.c.h.b16 %v3045
    %v4482 = vunpack.c.l.b16 %v3046
    %v4483 = vunpack.c.l.b16 %v3047
    %v4484 = vunpack.c.h.b16 %v3047
    %v4485 = vunpack.c.l.b16 %v3048
    %v4486 = vunpack.c.h.b16 %v3048
    %v4487 = vunpack.c.l.b16 %v3049
    %v4488 = vunpack.c.h.b16 %v3049
    %v4489 = vunpack.c.l.b16 %v3050
    %v4490 = vunpack.c.l.b16 %v3051
    %v4491 = vunpack.c.h.b16 %v3051
    %v4492 = vunpack.c.l.b16 %v3052
    %v4493 = vunpack.c.h.b16 %v3052
    %v4494 = vunpack.c.l.b16 %v3053
    %v4495 = vunpack.c.h.b16 %v3053
    %v4496 = vunpack.c.l.b16 %v3054
    %v4497 = vunpack.c.l.b16 %v3055
    %v4498 = vunpack.c.h.b16 %v3055
    %v4499 = vunpack.c.l.b16 %v3056
    %v4500 = vunpack.c.h.b16 %v3056
    %v4501 = vunpack.c.l.b16 %v3057
    %v4502 = vunpack.c.h.b16 %v3057
    %v4503 = vunpack.c.l.b16 %v3058
    %v4504 = vpack.c.b16 %v3615, %v3608
    %v4505 = vpack.c.b16 %v3616, %v3609
    %v4506 = vpack.c.b16 %v3617, %v3610
    %v4507 = vpack.c.b16 %v3618, %v3611
    %v4508 = vpack.c.b16 %v3619, %v3612
    %v4509 = vpack.c.b16 %v3620, %v3613
    %v4510 = vpack.c.b16 %v3621, %v3614
    %v4511 = vpack.c.b16 %v3629, %v3622
    %v4512 = vpack.c.b16 %v3630, %v3623
    %v4513 = vpack.c.b16 %v3631, %v3624
    %v4514 = vpack.c.b16 %v3632, %v3625
    %v4515 = vpack.c.b16 %v3633, %v3626
    %v4516 = vpack.c.b16 %v3634, %v3627
    %v4517 = vpack.c.b16 %v3635, %v3628
    %v4518 = vpack.c.b16 %v3643, %v3636
    %v4519 = vpack.c.b16 %v3644, %v3637
    %v4520 = vpack.c.b16 %v3645, %v3638
    %v4521 = vpack.c.b16 %v3646, %v3639
    %v4522 = vpack.c.b16 %v3647, %v3640
    %v4523 = vpack.c.b16 %v3648, %v3641
    %v4524 = vpack.c.b16 %v3649, %v3642
    %v4525 = vpack.c.b16 %v3657, %v3650
    %v4526 = vpack.c.b16 %v3658, %v3651
    %v4527 = vpack.c.b16 %v3659, %v3652
    %v4528 = vpack.c.b16 %v3660, %v3653
    %v4529 = vpack.c.b16 %v3661, %v3654
    %v4530 = vpack.c.b16 %v3662, %v3655
    %v4531 = vpack.c.b16 %v3663, %v3656
    %v4532 = vpack.c.b16 %v3671, %v3664
    %v4533 = vpack.c.b16 %v3672, %v3665
    %v4534 = vpack.c.b16 %v3673, %v3666
    %v4535 = vpack.c.b16 %v3674, %v3667
    %v4536 = vpack.c.b16 %v3675, %v3668
    %v4537 = vpack.c.b16 %v3676, %v3669
    %v4538 = vpack.c.b16 %v3677, %v3670
    %v4539 = vpack.c.b16 %v3685, %v3678
    %v4540 = vpack.c.b16 %v3686, %v3679
    %v4541 = vpack.c.b16 %v3687, %v3680
    %v4542 = vpack.c.b16 %v3688, %v3681
    %v4543 = vpack.c.b16 %v3689, %v3682
    %v4544 = vpack.c.b16 %v3690, %v3683
    %v4545 = vpack.c.b16 %v3691, %v3684
    %v4546 = vpack.c.b16 %v3699, %v3692
    %v4547 = vpack.c.b16 %v3700, %v3693
    %v4548 = vpack.c.b16 %v3701, %v3694
    %v4549 = vpack.c.b16 %v3702, %v3695
    %v4550 = vpack.c.b16 %v3703, %v3696
    %v4551 = vpack.c.b16 %v3704, %v3697
    %v4552 = vpack.c.b16 %v3705, %v3698
    %v4553 = vpack.c.b16 %v3713, %v3706
    %v4554 = vpack.c.b16 %v3714, %v3707
    %v4555 = vpack.c.b16 %v3715, %v3708
    %v4556 = vpack.c.b16 %v3716, %v3709
    %v4557 = vpack.c.b16 %v3717, %v3710
    %v4558 = vpack.c.b16 %v3718, %v3711
    %v4559 = vpack.c.b16 %v3719, %v3712
    %v4560 = vpack.c.b16 %v3727, %v3720
    %v4561 = vpack.c.b16 %v3728, %v3721
    %v4562 = vpack.c.b16 %v3729, %v3722
    %v4563 = vpack.c.b16 %v3730, %v3723
    %v4564 = vpack.c.b16 %v3731, %v3724
    %v4565 = vpack.c.b16 %v3732, %v3725
    %v4566 = vpack.c.b16 %v3733, %v3726
    %v4567 = vpack.c.b16 %v3741, %v3734
    %v4568 = vpack.c.b16 %v3742, %v3735
    %v4569 = vpack.c.b16 %v3743, %v3736
    %v4570 = vpack.c.b16 %v3744, %v3737
    %v4571 = vpack.c.b16 %v3745, %v3738
    %v4572 = vpack.c.b16 %v3746, %v3739
    %v4573 = vpack.c.b16 %v3747, %v3740
    %v4574 = vpack.c.b16 %v3755, %v3748
    %v4575 = vpack.c.b16 %v3756, %v3749
    %v4576 = vpack.c.b16 %v3757, %v3750
    %v4577 = vpack.c.b16 %v3758, %v3751
    %v4578 = vpack.c.b16 %v3759, %v3752
    %v4579 = vpack.c.b16 %v3760, %v3753
    %v4580 = vpack.c.b16 %v3761, %v3754
    %v4581 = vpack.c.b16 %v3769, %v3762
    %v4582 = vpack.c.b16 %v3770, %v3763
    %v4583 = vpack.c.b16 %v3771, %v3764
    %v4584 = vpack.c.b16 %v3772, %v3765
    %v4585 = vpack.c.b16 %v3773, %v3766
    %v4586 = vpack.c.b16 %v3774, %v3767
    %v4587 = vpack.c.b16 %v3775, %v3768
    %v4588 = vpack.c.b16 %v3783, %v3776
    %v4589 = vpack.c.b16 %v3784, %v3777
    %v4590 = vpack.c.b16 %v3785, %v3778
    %v4591 = vpack.c.b16 %v3786, %v3779
    %v4592 = vpack.c.b16 %v3787, %v3780
    %v4593 = vpack.c.b16 %v3788, %v3781
    %v4594 = vpack.c.b16 %v3789, %v3782
    %v4595 = vpack.c.b16 %v3797, %v3790
    %v4596 = vpack.c.b16 %v3798, %v3791
    %v4597 = vpack.c.b16 %v3799, %v3792
    %v4598 = vpack.c.b16 %v3800, %v3793
    %v4599 = vpack.c.b16 %v3801, %v3794
    %v4600 = vpack.c.b16 %v3802, %v3795
    %v4601 = vpack.c.b16 %v3803, %v3796
    %v4602 = vpack.c.b16 %v3811, %v3804
    %v4603 = vpack.c.b16 %v3812, %v3805
    %v4604 = vpack.c.b16 %v3813, %v3806
    %v4605 = vpack.c.b16 %v3814, %v3807
    %v4606 = vpack.c.b16 %v3815, %v3808
    %v4607 = vpack.c.b16 %v3816, %v3809
    %v4608 = vpack.c.b16 %v3817, %v3810
    %v4609 = vpack.c.b16 %v3825, %v3818
    %v4610 = vpack.c.b16 %v3826, %v3819
    %v4611 = vpack.c.b16 %v3827, %v3820
    %v4612 = vpack.c.b16 %v3828, %v3821
    %v4613 = vpack.c.b16 %v3829, %v3822
    %v4614 = vpack.c.b16 %v3830, %v3823
    %v4615 = vpack.c.b16 %v3831, %v3824
    %v4616 = vpack.c.b16 %v3839, %v3832
    %v4617 = vpack.c.b16 %v3840, %v3833
    %v4618 = vpack.c.b16 %v3841, %v3834
    %v4619 = vpack.c.b16 %v3842, %v3835
    %v4620 = vpack.c.b16 %v3843, %v3836
    %v4621 = vpack.c.b16 %v3844, %v3837
    %v4622 = vpack.c.b16 %v3845, %v3838
    %v4623 = vpack.c.b16 %v3853, %v3846
    %v4624 = vpack.c.b16 %v3854, %v3847
    %v4625 = vpack.c.b16 %v3855, %v3848
    %v4626 = vpack.c.b16 %v3856, %v3849
    %v4627 = vpack.c.b16 %v3857, %v3850
    %v4628 = vpack.c.b16 %v3858, %v3851
    %v4629 = vpack.c.b16 %v3859, %v3852
    %v4630 = vpack.c.b16 %v3867, %v3860
    %v4631 = vpack.c.b16 %v3868, %v3861
    %v4632 = vpack.c.b16 %v3869, %v3862
    %v4633 = vpack.c.b16 %v3870, %v3863
    %v4634 = vpack.c.b16 %v3871, %v3864
    %v4635 = vpack.c.b16 %v3872, %v3865
    %v4636 = vpack.c.b16 %v3873, %v3866
    %v4637 = vpack.c.b16 %v3881, %v3874
    %v4638 = vpack.c.b16 %v3882, %v3875
    %v4639 = vpack.c.b16 %v3883, %v3876
    %v4640 = vpack.c.b16 %v3884, %v3877
    %v4641 = vpack.c.b16 %v3885, %v3878
    %v4642 = vpack.c.b16 %v3886, %v3879
    %v4643 = vpack.c.b16 %v3887, %v3880
    %v4644 = vpack.c.b16 %v3895, %v3888
    %v4645 = vpack.c.b16 %v3896, %v3889
    %v4646 = vpack.c.b16 %v3897, %v3890
    %v4647 = vpack.c.b16 %v3898, %v3891
    %v4648 = vpack.c.b16 %v3899, %v3892
    %v4649 = vpack.c.b16 %v3900, %v3893
    %v4650 = vpack.c.b16 %v3901, %v3894
    %v4651 = vpack.c.b16 %v3909, %v3902
    %v4652 = vpack.c.b16 %v3910, %v3903
    %v4653 = vpack.c.b16 %v3911, %v3904
    %v4654 = vpack.c.b16 %v3912, %v3905
    %v4655 = vpack.c.b16 %v3913, %v3906
    %v4656 = vpack.c.b16 %v3914, %v3907
    %v4657 = vpack.c.b16 %v3915, %v3908
    %v4658 = vpack.c.b16 %v3923, %v3916
    %v4659 = vpack.c.b16 %v3924, %v3917
    %v4660 = vpack.c.b16 %v3925, %v3918
    %v4661 = vpack.c.b16 %v3926, %v3919
    %v4662 = vpack.c.b16 %v3927, %v3920
    %v4663 = vpack.c.b16 %v3928, %v3921
    %v4664 = vpack.c.b16 %v3929, %v3922
    %v4665 = vpack.c.b16 %v3937, %v3930
    %v4666 = vpack.c.b16 %v3938, %v3931
    %v4667 = vpack.c.b16 %v3939, %v3932
    %v4668 = vpack.c.b16 %v3940, %v3933
    %v4669 = vpack.c.b16 %v3941, %v3934
    %v4670 = vpack.c.b16 %v3942, %v3935
    %v4671 = vpack.c.b16 %v3943, %v3936
    %v4672 = vpack.c.b16 %v3951, %v3944
    %v4673 = vpack.c.b16 %v3952, %v3945
    %v4674 = vpack.c.b16 %v3953, %v3946
    %v4675 = vpack.c.b16 %v3954, %v3947
    %v4676 = vpack.c.b16 %v3955, %v3948
    %v4677 = vpack.c.b16 %v3956, %v3949
    %v4678 = vpack.c.b16 %v3957, %v3950
    %v4679 = vpack.c.b16 %v3965, %v3958
    %v4680 = vpack.c.b16 %v3966, %v3959
    %v4681 = vpack.c.b16 %v3967, %v3960
    %v4682 = vpack.c.b16 %v3968, %v3961
    %v4683 = vpack.c.b16 %v3969, %v3962
    %v4684 = vpack.c.b16 %v3970, %v3963
    %v4685 = vpack.c.b16 %v3971, %v3964
    %v4686 = vpack.c.b16 %v3979, %v3972
    %v4687 = vpack.c.b16 %v3980, %v3973
    %v4688 = vpack.c.b16 %v3981, %v3974
    %v4689 = vpack.c.b16 %v3982, %v3975
    %v4690 = vpack.c.b16 %v3983, %v3976
    %v4691 = vpack.c.b16 %v3984, %v3977
    %v4692 = vpack.c.b16 %v3985, %v3978
    %v4693 = vpack.c.b16 %v3993, %v3986
    %v4694 = vpack.c.b16 %v3994, %v3987
    %v4695 = vpack.c.b16 %v3995, %v3988
    %v4696 = vpack.c.b16 %v3996, %v3989
    %v4697 = vpack.c.b16 %v3997, %v3990
    %v4698 = vpack.c.b16 %v3998, %v3991
    %v4699 = vpack.c.b16 %v3999, %v3992
    %v4700 = vpack.c.b16 %v4007, %v4000
    %v4701 = vpack.c.b16 %v4008, %v4001
    %v4702 = vpack.c.b16 %v4009, %v4002
    %v4703 = vpack.c.b16 %v4010, %v4003
    %v4704 = vpack.c.b16 %v4011, %v4004
    %v4705 = vpack.c.b16 %v4012, %v4005
    %v4706 = vpack.c.b16 %v4013, %v4006
    %v4707 = vpack.c.b16 %v4021, %v4014
    %v4708 = vpack.c.b16 %v4022, %v4015
    %v4709 = vpack.c.b16 %v4023, %v4016
    %v4710 = vpack.c.b16 %v4024, %v4017
    %v4711 = vpack.c.b16 %v4025, %v4018
    %v4712 = vpack.c.b16 %v4026, %v4019
    %v4713 = vpack.c.b16 %v4027, %v4020
    %v4714 = vpack.c.b16 %v4035, %v4028
    %v4715 = vpack.c.b16 %v4036, %v4029
    %v4716 = vpack.c.b16 %v4037, %v4030
    %v4717 = vpack.c.b16 %v4038, %v4031
    %v4718 = vpack.c.b16 %v4039, %v4032
    %v4719 = vpack.c.b16 %v4040, %v4033
    %v4720 = vpack.c.b16 %v4041, %v4034
    %v4721 = vpack.c.b16 %v4049, %v4042
    %v4722 = vpack.c.b16 %v4050, %v4043
    %v4723 = vpack.c.b16 %v4051, %v4044
    %v4724 = vpack.c.b16 %v4052, %v4045
    %v4725 = vpack.c.b16 %v4053, %v4046
    %v4726 = vpack.c.b16 %v4054, %v4047
    %v4727 = vpack.c.b16 %v4055, %v4048
    %v4728 = vpack.c.b16 %v4063, %v4056
    %v4729 = vpack.c.b16 %v4064, %v4057
    %v4730 = vpack.c.b16 %v4065, %v4058
    %v4731 = vpack.c.b16 %v4066, %v4059
    %v4732 = vpack.c.b16 %v4067, %v4060
    %v4733 = vpack.c.b16 %v4068, %v4061
    %v4734 = vpack.c.b16 %v4069, %v4062
    %v4735 = vpack.c.b16 %v4077, %v4070
    %v4736 = vpack.c.b16 %v4078, %v4071
    %v4737 = vpack.c.b16 %v4079, %v4072
    %v4738 = vpack.c.b16 %v4080, %v4073
    %v4739 = vpack.c.b16 %v4081, %v4074
    %v4740 = vpack.c.b16 %v4082, %v4075
    %v4741 = vpack.c.b16 %v4083, %v4076
    %v4742 = vpack.c.b16 %v4091, %v4084
    %v4743 = vpack.c.b16 %v4092, %v4085
    %v4744 = vpack.c.b16 %v4093, %v4086
    %v4745 = vpack.c.b16 %v4094, %v4087
    %v4746 = vpack.c.b16 %v4095, %v4088
    %v4747 = vpack.c.b16 %v4096, %v4089
    %v4748 = vpack.c.b16 %v4097, %v4090
    %v4749 = vpack.c.b16 %v4105, %v4098
    %v4750 = vpack.c.b16 %v4106, %v4099
    %v4751 = vpack.c.b16 %v4107, %v4100
    %v4752 = vpack.c.b16 %v4108, %v4101
    %v4753 = vpack.c.b16 %v4109, %v4102
    %v4754 = vpack.c.b16 %v4110, %v4103
    %v4755 = vpack.c.b16 %v4111, %v4104
    %v4756 = vpack.c.b16 %v4119, %v4112
    %v4757 = vpack.c.b16 %v4120, %v4113
    %v4758 = vpack.c.b16 %v4121, %v4114
    %v4759 = vpack.c.b16 %v4122, %v4115
    %v4760 = vpack.c.b16 %v4123, %v4116
    %v4761 = vpack.c.b16 %v4124, %v4117
    %v4762 = vpack.c.b16 %v4125, %v4118
    %v4763 = vpack.c.b16 %v4133, %v4126
    %v4764 = vpack.c.b16 %v4134, %v4127
    %v4765 = vpack.c.b16 %v4135, %v4128
    %v4766 = vpack.c.b16 %v4136, %v4129
    %v4767 = vpack.c.b16 %v4137, %v4130
    %v4768 = vpack.c.b16 %v4138, %v4131
    %v4769 = vpack.c.b16 %v4139, %v4132
    %v4770 = vpack.c.b16 %v4147, %v4140
    %v4771 = vpack.c.b16 %v4148, %v4141
    %v4772 = vpack.c.b16 %v4149, %v4142
    %v4773 = vpack.c.b16 %v4150, %v4143
    %v4774 = vpack.c.b16 %v4151, %v4144
    %v4775 = vpack.c.b16 %v4152, %v4145
    %v4776 = vpack.c.b16 %v4153, %v4146
    %v4777 = vpack.c.b16 %v4161, %v4154
    %v4778 = vpack.c.b16 %v4162, %v4155
    %v4779 = vpack.c.b16 %v4163, %v4156
    %v4780 = vpack.c.b16 %v4164, %v4157
    %v4781 = vpack.c.b16 %v4165, %v4158
    %v4782 = vpack.c.b16 %v4166, %v4159
    %v4783 = vpack.c.b16 %v4167, %v4160
    %v4784 = vpack.c.b16 %v4175, %v4168
    %v4785 = vpack.c.b16 %v4176, %v4169
    %v4786 = vpack.c.b16 %v4177, %v4170
    %v4787 = vpack.c.b16 %v4178, %v4171
    %v4788 = vpack.c.b16 %v4179, %v4172
    %v4789 = vpack.c.b16 %v4180, %v4173
    %v4790 = vpack.c.b16 %v4181, %v4174
    %v4791 = vpack.c.b16 %v4189, %v4182
    %v4792 = vpack.c.b16 %v4190, %v4183
    %v4793 = vpack.c.b16 %v4191, %v4184
    %v4794 = vpack.c.b16 %v4192, %v4185
    %v4795 = vpack.c.b16 %v4193, %v4186
    %v4796 = vpack.c.b16 %v4194, %v4187
    %v4797 = vpack.c.b16 %v4195, %v4188
    %v4798 = vpack.c.b16 %v4203, %v4196
    %v4799 = vpack.c.b16 %v4204, %v4197
    %v4800 = vpack.c.b16 %v4205, %v4198
    %v4801 = vpack.c.b16 %v4206, %v4199
    %v4802 = vpack.c.b16 %v4207, %v4200
    %v4803 = vpack.c.b16 %v4208, %v4201
    %v4804 = vpack.c.b16 %v4209, %v4202
    %v4805 = vpack.c.b16 %v4217, %v4210
    %v4806 = vpack.c.b16 %v4218, %v4211
    %v4807 = vpack.c.b16 %v4219, %v4212
    %v4808 = vpack.c.b16 %v4220, %v4213
    %v4809 = vpack.c.b16 %v4221, %v4214
    %v4810 = vpack.c.b16 %v4222, %v4215
    %v4811 = vpack.c.b16 %v4223, %v4216
    %v4812 = vpack.c.b16 %v4231, %v4224
    %v4813 = vpack.c.b16 %v4232, %v4225
    %v4814 = vpack.c.b16 %v4233, %v4226
    %v4815 = vpack.c.b16 %v4234, %v4227
    %v4816 = vpack.c.b16 %v4235, %v4228
    %v4817 = vpack.c.b16 %v4236, %v4229
    %v4818 = vpack.c.b16 %v4237, %v4230
    %v4819 = vpack.c.b16 %v4245, %v4238
    %v4820 = vpack.c.b16 %v4246, %v4239
    %v4821 = vpack.c.b16 %v4247, %v4240
    %v4822 = vpack.c.b16 %v4248, %v4241
    %v4823 = vpack.c.b16 %v4249, %v4242
    %v4824 = vpack.c.b16 %v4250, %v4243
    %v4825 = vpack.c.b16 %v4251, %v4244
    %v4826 = vpack.c.b16 %v4259, %v4252
    %v4827 = vpack.c.b16 %v4260, %v4253
    %v4828 = vpack.c.b16 %v4261, %v4254
    %v4829 = vpack.c.b16 %v4262, %v4255
    %v4830 = vpack.c.b16 %v4263, %v4256
    %v4831 = vpack.c.b16 %v4264, %v4257
    %v4832 = vpack.c.b16 %v4265, %v4258
    %v4833 = vpack.c.b16 %v4273, %v4266
    %v4834 = vpack.c.b16 %v4274, %v4267
    %v4835 = vpack.c.b16 %v4275, %v4268
    %v4836 = vpack.c.b16 %v4276, %v4269
    %v4837 = vpack.c.b16 %v4277, %v4270
    %v4838 = vpack.c.b16 %v4278, %v4271
    %v4839 = vpack.c.b16 %v4279, %v4272
    %v4840 = vpack.c.b16 %v4287, %v4280
    %v4841 = vpack.c.b16 %v4288, %v4281
    %v4842 = vpack.c.b16 %v4289, %v4282
    %v4843 = vpack.c.b16 %v4290, %v4283
    %v4844 = vpack.c.b16 %v4291, %v4284
    %v4845 = vpack.c.b16 %v4292, %v4285
    %v4846 = vpack.c.b16 %v4293, %v4286
    %v4847 = vpack.c.b16 %v4301, %v4294
    %v4848 = vpack.c.b16 %v4302, %v4295
    %v4849 = vpack.c.b16 %v4303, %v4296
    %v4850 = vpack.c.b16 %v4304, %v4297
    %v4851 = vpack.c.b16 %v4305, %v4298
    %v4852 = vpack.c.b16 %v4306, %v4299
    %v4853 = vpack.c.b16 %v4307, %v4300
    %v4854 = vpack.c.b16 %v4315, %v4308
    %v4855 = vpack.c.b16 %v4316, %v4309
    %v4856 = vpack.c.b16 %v4317, %v4310
    %v4857 = vpack.c.b16 %v4318, %v4311
    %v4858 = vpack.c.b16 %v4319, %v4312
    %v4859 = vpack.c.b16 %v4320, %v4313
    %v4860 = vpack.c.b16 %v4321, %v4314
    %v4861 = vpack.c.b16 %v4329, %v4322
    %v4862 = vpack.c.b16 %v4330, %v4323
    %v4863 = vpack.c.b16 %v4331, %v4324
    %v4864 = vpack.c.b16 %v4332, %v4325
    %v4865 = vpack.c.b16 %v4333, %v4326
    %v4866 = vpack.c.b16 %v4334, %v4327
    %v4867 = vpack.c.b16 %v4335, %v4328
    %v4868 = vpack.c.b16 %v4343, %v4336
    %v4869 = vpack.c.b16 %v4344, %v4337
    %v4870 = vpack.c.b16 %v4345, %v4338
    %v4871 = vpack.c.b16 %v4346, %v4339
    %v4872 = vpack.c.b16 %v4347, %v4340
    %v4873 = vpack.c.b16 %v4348, %v4341
    %v4874 = vpack.c.b16 %v4349, %v4342
    %v4875 = vpack.c.b16 %v4357, %v4350
    %v4876 = vpack.c.b16 %v4358, %v4351
    %v4877 = vpack.c.b16 %v4359, %v4352
    %v4878 = vpack.c.b16 %v4360, %v4353
    %v4879 = vpack.c.b16 %v4361, %v4354
    %v4880 = vpack.c.b16 %v4362, %v4355
    %v4881 = vpack.c.b16 %v4363, %v4356
    %v4882 = vpack.c.b16 %v4371, %v4364
    %v4883 = vpack.c.b16 %v4372, %v4365
    %v4884 = vpack.c.b16 %v4373, %v4366
    %v4885 = vpack.c.b16 %v4374, %v4367
    %v4886 = vpack.c.b16 %v4375, %v4368
    %v4887 = vpack.c.b16 %v4376, %v4369
    %v4888 = vpack.c.b16 %v4377, %v4370
    %v4889 = vpack.c.b16 %v4385, %v4378
    %v4890 = vpack.c.b16 %v4386, %v4379
    %v4891 = vpack.c.b16 %v4387, %v4380
    %v4892 = vpack.c.b16 %v4388, %v4381
    %v4893 = vpack.c.b16 %v4389, %v4382
    %v4894 = vpack.c.b16 %v4390, %v4383
    %v4895 = vpack.c.b16 %v4391, %v4384
    %v4896 = vpack.c.b16 %v4399, %v4392
    %v4897 = vpack.c.b16 %v4400, %v4393
    %v4898 = vpack.c.b16 %v4401, %v4394
    %v4899 = vpack.c.b16 %v4402, %v4395
    %v4900 = vpack.c.b16 %v4403, %v4396
    %v4901 = vpack.c.b16 %v4404, %v4397
    %v4902 = vpack.c.b16 %v4405, %v4398
    %v4903 = vpack.c.b16 %v4413, %v4406
    %v4904 = vpack.c.b16 %v4414, %v4407
    %v4905 = vpack.c.b16 %v4415, %v4408
    %v4906 = vpack.c.b16 %v4416, %v4409
    %v4907 = vpack.c.b16 %v4417, %v4410
    %v4908 = vpack.c.b16 %v4418, %v4411
    %v4909 = vpack.c.b16 %v4419, %v4412
    %v4910 = vpack.c.b16 %v4427, %v4420
    %v4911 = vpack.c.b16 %v4428, %v4421
    %v4912 = vpack.c.b16 %v4429, %v4422
    %v4913 = vpack.c.b16 %v4430, %v4423
    %v4914 = vpack.c.b16 %v4431, %v4424
    %v4915 = vpack.c.b16 %v4432, %v4425
    %v4916 = vpack.c.b16 %v4433, %v4426
    %v4917 = vpack.c.b16 %v4441, %v4434
    %v4918 = vpack.c.b16 %v4442, %v4435
    %v4919 = vpack.c.b16 %v4443, %v4436
    %v4920 = vpack.c.b16 %v4444, %v4437
    %v4921 = vpack.c.b16 %v4445, %v4438
    %v4922 = vpack.c.b16 %v4446, %v4439
    %v4923 = vpack.c.b16 %v4447, %v4440
    %v4924 = vpack.c.b16 %v4455, %v4448
    %v4925 = vpack.c.b16 %v4456, %v4449
    %v4926 = vpack.c.b16 %v4457, %v4450
    %v4927 = vpack.c.b16 %v4458, %v4451
    %v4928 = vpack.c.b16 %v4459, %v4452
    %v4929 = vpack.c.b16 %v4460, %v4453
    %v4930 = vpack.c.b16 %v4461, %v4454
    %v4931 = vpack.c.b16 %v4469, %v4462
    %v4932 = vpack.c.b16 %v4470, %v4463
    %v4933 = vpack.c.b16 %v4471, %v4464
    %v4934 = vpack.c.b16 %v4472, %v4465
    %v4935 = vpack.c.b16 %v4473, %v4466
    %v4936 = vpack.c.b16 %v4474, %v4467
    %v4937 = vpack.c.b16 %v4475, %v4468
    %v4938 = vpack.c.b16 %v4483, %v4476
    %v4939 = vpack.c.b16 %v4484, %v4477
    %v4940 = vpack.c.b16 %v4485, %v4478
    %v4941 = vpack.c.b16 %v4486, %v4479
    %v4942 = vpack.c.b16 %v4487, %v4480
    %v4943 = vpack.c.b16 %v4488, %v4481
    %v4944 = vpack.c.b16 %v4489, %v4482
    %v4945 = vpack.c.b16 %v4497, %v4490
    %v4946 = vpack.c.b16 %v4498, %v4491
    %v4947 = vpack.c.b16 %v4499, %v4492
    %v4948 = vpack.c.b16 %v4500, %v4493
    %v4949 = vpack.c.b16 %v4501, %v4494
    %v4950 = vpack.c.b16 %v4502, %v4495
    %v4951 = vpack.c.b16 %v4503, %v4496
    %5400 = vmatprep.subr.bf16.mxu0 %v4505
    %5401 = vmatpush1.bf16.msra.mxu0 %v4504
    %5402 = vmatprep.subr.bf16.mxu0 %v4512
    %5403 = vmatpush1.bf16.msra.mxu0 %v4511
    %5404 = vmatprep.subr.bf16.mxu0 %v4519
    %5405 = vmatpush1.bf16.msra.mxu0 %v4518
    %5406 = vmatprep.subr.bf16.mxu0 %v4526
    %5407 = vmatpush1.bf16.msra.mxu0 %v4525
    %5408 = vmatprep.subr.bf16.mxu0 %v4533
    %5409 = vmatpush1.bf16.msra.mxu0 %v4532
    %5410 = vmatprep.subr.bf16.mxu0 %v4540
    %5411 = vmatpush1.bf16.msra.mxu0 %v4539
    %5412 = vmatprep.subr.bf16.mxu0 %v4547
    %5413 = vmatpush1.bf16.msra.mxu0 %v4546
    %5414 = vmatprep.subr.bf16.mxu0 %v4554
    %5415 = vmatpush1.bf16.msra.mxu0 %v4553
    %5416 = vmatprep.subr.bf16.mxu0 %v4561
    %5417 = vmatpush1.bf16.msra.mxu0 %v4560
    %5418 = vmatprep.subr.bf16.mxu0 %v4568
    %5419 = vmatpush1.bf16.msra.mxu0 %v4567
    %5420 = vmatprep.subr.bf16.mxu0 %v4575
    %5421 = vmatpush1.bf16.msra.mxu0 %v4574
    %5422 = vmatprep.subr.bf16.mxu0 %v4582
    %5423 = vmatpush1.bf16.msra.mxu0 %v4581
    %5424 = vmatprep.subr.bf16.mxu0 %v4589
    %5425 = vmatpush1.bf16.msra.mxu0 %v4588
    %5426 = vmatprep.subr.bf16.mxu0 %v4596
    %5427 = vmatpush1.bf16.msra.mxu0 %v4595
    %5428 = vmatprep.subr.bf16.mxu0 %v4603
    %5429 = vmatpush1.bf16.msra.mxu0 %v4602
    %5430 = vmatprep.subr.bf16.mxu0 %v4610
    %5431 = vmatpush1.bf16.msra.mxu0 %v4609
    %5432 = vmatprep.mubr.bf16.mxu0 %v2540
    %5433 = vmatmul.mubr.bf16.gmra.mrb[0].mxu0 %v2539
    %v5434 = vpop.f32.mrb[0].mxu0
    %v5435 = vadd.f32 %v3064, %v5434
    %v5436 = vpop.f32.mrb[0].mxu0
    %v5437 = vadd.f32 %v3068, %v5436
    %v5438 = vpop.f32.mrb[0].mxu0
    %v5439 = vpop.f32.mrb[0].mxu0
    %5440 = vdwg.mxu0
    %5441 = vmatprep.subr.bf16.mxu0 %v4617
    %5442 = vmatpush1.bf16.msra.mxu0 %v4616
    %5443 = vmatprep.subr.bf16.mxu0 %v4624
    %5444 = vmatpush1.bf16.msra.mxu0 %v4623
    %5445 = vmatprep.subr.bf16.mxu0 %v4631
    %5446 = vmatpush1.bf16.msra.mxu0 %v4630
    %5447 = vmatprep.subr.bf16.mxu0 %v4638
    %5448 = vmatpush1.bf16.msra.mxu0 %v4637
    %5449 = vmatprep.subr.bf16.mxu0 %v4645
    %5450 = vmatpush1.bf16.msra.mxu0 %v4644
    %5451 = vmatprep.subr.bf16.mxu0 %v4652
    %5452 = vmatpush1.bf16.msra.mxu0 %v4651
    %5453 = vmatprep.subr.bf16.mxu0 %v4659
    %5454 = vmatpush1.bf16.msra.mxu0 %v4658
    %5455 = vmatprep.subr.bf16.mxu0 %v4666
    %5456 = vmatpush1.bf16.msra.mxu0 %v4665
    %5457 = vmatprep.subr.bf16.mxu0 %v4673
    %5458 = vmatpush1.bf16.msra.mxu0 %v4672
    %5459 = vmatprep.subr.bf16.mxu0 %v4680
    %5460 = vmatpush1.bf16.msra.mxu0 %v4679
    %5461 = vmatprep.subr.bf16.mxu0 %v4687
    %5462 = vmatpush1.bf16.msra.mxu0 %v4686
    %5463 = vmatprep.subr.bf16.mxu0 %v4694
    %5464 = vmatpush1.bf16.msra.mxu0 %v4693
    %5465 = vmatprep.subr.bf16.mxu0 %v4701
    %5466 = vmatpush1.bf16.msra.mxu0 %v4700
    %5467 = vmatprep.subr.bf16.mxu0 %v4708
    %5468 = vmatpush1.bf16.msra.mxu0 %v4707
    %5469 = vmatprep.subr.bf16.mxu0 %v4715
    %5470 = vmatpush1.bf16.msra.mxu0 %v4714
    %5471 = vmatprep.subr.bf16.mxu0 %v4722
    %5472 = vmatpush1.bf16.msra.mxu0 %v4721
    %5473 = vmatprep.mubr.bf16.mxu0 %v2542
    %5474 = vmatmul.mubr.bf16.gmra.mrb[0].mxu0 %v2541
    %v5475 = vpop.f32.mrb[0].mxu0
    %v5476 = vadd.f32 %v5435, %v5475
    %v5477 = vpop.f32.mrb[0].mxu0
    %v5478 = vadd.f32 %v5437, %v5477
    %v5479 = vpop.f32.mrb[0].mxu0
    %v5480 = vpop.f32.mrb[0].mxu0
    %5481 = vdwg.mxu0
    %5482 = vmatprep.subr.bf16.mxu0 %v4729
    %5483 = vmatpush1.bf16.msra.mxu0 %v4728
    %5484 = vmatprep.subr.bf16.mxu0 %v4736
    %5485 = vmatpush1.bf16.msra.mxu0 %v4735
    %5486 = vmatprep.subr.bf16.mxu0 %v4743
    %5487 = vmatpush1.bf16.msra.mxu0 %v4742
    %5488 = vmatprep.subr.bf16.mxu0 %v4750
    %5489 = vmatpush1.bf16.msra.mxu0 %v4749
    %5490 = vmatprep.subr.bf16.mxu0 %v4757
    %5491 = vmatpush1.bf16.msra.mxu0 %v4756
    %5492 = vmatprep.subr.bf16.mxu0 %v4764
    %5493 = vmatpush1.bf16.msra.mxu0 %v4763
    %5494 = vmatprep.subr.bf16.mxu0 %v4771
    %5495 = vmatpush1.bf16.msra.mxu0 %v4770
    %5496 = vmatprep.subr.bf16.mxu0 %v4778
    %5497 = vmatpush1.bf16.msra.mxu0 %v4777
    %5498 = vmatprep.subr.bf16.mxu0 %v4785
    %5499 = vmatpush1.bf16.msra.mxu0 %v4784
    %5500 = vmatprep.subr.bf16.mxu0 %v4792
    %5501 = vmatpush1.bf16.msra.mxu0 %v4791
    %5502 = vmatprep.subr.bf16.mxu0 %v4799
    %5503 = vmatpush1.bf16.msra.mxu0 %v4798
    %5504 = vmatprep.subr.bf16.mxu0 %v4806
    %5505 = vmatpush1.bf16.msra.mxu0 %v4805
    %5506 = vmatprep.subr.bf16.mxu0 %v4813
    %5507 = vmatpush1.bf16.msra.mxu0 %v4812
    %5508 = vmatprep.subr.bf16.mxu0 %v4820
    %5509 = vmatpush1.bf16.msra.mxu0 %v4819
    %5510 = vmatprep.subr.bf16.mxu0 %v4827
    %5511 = vmatpush1.bf16.msra.mxu0 %v4826
    %5512 = vmatprep.subr.bf16.mxu0 %v4834
    %5513 = vmatpush1.bf16.msra.mxu0 %v4833
    %5514 = vmatprep.mubr.bf16.mxu0 %v2544
    %5515 = vmatmul.mubr.bf16.gmra.mrb[0].mxu0 %v2543
    %v5516 = vpop.f32.mrb[0].mxu0
    %v5517 = vadd.f32 %v5476, %v5516
    %v5518 = vpop.f32.mrb[0].mxu0
    %v5519 = vadd.f32 %v5478, %v5518
    %v5520 = vpop.f32.mrb[0].mxu0
    %v5521 = vpop.f32.mrb[0].mxu0
    %5522 = vdwg.mxu0
    %5523 = vmatprep.subr.bf16.mxu0 %v4841
    %5524 = vmatpush1.bf16.msra.mxu0 %v4840
    %5525 = vmatprep.subr.bf16.mxu0 %v4848
    %5526 = vmatpush1.bf16.msra.mxu0 %v4847
    %5527 = vmatprep.subr.bf16.mxu0 %v4855
    %5528 = vmatpush1.bf16.msra.mxu0 %v4854
    %5529 = vmatprep.subr.bf16.mxu0 %v4862
    %5530 = vmatpush1.bf16.msra.mxu0 %v4861
    %5531 = vmatprep.subr.bf16.mxu0 %v4869
    %5532 = vmatpush1.bf16.msra.mxu0 %v4868
    %5533 = vmatprep.subr.bf16.mxu0 %v4876
    %5534 = vmatpush1.bf16.msra.mxu0 %v4875
    %5535 = vmatprep.subr.bf16.mxu0 %v4883
    %5536 = vmatpush1.bf16.msra.mxu0 %v4882
    %5537 = vmatprep.subr.bf16.mxu0 %v4890
    %5538 = vmatpush1.bf16.msra.mxu0 %v4889
    %5539 = vmatprep.subr.bf16.mxu0 %v4897
    %5540 = vmatpush1.bf16.msra.mxu0 %v4896
    %5541 = vmatprep.subr.bf16.mxu0 %v4904
    %5542 = vmatpush1.bf16.msra.mxu0 %v4903
    %5543 = vmatprep.subr.bf16.mxu0 %v4911
    %5544 = vmatpush1.bf16.msra.mxu0 %v4910
    %5545 = vmatprep.subr.bf16.mxu0 %v4918
    %5546 = vmatpush1.bf16.msra.mxu0 %v4917
    %5547 = vmatprep.subr.bf16.mxu0 %v4925
    %5548 = vmatpush1.bf16.msra.mxu0 %v4924
    %5549 = vmatprep.subr.bf16.mxu0 %v4932
    %5550 = vmatpush1.bf16.msra.mxu0 %v4931
    %5551 = vmatprep.subr.bf16.mxu0 %v4939
    %5552 = vmatpush1.bf16.msra.mxu0 %v4938
    %5553 = vmatprep.subr.bf16.mxu0 %v4946
    %5554 = vmatpush1.bf16.msra.mxu0 %v4945
    %5555 = vmatprep.mubr.bf16.mxu0 %v2546
    %5556 = vmatmul.mubr.bf16.gmra.mrb[0].mxu0 %v2545
    %v5557 = vpop.f32.mrb[0].mxu0
    %v5558 = vadd.f32 %v5517, %v5557
    %v5559 = vpop.f32.mrb[0].mxu0
    %v5560 = vadd.f32 %v5519, %v5559
    %v5561 = vpop.f32.mrb[0].mxu0
    %v5562 = vpop.f32.mrb[0].mxu0
    %5563 = vdwg.mxu0
    %5564 = vmatprep.subr.bf16.mxu0 %v4507
    %5565 = vmatpush1.bf16.msra.mxu0 %v4506
    %5566 = vmatprep.subr.bf16.mxu0 %v4514
    %5567 = vmatpush1.bf16.msra.mxu0 %v4513
    %5568 = vmatprep.subr.bf16.mxu0 %v4521
    %5569 = vmatpush1.bf16.msra.mxu0 %v4520
    %5570 = vmatprep.subr.bf16.mxu0 %v4528
    %5571 = vmatpush1.bf16.msra.mxu0 %v4527
    %5572 = vmatprep.subr.bf16.mxu0 %v4535
    %5573 = vmatpush1.bf16.msra.mxu0 %v4534
    %5574 = vmatprep.subr.bf16.mxu0 %v4542
    %5575 = vmatpush1.bf16.msra.mxu0 %v4541
    %5576 = vmatprep.subr.bf16.mxu0 %v4549
    %5577 = vmatpush1.bf16.msra.mxu0 %v4548
    %5578 = vmatprep.subr.bf16.mxu0 %v4556
    %5579 = vmatpush1.bf16.msra.mxu0 %v4555
    %5580 = vmatprep.subr.bf16.mxu0 %v4563
    %5581 = vmatpush1.bf16.msra.mxu0 %v4562
    %5582 = vmatprep.subr.bf16.mxu0 %v4570
    %5583 = vmatpush1.bf16.msra.mxu0 %v4569
    %5584 = vmatprep.subr.bf16.mxu0 %v4577
    %5585 = vmatpush1.bf16.msra.mxu0 %v4576
    %5586 = vmatprep.subr.bf16.mxu0 %v4584
    %5587 = vmatpush1.bf16.msra.mxu0 %v4583
    %5588 = vmatprep.subr.bf16.mxu0 %v4591
    %5589 = vmatpush1.bf16.msra.mxu0 %v4590
    %5590 = vmatprep.subr.bf16.mxu0 %v4598
    %5591 = vmatpush1.bf16.msra.mxu0 %v4597
    %5592 = vmatprep.subr.bf16.mxu0 %v4605
    %5593 = vmatpush1.bf16.msra.mxu0 %v4604
    %5594 = vmatprep.subr.bf16.mxu0 %v4612
    %5595 = vmatpush1.bf16.msra.mxu0 %v4611
    %5596 = vmatprep.mubr.bf16.mxu0 %v2540
    %5597 = vmatmul.mubr.bf16.gmra.mrb[0].mxu0 %v2539
    %v5598 = vpop.f32.mrb[0].mxu0
    %v5599 = vadd.f32 %v3072, %v5598
    %v5600 = vpop.f32.mrb[0].mxu0
    %v5601 = vadd.f32 %v3076, %v5600
    %v5602 = vpop.f32.mrb[0].mxu0
    %v5603 = vpop.f32.mrb[0].mxu0
    %5604 = vdwg.mxu0
    %5605 = vmatprep.subr.bf16.mxu0 %v4619
    %5606 = vmatpush1.bf16.msra.mxu0 %v4618
    %5607 = vmatprep.subr.bf16.mxu0 %v4626
    %5608 = vmatpush1.bf16.msra.mxu0 %v4625
    %5609 = vmatprep.subr.bf16.mxu0 %v4633
    %5610 = vmatpush1.bf16.msra.mxu0 %v4632
    %5611 = vmatprep.subr.bf16.mxu0 %v4640
    %5612 = vmatpush1.bf16.msra.mxu0 %v4639
    %5613 = vmatprep.subr.bf16.mxu0 %v4647
    %5614 = vmatpush1.bf16.msra.mxu0 %v4646
    %5615 = vmatprep.subr.bf16.mxu0 %v4654
    %5616 = vmatpush1.bf16.msra.mxu0 %v4653
    %5617 = vmatprep.subr.bf16.mxu0 %v4661
    %5618 = vmatpush1.bf16.msra.mxu0 %v4660
    %5619 = vmatprep.subr.bf16.mxu0 %v4668
    %5620 = vmatpush1.bf16.msra.mxu0 %v4667
    %5621 = vmatprep.subr.bf16.mxu0 %v4675
    %5622 = vmatpush1.bf16.msra.mxu0 %v4674
    %5623 = vmatprep.subr.bf16.mxu0 %v4682
    %5624 = vmatpush1.bf16.msra.mxu0 %v4681
    %5625 = vmatprep.subr.bf16.mxu0 %v4689
    %5626 = vmatpush1.bf16.msra.mxu0 %v4688
    %5627 = vmatprep.subr.bf16.mxu0 %v4696
    %5628 = vmatpush1.bf16.msra.mxu0 %v4695
    %5629 = vmatprep.subr.bf16.mxu0 %v4703
    %5630 = vmatpush1.bf16.msra.mxu0 %v4702
    %5631 = vmatprep.subr.bf16.mxu0 %v4710
    %5632 = vmatpush1.bf16.msra.mxu0 %v4709
    %5633 = vmatprep.subr.bf16.mxu0 %v4717
    %5634 = vmatpush1.bf16.msra.mxu0 %v4716
    %5635 = vmatprep.subr.bf16.mxu0 %v4724
    %5636 = vmatpush1.bf16.msra.mxu0 %v4723
    %5637 = vmatprep.mubr.bf16.mxu0 %v2542
    %5638 = vmatmul.mubr.bf16.gmra.mrb[0].mxu0 %v2541
    %v5639 = vpop.f32.mrb[0].mxu0
    %v5640 = vadd.f32 %v5599, %v5639
    %v5641 = vpop.f32.mrb[0].mxu0
    %v5642 = vadd.f32 %v5601, %v5641
    %v5643 = vpop.f32.mrb[0].mxu0
    %v5644 = vpop.f32.mrb[0].mxu0
    %5645 = vdwg.mxu0
    %5646 = vmatprep.subr.bf16.mxu0 %v4731
    %5647 = vmatpush1.bf16.msra.mxu0 %v4730
    %5648 = vmatprep.subr.bf16.mxu0 %v4738
    %5649 = vmatpush1.bf16.msra.mxu0 %v4737
    %5650 = vmatprep.subr.bf16.mxu0 %v4745
    %5651 = vmatpush1.bf16.msra.mxu0 %v4744
    %5652 = vmatprep.subr.bf16.mxu0 %v4752
    %5653 = vmatpush1.bf16.msra.mxu0 %v4751
    %5654 = vmatprep.subr.bf16.mxu0 %v4759
    %5655 = vmatpush1.bf16.msra.mxu0 %v4758
    %5656 = vmatprep.subr.bf16.mxu0 %v4766
    %5657 = vmatpush1.bf16.msra.mxu0 %v4765
    %5658 = vmatprep.subr.bf16.mxu0 %v4773
    %5659 = vmatpush1.bf16.msra.mxu0 %v4772
    %5660 = vmatprep.subr.bf16.mxu0 %v4780
    %5661 = vmatpush1.bf16.msra.mxu0 %v4779
    %5662 = vmatprep.subr.bf16.mxu0 %v4787
    %5663 = vmatpush1.bf16.msra.mxu0 %v4786
    %5664 = vmatprep.subr.bf16.mxu0 %v4794
    %5665 = vmatpush1.bf16.msra.mxu0 %v4793
    %5666 = vmatprep.subr.bf16.mxu0 %v4801
    %5667 = vmatpush1.bf16.msra.mxu0 %v4800
    %5668 = vmatprep.subr.bf16.mxu0 %v4808
    %5669 = vmatpush1.bf16.msra.mxu0 %v4807
    %5670 = vmatprep.subr.bf16.mxu0 %v4815
    %5671 = vmatpush1.bf16.msra.mxu0 %v4814
    %5672 = vmatprep.subr.bf16.mxu0 %v4822
    %5673 = vmatpush1.bf16.msra.mxu0 %v4821
    %5674 = vmatprep.subr.bf16.mxu0 %v4829
    %5675 = vmatpush1.bf16.msra.mxu0 %v4828
    %5676 = vmatprep.subr.bf16.mxu0 %v4836
    %5677 = vmatpush1.bf16.msra.mxu0 %v4835
    %5678 = vmatprep.mubr.bf16.mxu0 %v2544
    %5679 = vmatmul.mubr.bf16.gmra.mrb[0].mxu0 %v2543
    %v5680 = vpop.f32.mrb[0].mxu0
    %v5681 = vadd.f32 %v5640, %v5680
    %v5682 = vpop.f32.mrb[0].mxu0
    %v5683 = vadd.f32 %v5642, %v5682
    %v5684 = vpop.f32.mrb[0].mxu0
    %v5685 = vpop.f32.mrb[0].mxu0
    %5686 = vdwg.mxu0
    %5687 = vmatprep.subr.bf16.mxu0 %v4843
    %5688 = vmatpush1.bf16.msra.mxu0 %v4842
    %5689 = vmatprep.subr.bf16.mxu0 %v4850
    %5690 = vmatpush1.bf16.msra.mxu0 %v4849
    %5691 = vmatprep.subr.bf16.mxu0 %v4857
    %5692 = vmatpush1.bf16.msra.mxu0 %v4856
    %5693 = vmatprep.subr.bf16.mxu0 %v4864
    %5694 = vmatpush1.bf16.msra.mxu0 %v4863
    %5695 = vmatprep.subr.bf16.mxu0 %v4871
    %5696 = vmatpush1.bf16.msra.mxu0 %v4870
    %5697 = vmatprep.subr.bf16.mxu0 %v4878
    %5698 = vmatpush1.bf16.msra.mxu0 %v4877
    %5699 = vmatprep.subr.bf16.mxu0 %v4885
    %5700 = vmatpush1.bf16.msra.mxu0 %v4884
    %5701 = vmatprep.subr.bf16.mxu0 %v4892
    %5702 = vmatpush1.bf16.msra.mxu0 %v4891
    %5703 = vmatprep.subr.bf16.mxu0 %v4899
    %5704 = vmatpush1.bf16.msra.mxu0 %v4898
    %5705 = vmatprep.subr.bf16.mxu0 %v4906
    %5706 = vmatpush1.bf16.msra.mxu0 %v4905
    %5707 = vmatprep.subr.bf16.mxu0 %v4913
    %5708 = vmatpush1.bf16.msra.mxu0 %v4912
    %5709 = vmatprep.subr.bf16.mxu0 %v4920
    %5710 = vmatpush1.bf16.msra.mxu0 %v4919
    %5711 = vmatprep.subr.bf16.mxu0 %v4927
    %5712 = vmatpush1.bf16.msra.mxu0 %v4926
    %5713 = vmatprep.subr.bf16.mxu0 %v4934
    %5714 = vmatpush1.bf16.msra.mxu0 %v4933
    %5715 = vmatprep.subr.bf16.mxu0 %v4941
    %5716 = vmatpush1.bf16.msra.mxu0 %v4940
    %5717 = vmatprep.subr.bf16.mxu0 %v4948
    %5718 = vmatpush1.bf16.msra.mxu0 %v4947
    %5719 = vmatprep.mubr.bf16.mxu0 %v2546
    %5720 = vmatmul.mubr.bf16.gmra.mrb[0].mxu0 %v2545
    %v5721 = vpop.f32.mrb[0].mxu0
    %v5722 = vadd.f32 %v5681, %v5721
    %v5723 = vpop.f32.mrb[0].mxu0
    %v5724 = vadd.f32 %v5683, %v5723
    %v5725 = vpop.f32.mrb[0].mxu0
    %v5726 = vpop.f32.mrb[0].mxu0
    %5727 = vdwg.mxu0
    %5728 = vmatprep.subr.bf16.mxu0 %v4509
    %5729 = vmatpush1.bf16.msra.mxu0 %v4508
    %5730 = vmatprep.subr.bf16.mxu0 %v4516
    %5731 = vmatpush1.bf16.msra.mxu0 %v4515
    %5732 = vmatprep.subr.bf16.mxu0 %v4523
    %5733 = vmatpush1.bf16.msra.mxu0 %v4522
    %5734 = vmatprep.subr.bf16.mxu0 %v4530
    %5735 = vmatpush1.bf16.msra.mxu0 %v4529
    %5736 = vmatprep.subr.bf16.mxu0 %v4537
    %5737 = vmatpush1.bf16.msra.mxu0 %v4536
    %5738 = vmatprep.subr.bf16.mxu0 %v4544
    %5739 = vmatpush1.bf16.msra.mxu0 %v4543
    %5740 = vmatprep.subr.bf16.mxu0 %v4551
    %5741 = vmatpush1.bf16.msra.mxu0 %v4550
    %5742 = vmatprep.subr.bf16.mxu0 %v4558
    %5743 = vmatpush1.bf16.msra.mxu0 %v4557
    %5744 = vmatprep.subr.bf16.mxu0 %v4565
    %5745 = vmatpush1.bf16.msra.mxu0 %v4564
    %5746 = vmatprep.subr.bf16.mxu0 %v4572
    %5747 = vmatpush1.bf16.msra.mxu0 %v4571
    %5748 = vmatprep.subr.bf16.mxu0 %v4579
    %5749 = vmatpush1.bf16.msra.mxu0 %v4578
    %5750 = vmatprep.subr.bf16.mxu0 %v4586
    %5751 = vmatpush1.bf16.msra.mxu0 %v4585
    %5752 = vmatprep.subr.bf16.mxu0 %v4593
    %5753 = vmatpush1.bf16.msra.mxu0 %v4592
    %5754 = vmatprep.subr.bf16.mxu0 %v4600
    %5755 = vmatpush1.bf16.msra.mxu0 %v4599
    %5756 = vmatprep.subr.bf16.mxu0 %v4607
    %5757 = vmatpush1.bf16.msra.mxu0 %v4606
    %5758 = vmatprep.subr.bf16.mxu0 %v4614
    %5759 = vmatpush1.bf16.msra.mxu0 %v4613
    %5760 = vmatprep.mubr.bf16.mxu0 %v2540
    %5761 = vmatmul.mubr.bf16.gmra.mrb[0].mxu0 %v2539
    %v5762 = vpop.f32.mrb[0].mxu0
    %v5763 = vadd.f32 %v3080, %v5762
    %v5764 = vpop.f32.mrb[0].mxu0
    %v5765 = vadd.f32 %v3084, %v5764
    %v5766 = vpop.f32.mrb[0].mxu0
    %v5767 = vpop.f32.mrb[0].mxu0
    %5768 = vdwg.mxu0
    %5769 = vmatprep.subr.bf16.mxu0 %v4621
    %5770 = vmatpush1.bf16.msra.mxu0 %v4620
    %5771 = vmatprep.subr.bf16.mxu0 %v4628
    %5772 = vmatpush1.bf16.msra.mxu0 %v4627
    %5773 = vmatprep.subr.bf16.mxu0 %v4635
    %5774 = vmatpush1.bf16.msra.mxu0 %v4634
    %5775 = vmatprep.subr.bf16.mxu0 %v4642
    %5776 = vmatpush1.bf16.msra.mxu0 %v4641
    %5777 = vmatprep.subr.bf16.mxu0 %v4649
    %5778 = vmatpush1.bf16.msra.mxu0 %v4648
    %5779 = vmatprep.subr.bf16.mxu0 %v4656
    %5780 = vmatpush1.bf16.msra.mxu0 %v4655
    %5781 = vmatprep.subr.bf16.mxu0 %v4663
    %5782 = vmatpush1.bf16.msra.mxu0 %v4662
    %5783 = vmatprep.subr.bf16.mxu0 %v4670
    %5784 = vmatpush1.bf16.msra.mxu0 %v4669
    %5785 = vmatprep.subr.bf16.mxu0 %v4677
    %5786 = vmatpush1.bf16.msra.mxu0 %v4676
    %5787 = vmatprep.subr.bf16.mxu0 %v4684
    %5788 = vmatpush1.bf16.msra.mxu0 %v4683
    %5789 = vmatprep.subr.bf16.mxu0 %v4691
    %5790 = vmatpush1.bf16.msra.mxu0 %v4690
    %5791 = vmatprep.subr.bf16.mxu0 %v4698
    %5792 = vmatpush1.bf16.msra.mxu0 %v4697
    %5793 = vmatprep.subr.bf16.mxu0 %v4705
    %5794 = vmatpush1.bf16.msra.mxu0 %v4704
    %5795 = vmatprep.subr.bf16.mxu0 %v4712
    %5796 = vmatpush1.bf16.msra.mxu0 %v4711
    %5797 = vmatprep.subr.bf16.mxu0 %v4719
    %5798 = vmatpush1.bf16.msra.mxu0 %v4718
    %5799 = vmatprep.subr.bf16.mxu0 %v4726
    %5800 = vmatpush1.bf16.msra.mxu0 %v4725
    %5801 = vmatprep.mubr.bf16.mxu0 %v2542
    %5802 = vmatmul.mubr.bf16.gmra.mrb[0].mxu0 %v2541
    %v5803 = vpop.f32.mrb[0].mxu0
    %v5804 = vadd.f32 %v5763, %v5803
    %v5805 = vpop.f32.mrb[0].mxu0
    %v5806 = vadd.f32 %v5765, %v5805
    %v5807 = vpop.f32.mrb[0].mxu0
    %v5808 = vpop.f32.mrb[0].mxu0
    %5809 = vdwg.mxu0
    %5810 = vmatprep.subr.bf16.mxu0 %v4733
    %5811 = vmatpush1.bf16.msra.mxu0 %v4732
    %5812 = vmatprep.subr.bf16.mxu0 %v4740
    %5813 = vmatpush1.bf16.msra.mxu0 %v4739
    %5814 = vmatprep.subr.bf16.mxu0 %v4747
    %5815 = vmatpush1.bf16.msra.mxu0 %v4746
    %5816 = vmatprep.subr.bf16.mxu0 %v4754
    %5817 = vmatpush1.bf16.msra.mxu0 %v4753
    %5818 = vmatprep.subr.bf16.mxu0 %v4761
    %5819 = vmatpush1.bf16.msra.mxu0 %v4760
    %5820 = vmatprep.subr.bf16.mxu0 %v4768
    %5821 = vmatpush1.bf16.msra.mxu0 %v4767
    %5822 = vmatprep.subr.bf16.mxu0 %v4775
    %5823 = vmatpush1.bf16.msra.mxu0 %v4774
    %5824 = vmatprep.subr.bf16.mxu0 %v4782
    %5825 = vmatpush1.bf16.msra.mxu0 %v4781
    %5826 = vmatprep.subr.bf16.mxu0 %v4789
    %5827 = vmatpush1.bf16.msra.mxu0 %v4788
    %5828 = vmatprep.subr.bf16.mxu0 %v4796
    %5829 = vmatpush1.bf16.msra.mxu0 %v4795
    %5830 = vmatprep.subr.bf16.mxu0 %v4803
    %5831 = vmatpush1.bf16.msra.mxu0 %v4802
    %5832 = vmatprep.subr.bf16.mxu0 %v4810
    %5833 = vmatpush1.bf16.msra.mxu0 %v4809
    %5834 = vmatprep.subr.bf16.mxu0 %v4817
    %5835 = vmatpush1.bf16.msra.mxu0 %v4816
    %5836 = vmatprep.subr.bf16.mxu0 %v4824
    %5837 = vmatpush1.bf16.msra.mxu0 %v4823
    %5838 = vmatprep.subr.bf16.mxu0 %v4831
    %5839 = vmatpush1.bf16.msra.mxu0 %v4830
    %5840 = vmatprep.subr.bf16.mxu0 %v4838
    %5841 = vmatpush1.bf16.msra.mxu0 %v4837
    %5842 = vmatprep.mubr.bf16.mxu0 %v2544
    %5843 = vmatmul.mubr.bf16.gmra.mrb[0].mxu0 %v2543
    %v5844 = vpop.f32.mrb[0].mxu0
    %v5845 = vadd.f32 %v5804, %v5844
    %v5846 = vpop.f32.mrb[0].mxu0
    %v5847 = vadd.f32 %v5806, %v5846
    %v5848 = vpop.f32.mrb[0].mxu0
    %v5849 = vpop.f32.mrb[0].mxu0
    %5850 = vdwg.mxu0
    %5851 = vmatprep.subr.bf16.mxu0 %v4845
    %5852 = vmatpush1.bf16.msra.mxu0 %v4844
    %5853 = vmatprep.subr.bf16.mxu0 %v4852
    %5854 = vmatpush1.bf16.msra.mxu0 %v4851
    %5855 = vmatprep.subr.bf16.mxu0 %v4859
    %5856 = vmatpush1.bf16.msra.mxu0 %v4858
    %5857 = vmatprep.subr.bf16.mxu0 %v4866
    %5858 = vmatpush1.bf16.msra.mxu0 %v4865
    %5859 = vmatprep.subr.bf16.mxu0 %v4873
    %5860 = vmatpush1.bf16.msra.mxu0 %v4872
    %5861 = vmatprep.subr.bf16.mxu0 %v4880
    %5862 = vmatpush1.bf16.msra.mxu0 %v4879
    %5863 = vmatprep.subr.bf16.mxu0 %v4887
    %5864 = vmatpush1.bf16.msra.mxu0 %v4886
    %5865 = vmatprep.subr.bf16.mxu0 %v4894
    %5866 = vmatpush1.bf16.msra.mxu0 %v4893
    %5867 = vmatprep.subr.bf16.mxu0 %v4901
    %5868 = vmatpush1.bf16.msra.mxu0 %v4900
    %5869 = vmatprep.subr.bf16.mxu0 %v4908
    %5870 = vmatpush1.bf16.msra.mxu0 %v4907
    %5871 = vmatprep.subr.bf16.mxu0 %v4915
    %5872 = vmatpush1.bf16.msra.mxu0 %v4914
    %5873 = vmatprep.subr.bf16.mxu0 %v4922
    %5874 = vmatpush1.bf16.msra.mxu0 %v4921
    %5875 = vmatprep.subr.bf16.mxu0 %v4929
    %5876 = vmatpush1.bf16.msra.mxu0 %v4928
    %5877 = vmatprep.subr.bf16.mxu0 %v4936
    %5878 = vmatpush1.bf16.msra.mxu0 %v4935
    %5879 = vmatprep.subr.bf16.mxu0 %v4943
    %5880 = vmatpush1.bf16.msra.mxu0 %v4942
    %5881 = vmatprep.subr.bf16.mxu0 %v4950
    %5882 = vmatpush1.bf16.msra.mxu0 %v4949
    %5883 = vmatprep.mubr.bf16.mxu0 %v2546
    %5884 = vmatmul.mubr.bf16.gmra.mrb[0].mxu0 %v2545
    %v5885 = vpop.f32.mrb[0].mxu0
    %v5886 = vadd.f32 %v5845, %v5885
    %v5887 = vpop.f32.mrb[0].mxu0
    %v5888 = vadd.f32 %v5847, %v5887
    %v5889 = vpop.f32.mrb[0].mxu0
    %v5890 = vpop.f32.mrb[0].mxu0
    %5891 = vdwg.mxu0
    %5892 = vmatprep.subr.bf16.mxu0 0
    %5893 = vmatpush1.bf16.msra.mxu0 %v4510
    %5894 = vmatprep.subr.bf16.mxu0 0
    %5895 = vmatpush1.bf16.msra.mxu0 %v4517
    %5896 = vmatprep.subr.bf16.mxu0 0
    %5897 = vmatpush1.bf16.msra.mxu0 %v4524
    %5898 = vmatprep.subr.bf16.mxu0 0
    %5899 = vmatpush1.bf16.msra.mxu0 %v4531
    %5900 = vmatprep.subr.bf16.mxu0 0
    %5901 = vmatpush1.bf16.msra.mxu0 %v4538
    %5902 = vmatprep.subr.bf16.mxu0 0
    %5903 = vmatpush1.bf16.msra.mxu0 %v4545
    %5904 = vmatprep.subr.bf16.mxu0 0
    %5905 = vmatpush1.bf16.msra.mxu0 %v4552
    %5906 = vmatprep.subr.bf16.mxu0 0
    %5907 = vmatpush1.bf16.msra.mxu0 %v4559
    %5908 = vmatprep.subr.bf16.mxu0 0
    %5909 = vmatpush1.bf16.msra.mxu0 %v4566
    %5910 = vmatprep.subr.bf16.mxu0 0
    %5911 = vmatpush1.bf16.msra.mxu0 %v4573
    %5912 = vmatprep.subr.bf16.mxu0 0
    %5913 = vmatpush1.bf16.msra.mxu0 %v4580
    %5914 = vmatprep.subr.bf16.mxu0 0
    %5915 = vmatpush1.bf16.msra.mxu0 %v4587
    %5916 = vmatprep.subr.bf16.mxu0 0
    %5917 = vmatpush1.bf16.msra.mxu0 %v4594
    %5918 = vmatprep.subr.bf16.mxu0 0
    %5919 = vmatpush1.bf16.msra.mxu0 %v4601
    %5920 = vmatprep.subr.bf16.mxu0 0
    %5921 = vmatpush1.bf16.msra.mxu0 %v4608
    %5922 = vmatprep.subr.bf16.mxu0 0
    %5923 = vmatpush1.bf16.msra.mxu0 %v4615
    %5924 = vmatprep.mubr.bf16.mxu0 %v2540
    %5925 = vmatmul.mubr.bf16.gmra.mrb[0].mxu0 %v2539
    %v5926 = vpop.f32.mrb[0].mxu0
    %v5927 = vadd.f32 %v3088, %v5926
    %v5928 = vpop.f32.mrb[0].mxu0
    %v5929 = vpop.f32.mrb[0].mxu0
    %v5930 = vpop.f32.mrb[0].mxu0
    %5931 = vdwg.mxu0
    %5932 = vmatprep.subr.bf16.mxu0 0
    %5933 = vmatpush1.bf16.msra.mxu0 %v4622
    %5934 = vmatprep.subr.bf16.mxu0 0
    %5935 = vmatpush1.bf16.msra.mxu0 %v4629
    %5936 = vmatprep.subr.bf16.mxu0 0
    %5937 = vmatpush1.bf16.msra.mxu0 %v4636
    %5938 = vmatprep.subr.bf16.mxu0 0
    %5939 = vmatpush1.bf16.msra.mxu0 %v4643
    %5940 = vmatprep.subr.bf16.mxu0 0
    %5941 = vmatpush1.bf16.msra.mxu0 %v4650
    %5942 = vmatprep.subr.bf16.mxu0 0
    %5943 = vmatpush1.bf16.msra.mxu0 %v4657
    %5944 = vmatprep.subr.bf16.mxu0 0
    %5945 = vmatpush1.bf16.msra.mxu0 %v4664
    %5946 = vmatprep.subr.bf16.mxu0 0
    %5947 = vmatpush1.bf16.msra.mxu0 %v4671
    %5948 = vmatprep.subr.bf16.mxu0 0
    %5949 = vmatpush1.bf16.msra.mxu0 %v4678
    %5950 = vmatprep.subr.bf16.mxu0 0
    %5951 = vmatpush1.bf16.msra.mxu0 %v4685
    %5952 = vmatprep.subr.bf16.mxu0 0
    %5953 = vmatpush1.bf16.msra.mxu0 %v4692
    %5954 = vmatprep.subr.bf16.mxu0 0
    %5955 = vmatpush1.bf16.msra.mxu0 %v4699
    %5956 = vmatprep.subr.bf16.mxu0 0
    %5957 = vmatpush1.bf16.msra.mxu0 %v4706
    %5958 = vmatprep.subr.bf16.mxu0 0
    %5959 = vmatpush1.bf16.msra.mxu0 %v4713
    %5960 = vmatprep.subr.bf16.mxu0 0
    %5961 = vmatpush1.bf16.msra.mxu0 %v4720
    %5962 = vmatprep.subr.bf16.mxu0 0
    %5963 = vmatpush1.bf16.msra.mxu0 %v4727
    %5964 = vmatprep.mubr.bf16.mxu0 %v2542
    %5965 = vmatmul.mubr.bf16.gmra.mrb[0].mxu0 %v2541
    %v5966 = vpop.f32.mrb[0].mxu0
    %v5967 = vadd.f32 %v5927, %v5966
    %v5968 = vpop.f32.mrb[0].mxu0
    %v5969 = vpop.f32.mrb[0].mxu0
    %v5970 = vpop.f32.mrb[0].mxu0
    %5971 = vdwg.mxu0
    %5972 = vmatprep.subr.bf16.mxu0 0
    %5973 = vmatpush1.bf16.msra.mxu0 %v4734
    %5974 = vmatprep.subr.bf16.mxu0 0
    %5975 = vmatpush1.bf16.msra.mxu0 %v4741
    %5976 = vmatprep.subr.bf16.mxu0 0
    %5977 = vmatpush1.bf16.msra.mxu0 %v4748
    %5978 = vmatprep.subr.bf16.mxu0 0
    %5979 = vmatpush1.bf16.msra.mxu0 %v4755
    %5980 = vmatprep.subr.bf16.mxu0 0
    %5981 = vmatpush1.bf16.msra.mxu0 %v4762
    %5982 = vmatprep.subr.bf16.mxu0 0
    %5983 = vmatpush1.bf16.msra.mxu0 %v4769
    %5984 = vmatprep.subr.bf16.mxu0 0
    %5985 = vmatpush1.bf16.msra.mxu0 %v4776
    %5986 = vmatprep.subr.bf16.mxu0 0
    %5987 = vmatpush1.bf16.msra.mxu0 %v4783
    %5988 = vmatprep.subr.bf16.mxu0 0
    %5989 = vmatpush1.bf16.msra.mxu0 %v4790
    %5990 = vmatprep.subr.bf16.mxu0 0
    %5991 = vmatpush1.bf16.msra.mxu0 %v4797
    %5992 = vmatprep.subr.bf16.mxu0 0
    %5993 = vmatpush1.bf16.msra.mxu0 %v4804
    %5994 = vmatprep.subr.bf16.mxu0 0
    %5995 = vmatpush1.bf16.msra.mxu0 %v4811
    %5996 = vmatprep.subr.bf16.mxu0 0
    %5997 = vmatpush1.bf16.msra.mxu0 %v4818
    %5998 = vmatprep.subr.bf16.mxu0 0
    %5999 = vmatpush1.bf16.msra.mxu0 %v4825
    %6000 = vmatprep.subr.bf16.mxu0 0
    %6001 = vmatpush1.bf16.msra.mxu0 %v4832
    %6002 = vmatprep.subr.bf16.mxu0 0
    %6003 = vmatpush1.bf16.msra.mxu0 %v4839
    %6004 = vmatprep.mubr.bf16.mxu0 %v2544
    %6005 = vmatmul.mubr.bf16.gmra.mrb[0].mxu0 %v2543
    %v6006 = vpop.f32.mrb[0].mxu0
    %v6007 = vadd.f32 %v5967, %v6006
    %v6008 = vpop.f32.mrb[0].mxu0
    %v6009 = vpop.f32.mrb[0].mxu0
    %v6010 = vpop.f32.mrb[0].mxu0
    %6011 = vdwg.mxu0
    %6012 = vmatprep.subr.bf16.mxu0 0
    %6013 = vmatpush1.bf16.msra.mxu0 %v4846
    %6014 = vmatprep.subr.bf16.mxu0 0
    %6015 = vmatpush1.bf16.msra.mxu0 %v4853
    %6016 = vmatprep.subr.bf16.mxu0 0
    %6017 = vmatpush1.bf16.msra.mxu0 %v4860
    %6018 = vmatprep.subr.bf16.mxu0 0
    %6019 = vmatpush1.bf16.msra.mxu0 %v4867
    %6020 = vmatprep.subr.bf16.mxu0 0
    %6021 = vmatpush1.bf16.msra.mxu0 %v4874
    %6022 = vmatprep.subr.bf16.mxu0 0
    %6023 = vmatpush1.bf16.msra.mxu0 %v4881
    %6024 = vmatprep.subr.bf16.mxu0 0
    %6025 = vmatpush1.bf16.msra.mxu0 %v4888
    %6026 = vmatprep.subr.bf16.mxu0 0
    %6027 = vmatpush1.bf16.msra.mxu0 %v4895
    %6028 = vmatprep.subr.bf16.mxu0 0
    %6029 = vmatpush1.bf16.msra.mxu0 %v4902
    %6030 = vmatprep.subr.bf16.mxu0 0
    %6031 = vmatpush1.bf16.msra.mxu0 %v4909
    %6032 = vmatprep.subr.bf16.mxu0 0
    %6033 = vmatpush1.bf16.msra.mxu0 %v4916
    %6034 = vmatprep.subr.bf16.mxu0 0
    %6035 = vmatpush1.bf16.msra.mxu0 %v4923
    %6036 = vmatprep.subr.bf16.mxu0 0
    %6037 = vmatpush1.bf16.msra.mxu0 %v4930
    %6038 = vmatprep.subr.bf16.mxu0 0
    %6039 = vmatpush1.bf16.msra.mxu0 %v4937
    %6040 = vmatprep.subr.bf16.mxu0 0
    %6041 = vmatpush1.bf16.msra.mxu0 %v4944
    %6042 = vmatprep.subr.bf16.mxu0 0
    %6043 = vmatpush1.bf16.msra.mxu0 %v4951
    %6044 = vmatprep.mubr.bf16.mxu0 %v2546
    %6045 = vmatmul.mubr.bf16.gmra.mrb[0].mxu0 %v2545
    %v6046 = vpop.f32.mrb[0].mxu0
    %v6047 = vadd.f32 %v6007, %v6046
    %v6048 = vpop.f32.mrb[0].mxu0
    %v6049 = vpop.f32.mrb[0].mxu0
    %v6050 = vpop.f32.mrb[0].mxu0
    %6051 = vdwg.mxu0
    %v6052 = vmul.f32 %v5558, 0.5
    %v6053 = vmul.f32 %v5560, 0.5
    %v6054 = vmul.f32 %v5722, 0.5
    %v6055 = vmul.f32 %v5724, 0.5
    %v6056 = vmul.f32 %v5886, 0.5
    %v6057 = vmul.f32 %v5888, 0.5
    %v6058 = vmul.f32 %v6047, 0.5
    %v6059 = vtanh.pop %v6052
    %v6060 = vtanh.pop %v6053
    %v6061 = vtanh.pop %v6054
    %v6062 = vtanh.pop %v6055
    %v6063 = vtanh.pop %v6056
    %v6064 = vtanh.pop %v6057
    %v6065 = vtanh.pop %v6058
    %v6066 = vadd.f32 %v6059, 1.0
    %v6067 = vadd.f32 %v6060, 1.0
    %v6068 = vadd.f32 %v6061, 1.0
    %v6069 = vadd.f32 %v6062, 1.0
    %v6070 = vadd.f32 %v6063, 1.0
    %v6071 = vadd.f32 %v6064, 1.0
    %v6072 = vadd.f32 %v6065, 1.0
    %v6073 = vmul.f32 %v6066, 0.5
    %v6074 = vmul.f32 %v6067, 0.5
    %v6075 = vmul.f32 %v6068, 0.5
    %v6076 = vmul.f32 %v6069, 0.5
    %v6077 = vmul.f32 %v6070, 0.5
    %v6078 = vmul.f32 %v6071, 0.5
    %v6079 = vmul.f32 %v6072, 0.5
    %v6087 = vcombine.low %v6073, %v6074
    %v6088 = vcombine.low %v6075, %v6076
    %v6090 = vunpack.c.l.s4 1983009808
    %v6091 = vunpack.c.0.s8 %v6090
    %v6092 = vlaneseq
    %v6093 = vshrl.u32 %v6092, 7
    %v6094 = vsub.s32 %v6091, %v6093
    %v6095 = vrot.slane %v6087, %v6094
    %v6097 = vunpack.c.l.s4 1983009808
    %v6098 = vunpack.c.0.s8 %v6097
    %v6099 = vlaneseq
    %v6100 = vshrl.u32 %v6099, 7
    %v6101 = vsub.s32 %v6098, %v6100
    %v6102 = vrot.slane %v6088, %v6101
    %v6103 = vcombine.low %v6095, %v6102
    %v6104 = vcombine.low %v6077, %v6078
    %v6106 = vunpack.c.l.s4 1983009808
    %v6107 = vunpack.c.0.s8 %v6106
    %v6108 = vlaneseq
    %v6109 = vshrl.u32 %v6108, 7
    %v6110 = vsub.s32 %v6107, %v6109
    %v6111 = vrot.slane %v6104, %v6110
    %v6113 = vunpack.c.l.s4 1983009808
    %v6114 = vunpack.c.0.s8 %v6113
    %v6115 = vlaneseq
    %v6116 = vshrl.u32 %v6115, 7
    %v6117 = vsub.s32 %v6114, %v6116
    %v6118 = vrot.slane %v6079, %v6117
    %v6119 = vcombine.low %v6111, %v6118
    %6122 = vst [vmem:[#allocation4] sm:$0xff] %v6103
    %vm6123 = vcmask 1041408
    %vm6124 = vcmask 1043458
    %vm6125 = vmor %vm6124, %vm6123
    %vm6126 = vcmask 128004
    %vm6127 = vmor %vm6126, %vm6125
    %6128 = vst.msk [vmem:[#allocation4 + $0x8] sm:$0x3f] %vm6127, %v6119
    // Predicated region
    $region46: #{net_forward.5} parent=1 // pred_check
      _
    $region47: #{net_forward.5} parent=1 // pred_check_branch
      %6130 = sbr.rel (0) target = $region49
    $region48: #{net_forward.5} parent=1 // pred_region
      %s6132 = ssub.s32 32, 32
      %6133 = vsyncadd [#allocation3], %s6132
      %s6135 = sshll.u32 [#allocation2], 4
      %s6136 = int_to_ptr.vmem [resolvable:$true] %s6135
      %6138 = dma.vmem_to_hbm [thread:$0]  %s6136, 32, %s11, [#allocation3]
    $region49: #{net_forward.5} parent=1 // pred_fallthru
      _
    // Predicated region
    $region50: #{net_forward.5} parent=1 // pred_check
      _
    $region51: #{net_forward.5} parent=1 // pred_check_branch
      %6140 = sbr.rel (0) target = $region53
    $region52: #{net_forward.5} parent=1 // pred_region
      %s6142 = ssub.s32 224, 224
      %6143 = vsyncadd [#allocation5], %s6142
      %s6145 = sshll.u32 [#allocation4], 4
      %s6146 = int_to_ptr.vmem [resolvable:$true] %s6145
      %6148 = dma.vmem_to_hbm [thread:$0]  %s6146, 224, %s12, [#allocation5]
    $region53: #{net_forward.5} parent=1 // pred_fallthru
      _
    // Predicated region
    $region54: #{net_forward.5} parent=1 // pred_check
      _
    $region55: #{net_forward.5} parent=1 // pred_check_branch
      %6150 = sbr.rel (0) target = $region57
    $region56: #{net_forward.5} parent=1 // pred_region
      %6151 = dma.done [#allocation3], 32
    $region57: #{net_forward.5} parent=1 // pred_fallthru
      _
    // Predicated region
    $region58: #{net_forward.5} parent=1 // pred_check
      _
    $region59: #{net_forward.5} parent=1 // pred_check_branch
      %6153 = sbr.rel (0) target = $region61
    $region60: #{net_forward.5} parent=1 // pred_region
      %6154 = dma.done [#allocation5], 224
    $region61: #{net_forward.5} parent=1 // pred_fallthru
      _
    %6155 = vsyncpa [#allocation3], 1
    %6156 = vsyncpa [#allocation5], 1

</llo_original>
